<compile_context>
chip_gen: v6e
topology: v6e:2x2x1
jax: 0.10.0
libtpu: 0.0.40
codegen_flags: <defaults>
</compile_context>

<pallas_src>
import math
import numpy as np
import jax
import jax.numpy as jnp
from jax import lax
from jax.experimental import pallas as pl
from jax.experimental.pallas import tpu as pltpu

# ----------------------------- configuration --------------------------------
K_H, K_W = 10, 5
NUM_PERM = 1                      # TODO(synk): grouped conv for num_perm > 1 not implemented
EMBED_DIM = K_H * K_W             # InteractE requires embedding_dim == k_h * k_w (=50)
KERNEL_SIZE = 9
NUM_FILT = 96
NUM_ENTITIES = 128
NUM_RELATIONS = 16
BATCH = 8                         # == 8 sublanes: makes the in-kernel reshape layout-free

H = 2 * K_W                       # conv input height (stack_inp dim 2)  = 10
W = K_H                           # conv input width  (stack_inp dim 3)  = 10
PAD = KERNEL_SIZE // 2            # circular padding                     = 4
HW = H * W                        # conv output spatial positions        = 100
KK = KERNEL_SIZE * KERNEL_SIZE    # flattened receptive field            = 81
F_TOT = NUM_FILT * NUM_PERM       # real conv channels                   = 96
FLAT = F_TOT * HW                 # flat_sz                              = 9600

F_PAD = 128                       # conv channels padded -> lane-dense output
D_PAD = 64                        # embed dim padded     -> clean FC / score shapes

BN_EPS = 1e-5
BN_SCALE = float(1.0 / np.sqrt(1.0 + BN_EPS))   # eval-mode BatchNorm scale


# ------------------------ deterministic chequer perm ------------------------
def chequer_perm(num_perm, k_h, k_w, embed_dim):
    # TODO(synk): Permutator source not provided; standard InteractE chequer
    # interleave with identity entity/relation sub-permutations (deterministic).
    perms = []
    for k in range(num_perm):
        temp, ei, ri = [], 0, 0
        for i in range(k_h):
            for _ in range(k_w):
                ent_first = (i % 2 == 0) if (k % 2 == 0) else (i % 2 == 1)
                if ent_first:
                    temp.append(ei); ei += 1
                    temp.append(ri + embed_dim); ri += 1
                else:
                    temp.append(ri + embed_dim); ri += 1
                    temp.append(ei); ei += 1
        perms.append(temp)
    return jnp.asarray(perms, dtype=jnp.int32)        # [num_perm, 2*embed_dim]


# --------------------- static index: circular pad + im2col -------------------
def _conv_gather_index():
    """idx[p, k]: position inside the 10x10 stacked image feeding output p, tap k
    (circular padding folded in via modular arithmetic)."""
    idx = np.empty((HW, KK), np.int32)
    for oh in range(H):
        for ow in range(W):
            p = oh * W + ow
            for kh in range(KERNEL_SIZE):
                for kw in range(KERNEL_SIZE):
                    r = (oh + kh - PAD) % H
                    c = (ow + kw - PAD) % W
                    idx[p, kh * KERNEL_SIZE + kw] = r * W + c
    return idx


# -------------------- one-time parameter preparation (hoisted) ---------------
def prepare_params(params, perm):
    """Fold BN scales into weights, permute/pad weight layouts, compose the
    chequer-perm + circular-pad + im2col gather index.  Run once at load time."""
    s01 = BN_SCALE * BN_SCALE     # bn0 (input) * bn1 (conv output), conv is linear
    s2 = BN_SCALE                 # bn2 (fc output)

    # Conv filter -> [KK, F_PAD], spatial-major taps, BN folded, zero-padded cols.
    wconv = params["conv_filt"].reshape(F_TOT, KK).T * s01          # [81, 96]
    wconv = jnp.pad(wconv, ((0, 0), (0, F_PAD - F_TOT)))            # [81, 128]

    # FC weight: PyTorch fc_w is [D, FLAT] with FLAT index = f*HW + p (NCHW flatten).
    # Re-lay as [HW, F_PAD, D_PAD] so the kernel's p-batched matmul matches exactly.
    wfc3 = params["fc_w"].reshape(EMBED_DIM, F_TOT, HW).transpose(2, 1, 0) * s2
    wfc3 = jnp.pad(wfc3, ((0, 0), (0, F_PAD - F_TOT), (0, D_PAD - EMBED_DIM)))  # [100,128,64]

    bfc = jnp.pad(params["fc_b"] * s2, (0, D_PAD - EMBED_DIM)).reshape(1, D_PAD)
    ent_t = jnp.pad(params["ent_emb"].T, ((0, D_PAD - EMBED_DIM), (0, 0)))      # [64, E]
    bias = params["bias"].reshape(1, NUM_ENTITIES)

    # comb[b, gather_idx[p,k]] == circularly-padded, chequer-permuted patch value.
    conv_idx = _conv_gather_index()                                  # [HW, KK] into 10x10 image
    perm_np = np.asarray(perm)[0]                                    # [100] into comb's 2D dim
    gather_idx = jnp.asarray(perm_np[conv_idx].reshape(-1), dtype=jnp.int32)    # [HW*KK]

    return {
        "ent_emb": params["ent_emb"], "rel_emb": params["rel_emb"],
        "wconv": wconv, "wfc3": wfc3, "bfc": bfc, "ent_t": ent_t, "bias": bias,
        "gather_idx": gather_idx,
    }


# ------------------------------ fused Pallas kernel ---------------------------
def interacte_fused_kernel(patch_ref, wconv_ref, wfc_ref, bfc_ref, ent_ref, bias_ref, out_ref):
    # Conv as matmul: [HW*B, KK] @ [KK, F_PAD] -> [HW*B, F_PAD] (bn0*bn1 folded in wconv).
    conv = jnp.dot(patch_ref[...], wconv_ref[...], preferred_element_type=jnp.float32)
    conv = jnp.maximum(conv, 0.0)                 # ReLU (feature_map_drop = identity)

    # Rows are p-major / batch-minor with BATCH == 8 (= sublane count), so this
    # split of the leading dim is layout-preserving (no vreg relayout).
    conv3 = conv.reshape(HW, BATCH, F_PAD)        # [100, 8, 128]

    # FC: hid[b,d] = sum_{p,f} conv3[p,b,f] * wfc[p,f,d]  (bn2 folded into wfc/bfc).
    g = lax.dot_general(conv3, wfc_ref[...],
                        dimension_numbers=(((2,), (1,)), ((0,), (0,))),
                        preferred_element_type=jnp.float32)          # [100, 8, 64]
    hid = jnp.maximum(jnp.sum(g, axis=0) + bfc_ref[...], 0.0)        # [8, 64]

    # Entity scores + bias + sigmoid.
    score = jnp.dot(hid, ent_ref[...], preferred_element_type=jnp.float32) + bias_ref[...]
    out_ref[...] = jax.nn.sigmoid(score)          # [8, 128] lane-dense output


_VMEM = pl.BlockSpec(memory_space=pltpu.MemorySpace.VMEM)

_COST = pl.CostEstimate(
    flops=2 * (HW * BATCH * KK * F_PAD          # conv matmul
               + HW * BATCH * F_PAD * D_PAD     # FC batched matmul
               + BATCH * D_PAD * NUM_ENTITIES), # entity score
    transcendentals=BATCH * NUM_ENTITIES,
    bytes_accessed=4 * (HW * BATCH * KK + KK * F_PAD + HW * F_PAD * D_PAD
                        + D_PAD + D_PAD * NUM_ENTITIES + NUM_ENTITIES
                        + BATCH * NUM_ENTITIES),
)


# ------------------------------ forward wrapper -------------------------------
def interacte_forward(e1, rel, prep):
    # Embedding lookups + concat (tiny XLA gathers).
    comb = jnp.concatenate([prep["ent_emb"][e1], prep["rel_emb"][rel]], axis=1)   # [B, 100]
    # chequer perm + circular pad + im2col as ONE gather, then lay rows p-major.
    patches = jnp.take(comb, prep["gather_idx"], axis=1)                          # [B, HW*KK]
    patches = patches.reshape(BATCH, HW, KK).transpose(1, 0, 2).reshape(HW * BATCH, KK)

    # TODO(synk): if BATCH/NUM_ENTITIES grow, shard the conv M dim over the two
    # v7x TensorCores with grid=(2,) + dimension_semantics=("parallel",); at this
    # size a grid only adds per-step overhead.
    # TODO(synk): matmul operands could be cast to bf16 on v6e/v7x for DMA savings;
    # kept f32 to stay safely within the 2e-3 tolerance vs the f32 reference.
    return pl.pallas_call(
        interacte_fused_kernel,
        out_shape=jax.ShapeDtypeStruct((BATCH, NUM_ENTITIES), jnp.float32),
        in_specs=[_VMEM] * 6,
        out_specs=_VMEM,
        cost_estimate=_COST,
    )(patches, prep["wconv"], prep["wfc3"], prep["bfc"], prep["ent_t"], prep["bias"])


# ---------------------------- pure-JAX reference ------------------------------
def reference_forward(e1, rel, params, perm):
    ent_emb = params["ent_emb"]
    comb = jnp.concatenate([ent_emb[e1], params["rel_emb"][rel]], axis=1)
    stack = comb[:, perm].reshape(-1, NUM_PERM, H, W) * BN_SCALE
    padded = jnp.pad(stack, ((0, 0), (0, 0), (PAD, PAD), (PAD, PAD)), mode="wrap")
    x = lax.conv_general_dilated(
        padded, params["conv_filt"], (1, 1), "VALID",
        dimension_numbers=("NCHW", "OIHW", "NCHW"), feature_group_count=NUM_PERM)
    x = jnp.maximum(x * BN_SCALE, 0.0)
    x = x.reshape(-1, FLAT)                                  # NCHW flatten (channel-major)
    x = x @ params["fc_w"].T + params["fc_b"]
    x = jnp.maximum(x * BN_SCALE, 0.0)
    x = x @ ent_emb.T + params["bias"]
    return jax.nn.sigmoid(x)


# ---------------------------------- main --------------------------------------
def _xavier_normal(key, shape, fan_in, fan_out):
    std = math.sqrt(2.0 / (fan_in + fan_out))
    return std * jax.random.normal(key, shape, dtype=jnp.float32)


if __name__ == "__main__":
    key = jax.random.PRNGKey(0)
    k1, k2, k3, k4, k5, k6 = jax.random.split(key, 6)

    params = {
        # padding_idx=0 -> zero row 0
        "ent_emb": _xavier_normal(k1, (NUM_ENTITIES, EMBED_DIM), NUM_ENTITIES, EMBED_DIM).at[0].set(0.0),
        "rel_emb": _xavier_normal(k2, (NUM_RELATIONS, EMBED_DIM), NUM_RELATIONS, EMBED_DIM).at[0].set(0.0),
        "conv_filt": _xavier_normal(
            k3, (F_TOT, 1, KERNEL_SIZE, KERNEL_SIZE), KK, NUM_FILT * KK),
        "fc_w": _xavier_normal(k4, (EMBED_DIM, FLAT), FLAT, EMBED_DIM),
        "fc_b": jnp.zeros((EMBED_DIM,), jnp.float32),
        "bias": jnp.zeros((NUM_ENTITIES,), jnp.float32),
    }
    perm = chequer_perm(NUM_PERM, K_H, K_W, EMBED_DIM)
    prep = prepare_params(params, perm)          # one-time layout / BN-folding work

    e1 = jax.random.randint(k5, (BATCH,), 0, NUM_ENTITIES, dtype=jnp.int32)
    rel = jax.random.randint(k6, (BATCH,), 0, NUM_RELATIONS, dtype=jnp.int32)

    fwd = jax.jit(lambda a, b: interacte_forward(a, b, prep))
    out = jax.block_until_ready(fwd(e1, rel))

    ref = np.asarray(reference_forward(e1, rel, params, perm))
    np.testing.assert_allclose(np.asarray(out), ref, atol=2e-3, rtol=2e-3)
    assert out.shape == (BATCH, NUM_ENTITIES)

    print("KERNEL_OK")
</pallas_src>

<mosaic_0001>
module attributes {stable_mosaic.version = 11 : i64} {
  func.func @interacte_fused_kernel(%arg0: memref<800x81xf32, #tpu.memory_space<vmem>>, %arg1: memref<81x128xf32, #tpu.memory_space<vmem>>, %arg2: memref<100x128x64xf32, #tpu.memory_space<vmem>>, %arg3: memref<1x64xf32, #tpu.memory_space<vmem>>, %arg4: memref<64x128xf32, #tpu.memory_space<vmem>>, %arg5: memref<1x128xf32, #tpu.memory_space<vmem>>, %arg6: memref<8x128xf32, #tpu.memory_space<vmem>>) attributes {dimension_semantics = [], scalar_prefetch = 0 : i64, scratch_operands = 0 : i64, tpu.core_type = #tpu.core_type<tc>} {
    %c0 = arith.constant 0 : index
    %c0_0 = arith.constant 0 : index
    %0 = vector.load %arg0[%c0, %c0_0] : memref<800x81xf32, #tpu.memory_space<vmem>>, vector<800x81xf32>
    %c0_1 = arith.constant 0 : index
    %c0_2 = arith.constant 0 : index
    %1 = vector.load %arg1[%c0_1, %c0_2] : memref<81x128xf32, #tpu.memory_space<vmem>>, vector<81x128xf32>
    %cst = arith.constant dense<0.000000e+00> : vector<800x128xf32>
    %2 = tpu.matmul %0, %1, %cst {dimension_numbers = #tpu.dot_dimension_numbers<[1], [0], [0], [1], [0, 0, 1, 1], [], []>} : vector<800x81xf32>, vector<81x128xf32>, vector<800x128xf32> -> vector<800x128xf32>
    %cst_3 = arith.constant 0.000000e+00 : f32
    %3 = vector.broadcast %cst_3 : f32 to vector<800x128xf32>
    %4 = arith.maximumf %2, %3 : vector<800x128xf32>
    %5 = vector.shape_cast %4 : vector<800x128xf32> to vector<100x8x128xf32>
    %c0_4 = arith.constant 0 : index
    %c0_5 = arith.constant 0 : index
    %c0_6 = arith.constant 0 : index
    %6 = vector.load %arg2[%c0_4, %c0_5, %c0_6] : memref<100x128x64xf32, #tpu.memory_space<vmem>>, vector<100x128x64xf32>
    %cst_7 = arith.constant dense<0.000000e+00> : vector<100x8x64xf32>
    %7 = tpu.matmul %5, %6, %cst_7 {dimension_numbers = #tpu.dot_dimension_numbers<[2], [1], [1], [2], [0, 0, 0, 1, 1, 2], [0], [0]>} : vector<100x8x128xf32>, vector<100x128x64xf32>, vector<100x8x64xf32> -> vector<100x8x64xf32>
    %cst_8 = arith.constant dense<0.000000e+00> : vector<8x64xf32>
    %8 = vector.multi_reduction <add>, %7, %cst_8 [0] : vector<100x8x64xf32> to vector<8x64xf32>
    %c0_9 = arith.constant 0 : index
    %c0_10 = arith.constant 0 : index
    %9 = vector.load %arg3[%c0_9, %c0_10] : memref<1x64xf32, #tpu.memory_space<vmem>>, vector<1x64xf32>
    %10 = vector.broadcast %9 : vector<1x64xf32> to vector<8x64xf32>
    %11 = arith.addf %8, %10 : vector<8x64xf32>
    %cst_11 = arith.constant 0.000000e+00 : f32
    %12 = vector.broadcast %cst_11 : f32 to vector<8x64xf32>
    %13 = arith.maximumf %11, %12 : vector<8x64xf32>
    %c0_12 = arith.constant 0 : index
    %c0_13 = arith.constant 0 : index
    %14 = vector.load %arg4[%c0_12, %c0_13] : memref<64x128xf32, #tpu.memory_space<vmem>>, vector<64x128xf32>
    %cst_14 = arith.constant dense<0.000000e+00> : vector<8x128xf32>
    %15 = tpu.matmul %13, %14, %cst_14 {dimension_numbers = #tpu.dot_dimension_numbers<[1], [0], [0], [1], [0, 0, 1, 1], [], []>} : vector<8x64xf32>, vector<64x128xf32>, vector<8x128xf32> -> vector<8x128xf32>
    %c0_15 = arith.constant 0 : index
    %c0_16 = arith.constant 0 : index
    %16 = vector.load %arg5[%c0_15, %c0_16] : memref<1x128xf32, #tpu.memory_space<vmem>>, vector<1x128xf32>
    %17 = vector.broadcast %16 : vector<1x128xf32> to vector<8x128xf32>
    %18 = arith.addf %15, %17 : vector<8x128xf32>
    %19 = arith.negf %18 : vector<8x128xf32>
    %20 = math.exp %19 : vector<8x128xf32>
    %cst_17 = arith.constant 1.000000e+00 : f32
    %21 = vector.broadcast %cst_17 : f32 to vector<8x128xf32>
    %22 = arith.addf %21, %20 : vector<8x128xf32>
    %23 = arith.divf %21, %22 : vector<8x128xf32>
    %c0_18 = arith.constant 0 : index
    %c0_19 = arith.constant 0 : index
    %24 = vector.load %arg6[%c0_18, %c0_19] : memref<8x128xf32, #tpu.memory_space<vmem>>, vector<8x128xf32>
    tpu.vector_store %arg6[%c0_18, %c0_19], %23 {strides = array<i32>} : memref<8x128xf32, #tpu.memory_space<vmem>>, vector<8x128xf32>,
    return
  }
}

</mosaic_0001>

<llo_original>
// kernel: _lambda_.1
$region0: #{_lambda_.1}
  #allocation0 [shape = 'u32[]', space=smem, size = 0x4, offset = 0x4, fixed_abs, tag = 'smem constant byte address 0x4 - core index']
  #allocation1 [shape = 'u32[144,128]{1,0:T(1,128)}', space=vmem, size = 0x12000, scoped, tag = 'internal scratch']
  %s0 = inlined_call_operand.vmem [shape: f32[800,81], index: 0, kind: input, shape index: {}]
  %s1 = inlined_call_operand.vmem [shape: f32[81,128], index: 1, kind: input, shape index: {}]
  %s2 = inlined_call_operand.vmem [shape: f32[100,128,64], index: 2, kind: input, shape index: {}]
  %s3 = inlined_call_operand.vmem [shape: f32[1,64], index: 3, kind: input, shape index: {}]
  %s4 = inlined_call_operand.vmem [shape: f32[64,128], index: 4, kind: input, shape index: {}]
  %s5 = inlined_call_operand.vmem [shape: f32[1,128], index: 5, kind: input, shape index: {}]
  %s6 = inlined_call_operand.hbm [shape: f32[8,128], index: 6, kind: output, shape index: {}]
  %s7 = sld [smem:[#allocation0]]
  $region34: #{_lambda_.1} parent=0
    _
  %s9 = ssub.s32 1, %s7
  %s10 = scalar_select 0, %s9, %s7
  $region1: #{_lambda_.1} parent=0
    #allocation2 [shape = 'u8[4096]{0}', space=vmem, size = 0x1000, scoped, tag = 'output window, operand 0, single buffered']
    #allocation3 [shape = 's32[1]{0}', space=sflag, size = 0x4, scoped, tag = 'scoped memory for _lambda_.1']
    %11 = vsyncpa [#allocation3], 0
    // Predicated region
    $region2: #{_lambda_.1} parent=1 // pred_check
      _
    $region3: #{_lambda_.1} parent=1 // pred_check_branch
      %13 = sbr.rel (0) target = $region5
    $region4: #{_lambda_.1} parent=1 // pred_region
      _
    $region5: #{_lambda_.1} parent=1 // pred_fallthru
      _
    // Predicated region
    $region6: #{_lambda_.1} parent=1 // pred_check
      _
    $region7: #{_lambda_.1} parent=1 // pred_check_branch
      %15 = sbr.rel (0) target = $region9
    $region8: #{_lambda_.1} parent=1 // pred_region
      _
    $region9: #{_lambda_.1} parent=1 // pred_fallthru
      _
    // Predicated region
    $region10: #{_lambda_.1} parent=1 // pred_check
      _
    $region11: #{_lambda_.1} parent=1 // pred_check_branch
      %17 = sbr.rel (0) target = $region13
    $region12: #{_lambda_.1} parent=1 // pred_region
      _
    $region13: #{_lambda_.1} parent=1 // pred_fallthru
      _
    // Predicated region
    $region14: #{_lambda_.1} parent=1 // pred_check
      _
    $region15: #{_lambda_.1} parent=1 // pred_check_branch
      %19 = sbr.rel (0) target = $region17
    $region16: #{_lambda_.1} parent=1 // pred_region
      _
    $region17: #{_lambda_.1} parent=1 // pred_fallthru
      _
    // Predicated region
    $region18: #{_lambda_.1} parent=1 // pred_check
      _
    $region19: #{_lambda_.1} parent=1 // pred_check_branch
      %21 = sbr.rel (0) target = $region21
    $region20: #{_lambda_.1} parent=1 // pred_region
      _
    $region21: #{_lambda_.1} parent=1 // pred_fallthru
      _
    // Predicated region
    $region22: #{_lambda_.1} parent=1 // pred_check
      _
    $region23: #{_lambda_.1} parent=1 // pred_check_branch
      %23 = sbr.rel (0) target = $region25
    $region24: #{_lambda_.1} parent=1 // pred_region
      _
    $region25: #{_lambda_.1} parent=1 // pred_fallthru
      _
    %v24 = vld [vmem:[%s0] sm:$0xff]
    %v25 = vld [vmem:[%s0 + $0x8] sm:$0xff]
    %v26 = vld [vmem:[%s0 + $0x10] sm:$0xff]
    %v27 = vld [vmem:[%s0 + $0x18] sm:$0xff]
    %v28 = vld [vmem:[%s0 + $0x20] sm:$0xff]
    %v29 = vld [vmem:[%s0 + $0x28] sm:$0xff]
    %v30 = vld [vmem:[%s0 + $0x30] sm:$0xff]
    %v31 = vld [vmem:[%s0 + $0x38] sm:$0xff]
    %v32 = vld [vmem:[%s0 + $0x40] sm:$0xff]
    %v33 = vld [vmem:[%s0 + $0x48] sm:$0xff]
    %v34 = vld [vmem:[%s0 + $0x50] sm:$0xff]
    %v35 = vld [vmem:[%s0 + $0x58] sm:$0xff]
    %v36 = vld [vmem:[%s0 + $0x60] sm:$0xff]
    %v37 = vld [vmem:[%s0 + $0x68] sm:$0xff]
    %v38 = vld [vmem:[%s0 + $0x70] sm:$0xff]
    %v39 = vld [vmem:[%s0 + $0x78] sm:$0xff]
    %v40 = vld [vmem:[%s0 + $0x80] sm:$0xff]
    %v41 = vld [vmem:[%s0 + $0x88] sm:$0xff]
    %v42 = vld [vmem:[%s0 + $0x90] sm:$0xff]
    %v43 = vld [vmem:[%s0 + $0x98] sm:$0xff]
    %v44 = vld [vmem:[%s0 + $0xa0] sm:$0xff]
    %v45 = vld [vmem:[%s0 + $0xa8] sm:$0xff]
    %v46 = vld [vmem:[%s0 + $0xb0] sm:$0xff]
    %v47 = vld [vmem:[%s0 + $0xb8] sm:$0xff]
    %v48 = vld [vmem:[%s0 + $0xc0] sm:$0xff]
    %v49 = vld [vmem:[%s0 + $0xc8] sm:$0xff]
    %v50 = vld [vmem:[%s0 + $0xd0] sm:$0xff]
    %v51 = vld [vmem:[%s0 + $0xd8] sm:$0xff]
    %v52 = vld [vmem:[%s0 + $0xe0] sm:$0xff]
    %v53 = vld [vmem:[%s0 + $0xe8] sm:$0xff]
    %v54 = vld [vmem:[%s0 + $0xf0] sm:$0xff]
    %v55 = vld [vmem:[%s0 + $0xf8] sm:$0xff]
    %v56 = vld [vmem:[%s0 + $0x100] sm:$0xff]
    %v57 = vld [vmem:[%s0 + $0x108] sm:$0xff]
    %v58 = vld [vmem:[%s0 + $0x110] sm:$0xff]
    %v59 = vld [vmem:[%s0 + $0x118] sm:$0xff]
    %v60 = vld [vmem:[%s0 + $0x120] sm:$0xff]
    %v61 = vld [vmem:[%s0 + $0x128] sm:$0xff]
    %v62 = vld [vmem:[%s0 + $0x130] sm:$0xff]
    %v63 = vld [vmem:[%s0 + $0x138] sm:$0xff]
    %v64 = vld [vmem:[%s0 + $0x140] sm:$0xff]
    %v65 = vld [vmem:[%s0 + $0x148] sm:$0xff]
    %v66 = vld [vmem:[%s0 + $0x150] sm:$0xff]
    %v67 = vld [vmem:[%s0 + $0x158] sm:$0xff]
    %v68 = vld [vmem:[%s0 + $0x160] sm:$0xff]
    %v69 = vld [vmem:[%s0 + $0x168] sm:$0xff]
    %v70 = vld [vmem:[%s0 + $0x170] sm:$0xff]
    %v71 = vld [vmem:[%s0 + $0x178] sm:$0xff]
    %v72 = vld [vmem:[%s0 + $0x180] sm:$0xff]
    %v73 = vld [vmem:[%s0 + $0x188] sm:$0xff]
    %v74 = vld [vmem:[%s0 + $0x190] sm:$0xff]
    %v75 = vld [vmem:[%s0 + $0x198] sm:$0xff]
    %v76 = vld [vmem:[%s0 + $0x1a0] sm:$0xff]
    %v77 = vld [vmem:[%s0 + $0x1a8] sm:$0xff]
    %v78 = vld [vmem:[%s0 + $0x1b0] sm:$0xff]
    %v79 = vld [vmem:[%s0 + $0x1b8] sm:$0xff]
    %v80 = vld [vmem:[%s0 + $0x1c0] sm:$0xff]
    %v81 = vld [vmem:[%s0 + $0x1c8] sm:$0xff]
    %v82 = vld [vmem:[%s0 + $0x1d0] sm:$0xff]
    %v83 = vld [vmem:[%s0 + $0x1d8] sm:$0xff]
    %v84 = vld [vmem:[%s0 + $0x1e0] sm:$0xff]
    %v85 = vld [vmem:[%s0 + $0x1e8] sm:$0xff]
    %v86 = vld [vmem:[%s0 + $0x1f0] sm:$0xff]
    %v87 = vld [vmem:[%s0 + $0x1f8] sm:$0xff]
    %v88 = vld [vmem:[%s0 + $0x200] sm:$0xff]
    %v89 = vld [vmem:[%s0 + $0x208] sm:$0xff]
    %v90 = vld [vmem:[%s0 + $0x210] sm:$0xff]
    %v91 = vld [vmem:[%s0 + $0x218] sm:$0xff]
    %v92 = vld [vmem:[%s0 + $0x220] sm:$0xff]
    %v93 = vld [vmem:[%s0 + $0x228] sm:$0xff]
    %v94 = vld [vmem:[%s0 + $0x230] sm:$0xff]
    %v95 = vld [vmem:[%s0 + $0x238] sm:$0xff]
    %v96 = vld [vmem:[%s0 + $0x240] sm:$0xff]
    %v97 = vld [vmem:[%s0 + $0x248] sm:$0xff]
    %v98 = vld [vmem:[%s0 + $0x250] sm:$0xff]
    %v99 = vld [vmem:[%s0 + $0x258] sm:$0xff]
    %v100 = vld [vmem:[%s0 + $0x260] sm:$0xff]
    %v101 = vld [vmem:[%s0 + $0x268] sm:$0xff]
    %v102 = vld [vmem:[%s0 + $0x270] sm:$0xff]
    %v103 = vld [vmem:[%s0 + $0x278] sm:$0xff]
    %v104 = vld [vmem:[%s0 + $0x280] sm:$0xff]
    %v105 = vld [vmem:[%s0 + $0x288] sm:$0xff]
    %v106 = vld [vmem:[%s0 + $0x290] sm:$0xff]
    %v107 = vld [vmem:[%s0 + $0x298] sm:$0xff]
    %v108 = vld [vmem:[%s0 + $0x2a0] sm:$0xff]
    %v109 = vld [vmem:[%s0 + $0x2a8] sm:$0xff]
    %v110 = vld [vmem:[%s0 + $0x2b0] sm:$0xff]
    %v111 = vld [vmem:[%s0 + $0x2b8] sm:$0xff]
    %v112 = vld [vmem:[%s0 + $0x2c0] sm:$0xff]
    %v113 = vld [vmem:[%s0 + $0x2c8] sm:$0xff]
    %v114 = vld [vmem:[%s0 + $0x2d0] sm:$0xff]
    %v115 = vld [vmem:[%s0 + $0x2d8] sm:$0xff]
    %v116 = vld [vmem:[%s0 + $0x2e0] sm:$0xff]
    %v117 = vld [vmem:[%s0 + $0x2e8] sm:$0xff]
    %v118 = vld [vmem:[%s0 + $0x2f0] sm:$0xff]
    %v119 = vld [vmem:[%s0 + $0x2f8] sm:$0xff]
    %v120 = vld [vmem:[%s0 + $0x300] sm:$0xff]
    %v121 = vld [vmem:[%s0 + $0x308] sm:$0xff]
    %v122 = vld [vmem:[%s0 + $0x310] sm:$0xff]
    %v123 = vld [vmem:[%s0 + $0x318] sm:$0xff]
    %v124 = vld [vmem:[%s1] sm:$0xff]
    %v125 = vld [vmem:[%s1 + $0x8] sm:$0xff]
    %v126 = vld [vmem:[%s1 + $0x10] sm:$0xff]
    %v127 = vld [vmem:[%s1 + $0x18] sm:$0xff]
    %v128 = vld [vmem:[%s1 + $0x20] sm:$0xff]
    %v129 = vld [vmem:[%s1 + $0x28] sm:$0xff]
    %v130 = vld [vmem:[%s1 + $0x30] sm:$0xff]
    %v131 = vld [vmem:[%s1 + $0x38] sm:$0xff]
    %v132 = vld [vmem:[%s1 + $0x40] sm:$0xff]
    %v133 = vld [vmem:[%s1 + $0x48] sm:$0xff]
    %v134 = vld [vmem:[%s1 + $0x50] sm:$0x1]
    %vm135 = vcmask 662528
    %v137 = vsel %vm135, %v24, 0
    %v140 = vsel %vm135, %v25, 0
    %v143 = vsel %vm135, %v26, 0
    %v146 = vsel %vm135, %v27, 0
    %v149 = vsel %vm135, %v28, 0
    %v152 = vsel %vm135, %v29, 0
    %v155 = vsel %vm135, %v30, 0
    %v158 = vsel %vm135, %v31, 0
    %v161 = vsel %vm135, %v32, 0
    %v164 = vsel %vm135, %v33, 0
    %v167 = vsel %vm135, %v34, 0
    %v170 = vsel %vm135, %v35, 0
    %v173 = vsel %vm135, %v36, 0
    %v176 = vsel %vm135, %v37, 0
    %v179 = vsel %vm135, %v38, 0
    %v182 = vsel %vm135, %v39, 0
    %v185 = vsel %vm135, %v40, 0
    %v188 = vsel %vm135, %v41, 0
    %v191 = vsel %vm135, %v42, 0
    %v194 = vsel %vm135, %v43, 0
    %v197 = vsel %vm135, %v44, 0
    %v200 = vsel %vm135, %v45, 0
    %v203 = vsel %vm135, %v46, 0
    %v206 = vsel %vm135, %v47, 0
    %v209 = vsel %vm135, %v48, 0
    %v212 = vsel %vm135, %v49, 0
    %v215 = vsel %vm135, %v50, 0
    %v218 = vsel %vm135, %v51, 0
    %v221 = vsel %vm135, %v52, 0
    %v224 = vsel %vm135, %v53, 0
    %v227 = vsel %vm135, %v54, 0
    %v230 = vsel %vm135, %v55, 0
    %v233 = vsel %vm135, %v56, 0
    %v236 = vsel %vm135, %v57, 0
    %v239 = vsel %vm135, %v58, 0
    %v242 = vsel %vm135, %v59, 0
    %v245 = vsel %vm135, %v60, 0
    %v248 = vsel %vm135, %v61, 0
    %v251 = vsel %vm135, %v62, 0
    %v254 = vsel %vm135, %v63, 0
    %v257 = vsel %vm135, %v64, 0
    %v260 = vsel %vm135, %v65, 0
    %v263 = vsel %vm135, %v66, 0
    %v266 = vsel %vm135, %v67, 0
    %v269 = vsel %vm135, %v68, 0
    %v272 = vsel %vm135, %v69, 0
    %v275 = vsel %vm135, %v70, 0
    %v278 = vsel %vm135, %v71, 0
    %v281 = vsel %vm135, %v72, 0
    %v284 = vsel %vm135, %v73, 0
    %v287 = vsel %vm135, %v74, 0
    %v290 = vsel %vm135, %v75, 0
    %v293 = vsel %vm135, %v76, 0
    %v296 = vsel %vm135, %v77, 0
    %v299 = vsel %vm135, %v78, 0
    %v302 = vsel %vm135, %v79, 0
    %v305 = vsel %vm135, %v80, 0
    %v308 = vsel %vm135, %v81, 0
    %v311 = vsel %vm135, %v82, 0
    %v314 = vsel %vm135, %v83, 0
    %v317 = vsel %vm135, %v84, 0
    %v320 = vsel %vm135, %v85, 0
    %v323 = vsel %vm135, %v86, 0
    %v326 = vsel %vm135, %v87, 0
    %v329 = vsel %vm135, %v88, 0
    %v332 = vsel %vm135, %v89, 0
    %v335 = vsel %vm135, %v90, 0
    %v338 = vsel %vm135, %v91, 0
    %v341 = vsel %vm135, %v92, 0
    %v344 = vsel %vm135, %v93, 0
    %v347 = vsel %vm135, %v94, 0
    %v350 = vsel %vm135, %v95, 0
    %v353 = vsel %vm135, %v96, 0
    %v356 = vsel %vm135, %v97, 0
    %v359 = vsel %vm135, %v98, 0
    %v362 = vsel %vm135, %v99, 0
    %v365 = vsel %vm135, %v100, 0
    %v368 = vsel %vm135, %v101, 0
    %v371 = vsel %vm135, %v102, 0
    %v374 = vsel %vm135, %v103, 0
    %v377 = vsel %vm135, %v104, 0
    %v380 = vsel %vm135, %v105, 0
    %v383 = vsel %vm135, %v106, 0
    %v386 = vsel %vm135, %v107, 0
    %v389 = vsel %vm135, %v108, 0
    %v392 = vsel %vm135, %v109, 0
    %v395 = vsel %vm135, %v110, 0
    %v398 = vsel %vm135, %v111, 0
    %v401 = vsel %vm135, %v112, 0
    %v404 = vsel %vm135, %v113, 0
    %v407 = vsel %vm135, %v114, 0
    %v410 = vsel %vm135, %v115, 0
    %v413 = vsel %vm135, %v116, 0
    %v416 = vsel %vm135, %v117, 0
    %v419 = vsel %vm135, %v118, 0
    %v422 = vsel %vm135, %v119, 0
    %v425 = vsel %vm135, %v120, 0
    %v428 = vsel %vm135, %v121, 0
    %v431 = vsel %vm135, %v122, 0
    %v434 = vsel %vm135, %v123, 0
    %vm436 = vcmask 1040384
    %v438 = vsel %vm436, %v134, 0
    %440 = vmatprep.subr.mxu0 0.0
    %441 = vmatpush1.msra.mxu0 0.0
    %442 = vmatprep.subr.mxu0 0.0
    %443 = vmatpush1.msra.mxu0 0.0
    %444 = vmatprep.subr.mxu0 0.0
    %445 = vmatpush1.msra.mxu0 0.0
    %446 = vmatprep.subr.mxu0 0.0
    %447 = vmatpush1.msra.mxu0 0.0
    %448 = vmatprep.subr.mxu0 0.0
    %449 = vmatpush1.msra.mxu0 0.0
    %450 = vmatprep.subr.mxu0 0.0
    %451 = vmatpush1.msra.mxu0 %v438
    %452 = vmatprep.subr.mxu0 0.0
    %453 = vmatpush1.msra.mxu0 %v133
    %454 = vmatprep.subr.mxu0 0.0
    %455 = vmatpush1.msra.mxu0 %v132
    %456 = vmatprep.subr.mxu0 0.0
    %457 = vmatpush1.msra.mxu0 %v131
    %458 = vmatprep.subr.mxu0 0.0
    %459 = vmatpush1.msra.mxu0 %v130
    %460 = vmatprep.subr.mxu0 0.0
    %461 = vmatpush1.msra.mxu0 %v129
    %462 = vmatprep.subr.mxu0 0.0
    %463 = vmatpush1.msra.mxu0 %v128
    %464 = vmatprep.subr.mxu0 0.0
    %465 = vmatpush1.msra.mxu0 %v127
    %466 = vmatprep.subr.mxu0 0.0
    %467 = vmatpush1.msra.mxu0 %v126
    %468 = vmatprep.subr.mxu0 0.0
    %469 = vmatpush1.msra.mxu0 %v125
    %470 = vmatprep.subr.mxu0 0.0
    %471 = vmatpush1.msra.mxu0 %v124
    %472 = vmatprep.subr.mxu0 0.0
    %473 = vmatpush2.msra.mxu0 0.0
    %474 = vmatprep.subr.mxu0 0.0
    %475 = vmatpush2.msra.mxu0 0.0
    %476 = vmatprep.subr.mxu0 0.0
    %477 = vmatpush2.msra.mxu0 0.0
    %478 = vmatprep.subr.mxu0 0.0
    %479 = vmatpush2.msra.mxu0 0.0
    %480 = vmatprep.subr.mxu0 0.0
    %481 = vmatpush2.msra.mxu0 0.0
    %482 = vmatprep.subr.mxu0 0.0
    %483 = vmatpush2.msra.mxu0 0.0
    %484 = vmatprep.subr.mxu0 0.0
    %485 = vmatpush2.msra.mxu0 0.0
    %486 = vmatprep.subr.mxu0 0.0
    %487 = vmatpush2.msra.mxu0 0.0
    %488 = vmatprep.subr.mxu0 0.0
    %489 = vmatpush2.msra.mxu0 0.0
    %490 = vmatprep.subr.mxu0 0.0
    %491 = vmatpush2.msra.mxu0 0.0
    %492 = vmatprep.subr.mxu0 0.0
    %493 = vmatpush2.msra.mxu0 0.0
    %494 = vmatprep.subr.mxu0 0.0
    %495 = vmatpush2.msra.mxu0 0.0
    %496 = vmatprep.subr.mxu0 0.0
    %497 = vmatpush2.msra.mxu0 0.0
    %498 = vmatprep.subr.mxu0 0.0
    %499 = vmatpush2.msra.mxu0 0.0
    %500 = vmatprep.subr.mxu0 0.0
    %501 = vmatpush2.msra.mxu0 0.0
    %502 = vmatprep.subr.mxu0 0.0
    %503 = vmatpush2.msra.mxu0 0.0
    %504 = vmatprep.mubr.f32.mxu0 0.0
    %505 = vmatmul.mubr.f32.gmra.mxu0 %v137
    %v506 = vpop.f32.mrf.mxu0
    %v507 = vadd.f32 0.0, %v506
    %v508 = vpop.f32.mrf.mxu0
    %509 = vmatprep.mubr.f32.mxu0 0.0
    %510 = vmatmul.mubr.f32.gmra.mxu0 %v140
    %v511 = vpop.f32.mrf.mxu0
    %v512 = vadd.f32 0.0, %v511
    %v513 = vpop.f32.mrf.mxu0
    %514 = vmatprep.mubr.f32.mxu0 0.0
    %515 = vmatmul.mubr.f32.gmra.mxu0 %v143
    %v516 = vpop.f32.mrf.mxu0
    %v517 = vadd.f32 0.0, %v516
    %v518 = vpop.f32.mrf.mxu0
    %519 = vmatprep.mubr.f32.mxu0 0.0
    %520 = vmatmul.mubr.f32.gmra.mxu0 %v146
    %v521 = vpop.f32.mrf.mxu0
    %v522 = vadd.f32 0.0, %v521
    %v523 = vpop.f32.mrf.mxu0
    %524 = vmatprep.mubr.f32.mxu0 0.0
    %525 = vmatmul.mubr.f32.gmra.mxu0 %v149
    %v526 = vpop.f32.mrf.mxu0
    %v527 = vadd.f32 0.0, %v526
    %v528 = vpop.f32.mrf.mxu0
    %529 = vmatprep.mubr.f32.mxu0 0.0
    %530 = vmatmul.mubr.f32.gmra.mxu0 %v152
    %v531 = vpop.f32.mrf.mxu0
    %v532 = vadd.f32 0.0, %v531
    %v533 = vpop.f32.mrf.mxu0
    %534 = vmatprep.mubr.f32.mxu0 0.0
    %535 = vmatmul.mubr.f32.gmra.mxu0 %v155
    %v536 = vpop.f32.mrf.mxu0
    %v537 = vadd.f32 0.0, %v536
    %v538 = vpop.f32.mrf.mxu0
    %539 = vmatprep.mubr.f32.mxu0 0.0
    %540 = vmatmul.mubr.f32.gmra.mxu0 %v158
    %v541 = vpop.f32.mrf.mxu0
    %v542 = vadd.f32 0.0, %v541
    %v543 = vpop.f32.mrf.mxu0
    %544 = vmatprep.mubr.f32.mxu0 0.0
    %545 = vmatmul.mubr.f32.gmra.mxu0 %v161
    %v546 = vpop.f32.mrf.mxu0
    %v547 = vadd.f32 0.0, %v546
    %v548 = vpop.f32.mrf.mxu0
    %549 = vmatprep.mubr.f32.mxu0 0.0
    %550 = vmatmul.mubr.f32.gmra.mxu0 %v164
    %v551 = vpop.f32.mrf.mxu0
    %v552 = vadd.f32 0.0, %v551
    %v553 = vpop.f32.mrf.mxu0
    %554 = vmatprep.mubr.f32.mxu0 0.0
    %555 = vmatmul.mubr.f32.gmra.mxu0 %v167
    %v556 = vpop.f32.mrf.mxu0
    %v557 = vadd.f32 0.0, %v556
    %v558 = vpop.f32.mrf.mxu0
    %559 = vmatprep.mubr.f32.mxu0 0.0
    %560 = vmatmul.mubr.f32.gmra.mxu0 %v170
    %v561 = vpop.f32.mrf.mxu0
    %v562 = vadd.f32 0.0, %v561
    %v563 = vpop.f32.mrf.mxu0
    %564 = vmatprep.mubr.f32.mxu0 0.0
    %565 = vmatmul.mubr.f32.gmra.mxu0 %v173
    %v566 = vpop.f32.mrf.mxu0
    %v567 = vadd.f32 0.0, %v566
    %v568 = vpop.f32.mrf.mxu0
    %569 = vmatprep.mubr.f32.mxu0 0.0
    %570 = vmatmul.mubr.f32.gmra.mxu0 %v176
    %v571 = vpop.f32.mrf.mxu0
    %v572 = vadd.f32 0.0, %v571
    %v573 = vpop.f32.mrf.mxu0
    %574 = vmatprep.mubr.f32.mxu0 0.0
    %575 = vmatmul.mubr.f32.gmra.mxu0 %v179
    %v576 = vpop.f32.mrf.mxu0
    %v577 = vadd.f32 0.0, %v576
    %v578 = vpop.f32.mrf.mxu0
    %579 = vmatprep.mubr.f32.mxu0 0.0
    %580 = vmatmul.mubr.f32.gmra.mxu0 %v182
    %v581 = vpop.f32.mrf.mxu0
    %v582 = vadd.f32 0.0, %v581
    %v583 = vpop.f32.mrf.mxu0
    %584 = vmatprep.mubr.f32.mxu0 0.0
    %585 = vmatmul.mubr.f32.gmra.mxu0 %v185
    %v586 = vpop.f32.mrf.mxu0
    %v587 = vadd.f32 0.0, %v586
    %v588 = vpop.f32.mrf.mxu0
    %589 = vmatprep.mubr.f32.mxu0 0.0
    %590 = vmatmul.mubr.f32.gmra.mxu0 %v188
    %v591 = vpop.f32.mrf.mxu0
    %v592 = vadd.f32 0.0, %v591
    %v593 = vpop.f32.mrf.mxu0
    %594 = vmatprep.mubr.f32.mxu0 0.0
    %595 = vmatmul.mubr.f32.gmra.mxu0 %v191
    %v596 = vpop.f32.mrf.mxu0
    %v597 = vadd.f32 0.0, %v596
    %v598 = vpop.f32.mrf.mxu0
    %599 = vmatprep.mubr.f32.mxu0 0.0
    %600 = vmatmul.mubr.f32.gmra.mxu0 %v194
    %v601 = vpop.f32.mrf.mxu0
    %v602 = vadd.f32 0.0, %v601
    %v603 = vpop.f32.mrf.mxu0
    %604 = vmatprep.mubr.f32.mxu0 0.0
    %605 = vmatmul.mubr.f32.gmra.mxu0 %v197
    %v606 = vpop.f32.mrf.mxu0
    %v607 = vadd.f32 0.0, %v606
    %v608 = vpop.f32.mrf.mxu0
    %609 = vmatprep.mubr.f32.mxu0 0.0
    %610 = vmatmul.mubr.f32.gmra.mxu0 %v200
    %v611 = vpop.f32.mrf.mxu0
    %v612 = vadd.f32 0.0, %v611
    %v613 = vpop.f32.mrf.mxu0
    %614 = vmatprep.mubr.f32.mxu0 0.0
    %615 = vmatmul.mubr.f32.gmra.mxu0 %v203
    %v616 = vpop.f32.mrf.mxu0
    %v617 = vadd.f32 0.0, %v616
    %v618 = vpop.f32.mrf.mxu0
    %619 = vmatprep.mubr.f32.mxu0 0.0
    %620 = vmatmul.mubr.f32.gmra.mxu0 %v206
    %v621 = vpop.f32.mrf.mxu0
    %v622 = vadd.f32 0.0, %v621
    %v623 = vpop.f32.mrf.mxu0
    %624 = vmatprep.mubr.f32.mxu0 0.0
    %625 = vmatmul.mubr.f32.gmra.mxu0 %v209
    %v626 = vpop.f32.mrf.mxu0
    %v627 = vadd.f32 0.0, %v626
    %v628 = vpop.f32.mrf.mxu0
    %629 = vmatprep.mubr.f32.mxu0 0.0
    %630 = vmatmul.mubr.f32.gmra.mxu0 %v212
    %v631 = vpop.f32.mrf.mxu0
    %v632 = vadd.f32 0.0, %v631
    %v633 = vpop.f32.mrf.mxu0
    %634 = vmatprep.mubr.f32.mxu0 0.0
    %635 = vmatmul.mubr.f32.gmra.mxu0 %v215
    %v636 = vpop.f32.mrf.mxu0
    %v637 = vadd.f32 0.0, %v636
    %v638 = vpop.f32.mrf.mxu0
    %639 = vmatprep.mubr.f32.mxu0 0.0
    %640 = vmatmul.mubr.f32.gmra.mxu0 %v218
    %v641 = vpop.f32.mrf.mxu0
    %v642 = vadd.f32 0.0, %v641
    %v643 = vpop.f32.mrf.mxu0
    %644 = vmatprep.mubr.f32.mxu0 0.0
    %645 = vmatmul.mubr.f32.gmra.mxu0 %v221
    %v646 = vpop.f32.mrf.mxu0
    %v647 = vadd.f32 0.0, %v646
    %v648 = vpop.f32.mrf.mxu0
    %649 = vmatprep.mubr.f32.mxu0 0.0
    %650 = vmatmul.mubr.f32.gmra.mxu0 %v224
    %v651 = vpop.f32.mrf.mxu0
    %v652 = vadd.f32 0.0, %v651
    %v653 = vpop.f32.mrf.mxu0
    %654 = vmatprep.mubr.f32.mxu0 0.0
    %655 = vmatmul.mubr.f32.gmra.mxu0 %v227
    %v656 = vpop.f32.mrf.mxu0
    %v657 = vadd.f32 0.0, %v656
    %v658 = vpop.f32.mrf.mxu0
    %659 = vmatprep.mubr.f32.mxu0 0.0
    %660 = vmatmul.mubr.f32.gmra.mxu0 %v230
    %v661 = vpop.f32.mrf.mxu0
    %v662 = vadd.f32 0.0, %v661
    %v663 = vpop.f32.mrf.mxu0
    %664 = vmatprep.mubr.f32.mxu0 0.0
    %665 = vmatmul.mubr.f32.gmra.mxu0 %v233
    %v666 = vpop.f32.mrf.mxu0
    %v667 = vadd.f32 0.0, %v666
    %v668 = vpop.f32.mrf.mxu0
    %669 = vmatprep.mubr.f32.mxu0 0.0
    %670 = vmatmul.mubr.f32.gmra.mxu0 %v236
    %v671 = vpop.f32.mrf.mxu0
    %v672 = vadd.f32 0.0, %v671
    %v673 = vpop.f32.mrf.mxu0
    %674 = vmatprep.mubr.f32.mxu0 0.0
    %675 = vmatmul.mubr.f32.gmra.mxu0 %v239
    %v676 = vpop.f32.mrf.mxu0
    %v677 = vadd.f32 0.0, %v676
    %v678 = vpop.f32.mrf.mxu0
    %679 = vmatprep.mubr.f32.mxu0 0.0
    %680 = vmatmul.mubr.f32.gmra.mxu0 %v242
    %v681 = vpop.f32.mrf.mxu0
    %v682 = vadd.f32 0.0, %v681
    %v683 = vpop.f32.mrf.mxu0
    %684 = vmatprep.mubr.f32.mxu0 0.0
    %685 = vmatmul.mubr.f32.gmra.mxu0 %v245
    %v686 = vpop.f32.mrf.mxu0
    %v687 = vadd.f32 0.0, %v686
    %v688 = vpop.f32.mrf.mxu0
    %689 = vmatprep.mubr.f32.mxu0 0.0
    %690 = vmatmul.mubr.f32.gmra.mxu0 %v248
    %v691 = vpop.f32.mrf.mxu0
    %v692 = vadd.f32 0.0, %v691
    %v693 = vpop.f32.mrf.mxu0
    %694 = vmatprep.mubr.f32.mxu0 0.0
    %695 = vmatmul.mubr.f32.gmra.mxu0 %v251
    %v696 = vpop.f32.mrf.mxu0
    %v697 = vadd.f32 0.0, %v696
    %v698 = vpop.f32.mrf.mxu0
    %699 = vmatprep.mubr.f32.mxu0 0.0
    %700 = vmatmul.mubr.f32.gmra.mxu0 %v254
    %v701 = vpop.f32.mrf.mxu0
    %v702 = vadd.f32 0.0, %v701
    %v703 = vpop.f32.mrf.mxu0
    %704 = vmatprep.mubr.f32.mxu0 0.0
    %705 = vmatmul.mubr.f32.gmra.mxu0 %v257
    %v706 = vpop.f32.mrf.mxu0
    %v707 = vadd.f32 0.0, %v706
    %v708 = vpop.f32.mrf.mxu0
    %709 = vmatprep.mubr.f32.mxu0 0.0
    %710 = vmatmul.mubr.f32.gmra.mxu0 %v260
    %v711 = vpop.f32.mrf.mxu0
    %v712 = vadd.f32 0.0, %v711
    %v713 = vpop.f32.mrf.mxu0
    %714 = vmatprep.mubr.f32.mxu0 0.0
    %715 = vmatmul.mubr.f32.gmra.mxu0 %v263
    %v716 = vpop.f32.mrf.mxu0
    %v717 = vadd.f32 0.0, %v716
    %v718 = vpop.f32.mrf.mxu0
    %719 = vmatprep.mubr.f32.mxu0 0.0
    %720 = vmatmul.mubr.f32.gmra.mxu0 %v266
    %v721 = vpop.f32.mrf.mxu0
    %v722 = vadd.f32 0.0, %v721
    %v723 = vpop.f32.mrf.mxu0
    %724 = vmatprep.mubr.f32.mxu0 0.0
    %725 = vmatmul.mubr.f32.gmra.mxu0 %v269
    %v726 = vpop.f32.mrf.mxu0
    %v727 = vadd.f32 0.0, %v726
    %v728 = vpop.f32.mrf.mxu0
    %729 = vmatprep.mubr.f32.mxu0 0.0
    %730 = vmatmul.mubr.f32.gmra.mxu0 %v272
    %v731 = vpop.f32.mrf.mxu0
    %v732 = vadd.f32 0.0, %v731
    %v733 = vpop.f32.mrf.mxu0
    %734 = vmatprep.mubr.f32.mxu0 0.0
    %735 = vmatmul.mubr.f32.gmra.mxu0 %v275
    %v736 = vpop.f32.mrf.mxu0
    %v737 = vadd.f32 0.0, %v736
    %v738 = vpop.f32.mrf.mxu0
    %739 = vmatprep.mubr.f32.mxu0 0.0
    %740 = vmatmul.mubr.f32.gmra.mxu0 %v278
    %v741 = vpop.f32.mrf.mxu0
    %v742 = vadd.f32 0.0, %v741
    %v743 = vpop.f32.mrf.mxu0
    %744 = vmatprep.mubr.f32.mxu0 0.0
    %745 = vmatmul.mubr.f32.gmra.mxu0 %v281
    %v746 = vpop.f32.mrf.mxu0
    %v747 = vadd.f32 0.0, %v746
    %v748 = vpop.f32.mrf.mxu0
    %749 = vmatprep.mubr.f32.mxu0 0.0
    %750 = vmatmul.mubr.f32.gmra.mxu0 %v284
    %v751 = vpop.f32.mrf.mxu0
    %v752 = vadd.f32 0.0, %v751
    %v753 = vpop.f32.mrf.mxu0
    %754 = vmatprep.mubr.f32.mxu0 0.0
    %755 = vmatmul.mubr.f32.gmra.mxu0 %v287
    %v756 = vpop.f32.mrf.mxu0
    %v757 = vadd.f32 0.0, %v756
    %v758 = vpop.f32.mrf.mxu0
    %759 = vmatprep.mubr.f32.mxu0 0.0
    %760 = vmatmul.mubr.f32.gmra.mxu0 %v290
    %v761 = vpop.f32.mrf.mxu0
    %v762 = vadd.f32 0.0, %v761
    %v763 = vpop.f32.mrf.mxu0
    %764 = vmatprep.mubr.f32.mxu0 0.0
    %765 = vmatmul.mubr.f32.gmra.mxu0 %v293
    %v766 = vpop.f32.mrf.mxu0
    %v767 = vadd.f32 0.0, %v766
    %v768 = vpop.f32.mrf.mxu0
    %769 = vmatprep.mubr.f32.mxu0 0.0
    %770 = vmatmul.mubr.f32.gmra.mxu0 %v296
    %v771 = vpop.f32.mrf.mxu0
    %v772 = vadd.f32 0.0, %v771
    %v773 = vpop.f32.mrf.mxu0
    %774 = vmatprep.mubr.f32.mxu0 0.0
    %775 = vmatmul.mubr.f32.gmra.mxu0 %v299
    %v776 = vpop.f32.mrf.mxu0
    %v777 = vadd.f32 0.0, %v776
    %v778 = vpop.f32.mrf.mxu0
    %779 = vmatprep.mubr.f32.mxu0 0.0
    %780 = vmatmul.mubr.f32.gmra.mxu0 %v302
    %v781 = vpop.f32.mrf.mxu0
    %v782 = vadd.f32 0.0, %v781
    %v783 = vpop.f32.mrf.mxu0
    %784 = vmatprep.mubr.f32.mxu0 0.0
    %785 = vmatmul.mubr.f32.gmra.mxu0 %v305
    %v786 = vpop.f32.mrf.mxu0
    %v787 = vadd.f32 0.0, %v786
    %v788 = vpop.f32.mrf.mxu0
    %789 = vmatprep.mubr.f32.mxu0 0.0
    %790 = vmatmul.mubr.f32.gmra.mxu0 %v308
    %v791 = vpop.f32.mrf.mxu0
    %v792 = vadd.f32 0.0, %v791
    %v793 = vpop.f32.mrf.mxu0
    %794 = vmatprep.mubr.f32.mxu0 0.0
    %795 = vmatmul.mubr.f32.gmra.mxu0 %v311
    %v796 = vpop.f32.mrf.mxu0
    %v797 = vadd.f32 0.0, %v796
    %v798 = vpop.f32.mrf.mxu0
    %799 = vmatprep.mubr.f32.mxu0 0.0
    %800 = vmatmul.mubr.f32.gmra.mxu0 %v314
    %v801 = vpop.f32.mrf.mxu0
    %v802 = vadd.f32 0.0, %v801
    %v803 = vpop.f32.mrf.mxu0
    %804 = vmatprep.mubr.f32.mxu0 0.0
    %805 = vmatmul.mubr.f32.gmra.mxu0 %v317
    %v806 = vpop.f32.mrf.mxu0
    %v807 = vadd.f32 0.0, %v806
    %v808 = vpop.f32.mrf.mxu0
    %809 = vmatprep.mubr.f32.mxu0 0.0
    %810 = vmatmul.mubr.f32.gmra.mxu0 %v320
    %v811 = vpop.f32.mrf.mxu0
    %v812 = vadd.f32 0.0, %v811
    %v813 = vpop.f32.mrf.mxu0
    %814 = vmatprep.mubr.f32.mxu0 0.0
    %815 = vmatmul.mubr.f32.gmra.mxu0 %v323
    %v816 = vpop.f32.mrf.mxu0
    %v817 = vadd.f32 0.0, %v816
    %v818 = vpop.f32.mrf.mxu0
    %819 = vmatprep.mubr.f32.mxu0 0.0
    %820 = vmatmul.mubr.f32.gmra.mxu0 %v326
    %v821 = vpop.f32.mrf.mxu0
    %v822 = vadd.f32 0.0, %v821
    %v823 = vpop.f32.mrf.mxu0
    %824 = vmatprep.mubr.f32.mxu0 0.0
    %825 = vmatmul.mubr.f32.gmra.mxu0 %v329
    %v826 = vpop.f32.mrf.mxu0
    %v827 = vadd.f32 0.0, %v826
    %v828 = vpop.f32.mrf.mxu0
    %829 = vmatprep.mubr.f32.mxu0 0.0
    %830 = vmatmul.mubr.f32.gmra.mxu0 %v332
    %v831 = vpop.f32.mrf.mxu0
    %v832 = vadd.f32 0.0, %v831
    %v833 = vpop.f32.mrf.mxu0
    %834 = vmatprep.mubr.f32.mxu0 0.0
    %835 = vmatmul.mubr.f32.gmra.mxu0 %v335
    %v836 = vpop.f32.mrf.mxu0
    %v837 = vadd.f32 0.0, %v836
    %v838 = vpop.f32.mrf.mxu0
    %839 = vmatprep.mubr.f32.mxu0 0.0
    %840 = vmatmul.mubr.f32.gmra.mxu0 %v338
    %v841 = vpop.f32.mrf.mxu0
    %v842 = vadd.f32 0.0, %v841
    %v843 = vpop.f32.mrf.mxu0
    %844 = vmatprep.mubr.f32.mxu0 0.0
    %845 = vmatmul.mubr.f32.gmra.mxu0 %v341
    %v846 = vpop.f32.mrf.mxu0
    %v847 = vadd.f32 0.0, %v846
    %v848 = vpop.f32.mrf.mxu0
    %849 = vmatprep.mubr.f32.mxu0 0.0
    %850 = vmatmul.mubr.f32.gmra.mxu0 %v344
    %v851 = vpop.f32.mrf.mxu0
    %v852 = vadd.f32 0.0, %v851
    %v853 = vpop.f32.mrf.mxu0
    %854 = vmatprep.mubr.f32.mxu0 0.0
    %855 = vmatmul.mubr.f32.gmra.mxu0 %v347
    %v856 = vpop.f32.mrf.mxu0
    %v857 = vadd.f32 0.0, %v856
    %v858 = vpop.f32.mrf.mxu0
    %859 = vmatprep.mubr.f32.mxu0 0.0
    %860 = vmatmul.mubr.f32.gmra.mxu0 %v350
    %v861 = vpop.f32.mrf.mxu0
    %v862 = vadd.f32 0.0, %v861
    %v863 = vpop.f32.mrf.mxu0
    %864 = vmatprep.mubr.f32.mxu0 0.0
    %865 = vmatmul.mubr.f32.gmra.mxu0 %v353
    %v866 = vpop.f32.mrf.mxu0
    %v867 = vadd.f32 0.0, %v866
    %v868 = vpop.f32.mrf.mxu0
    %869 = vmatprep.mubr.f32.mxu0 0.0
    %870 = vmatmul.mubr.f32.gmra.mxu0 %v356
    %v871 = vpop.f32.mrf.mxu0
    %v872 = vadd.f32 0.0, %v871
    %v873 = vpop.f32.mrf.mxu0
    %874 = vmatprep.mubr.f32.mxu0 0.0
    %875 = vmatmul.mubr.f32.gmra.mxu0 %v359
    %v876 = vpop.f32.mrf.mxu0
    %v877 = vadd.f32 0.0, %v876
    %v878 = vpop.f32.mrf.mxu0
    %879 = vmatprep.mubr.f32.mxu0 0.0
    %880 = vmatmul.mubr.f32.gmra.mxu0 %v362
    %v881 = vpop.f32.mrf.mxu0
    %v882 = vadd.f32 0.0, %v881
    %v883 = vpop.f32.mrf.mxu0
    %884 = vmatprep.mubr.f32.mxu0 0.0
    %885 = vmatmul.mubr.f32.gmra.mxu0 %v365
    %v886 = vpop.f32.mrf.mxu0
    %v887 = vadd.f32 0.0, %v886
    %v888 = vpop.f32.mrf.mxu0
    %889 = vmatprep.mubr.f32.mxu0 0.0
    %890 = vmatmul.mubr.f32.gmra.mxu0 %v368
    %v891 = vpop.f32.mrf.mxu0
    %v892 = vadd.f32 0.0, %v891
    %v893 = vpop.f32.mrf.mxu0
    %894 = vmatprep.mubr.f32.mxu0 0.0
    %895 = vmatmul.mubr.f32.gmra.mxu0 %v371
    %v896 = vpop.f32.mrf.mxu0
    %v897 = vadd.f32 0.0, %v896
    %v898 = vpop.f32.mrf.mxu0
    %899 = vmatprep.mubr.f32.mxu0 0.0
    %900 = vmatmul.mubr.f32.gmra.mxu0 %v374
    %v901 = vpop.f32.mrf.mxu0
    %v902 = vadd.f32 0.0, %v901
    %v903 = vpop.f32.mrf.mxu0
    %904 = vmatprep.mubr.f32.mxu0 0.0
    %905 = vmatmul.mubr.f32.gmra.mxu0 %v377
    %v906 = vpop.f32.mrf.mxu0
    %v907 = vadd.f32 0.0, %v906
    %v908 = vpop.f32.mrf.mxu0
    %909 = vmatprep.mubr.f32.mxu0 0.0
    %910 = vmatmul.mubr.f32.gmra.mxu0 %v380
    %v911 = vpop.f32.mrf.mxu0
    %v912 = vadd.f32 0.0, %v911
    %v913 = vpop.f32.mrf.mxu0
    %914 = vmatprep.mubr.f32.mxu0 0.0
    %915 = vmatmul.mubr.f32.gmra.mxu0 %v383
    %v916 = vpop.f32.mrf.mxu0
    %v917 = vadd.f32 0.0, %v916
    %v918 = vpop.f32.mrf.mxu0
    %919 = vmatprep.mubr.f32.mxu0 0.0
    %920 = vmatmul.mubr.f32.gmra.mxu0 %v386
    %v921 = vpop.f32.mrf.mxu0
    %v922 = vadd.f32 0.0, %v921
    %v923 = vpop.f32.mrf.mxu0
    %924 = vmatprep.mubr.f32.mxu0 0.0
    %925 = vmatmul.mubr.f32.gmra.mxu0 %v389
    %v926 = vpop.f32.mrf.mxu0
    %v927 = vadd.f32 0.0, %v926
    %v928 = vpop.f32.mrf.mxu0
    %929 = vmatprep.mubr.f32.mxu0 0.0
    %930 = vmatmul.mubr.f32.gmra.mxu0 %v392
    %v931 = vpop.f32.mrf.mxu0
    %v932 = vadd.f32 0.0, %v931
    %v933 = vpop.f32.mrf.mxu0
    %934 = vmatprep.mubr.f32.mxu0 0.0
    %935 = vmatmul.mubr.f32.gmra.mxu0 %v395
    %v936 = vpop.f32.mrf.mxu0
    %v937 = vadd.f32 0.0, %v936
    %v938 = vpop.f32.mrf.mxu0
    %939 = vmatprep.mubr.f32.mxu0 0.0
    %940 = vmatmul.mubr.f32.gmra.mxu0 %v398
    %v941 = vpop.f32.mrf.mxu0
    %v942 = vadd.f32 0.0, %v941
    %v943 = vpop.f32.mrf.mxu0
    %944 = vmatprep.mubr.f32.mxu0 0.0
    %945 = vmatmul.mubr.f32.gmra.mxu0 %v401
    %v946 = vpop.f32.mrf.mxu0
    %v947 = vadd.f32 0.0, %v946
    %v948 = vpop.f32.mrf.mxu0
    %949 = vmatprep.mubr.f32.mxu0 0.0
    %950 = vmatmul.mubr.f32.gmra.mxu0 %v404
    %v951 = vpop.f32.mrf.mxu0
    %v952 = vadd.f32 0.0, %v951
    %v953 = vpop.f32.mrf.mxu0
    %954 = vmatprep.mubr.f32.mxu0 0.0
    %955 = vmatmul.mubr.f32.gmra.mxu0 %v407
    %v956 = vpop.f32.mrf.mxu0
    %v957 = vadd.f32 0.0, %v956
    %v958 = vpop.f32.mrf.mxu0
    %959 = vmatprep.mubr.f32.mxu0 0.0
    %960 = vmatmul.mubr.f32.gmra.mxu0 %v410
    %v961 = vpop.f32.mrf.mxu0
    %v962 = vadd.f32 0.0, %v961
    %v963 = vpop.f32.mrf.mxu0
    %964 = vmatprep.mubr.f32.mxu0 0.0
    %965 = vmatmul.mubr.f32.gmra.mxu0 %v413
    %v966 = vpop.f32.mrf.mxu0
    %v967 = vadd.f32 0.0, %v966
    %v968 = vpop.f32.mrf.mxu0
    %969 = vmatprep.mubr.f32.mxu0 0.0
    %970 = vmatmul.mubr.f32.gmra.mxu0 %v416
    %v971 = vpop.f32.mrf.mxu0
    %v972 = vadd.f32 0.0, %v971
    %v973 = vpop.f32.mrf.mxu0
    %974 = vmatprep.mubr.f32.mxu0 0.0
    %975 = vmatmul.mubr.f32.gmra.mxu0 %v419
    %v976 = vpop.f32.mrf.mxu0
    %v977 = vadd.f32 0.0, %v976
    %v978 = vpop.f32.mrf.mxu0
    %979 = vmatprep.mubr.f32.mxu0 0.0
    %980 = vmatmul.mubr.f32.gmra.mxu0 %v422
    %v981 = vpop.f32.mrf.mxu0
    %v982 = vadd.f32 0.0, %v981
    %v983 = vpop.f32.mrf.mxu0
    %984 = vmatprep.mubr.f32.mxu0 0.0
    %985 = vmatmul.mubr.f32.gmra.mxu0 %v425
    %v986 = vpop.f32.mrf.mxu0
    %v987 = vadd.f32 0.0, %v986
    %v988 = vpop.f32.mrf.mxu0
    %989 = vmatprep.mubr.f32.mxu0 0.0
    %990 = vmatmul.mubr.f32.gmra.mxu0 %v428
    %v991 = vpop.f32.mrf.mxu0
    %v992 = vadd.f32 0.0, %v991
    %v993 = vpop.f32.mrf.mxu0
    %994 = vmatprep.mubr.f32.mxu0 0.0
    %995 = vmatmul.mubr.f32.gmra.mxu0 %v431
    %v996 = vpop.f32.mrf.mxu0
    %v997 = vadd.f32 0.0, %v996
    %v998 = vpop.f32.mrf.mxu0
    %999 = vmatprep.mubr.f32.mxu0 0.0
    %1000 = vmatmul.mubr.f32.gmra.mxu0 %v434
    %v1001 = vpop.f32.mrf.mxu0
    %v1002 = vadd.f32 0.0, %v1001
    %v1003 = vpop.f32.mrf.mxu0
    %1004 = vdwg.mxu0
    %v1005 = vmax.f32 %v507, 0.0
    %v1006 = vmax.f32 %v512, 0.0
    %v1007 = vmax.f32 %v517, 0.0
    %v1008 = vmax.f32 %v522, 0.0
    %v1009 = vmax.f32 %v527, 0.0
    %v1010 = vmax.f32 %v532, 0.0
    %v1011 = vmax.f32 %v537, 0.0
    %v1012 = vmax.f32 %v542, 0.0
    %v1013 = vmax.f32 %v547, 0.0
    %v1014 = vmax.f32 %v552, 0.0
    %v1015 = vmax.f32 %v557, 0.0
    %v1016 = vmax.f32 %v562, 0.0
    %v1017 = vmax.f32 %v567, 0.0
    %v1018 = vmax.f32 %v572, 0.0
    %v1019 = vmax.f32 %v577, 0.0
    %v1020 = vmax.f32 %v582, 0.0
    %v1021 = vmax.f32 %v587, 0.0
    %v1022 = vmax.f32 %v592, 0.0
    %v1023 = vmax.f32 %v597, 0.0
    %v1024 = vmax.f32 %v602, 0.0
    %v1025 = vmax.f32 %v607, 0.0
    %v1026 = vmax.f32 %v612, 0.0
    %v1027 = vmax.f32 %v617, 0.0
    %v1028 = vmax.f32 %v622, 0.0
    %v1029 = vmax.f32 %v627, 0.0
    %v1030 = vmax.f32 %v632, 0.0
    %v1031 = vmax.f32 %v637, 0.0
    %v1032 = vmax.f32 %v642, 0.0
    %v1033 = vmax.f32 %v647, 0.0
    %v1034 = vmax.f32 %v652, 0.0
    %v1035 = vmax.f32 %v657, 0.0
    %v1036 = vmax.f32 %v662, 0.0
    %v1037 = vmax.f32 %v667, 0.0
    %v1038 = vmax.f32 %v672, 0.0
    %v1039 = vmax.f32 %v677, 0.0
    %v1040 = vmax.f32 %v682, 0.0
    %v1041 = vmax.f32 %v687, 0.0
    %v1042 = vmax.f32 %v692, 0.0
    %v1043 = vmax.f32 %v697, 0.0
    %v1044 = vmax.f32 %v702, 0.0
    %v1045 = vmax.f32 %v707, 0.0
    %v1046 = vmax.f32 %v712, 0.0
    %v1047 = vmax.f32 %v717, 0.0
    %v1048 = vmax.f32 %v722, 0.0
    %v1049 = vmax.f32 %v727, 0.0
    %v1050 = vmax.f32 %v732, 0.0
    %v1051 = vmax.f32 %v737, 0.0
    %v1052 = vmax.f32 %v742, 0.0
    %v1053 = vmax.f32 %v747, 0.0
    %v1054 = vmax.f32 %v752, 0.0
    %v1055 = vmax.f32 %v757, 0.0
    %v1056 = vmax.f32 %v762, 0.0
    %v1057 = vmax.f32 %v767, 0.0
    %v1058 = vmax.f32 %v772, 0.0
    %v1059 = vmax.f32 %v777, 0.0
    %v1060 = vmax.f32 %v782, 0.0
    %v1061 = vmax.f32 %v787, 0.0
    %v1062 = vmax.f32 %v792, 0.0
    %v1063 = vmax.f32 %v797, 0.0
    %v1064 = vmax.f32 %v802, 0.0
    %v1065 = vmax.f32 %v807, 0.0
    %v1066 = vmax.f32 %v812, 0.0
    %v1067 = vmax.f32 %v817, 0.0
    %v1068 = vmax.f32 %v822, 0.0
    %v1069 = vmax.f32 %v827, 0.0
    %v1070 = vmax.f32 %v832, 0.0
    %v1071 = vmax.f32 %v837, 0.0
    %v1072 = vmax.f32 %v842, 0.0
    %v1073 = vmax.f32 %v847, 0.0
    %v1074 = vmax.f32 %v852, 0.0
    %v1075 = vmax.f32 %v857, 0.0
    %v1076 = vmax.f32 %v862, 0.0
    %v1077 = vmax.f32 %v867, 0.0
    %v1078 = vmax.f32 %v872, 0.0
    %v1079 = vmax.f32 %v877, 0.0
    %v1080 = vmax.f32 %v882, 0.0
    %v1081 = vmax.f32 %v887, 0.0
    %v1082 = vmax.f32 %v892, 0.0
    %v1083 = vmax.f32 %v897, 0.0
    %v1084 = vmax.f32 %v902, 0.0
    %v1085 = vmax.f32 %v907, 0.0
    %v1086 = vmax.f32 %v912, 0.0
    %v1087 = vmax.f32 %v917, 0.0
    %v1088 = vmax.f32 %v922, 0.0
    %v1089 = vmax.f32 %v927, 0.0
    %v1090 = vmax.f32 %v932, 0.0
    %v1091 = vmax.f32 %v937, 0.0
    %v1092 = vmax.f32 %v942, 0.0
    %v1093 = vmax.f32 %v947, 0.0
    %v1094 = vmax.f32 %v952, 0.0
    %v1095 = vmax.f32 %v957, 0.0
    %v1096 = vmax.f32 %v962, 0.0
    %v1097 = vmax.f32 %v967, 0.0
    %v1098 = vmax.f32 %v972, 0.0
    %v1099 = vmax.f32 %v977, 0.0
    %v1100 = vmax.f32 %v982, 0.0
    %v1101 = vmax.f32 %v987, 0.0
    %v1102 = vmax.f32 %v992, 0.0
    %v1103 = vmax.f32 %v997, 0.0
    %v1104 = vmax.f32 %v1002, 0.0
    %v1105 = vld [vmem:[%s2] sm:$0xff]
    %v1106 = vld [vmem:[%s2 + $0x8] sm:$0xff]
    %v1107 = vld [vmem:[%s2 + $0x10] sm:$0xff]
    %v1108 = vld [vmem:[%s2 + $0x18] sm:$0xff]
    %v1109 = vld [vmem:[%s2 + $0x20] sm:$0xff]
    %v1110 = vld [vmem:[%s2 + $0x28] sm:$0xff]
    %v1111 = vld [vmem:[%s2 + $0x30] sm:$0xff]
    %v1112 = vld [vmem:[%s2 + $0x38] sm:$0xff]
    %v1113 = vld [vmem:[%s2 + $0x40] sm:$0xff]
    %v1114 = vld [vmem:[%s2 + $0x48] sm:$0xff]
    %v1115 = vld [vmem:[%s2 + $0x50] sm:$0xff]
    %v1116 = vld [vmem:[%s2 + $0x58] sm:$0xff]
    %v1117 = vld [vmem:[%s2 + $0x60] sm:$0xff]
    %v1118 = vld [vmem:[%s2 + $0x68] sm:$0xff]
    %v1119 = vld [vmem:[%s2 + $0x70] sm:$0xff]
    %v1120 = vld [vmem:[%s2 + $0x78] sm:$0xff]
    %v1121 = vld [vmem:[%s2 + $0x80] sm:$0xff]
    %v1122 = vld [vmem:[%s2 + $0x88] sm:$0xff]
    %v1123 = vld [vmem:[%s2 + $0x90] sm:$0xff]
    %v1124 = vld [vmem:[%s2 + $0x98] sm:$0xff]
    %v1125 = vld [vmem:[%s2 + $0xa0] sm:$0xff]
    %v1126 = vld [vmem:[%s2 + $0xa8] sm:$0xff]
    %v1127 = vld [vmem:[%s2 + $0xb0] sm:$0xff]
    %v1128 = vld [vmem:[%s2 + $0xb8] sm:$0xff]
    %v1129 = vld [vmem:[%s2 + $0xc0] sm:$0xff]
    %v1130 = vld [vmem:[%s2 + $0xc8] sm:$0xff]
    %v1131 = vld [vmem:[%s2 + $0xd0] sm:$0xff]
    %v1132 = vld [vmem:[%s2 + $0xd8] sm:$0xff]
    %v1133 = vld [vmem:[%s2 + $0xe0] sm:$0xff]
    %v1134 = vld [vmem:[%s2 + $0xe8] sm:$0xff]
    %v1135 = vld [vmem:[%s2 + $0xf0] sm:$0xff]
    %v1136 = vld [vmem:[%s2 + $0xf8] sm:$0xff]
    %v1137 = vld [vmem:[%s2 + $0x100] sm:$0xff]
    %v1138 = vld [vmem:[%s2 + $0x108] sm:$0xff]
    %v1139 = vld [vmem:[%s2 + $0x110] sm:$0xff]
    %v1140 = vld [vmem:[%s2 + $0x118] sm:$0xff]
    %v1141 = vld [vmem:[%s2 + $0x120] sm:$0xff]
    %v1142 = vld [vmem:[%s2 + $0x128] sm:$0xff]
    %v1143 = vld [vmem:[%s2 + $0x130] sm:$0xff]
    %v1144 = vld [vmem:[%s2 + $0x138] sm:$0xff]
    %v1145 = vld [vmem:[%s2 + $0x140] sm:$0xff]
    %v1146 = vld [vmem:[%s2 + $0x148] sm:$0xff]
    %v1147 = vld [vmem:[%s2 + $0x150] sm:$0xff]
    %v1148 = vld [vmem:[%s2 + $0x158] sm:$0xff]
    %v1149 = vld [vmem:[%s2 + $0x160] sm:$0xff]
    %v1150 = vld [vmem:[%s2 + $0x168] sm:$0xff]
    %v1151 = vld [vmem:[%s2 + $0x170] sm:$0xff]
    %v1152 = vld [vmem:[%s2 + $0x178] sm:$0xff]
    %v1153 = vld [vmem:[%s2 + $0x180] sm:$0xff]
    %v1154 = vld [vmem:[%s2 + $0x188] sm:$0xff]
    %v1155 = vld [vmem:[%s2 + $0x190] sm:$0xff]
    %v1156 = vld [vmem:[%s2 + $0x198] sm:$0xff]
    %v1157 = vld [vmem:[%s2 + $0x1a0] sm:$0xff]
    %v1158 = vld [vmem:[%s2 + $0x1a8] sm:$0xff]
    %v1159 = vld [vmem:[%s2 + $0x1b0] sm:$0xff]
    %v1160 = vld [vmem:[%s2 + $0x1b8] sm:$0xff]
    %v1161 = vld [vmem:[%s2 + $0x1c0] sm:$0xff]
    %v1162 = vld [vmem:[%s2 + $0x1c8] sm:$0xff]
    %v1163 = vld [vmem:[%s2 + $0x1d0] sm:$0xff]
    %v1164 = vld [vmem:[%s2 + $0x1d8] sm:$0xff]
    %v1165 = vld [vmem:[%s2 + $0x1e0] sm:$0xff]
    %v1166 = vld [vmem:[%s2 + $0x1e8] sm:$0xff]
    %v1167 = vld [vmem:[%s2 + $0x1f0] sm:$0xff]
    %v1168 = vld [vmem:[%s2 + $0x1f8] sm:$0xff]
    %v1169 = vld [vmem:[%s2 + $0x200] sm:$0xff]
    %v1170 = vld [vmem:[%s2 + $0x208] sm:$0xff]
    %v1171 = vld [vmem:[%s2 + $0x210] sm:$0xff]
    %v1172 = vld [vmem:[%s2 + $0x218] sm:$0xff]
    %v1173 = vld [vmem:[%s2 + $0x220] sm:$0xff]
    %v1174 = vld [vmem:[%s2 + $0x228] sm:$0xff]
    %v1175 = vld [vmem:[%s2 + $0x230] sm:$0xff]
    %v1176 = vld [vmem:[%s2 + $0x238] sm:$0xff]
    %v1177 = vld [vmem:[%s2 + $0x240] sm:$0xff]
    %v1178 = vld [vmem:[%s2 + $0x248] sm:$0xff]
    %v1179 = vld [vmem:[%s2 + $0x250] sm:$0xff]
    %v1180 = vld [vmem:[%s2 + $0x258] sm:$0xff]
    %v1181 = vld [vmem:[%s2 + $0x260] sm:$0xff]
    %v1182 = vld [vmem:[%s2 + $0x268] sm:$0xff]
    %v1183 = vld [vmem:[%s2 + $0x270] sm:$0xff]
    %v1184 = vld [vmem:[%s2 + $0x278] sm:$0xff]
    %v1185 = vld [vmem:[%s2 + $0x280] sm:$0xff]
    %v1186 = vld [vmem:[%s2 + $0x288] sm:$0xff]
    %v1187 = vld [vmem:[%s2 + $0x290] sm:$0xff]
    %v1188 = vld [vmem:[%s2 + $0x298] sm:$0xff]
    %v1189 = vld [vmem:[%s2 + $0x2a0] sm:$0xff]
    %v1190 = vld [vmem:[%s2 + $0x2a8] sm:$0xff]
    %v1191 = vld [vmem:[%s2 + $0x2b0] sm:$0xff]
    %v1192 = vld [vmem:[%s2 + $0x2b8] sm:$0xff]
    %v1193 = vld [vmem:[%s2 + $0x2c0] sm:$0xff]
    %v1194 = vld [vmem:[%s2 + $0x2c8] sm:$0xff]
    %v1195 = vld [vmem:[%s2 + $0x2d0] sm:$0xff]
    %v1196 = vld [vmem:[%s2 + $0x2d8] sm:$0xff]
    %v1197 = vld [vmem:[%s2 + $0x2e0] sm:$0xff]
    %v1198 = vld [vmem:[%s2 + $0x2e8] sm:$0xff]
    %v1199 = vld [vmem:[%s2 + $0x2f0] sm:$0xff]
    %v1200 = vld [vmem:[%s2 + $0x2f8] sm:$0xff]
    %v1201 = vld [vmem:[%s2 + $0x300] sm:$0xff]
    %v1202 = vld [vmem:[%s2 + $0x308] sm:$0xff]
    %v1203 = vld [vmem:[%s2 + $0x310] sm:$0xff]
    %v1204 = vld [vmem:[%s2 + $0x318] sm:$0xff]
    %v1205 = vld [vmem:[%s2 + $0x320] sm:$0xff]
    %v1206 = vld [vmem:[%s2 + $0x328] sm:$0xff]
    %v1207 = vld [vmem:[%s2 + $0x330] sm:$0xff]
    %v1208 = vld [vmem:[%s2 + $0x338] sm:$0xff]
    %v1209 = vld [vmem:[%s2 + $0x340] sm:$0xff]
    %v1210 = vld [vmem:[%s2 + $0x348] sm:$0xff]
    %v1211 = vld [vmem:[%s2 + $0x350] sm:$0xff]
    %v1212 = vld [vmem:[%s2 + $0x358] sm:$0xff]
    %v1213 = vld [vmem:[%s2 + $0x360] sm:$0xff]
    %v1214 = vld [vmem:[%s2 + $0x368] sm:$0xff]
    %v1215 = vld [vmem:[%s2 + $0x370] sm:$0xff]
    %v1216 = vld [vmem:[%s2 + $0x378] sm:$0xff]
    %v1217 = vld [vmem:[%s2 + $0x380] sm:$0xff]
    %v1218 = vld [vmem:[%s2 + $0x388] sm:$0xff]
    %v1219 = vld [vmem:[%s2 + $0x390] sm:$0xff]
    %v1220 = vld [vmem:[%s2 + $0x398] sm:$0xff]
    %v1221 = vld [vmem:[%s2 + $0x3a0] sm:$0xff]
    %v1222 = vld [vmem:[%s2 + $0x3a8] sm:$0xff]
    %v1223 = vld [vmem:[%s2 + $0x3b0] sm:$0xff]
    %v1224 = vld [vmem:[%s2 + $0x3b8] sm:$0xff]
    %v1225 = vld [vmem:[%s2 + $0x3c0] sm:$0xff]
    %v1226 = vld [vmem:[%s2 + $0x3c8] sm:$0xff]
    %v1227 = vld [vmem:[%s2 + $0x3d0] sm:$0xff]
    %v1228 = vld [vmem:[%s2 + $0x3d8] sm:$0xff]
    %v1229 = vld [vmem:[%s2 + $0x3e0] sm:$0xff]
    %v1230 = vld [vmem:[%s2 + $0x3e8] sm:$0xff]
    %v1231 = vld [vmem:[%s2 + $0x3f0] sm:$0xff]
    %v1232 = vld [vmem:[%s2 + $0x3f8] sm:$0xff]
    %v1233 = vld [vmem:[%s2 + $0x400] sm:$0xff]
    %v1234 = vld [vmem:[%s2 + $0x408] sm:$0xff]
    %v1235 = vld [vmem:[%s2 + $0x410] sm:$0xff]
    %v1236 = vld [vmem:[%s2 + $0x418] sm:$0xff]
    %v1237 = vld [vmem:[%s2 + $0x420] sm:$0xff]
    %v1238 = vld [vmem:[%s2 + $0x428] sm:$0xff]
    %v1239 = vld [vmem:[%s2 + $0x430] sm:$0xff]
    %v1240 = vld [vmem:[%s2 + $0x438] sm:$0xff]
    %v1241 = vld [vmem:[%s2 + $0x440] sm:$0xff]
    %v1242 = vld [vmem:[%s2 + $0x448] sm:$0xff]
    %v1243 = vld [vmem:[%s2 + $0x450] sm:$0xff]
    %v1244 = vld [vmem:[%s2 + $0x458] sm:$0xff]
    %v1245 = vld [vmem:[%s2 + $0x460] sm:$0xff]
    %v1246 = vld [vmem:[%s2 + $0x468] sm:$0xff]
    %v1247 = vld [vmem:[%s2 + $0x470] sm:$0xff]
    %v1248 = vld [vmem:[%s2 + $0x478] sm:$0xff]
    %v1249 = vld [vmem:[%s2 + $0x480] sm:$0xff]
    %v1250 = vld [vmem:[%s2 + $0x488] sm:$0xff]
    %v1251 = vld [vmem:[%s2 + $0x490] sm:$0xff]
    %v1252 = vld [vmem:[%s2 + $0x498] sm:$0xff]
    %v1253 = vld [vmem:[%s2 + $0x4a0] sm:$0xff]
    %v1254 = vld [vmem:[%s2 + $0x4a8] sm:$0xff]
    %v1255 = vld [vmem:[%s2 + $0x4b0] sm:$0xff]
    %v1256 = vld [vmem:[%s2 + $0x4b8] sm:$0xff]
    %v1257 = vld [vmem:[%s2 + $0x4c0] sm:$0xff]
    %v1258 = vld [vmem:[%s2 + $0x4c8] sm:$0xff]
    %v1259 = vld [vmem:[%s2 + $0x4d0] sm:$0xff]
    %v1260 = vld [vmem:[%s2 + $0x4d8] sm:$0xff]
    %v1261 = vld [vmem:[%s2 + $0x4e0] sm:$0xff]
    %v1262 = vld [vmem:[%s2 + $0x4e8] sm:$0xff]
    %v1263 = vld [vmem:[%s2 + $0x4f0] sm:$0xff]
    %v1264 = vld [vmem:[%s2 + $0x4f8] sm:$0xff]
    %v1265 = vld [vmem:[%s2 + $0x500] sm:$0xff]
    %v1266 = vld [vmem:[%s2 + $0x508] sm:$0xff]
    %v1267 = vld [vmem:[%s2 + $0x510] sm:$0xff]
    %v1268 = vld [vmem:[%s2 + $0x518] sm:$0xff]
    %v1269 = vld [vmem:[%s2 + $0x520] sm:$0xff]
    %v1270 = vld [vmem:[%s2 + $0x528] sm:$0xff]
    %v1271 = vld [vmem:[%s2 + $0x530] sm:$0xff]
    %v1272 = vld [vmem:[%s2 + $0x538] sm:$0xff]
    %v1273 = vld [vmem:[%s2 + $0x540] sm:$0xff]
    %v1274 = vld [vmem:[%s2 + $0x548] sm:$0xff]
    %v1275 = vld [vmem:[%s2 + $0x550] sm:$0xff]
    %v1276 = vld [vmem:[%s2 + $0x558] sm:$0xff]
    %v1277 = vld [vmem:[%s2 + $0x560] sm:$0xff]
    %v1278 = vld [vmem:[%s2 + $0x568] sm:$0xff]
    %v1279 = vld [vmem:[%s2 + $0x570] sm:$0xff]
    %v1280 = vld [vmem:[%s2 + $0x578] sm:$0xff]
    %v1281 = vld [vmem:[%s2 + $0x580] sm:$0xff]
    %v1282 = vld [vmem:[%s2 + $0x588] sm:$0xff]
    %v1283 = vld [vmem:[%s2 + $0x590] sm:$0xff]
    %v1284 = vld [vmem:[%s2 + $0x598] sm:$0xff]
    %v1285 = vld [vmem:[%s2 + $0x5a0] sm:$0xff]
    %v1286 = vld [vmem:[%s2 + $0x5a8] sm:$0xff]
    %v1287 = vld [vmem:[%s2 + $0x5b0] sm:$0xff]
    %v1288 = vld [vmem:[%s2 + $0x5b8] sm:$0xff]
    %v1289 = vld [vmem:[%s2 + $0x5c0] sm:$0xff]
    %v1290 = vld [vmem:[%s2 + $0x5c8] sm:$0xff]
    %v1291 = vld [vmem:[%s2 + $0x5d0] sm:$0xff]
    %v1292 = vld [vmem:[%s2 + $0x5d8] sm:$0xff]
    %v1293 = vld [vmem:[%s2 + $0x5e0] sm:$0xff]
    %v1294 = vld [vmem:[%s2 + $0x5e8] sm:$0xff]
    %v1295 = vld [vmem:[%s2 + $0x5f0] sm:$0xff]
    %v1296 = vld [vmem:[%s2 + $0x5f8] sm:$0xff]
    %v1297 = vld [vmem:[%s2 + $0x600] sm:$0xff]
    %v1298 = vld [vmem:[%s2 + $0x608] sm:$0xff]
    %v1299 = vld [vmem:[%s2 + $0x610] sm:$0xff]
    %v1300 = vld [vmem:[%s2 + $0x618] sm:$0xff]
    %v1301 = vld [vmem:[%s2 + $0x620] sm:$0xff]
    %v1302 = vld [vmem:[%s2 + $0x628] sm:$0xff]
    %v1303 = vld [vmem:[%s2 + $0x630] sm:$0xff]
    %v1304 = vld [vmem:[%s2 + $0x638] sm:$0xff]
    %v1305 = vld [vmem:[%s2 + $0x640] sm:$0xff]
    %v1306 = vld [vmem:[%s2 + $0x648] sm:$0xff]
    %v1307 = vld [vmem:[%s2 + $0x650] sm:$0xff]
    %v1308 = vld [vmem:[%s2 + $0x658] sm:$0xff]
    %v1309 = vld [vmem:[%s2 + $0x660] sm:$0xff]
    %v1310 = vld [vmem:[%s2 + $0x668] sm:$0xff]
    %v1311 = vld [vmem:[%s2 + $0x670] sm:$0xff]
    %v1312 = vld [vmem:[%s2 + $0x678] sm:$0xff]
    %v1313 = vld [vmem:[%s2 + $0x680] sm:$0xff]
    %v1314 = vld [vmem:[%s2 + $0x688] sm:$0xff]
    %v1315 = vld [vmem:[%s2 + $0x690] sm:$0xff]
    %v1316 = vld [vmem:[%s2 + $0x698] sm:$0xff]
    %v1317 = vld [vmem:[%s2 + $0x6a0] sm:$0xff]
    %v1318 = vld [vmem:[%s2 + $0x6a8] sm:$0xff]
    %v1319 = vld [vmem:[%s2 + $0x6b0] sm:$0xff]
    %v1320 = vld [vmem:[%s2 + $0x6b8] sm:$0xff]
    %v1321 = vld [vmem:[%s2 + $0x6c0] sm:$0xff]
    %v1322 = vld [vmem:[%s2 + $0x6c8] sm:$0xff]
    %v1323 = vld [vmem:[%s2 + $0x6d0] sm:$0xff]
    %v1324 = vld [vmem:[%s2 + $0x6d8] sm:$0xff]
    %v1325 = vld [vmem:[%s2 + $0x6e0] sm:$0xff]
    %v1326 = vld [vmem:[%s2 + $0x6e8] sm:$0xff]
    %v1327 = vld [vmem:[%s2 + $0x6f0] sm:$0xff]
    %v1328 = vld [vmem:[%s2 + $0x6f8] sm:$0xff]
    %v1329 = vld [vmem:[%s2 + $0x700] sm:$0xff]
    %v1330 = vld [vmem:[%s2 + $0x708] sm:$0xff]
    %v1331 = vld [vmem:[%s2 + $0x710] sm:$0xff]
    %v1332 = vld [vmem:[%s2 + $0x718] sm:$0xff]
    %v1333 = vld [vmem:[%s2 + $0x720] sm:$0xff]
    %v1334 = vld [vmem:[%s2 + $0x728] sm:$0xff]
    %v1335 = vld [vmem:[%s2 + $0x730] sm:$0xff]
    %v1336 = vld [vmem:[%s2 + $0x738] sm:$0xff]
    %v1337 = vld [vmem:[%s2 + $0x740] sm:$0xff]
    %v1338 = vld [vmem:[%s2 + $0x748] sm:$0xff]
    %v1339 = vld [vmem:[%s2 + $0x750] sm:$0xff]
    %v1340 = vld [vmem:[%s2 + $0x758] sm:$0xff]
    %v1341 = vld [vmem:[%s2 + $0x760] sm:$0xff]
    %v1342 = vld [vmem:[%s2 + $0x768] sm:$0xff]
    %v1343 = vld [vmem:[%s2 + $0x770] sm:$0xff]
    %v1344 = vld [vmem:[%s2 + $0x778] sm:$0xff]
    %v1345 = vld [vmem:[%s2 + $0x780] sm:$0xff]
    %v1346 = vld [vmem:[%s2 + $0x788] sm:$0xff]
    %v1347 = vld [vmem:[%s2 + $0x790] sm:$0xff]
    %v1348 = vld [vmem:[%s2 + $0x798] sm:$0xff]
    %v1349 = vld [vmem:[%s2 + $0x7a0] sm:$0xff]
    %v1350 = vld [vmem:[%s2 + $0x7a8] sm:$0xff]
    %v1351 = vld [vmem:[%s2 + $0x7b0] sm:$0xff]
    %v1352 = vld [vmem:[%s2 + $0x7b8] sm:$0xff]
    %v1353 = vld [vmem:[%s2 + $0x7c0] sm:$0xff]
    %v1354 = vld [vmem:[%s2 + $0x7c8] sm:$0xff]
    %v1355 = vld [vmem:[%s2 + $0x7d0] sm:$0xff]
    %v1356 = vld [vmem:[%s2 + $0x7d8] sm:$0xff]
    %v1357 = vld [vmem:[%s2 + $0x7e0] sm:$0xff]
    %v1358 = vld [vmem:[%s2 + $0x7e8] sm:$0xff]
    %v1359 = vld [vmem:[%s2 + $0x7f0] sm:$0xff]
    %v1360 = vld [vmem:[%s2 + $0x7f8] sm:$0xff]
    %v1361 = vld [vmem:[%s2 + $0x800] sm:$0xff]
    %v1362 = vld [vmem:[%s2 + $0x808] sm:$0xff]
    %v1363 = vld [vmem:[%s2 + $0x810] sm:$0xff]
    %v1364 = vld [vmem:[%s2 + $0x818] sm:$0xff]
    %v1365 = vld [vmem:[%s2 + $0x820] sm:$0xff]
    %v1366 = vld [vmem:[%s2 + $0x828] sm:$0xff]
    %v1367 = vld [vmem:[%s2 + $0x830] sm:$0xff]
    %v1368 = vld [vmem:[%s2 + $0x838] sm:$0xff]
    %v1369 = vld [vmem:[%s2 + $0x840] sm:$0xff]
    %v1370 = vld [vmem:[%s2 + $0x848] sm:$0xff]
    %v1371 = vld [vmem:[%s2 + $0x850] sm:$0xff]
    %v1372 = vld [vmem:[%s2 + $0x858] sm:$0xff]
    %v1373 = vld [vmem:[%s2 + $0x860] sm:$0xff]
    %v1374 = vld [vmem:[%s2 + $0x868] sm:$0xff]
    %v1375 = vld [vmem:[%s2 + $0x870] sm:$0xff]
    %v1376 = vld [vmem:[%s2 + $0x878] sm:$0xff]
    %v1377 = vld [vmem:[%s2 + $0x880] sm:$0xff]
    %v1378 = vld [vmem:[%s2 + $0x888] sm:$0xff]
    %v1379 = vld [vmem:[%s2 + $0x890] sm:$0xff]
    %v1380 = vld [vmem:[%s2 + $0x898] sm:$0xff]
    %v1381 = vld [vmem:[%s2 + $0x8a0] sm:$0xff]
    %v1382 = vld [vmem:[%s2 + $0x8a8] sm:$0xff]
    %v1383 = vld [vmem:[%s2 + $0x8b0] sm:$0xff]
    %v1384 = vld [vmem:[%s2 + $0x8b8] sm:$0xff]
    %v1385 = vld [vmem:[%s2 + $0x8c0] sm:$0xff]
    %v1386 = vld [vmem:[%s2 + $0x8c8] sm:$0xff]
    %v1387 = vld [vmem:[%s2 + $0x8d0] sm:$0xff]
    %v1388 = vld [vmem:[%s2 + $0x8d8] sm:$0xff]
    %v1389 = vld [vmem:[%s2 + $0x8e0] sm:$0xff]
    %v1390 = vld [vmem:[%s2 + $0x8e8] sm:$0xff]
    %v1391 = vld [vmem:[%s2 + $0x8f0] sm:$0xff]
    %v1392 = vld [vmem:[%s2 + $0x8f8] sm:$0xff]
    %v1393 = vld [vmem:[%s2 + $0x900] sm:$0xff]
    %v1394 = vld [vmem:[%s2 + $0x908] sm:$0xff]
    %v1395 = vld [vmem:[%s2 + $0x910] sm:$0xff]
    %v1396 = vld [vmem:[%s2 + $0x918] sm:$0xff]
    %v1397 = vld [vmem:[%s2 + $0x920] sm:$0xff]
    %v1398 = vld [vmem:[%s2 + $0x928] sm:$0xff]
    %v1399 = vld [vmem:[%s2 + $0x930] sm:$0xff]
    %v1400 = vld [vmem:[%s2 + $0x938] sm:$0xff]
    %v1401 = vld [vmem:[%s2 + $0x940] sm:$0xff]
    %v1402 = vld [vmem:[%s2 + $0x948] sm:$0xff]
    %v1403 = vld [vmem:[%s2 + $0x950] sm:$0xff]
    %v1404 = vld [vmem:[%s2 + $0x958] sm:$0xff]
    %v1405 = vld [vmem:[%s2 + $0x960] sm:$0xff]
    %v1406 = vld [vmem:[%s2 + $0x968] sm:$0xff]
    %v1407 = vld [vmem:[%s2 + $0x970] sm:$0xff]
    %v1408 = vld [vmem:[%s2 + $0x978] sm:$0xff]
    %v1409 = vld [vmem:[%s2 + $0x980] sm:$0xff]
    %v1410 = vld [vmem:[%s2 + $0x988] sm:$0xff]
    %v1411 = vld [vmem:[%s2 + $0x990] sm:$0xff]
    %v1412 = vld [vmem:[%s2 + $0x998] sm:$0xff]
    %v1413 = vld [vmem:[%s2 + $0x9a0] sm:$0xff]
    %v1414 = vld [vmem:[%s2 + $0x9a8] sm:$0xff]
    %v1415 = vld [vmem:[%s2 + $0x9b0] sm:$0xff]
    %v1416 = vld [vmem:[%s2 + $0x9b8] sm:$0xff]
    %v1417 = vld [vmem:[%s2 + $0x9c0] sm:$0xff]
    %v1418 = vld [vmem:[%s2 + $0x9c8] sm:$0xff]
    %v1419 = vld [vmem:[%s2 + $0x9d0] sm:$0xff]
    %v1420 = vld [vmem:[%s2 + $0x9d8] sm:$0xff]
    %v1421 = vld [vmem:[%s2 + $0x9e0] sm:$0xff]
    %v1422 = vld [vmem:[%s2 + $0x9e8] sm:$0xff]
    %v1423 = vld [vmem:[%s2 + $0x9f0] sm:$0xff]
    %v1424 = vld [vmem:[%s2 + $0x9f8] sm:$0xff]
    %v1425 = vld [vmem:[%s2 + $0xa00] sm:$0xff]
    %v1426 = vld [vmem:[%s2 + $0xa08] sm:$0xff]
    %v1427 = vld [vmem:[%s2 + $0xa10] sm:$0xff]
    %v1428 = vld [vmem:[%s2 + $0xa18] sm:$0xff]
    %v1429 = vld [vmem:[%s2 + $0xa20] sm:$0xff]
    %v1430 = vld [vmem:[%s2 + $0xa28] sm:$0xff]
    %v1431 = vld [vmem:[%s2 + $0xa30] sm:$0xff]
    %v1432 = vld [vmem:[%s2 + $0xa38] sm:$0xff]
    %v1433 = vld [vmem:[%s2 + $0xa40] sm:$0xff]
    %v1434 = vld [vmem:[%s2 + $0xa48] sm:$0xff]
    %v1435 = vld [vmem:[%s2 + $0xa50] sm:$0xff]
    %v1436 = vld [vmem:[%s2 + $0xa58] sm:$0xff]
    %v1437 = vld [vmem:[%s2 + $0xa60] sm:$0xff]
    %v1438 = vld [vmem:[%s2 + $0xa68] sm:$0xff]
    %v1439 = vld [vmem:[%s2 + $0xa70] sm:$0xff]
    %v1440 = vld [vmem:[%s2 + $0xa78] sm:$0xff]
    %v1441 = vld [vmem:[%s2 + $0xa80] sm:$0xff]
    %v1442 = vld [vmem:[%s2 + $0xa88] sm:$0xff]
    %v1443 = vld [vmem:[%s2 + $0xa90] sm:$0xff]
    %v1444 = vld [vmem:[%s2 + $0xa98] sm:$0xff]
    %v1445 = vld [vmem:[%s2 + $0xaa0] sm:$0xff]
    %v1446 = vld [vmem:[%s2 + $0xaa8] sm:$0xff]
    %v1447 = vld [vmem:[%s2 + $0xab0] sm:$0xff]
    %v1448 = vld [vmem:[%s2 + $0xab8] sm:$0xff]
    %v1449 = vld [vmem:[%s2 + $0xac0] sm:$0xff]
    %v1450 = vld [vmem:[%s2 + $0xac8] sm:$0xff]
    %v1451 = vld [vmem:[%s2 + $0xad0] sm:$0xff]
    %v1452 = vld [vmem:[%s2 + $0xad8] sm:$0xff]
    %v1453 = vld [vmem:[%s2 + $0xae0] sm:$0xff]
    %v1454 = vld [vmem:[%s2 + $0xae8] sm:$0xff]
    %v1455 = vld [vmem:[%s2 + $0xaf0] sm:$0xff]
    %v1456 = vld [vmem:[%s2 + $0xaf8] sm:$0xff]
    %v1457 = vld [vmem:[%s2 + $0xb00] sm:$0xff]
    %v1458 = vld [vmem:[%s2 + $0xb08] sm:$0xff]
    %v1459 = vld [vmem:[%s2 + $0xb10] sm:$0xff]
    %v1460 = vld [vmem:[%s2 + $0xb18] sm:$0xff]
    %v1461 = vld [vmem:[%s2 + $0xb20] sm:$0xff]
    %v1462 = vld [vmem:[%s2 + $0xb28] sm:$0xff]
    %v1463 = vld [vmem:[%s2 + $0xb30] sm:$0xff]
    %v1464 = vld [vmem:[%s2 + $0xb38] sm:$0xff]
    %v1465 = vld [vmem:[%s2 + $0xb40] sm:$0xff]
    %v1466 = vld [vmem:[%s2 + $0xb48] sm:$0xff]
    %v1467 = vld [vmem:[%s2 + $0xb50] sm:$0xff]
    %v1468 = vld [vmem:[%s2 + $0xb58] sm:$0xff]
    %v1469 = vld [vmem:[%s2 + $0xb60] sm:$0xff]
    %v1470 = vld [vmem:[%s2 + $0xb68] sm:$0xff]
    %v1471 = vld [vmem:[%s2 + $0xb70] sm:$0xff]
    %v1472 = vld [vmem:[%s2 + $0xb78] sm:$0xff]
    %v1473 = vld [vmem:[%s2 + $0xb80] sm:$0xff]
    %v1474 = vld [vmem:[%s2 + $0xb88] sm:$0xff]
    %v1475 = vld [vmem:[%s2 + $0xb90] sm:$0xff]
    %v1476 = vld [vmem:[%s2 + $0xb98] sm:$0xff]
    %v1477 = vld [vmem:[%s2 + $0xba0] sm:$0xff]
    %v1478 = vld [vmem:[%s2 + $0xba8] sm:$0xff]
    %v1479 = vld [vmem:[%s2 + $0xbb0] sm:$0xff]
    %v1480 = vld [vmem:[%s2 + $0xbb8] sm:$0xff]
    %v1481 = vld [vmem:[%s2 + $0xbc0] sm:$0xff]
    %v1482 = vld [vmem:[%s2 + $0xbc8] sm:$0xff]
    %v1483 = vld [vmem:[%s2 + $0xbd0] sm:$0xff]
    %v1484 = vld [vmem:[%s2 + $0xbd8] sm:$0xff]
    %v1485 = vld [vmem:[%s2 + $0xbe0] sm:$0xff]
    %v1486 = vld [vmem:[%s2 + $0xbe8] sm:$0xff]
    %v1487 = vld [vmem:[%s2 + $0xbf0] sm:$0xff]
    %v1488 = vld [vmem:[%s2 + $0xbf8] sm:$0xff]
    %v1489 = vld [vmem:[%s2 + $0xc00] sm:$0xff]
    %v1490 = vld [vmem:[%s2 + $0xc08] sm:$0xff]
    %v1491 = vld [vmem:[%s2 + $0xc10] sm:$0xff]
    %v1492 = vld [vmem:[%s2 + $0xc18] sm:$0xff]
    %v1493 = vld [vmem:[%s2 + $0xc20] sm:$0xff]
    %v1494 = vld [vmem:[%s2 + $0xc28] sm:$0xff]
    %v1495 = vld [vmem:[%s2 + $0xc30] sm:$0xff]
    %v1496 = vld [vmem:[%s2 + $0xc38] sm:$0xff]
    %v1497 = vld [vmem:[%s2 + $0xc40] sm:$0xff]
    %v1498 = vld [vmem:[%s2 + $0xc48] sm:$0xff]
    %v1499 = vld [vmem:[%s2 + $0xc50] sm:$0xff]
    %v1500 = vld [vmem:[%s2 + $0xc58] sm:$0xff]
    %v1501 = vld [vmem:[%s2 + $0xc60] sm:$0xff]
    %v1502 = vld [vmem:[%s2 + $0xc68] sm:$0xff]
    %v1503 = vld [vmem:[%s2 + $0xc70] sm:$0xff]
    %v1504 = vld [vmem:[%s2 + $0xc78] sm:$0xff]
    %v1505 = vld [vmem:[%s2 + $0xc80] sm:$0xff]
    %v1506 = vld [vmem:[%s2 + $0xc88] sm:$0xff]
    %v1507 = vld [vmem:[%s2 + $0xc90] sm:$0xff]
    %v1508 = vld [vmem:[%s2 + $0xc98] sm:$0xff]
    %v1509 = vld [vmem:[%s2 + $0xca0] sm:$0xff]
    %v1510 = vld [vmem:[%s2 + $0xca8] sm:$0xff]
    %v1511 = vld [vmem:[%s2 + $0xcb0] sm:$0xff]
    %v1512 = vld [vmem:[%s2 + $0xcb8] sm:$0xff]
    %v1513 = vld [vmem:[%s2 + $0xcc0] sm:$0xff]
    %v1514 = vld [vmem:[%s2 + $0xcc8] sm:$0xff]
    %v1515 = vld [vmem:[%s2 + $0xcd0] sm:$0xff]
    %v1516 = vld [vmem:[%s2 + $0xcd8] sm:$0xff]
    %v1517 = vld [vmem:[%s2 + $0xce0] sm:$0xff]
    %v1518 = vld [vmem:[%s2 + $0xce8] sm:$0xff]
    %v1519 = vld [vmem:[%s2 + $0xcf0] sm:$0xff]
    %v1520 = vld [vmem:[%s2 + $0xcf8] sm:$0xff]
    %v1521 = vld [vmem:[%s2 + $0xd00] sm:$0xff]
    %v1522 = vld [vmem:[%s2 + $0xd08] sm:$0xff]
    %v1523 = vld [vmem:[%s2 + $0xd10] sm:$0xff]
    %v1524 = vld [vmem:[%s2 + $0xd18] sm:$0xff]
    %v1525 = vld [vmem:[%s2 + $0xd20] sm:$0xff]
    %v1526 = vld [vmem:[%s2 + $0xd28] sm:$0xff]
    %v1527 = vld [vmem:[%s2 + $0xd30] sm:$0xff]
    %v1528 = vld [vmem:[%s2 + $0xd38] sm:$0xff]
    %v1529 = vld [vmem:[%s2 + $0xd40] sm:$0xff]
    %v1530 = vld [vmem:[%s2 + $0xd48] sm:$0xff]
    %v1531 = vld [vmem:[%s2 + $0xd50] sm:$0xff]
    %v1532 = vld [vmem:[%s2 + $0xd58] sm:$0xff]
    %v1533 = vld [vmem:[%s2 + $0xd60] sm:$0xff]
    %v1534 = vld [vmem:[%s2 + $0xd68] sm:$0xff]
    %v1535 = vld [vmem:[%s2 + $0xd70] sm:$0xff]
    %v1536 = vld [vmem:[%s2 + $0xd78] sm:$0xff]
    %v1537 = vld [vmem:[%s2 + $0xd80] sm:$0xff]
    %v1538 = vld [vmem:[%s2 + $0xd88] sm:$0xff]
    %v1539 = vld [vmem:[%s2 + $0xd90] sm:$0xff]
    %v1540 = vld [vmem:[%s2 + $0xd98] sm:$0xff]
    %v1541 = vld [vmem:[%s2 + $0xda0] sm:$0xff]
    %v1542 = vld [vmem:[%s2 + $0xda8] sm:$0xff]
    %v1543 = vld [vmem:[%s2 + $0xdb0] sm:$0xff]
    %v1544 = vld [vmem:[%s2 + $0xdb8] sm:$0xff]
    %v1545 = vld [vmem:[%s2 + $0xdc0] sm:$0xff]
    %v1546 = vld [vmem:[%s2 + $0xdc8] sm:$0xff]
    %v1547 = vld [vmem:[%s2 + $0xdd0] sm:$0xff]
    %v1548 = vld [vmem:[%s2 + $0xdd8] sm:$0xff]
    %v1549 = vld [vmem:[%s2 + $0xde0] sm:$0xff]
    %v1550 = vld [vmem:[%s2 + $0xde8] sm:$0xff]
    %v1551 = vld [vmem:[%s2 + $0xdf0] sm:$0xff]
    %v1552 = vld [vmem:[%s2 + $0xdf8] sm:$0xff]
    %v1553 = vld [vmem:[%s2 + $0xe00] sm:$0xff]
    %v1554 = vld [vmem:[%s2 + $0xe08] sm:$0xff]
    %v1555 = vld [vmem:[%s2 + $0xe10] sm:$0xff]
    %v1556 = vld [vmem:[%s2 + $0xe18] sm:$0xff]
    %v1557 = vld [vmem:[%s2 + $0xe20] sm:$0xff]
    %v1558 = vld [vmem:[%s2 + $0xe28] sm:$0xff]
    %v1559 = vld [vmem:[%s2 + $0xe30] sm:$0xff]
    %v1560 = vld [vmem:[%s2 + $0xe38] sm:$0xff]
    %v1561 = vld [vmem:[%s2 + $0xe40] sm:$0xff]
    %v1562 = vld [vmem:[%s2 + $0xe48] sm:$0xff]
    %v1563 = vld [vmem:[%s2 + $0xe50] sm:$0xff]
    %v1564 = vld [vmem:[%s2 + $0xe58] sm:$0xff]
    %v1565 = vld [vmem:[%s2 + $0xe60] sm:$0xff]
    %v1566 = vld [vmem:[%s2 + $0xe68] sm:$0xff]
    %v1567 = vld [vmem:[%s2 + $0xe70] sm:$0xff]
    %v1568 = vld [vmem:[%s2 + $0xe78] sm:$0xff]
    %v1569 = vld [vmem:[%s2 + $0xe80] sm:$0xff]
    %v1570 = vld [vmem:[%s2 + $0xe88] sm:$0xff]
    %v1571 = vld [vmem:[%s2 + $0xe90] sm:$0xff]
    %v1572 = vld [vmem:[%s2 + $0xe98] sm:$0xff]
    %v1573 = vld [vmem:[%s2 + $0xea0] sm:$0xff]
    %v1574 = vld [vmem:[%s2 + $0xea8] sm:$0xff]
    %v1575 = vld [vmem:[%s2 + $0xeb0] sm:$0xff]
    %v1576 = vld [vmem:[%s2 + $0xeb8] sm:$0xff]
    %v1577 = vld [vmem:[%s2 + $0xec0] sm:$0xff]
    %v1578 = vld [vmem:[%s2 + $0xec8] sm:$0xff]
    %v1579 = vld [vmem:[%s2 + $0xed0] sm:$0xff]
    %v1580 = vld [vmem:[%s2 + $0xed8] sm:$0xff]
    %v1581 = vld [vmem:[%s2 + $0xee0] sm:$0xff]
    %v1582 = vld [vmem:[%s2 + $0xee8] sm:$0xff]
    %v1583 = vld [vmem:[%s2 + $0xef0] sm:$0xff]
    %v1584 = vld [vmem:[%s2 + $0xef8] sm:$0xff]
    %v1585 = vld [vmem:[%s2 + $0xf00] sm:$0xff]
    %v1586 = vld [vmem:[%s2 + $0xf08] sm:$0xff]
    %v1587 = vld [vmem:[%s2 + $0xf10] sm:$0xff]
    %v1588 = vld [vmem:[%s2 + $0xf18] sm:$0xff]
    %v1589 = vld [vmem:[%s2 + $0xf20] sm:$0xff]
    %v1590 = vld [vmem:[%s2 + $0xf28] sm:$0xff]
    %v1591 = vld [vmem:[%s2 + $0xf30] sm:$0xff]
    %v1592 = vld [vmem:[%s2 + $0xf38] sm:$0xff]
    %v1593 = vld [vmem:[%s2 + $0xf40] sm:$0xff]
    %v1594 = vld [vmem:[%s2 + $0xf48] sm:$0xff]
    %v1595 = vld [vmem:[%s2 + $0xf50] sm:$0xff]
    %v1596 = vld [vmem:[%s2 + $0xf58] sm:$0xff]
    %v1597 = vld [vmem:[%s2 + $0xf60] sm:$0xff]
    %v1598 = vld [vmem:[%s2 + $0xf68] sm:$0xff]
    %v1599 = vld [vmem:[%s2 + $0xf70] sm:$0xff]
    %v1600 = vld [vmem:[%s2 + $0xf78] sm:$0xff]
    %v1601 = vld [vmem:[%s2 + $0xf80] sm:$0xff]
    %v1602 = vld [vmem:[%s2 + $0xf88] sm:$0xff]
    %v1603 = vld [vmem:[%s2 + $0xf90] sm:$0xff]
    %v1604 = vld [vmem:[%s2 + $0xf98] sm:$0xff]
    %v1605 = vld [vmem:[%s2 + $0xfa0] sm:$0xff]
    %v1606 = vld [vmem:[%s2 + $0xfa8] sm:$0xff]
    %v1607 = vld [vmem:[%s2 + $0xfb0] sm:$0xff]
    %v1608 = vld [vmem:[%s2 + $0xfb8] sm:$0xff]
    %v1609 = vld [vmem:[%s2 + $0xfc0] sm:$0xff]
    %v1610 = vld [vmem:[%s2 + $0xfc8] sm:$0xff]
    %v1611 = vld [vmem:[%s2 + $0xfd0] sm:$0xff]
    %v1612 = vld [vmem:[%s2 + $0xfd8] sm:$0xff]
    %v1613 = vld [vmem:[%s2 + $0xfe0] sm:$0xff]
    %v1614 = vld [vmem:[%s2 + $0xfe8] sm:$0xff]
    %v1615 = vld [vmem:[%s2 + $0xff0] sm:$0xff]
    %v1616 = vld [vmem:[%s2 + $0xff8] sm:$0xff]
    %v1617 = vld [vmem:[%s2 + $0x1000] sm:$0xff]
    %v1618 = vld [vmem:[%s2 + $0x1008] sm:$0xff]
    %v1619 = vld [vmem:[%s2 + $0x1010] sm:$0xff]
    %v1620 = vld [vmem:[%s2 + $0x1018] sm:$0xff]
    %v1621 = vld [vmem:[%s2 + $0x1020] sm:$0xff]
    %v1622 = vld [vmem:[%s2 + $0x1028] sm:$0xff]
    %v1623 = vld [vmem:[%s2 + $0x1030] sm:$0xff]
    %v1624 = vld [vmem:[%s2 + $0x1038] sm:$0xff]
    %v1625 = vld [vmem:[%s2 + $0x1040] sm:$0xff]
    %v1626 = vld [vmem:[%s2 + $0x1048] sm:$0xff]
    %v1627 = vld [vmem:[%s2 + $0x1050] sm:$0xff]
    %v1628 = vld [vmem:[%s2 + $0x1058] sm:$0xff]
    %v1629 = vld [vmem:[%s2 + $0x1060] sm:$0xff]
    %v1630 = vld [vmem:[%s2 + $0x1068] sm:$0xff]
    %v1631 = vld [vmem:[%s2 + $0x1070] sm:$0xff]
    %v1632 = vld [vmem:[%s2 + $0x1078] sm:$0xff]
    %v1633 = vld [vmem:[%s2 + $0x1080] sm:$0xff]
    %v1634 = vld [vmem:[%s2 + $0x1088] sm:$0xff]
    %v1635 = vld [vmem:[%s2 + $0x1090] sm:$0xff]
    %v1636 = vld [vmem:[%s2 + $0x1098] sm:$0xff]
    %v1637 = vld [vmem:[%s2 + $0x10a0] sm:$0xff]
    %v1638 = vld [vmem:[%s2 + $0x10a8] sm:$0xff]
    %v1639 = vld [vmem:[%s2 + $0x10b0] sm:$0xff]
    %v1640 = vld [vmem:[%s2 + $0x10b8] sm:$0xff]
    %v1641 = vld [vmem:[%s2 + $0x10c0] sm:$0xff]
    %v1642 = vld [vmem:[%s2 + $0x10c8] sm:$0xff]
    %v1643 = vld [vmem:[%s2 + $0x10d0] sm:$0xff]
    %v1644 = vld [vmem:[%s2 + $0x10d8] sm:$0xff]
    %v1645 = vld [vmem:[%s2 + $0x10e0] sm:$0xff]
    %v1646 = vld [vmem:[%s2 + $0x10e8] sm:$0xff]
    %v1647 = vld [vmem:[%s2 + $0x10f0] sm:$0xff]
    %v1648 = vld [vmem:[%s2 + $0x10f8] sm:$0xff]
    %v1649 = vld [vmem:[%s2 + $0x1100] sm:$0xff]
    %v1650 = vld [vmem:[%s2 + $0x1108] sm:$0xff]
    %v1651 = vld [vmem:[%s2 + $0x1110] sm:$0xff]
    %v1652 = vld [vmem:[%s2 + $0x1118] sm:$0xff]
    %v1653 = vld [vmem:[%s2 + $0x1120] sm:$0xff]
    %v1654 = vld [vmem:[%s2 + $0x1128] sm:$0xff]
    %v1655 = vld [vmem:[%s2 + $0x1130] sm:$0xff]
    %v1656 = vld [vmem:[%s2 + $0x1138] sm:$0xff]
    %v1657 = vld [vmem:[%s2 + $0x1140] sm:$0xff]
    %v1658 = vld [vmem:[%s2 + $0x1148] sm:$0xff]
    %v1659 = vld [vmem:[%s2 + $0x1150] sm:$0xff]
    %v1660 = vld [vmem:[%s2 + $0x1158] sm:$0xff]
    %v1661 = vld [vmem:[%s2 + $0x1160] sm:$0xff]
    %v1662 = vld [vmem:[%s2 + $0x1168] sm:$0xff]
    %v1663 = vld [vmem:[%s2 + $0x1170] sm:$0xff]
    %v1664 = vld [vmem:[%s2 + $0x1178] sm:$0xff]
    %v1665 = vld [vmem:[%s2 + $0x1180] sm:$0xff]
    %v1666 = vld [vmem:[%s2 + $0x1188] sm:$0xff]
    %v1667 = vld [vmem:[%s2 + $0x1190] sm:$0xff]
    %v1668 = vld [vmem:[%s2 + $0x1198] sm:$0xff]
    %v1669 = vld [vmem:[%s2 + $0x11a0] sm:$0xff]
    %v1670 = vld [vmem:[%s2 + $0x11a8] sm:$0xff]
    %v1671 = vld [vmem:[%s2 + $0x11b0] sm:$0xff]
    %v1672 = vld [vmem:[%s2 + $0x11b8] sm:$0xff]
    %v1673 = vld [vmem:[%s2 + $0x11c0] sm:$0xff]
    %v1674 = vld [vmem:[%s2 + $0x11c8] sm:$0xff]
    %v1675 = vld [vmem:[%s2 + $0x11d0] sm:$0xff]
    %v1676 = vld [vmem:[%s2 + $0x11d8] sm:$0xff]
    %v1677 = vld [vmem:[%s2 + $0x11e0] sm:$0xff]
    %v1678 = vld [vmem:[%s2 + $0x11e8] sm:$0xff]
    %v1679 = vld [vmem:[%s2 + $0x11f0] sm:$0xff]
    %v1680 = vld [vmem:[%s2 + $0x11f8] sm:$0xff]
    %v1681 = vld [vmem:[%s2 + $0x1200] sm:$0xff]
    %v1682 = vld [vmem:[%s2 + $0x1208] sm:$0xff]
    %v1683 = vld [vmem:[%s2 + $0x1210] sm:$0xff]
    %v1684 = vld [vmem:[%s2 + $0x1218] sm:$0xff]
    %v1685 = vld [vmem:[%s2 + $0x1220] sm:$0xff]
    %v1686 = vld [vmem:[%s2 + $0x1228] sm:$0xff]
    %v1687 = vld [vmem:[%s2 + $0x1230] sm:$0xff]
    %v1688 = vld [vmem:[%s2 + $0x1238] sm:$0xff]
    %v1689 = vld [vmem:[%s2 + $0x1240] sm:$0xff]
    %v1690 = vld [vmem:[%s2 + $0x1248] sm:$0xff]
    %v1691 = vld [vmem:[%s2 + $0x1250] sm:$0xff]
    %v1692 = vld [vmem:[%s2 + $0x1258] sm:$0xff]
    %v1693 = vld [vmem:[%s2 + $0x1260] sm:$0xff]
    %v1694 = vld [vmem:[%s2 + $0x1268] sm:$0xff]
    %v1695 = vld [vmem:[%s2 + $0x1270] sm:$0xff]
    %v1696 = vld [vmem:[%s2 + $0x1278] sm:$0xff]
    %v1697 = vld [vmem:[%s2 + $0x1280] sm:$0xff]
    %v1698 = vld [vmem:[%s2 + $0x1288] sm:$0xff]
    %v1699 = vld [vmem:[%s2 + $0x1290] sm:$0xff]
    %v1700 = vld [vmem:[%s2 + $0x1298] sm:$0xff]
    %v1701 = vld [vmem:[%s2 + $0x12a0] sm:$0xff]
    %v1702 = vld [vmem:[%s2 + $0x12a8] sm:$0xff]
    %v1703 = vld [vmem:[%s2 + $0x12b0] sm:$0xff]
    %v1704 = vld [vmem:[%s2 + $0x12b8] sm:$0xff]
    %v1705 = vld [vmem:[%s2 + $0x12c0] sm:$0xff]
    %v1706 = vld [vmem:[%s2 + $0x12c8] sm:$0xff]
    %v1707 = vld [vmem:[%s2 + $0x12d0] sm:$0xff]
    %v1708 = vld [vmem:[%s2 + $0x12d8] sm:$0xff]
    %v1709 = vld [vmem:[%s2 + $0x12e0] sm:$0xff]
    %v1710 = vld [vmem:[%s2 + $0x12e8] sm:$0xff]
    %v1711 = vld [vmem:[%s2 + $0x12f0] sm:$0xff]
    %v1712 = vld [vmem:[%s2 + $0x12f8] sm:$0xff]
    %v1713 = vld [vmem:[%s2 + $0x1300] sm:$0xff]
    %v1714 = vld [vmem:[%s2 + $0x1308] sm:$0xff]
    %v1715 = vld [vmem:[%s2 + $0x1310] sm:$0xff]
    %v1716 = vld [vmem:[%s2 + $0x1318] sm:$0xff]
    %v1717 = vld [vmem:[%s2 + $0x1320] sm:$0xff]
    %v1718 = vld [vmem:[%s2 + $0x1328] sm:$0xff]
    %v1719 = vld [vmem:[%s2 + $0x1330] sm:$0xff]
    %v1720 = vld [vmem:[%s2 + $0x1338] sm:$0xff]
    %v1721 = vld [vmem:[%s2 + $0x1340] sm:$0xff]
    %v1722 = vld [vmem:[%s2 + $0x1348] sm:$0xff]
    %v1723 = vld [vmem:[%s2 + $0x1350] sm:$0xff]
    %v1724 = vld [vmem:[%s2 + $0x1358] sm:$0xff]
    %v1725 = vld [vmem:[%s2 + $0x1360] sm:$0xff]
    %v1726 = vld [vmem:[%s2 + $0x1368] sm:$0xff]
    %v1727 = vld [vmem:[%s2 + $0x1370] sm:$0xff]
    %v1728 = vld [vmem:[%s2 + $0x1378] sm:$0xff]
    %v1729 = vld [vmem:[%s2 + $0x1380] sm:$0xff]
    %v1730 = vld [vmem:[%s2 + $0x1388] sm:$0xff]
    %v1731 = vld [vmem:[%s2 + $0x1390] sm:$0xff]
    %v1732 = vld [vmem:[%s2 + $0x1398] sm:$0xff]
    %v1733 = vld [vmem:[%s2 + $0x13a0] sm:$0xff]
    %v1734 = vld [vmem:[%s2 + $0x13a8] sm:$0xff]
    %v1735 = vld [vmem:[%s2 + $0x13b0] sm:$0xff]
    %v1736 = vld [vmem:[%s2 + $0x13b8] sm:$0xff]
    %v1737 = vld [vmem:[%s2 + $0x13c0] sm:$0xff]
    %v1738 = vld [vmem:[%s2 + $0x13c8] sm:$0xff]
    %v1739 = vld [vmem:[%s2 + $0x13d0] sm:$0xff]
    %v1740 = vld [vmem:[%s2 + $0x13d8] sm:$0xff]
    %v1741 = vld [vmem:[%s2 + $0x13e0] sm:$0xff]
    %v1742 = vld [vmem:[%s2 + $0x13e8] sm:$0xff]
    %v1743 = vld [vmem:[%s2 + $0x13f0] sm:$0xff]
    %v1744 = vld [vmem:[%s2 + $0x13f8] sm:$0xff]
    %v1745 = vld [vmem:[%s2 + $0x1400] sm:$0xff]
    %v1746 = vld [vmem:[%s2 + $0x1408] sm:$0xff]
    %v1747 = vld [vmem:[%s2 + $0x1410] sm:$0xff]
    %v1748 = vld [vmem:[%s2 + $0x1418] sm:$0xff]
    %v1749 = vld [vmem:[%s2 + $0x1420] sm:$0xff]
    %v1750 = vld [vmem:[%s2 + $0x1428] sm:$0xff]
    %v1751 = vld [vmem:[%s2 + $0x1430] sm:$0xff]
    %v1752 = vld [vmem:[%s2 + $0x1438] sm:$0xff]
    %v1753 = vld [vmem:[%s2 + $0x1440] sm:$0xff]
    %v1754 = vld [vmem:[%s2 + $0x1448] sm:$0xff]
    %v1755 = vld [vmem:[%s2 + $0x1450] sm:$0xff]
    %v1756 = vld [vmem:[%s2 + $0x1458] sm:$0xff]
    %v1757 = vld [vmem:[%s2 + $0x1460] sm:$0xff]
    %v1758 = vld [vmem:[%s2 + $0x1468] sm:$0xff]
    %v1759 = vld [vmem:[%s2 + $0x1470] sm:$0xff]
    %v1760 = vld [vmem:[%s2 + $0x1478] sm:$0xff]
    %v1761 = vld [vmem:[%s2 + $0x1480] sm:$0xff]
    %v1762 = vld [vmem:[%s2 + $0x1488] sm:$0xff]
    %v1763 = vld [vmem:[%s2 + $0x1490] sm:$0xff]
    %v1764 = vld [vmem:[%s2 + $0x1498] sm:$0xff]
    %v1765 = vld [vmem:[%s2 + $0x14a0] sm:$0xff]
    %v1766 = vld [vmem:[%s2 + $0x14a8] sm:$0xff]
    %v1767 = vld [vmem:[%s2 + $0x14b0] sm:$0xff]
    %v1768 = vld [vmem:[%s2 + $0x14b8] sm:$0xff]
    %v1769 = vld [vmem:[%s2 + $0x14c0] sm:$0xff]
    %v1770 = vld [vmem:[%s2 + $0x14c8] sm:$0xff]
    %v1771 = vld [vmem:[%s2 + $0x14d0] sm:$0xff]
    %v1772 = vld [vmem:[%s2 + $0x14d8] sm:$0xff]
    %v1773 = vld [vmem:[%s2 + $0x14e0] sm:$0xff]
    %v1774 = vld [vmem:[%s2 + $0x14e8] sm:$0xff]
    %v1775 = vld [vmem:[%s2 + $0x14f0] sm:$0xff]
    %v1776 = vld [vmem:[%s2 + $0x14f8] sm:$0xff]
    %v1777 = vld [vmem:[%s2 + $0x1500] sm:$0xff]
    %v1778 = vld [vmem:[%s2 + $0x1508] sm:$0xff]
    %v1779 = vld [vmem:[%s2 + $0x1510] sm:$0xff]
    %v1780 = vld [vmem:[%s2 + $0x1518] sm:$0xff]
    %v1781 = vld [vmem:[%s2 + $0x1520] sm:$0xff]
    %v1782 = vld [vmem:[%s2 + $0x1528] sm:$0xff]
    %v1783 = vld [vmem:[%s2 + $0x1530] sm:$0xff]
    %v1784 = vld [vmem:[%s2 + $0x1538] sm:$0xff]
    %v1785 = vld [vmem:[%s2 + $0x1540] sm:$0xff]
    %v1786 = vld [vmem:[%s2 + $0x1548] sm:$0xff]
    %v1787 = vld [vmem:[%s2 + $0x1550] sm:$0xff]
    %v1788 = vld [vmem:[%s2 + $0x1558] sm:$0xff]
    %v1789 = vld [vmem:[%s2 + $0x1560] sm:$0xff]
    %v1790 = vld [vmem:[%s2 + $0x1568] sm:$0xff]
    %v1791 = vld [vmem:[%s2 + $0x1570] sm:$0xff]
    %v1792 = vld [vmem:[%s2 + $0x1578] sm:$0xff]
    %v1793 = vld [vmem:[%s2 + $0x1580] sm:$0xff]
    %v1794 = vld [vmem:[%s2 + $0x1588] sm:$0xff]
    %v1795 = vld [vmem:[%s2 + $0x1590] sm:$0xff]
    %v1796 = vld [vmem:[%s2 + $0x1598] sm:$0xff]
    %v1797 = vld [vmem:[%s2 + $0x15a0] sm:$0xff]
    %v1798 = vld [vmem:[%s2 + $0x15a8] sm:$0xff]
    %v1799 = vld [vmem:[%s2 + $0x15b0] sm:$0xff]
    %v1800 = vld [vmem:[%s2 + $0x15b8] sm:$0xff]
    %v1801 = vld [vmem:[%s2 + $0x15c0] sm:$0xff]
    %v1802 = vld [vmem:[%s2 + $0x15c8] sm:$0xff]
    %v1803 = vld [vmem:[%s2 + $0x15d0] sm:$0xff]
    %v1804 = vld [vmem:[%s2 + $0x15d8] sm:$0xff]
    %v1805 = vld [vmem:[%s2 + $0x15e0] sm:$0xff]
    %v1806 = vld [vmem:[%s2 + $0x15e8] sm:$0xff]
    %v1807 = vld [vmem:[%s2 + $0x15f0] sm:$0xff]
    %v1808 = vld [vmem:[%s2 + $0x15f8] sm:$0xff]
    %v1809 = vld [vmem:[%s2 + $0x1600] sm:$0xff]
    %v1810 = vld [vmem:[%s2 + $0x1608] sm:$0xff]
    %v1811 = vld [vmem:[%s2 + $0x1610] sm:$0xff]
    %v1812 = vld [vmem:[%s2 + $0x1618] sm:$0xff]
    %v1813 = vld [vmem:[%s2 + $0x1620] sm:$0xff]
    %v1814 = vld [vmem:[%s2 + $0x1628] sm:$0xff]
    %v1815 = vld [vmem:[%s2 + $0x1630] sm:$0xff]
    %v1816 = vld [vmem:[%s2 + $0x1638] sm:$0xff]
    %v1817 = vld [vmem:[%s2 + $0x1640] sm:$0xff]
    %v1818 = vld [vmem:[%s2 + $0x1648] sm:$0xff]
    %v1819 = vld [vmem:[%s2 + $0x1650] sm:$0xff]
    %v1820 = vld [vmem:[%s2 + $0x1658] sm:$0xff]
    %v1821 = vld [vmem:[%s2 + $0x1660] sm:$0xff]
    %v1822 = vld [vmem:[%s2 + $0x1668] sm:$0xff]
    %v1823 = vld [vmem:[%s2 + $0x1670] sm:$0xff]
    %v1824 = vld [vmem:[%s2 + $0x1678] sm:$0xff]
    %v1825 = vld [vmem:[%s2 + $0x1680] sm:$0xff]
    %v1826 = vld [vmem:[%s2 + $0x1688] sm:$0xff]
    %v1827 = vld [vmem:[%s2 + $0x1690] sm:$0xff]
    %v1828 = vld [vmem:[%s2 + $0x1698] sm:$0xff]
    %v1829 = vld [vmem:[%s2 + $0x16a0] sm:$0xff]
    %v1830 = vld [vmem:[%s2 + $0x16a8] sm:$0xff]
    %v1831 = vld [vmem:[%s2 + $0x16b0] sm:$0xff]
    %v1832 = vld [vmem:[%s2 + $0x16b8] sm:$0xff]
    %v1833 = vld [vmem:[%s2 + $0x16c0] sm:$0xff]
    %v1834 = vld [vmem:[%s2 + $0x16c8] sm:$0xff]
    %v1835 = vld [vmem:[%s2 + $0x16d0] sm:$0xff]
    %v1836 = vld [vmem:[%s2 + $0x16d8] sm:$0xff]
    %v1837 = vld [vmem:[%s2 + $0x16e0] sm:$0xff]
    %v1838 = vld [vmem:[%s2 + $0x16e8] sm:$0xff]
    %v1839 = vld [vmem:[%s2 + $0x16f0] sm:$0xff]
    %v1840 = vld [vmem:[%s2 + $0x16f8] sm:$0xff]
    %v1841 = vld [vmem:[%s2 + $0x1700] sm:$0xff]
    %v1842 = vld [vmem:[%s2 + $0x1708] sm:$0xff]
    %v1843 = vld [vmem:[%s2 + $0x1710] sm:$0xff]
    %v1844 = vld [vmem:[%s2 + $0x1718] sm:$0xff]
    %v1845 = vld [vmem:[%s2 + $0x1720] sm:$0xff]
    %v1846 = vld [vmem:[%s2 + $0x1728] sm:$0xff]
    %v1847 = vld [vmem:[%s2 + $0x1730] sm:$0xff]
    %v1848 = vld [vmem:[%s2 + $0x1738] sm:$0xff]
    %v1849 = vld [vmem:[%s2 + $0x1740] sm:$0xff]
    %v1850 = vld [vmem:[%s2 + $0x1748] sm:$0xff]
    %v1851 = vld [vmem:[%s2 + $0x1750] sm:$0xff]
    %v1852 = vld [vmem:[%s2 + $0x1758] sm:$0xff]
    %v1853 = vld [vmem:[%s2 + $0x1760] sm:$0xff]
    %v1854 = vld [vmem:[%s2 + $0x1768] sm:$0xff]
    %v1855 = vld [vmem:[%s2 + $0x1770] sm:$0xff]
    %v1856 = vld [vmem:[%s2 + $0x1778] sm:$0xff]
    %v1857 = vld [vmem:[%s2 + $0x1780] sm:$0xff]
    %v1858 = vld [vmem:[%s2 + $0x1788] sm:$0xff]
    %v1859 = vld [vmem:[%s2 + $0x1790] sm:$0xff]
    %v1860 = vld [vmem:[%s2 + $0x1798] sm:$0xff]
    %v1861 = vld [vmem:[%s2 + $0x17a0] sm:$0xff]
    %v1862 = vld [vmem:[%s2 + $0x17a8] sm:$0xff]
    %v1863 = vld [vmem:[%s2 + $0x17b0] sm:$0xff]
    %v1864 = vld [vmem:[%s2 + $0x17b8] sm:$0xff]
    %v1865 = vld [vmem:[%s2 + $0x17c0] sm:$0xff]
    %v1866 = vld [vmem:[%s2 + $0x17c8] sm:$0xff]
    %v1867 = vld [vmem:[%s2 + $0x17d0] sm:$0xff]
    %v1868 = vld [vmem:[%s2 + $0x17d8] sm:$0xff]
    %v1869 = vld [vmem:[%s2 + $0x17e0] sm:$0xff]
    %v1870 = vld [vmem:[%s2 + $0x17e8] sm:$0xff]
    %v1871 = vld [vmem:[%s2 + $0x17f0] sm:$0xff]
    %v1872 = vld [vmem:[%s2 + $0x17f8] sm:$0xff]
    %v1873 = vld [vmem:[%s2 + $0x1800] sm:$0xff]
    %v1874 = vld [vmem:[%s2 + $0x1808] sm:$0xff]
    %v1875 = vld [vmem:[%s2 + $0x1810] sm:$0xff]
    %v1876 = vld [vmem:[%s2 + $0x1818] sm:$0xff]
    %v1877 = vld [vmem:[%s2 + $0x1820] sm:$0xff]
    %v1878 = vld [vmem:[%s2 + $0x1828] sm:$0xff]
    %v1879 = vld [vmem:[%s2 + $0x1830] sm:$0xff]
    %v1880 = vld [vmem:[%s2 + $0x1838] sm:$0xff]
    %v1881 = vld [vmem:[%s2 + $0x1840] sm:$0xff]
    %v1882 = vld [vmem:[%s2 + $0x1848] sm:$0xff]
    %v1883 = vld [vmem:[%s2 + $0x1850] sm:$0xff]
    %v1884 = vld [vmem:[%s2 + $0x1858] sm:$0xff]
    %v1885 = vld [vmem:[%s2 + $0x1860] sm:$0xff]
    %v1886 = vld [vmem:[%s2 + $0x1868] sm:$0xff]
    %v1887 = vld [vmem:[%s2 + $0x1870] sm:$0xff]
    %v1888 = vld [vmem:[%s2 + $0x1878] sm:$0xff]
    %v1889 = vld [vmem:[%s2 + $0x1880] sm:$0xff]
    %v1890 = vld [vmem:[%s2 + $0x1888] sm:$0xff]
    %v1891 = vld [vmem:[%s2 + $0x1890] sm:$0xff]
    %v1892 = vld [vmem:[%s2 + $0x1898] sm:$0xff]
    %v1893 = vld [vmem:[%s2 + $0x18a0] sm:$0xff]
    %v1894 = vld [vmem:[%s2 + $0x18a8] sm:$0xff]
    %v1895 = vld [vmem:[%s2 + $0x18b0] sm:$0xff]
    %v1896 = vld [vmem:[%s2 + $0x18b8] sm:$0xff]
    %v1897 = vld [vmem:[%s2 + $0x18c0] sm:$0xff]
    %v1898 = vld [vmem:[%s2 + $0x18c8] sm:$0xff]
    %v1899 = vld [vmem:[%s2 + $0x18d0] sm:$0xff]
    %v1900 = vld [vmem:[%s2 + $0x18d8] sm:$0xff]
    %v1901 = vld [vmem:[%s2 + $0x18e0] sm:$0xff]
    %v1902 = vld [vmem:[%s2 + $0x18e8] sm:$0xff]
    %v1903 = vld [vmem:[%s2 + $0x18f0] sm:$0xff]
    %v1904 = vld [vmem:[%s2 + $0x18f8] sm:$0xff]
    %v1905 = vld [vmem:[%s2 + $0x1900] sm:$0xff]
    %v1906 = vld [vmem:[%s2 + $0x1908] sm:$0xff]
    %v1907 = vld [vmem:[%s2 + $0x1910] sm:$0xff]
    %v1908 = vld [vmem:[%s2 + $0x1918] sm:$0xff]
    %v1909 = vld [vmem:[%s2 + $0x1920] sm:$0xff]
    %v1910 = vld [vmem:[%s2 + $0x1928] sm:$0xff]
    %v1911 = vld [vmem:[%s2 + $0x1930] sm:$0xff]
    %v1912 = vld [vmem:[%s2 + $0x1938] sm:$0xff]
    %v1913 = vld [vmem:[%s2 + $0x1940] sm:$0xff]
    %v1914 = vld [vmem:[%s2 + $0x1948] sm:$0xff]
    %v1915 = vld [vmem:[%s2 + $0x1950] sm:$0xff]
    %v1916 = vld [vmem:[%s2 + $0x1958] sm:$0xff]
    %v1917 = vld [vmem:[%s2 + $0x1960] sm:$0xff]
    %v1918 = vld [vmem:[%s2 + $0x1968] sm:$0xff]
    %v1919 = vld [vmem:[%s2 + $0x1970] sm:$0xff]
    %v1920 = vld [vmem:[%s2 + $0x1978] sm:$0xff]
    %v1921 = vld [vmem:[%s2 + $0x1980] sm:$0xff]
    %v1922 = vld [vmem:[%s2 + $0x1988] sm:$0xff]
    %v1923 = vld [vmem:[%s2 + $0x1990] sm:$0xff]
    %v1924 = vld [vmem:[%s2 + $0x1998] sm:$0xff]
    %v1925 = vld [vmem:[%s2 + $0x19a0] sm:$0xff]
    %v1926 = vld [vmem:[%s2 + $0x19a8] sm:$0xff]
    %v1927 = vld [vmem:[%s2 + $0x19b0] sm:$0xff]
    %v1928 = vld [vmem:[%s2 + $0x19b8] sm:$0xff]
    %v1929 = vld [vmem:[%s2 + $0x19c0] sm:$0xff]
    %v1930 = vld [vmem:[%s2 + $0x19c8] sm:$0xff]
    %v1931 = vld [vmem:[%s2 + $0x19d0] sm:$0xff]
    %v1932 = vld [vmem:[%s2 + $0x19d8] sm:$0xff]
    %v1933 = vld [vmem:[%s2 + $0x19e0] sm:$0xff]
    %v1934 = vld [vmem:[%s2 + $0x19e8] sm:$0xff]
    %v1935 = vld [vmem:[%s2 + $0x19f0] sm:$0xff]
    %v1936 = vld [vmem:[%s2 + $0x19f8] sm:$0xff]
    %v1937 = vld [vmem:[%s2 + $0x1a00] sm:$0xff]
    %v1938 = vld [vmem:[%s2 + $0x1a08] sm:$0xff]
    %v1939 = vld [vmem:[%s2 + $0x1a10] sm:$0xff]
    %v1940 = vld [vmem:[%s2 + $0x1a18] sm:$0xff]
    %v1941 = vld [vmem:[%s2 + $0x1a20] sm:$0xff]
    %v1942 = vld [vmem:[%s2 + $0x1a28] sm:$0xff]
    %v1943 = vld [vmem:[%s2 + $0x1a30] sm:$0xff]
    %v1944 = vld [vmem:[%s2 + $0x1a38] sm:$0xff]
    %v1945 = vld [vmem:[%s2 + $0x1a40] sm:$0xff]
    %v1946 = vld [vmem:[%s2 + $0x1a48] sm:$0xff]
    %v1947 = vld [vmem:[%s2 + $0x1a50] sm:$0xff]
    %v1948 = vld [vmem:[%s2 + $0x1a58] sm:$0xff]
    %v1949 = vld [vmem:[%s2 + $0x1a60] sm:$0xff]
    %v1950 = vld [vmem:[%s2 + $0x1a68] sm:$0xff]
    %v1951 = vld [vmem:[%s2 + $0x1a70] sm:$0xff]
    %v1952 = vld [vmem:[%s2 + $0x1a78] sm:$0xff]
    %v1953 = vld [vmem:[%s2 + $0x1a80] sm:$0xff]
    %v1954 = vld [vmem:[%s2 + $0x1a88] sm:$0xff]
    %v1955 = vld [vmem:[%s2 + $0x1a90] sm:$0xff]
    %v1956 = vld [vmem:[%s2 + $0x1a98] sm:$0xff]
    %v1957 = vld [vmem:[%s2 + $0x1aa0] sm:$0xff]
    %v1958 = vld [vmem:[%s2 + $0x1aa8] sm:$0xff]
    %v1959 = vld [vmem:[%s2 + $0x1ab0] sm:$0xff]
    %v1960 = vld [vmem:[%s2 + $0x1ab8] sm:$0xff]
    %v1961 = vld [vmem:[%s2 + $0x1ac0] sm:$0xff]
    %v1962 = vld [vmem:[%s2 + $0x1ac8] sm:$0xff]
    %v1963 = vld [vmem:[%s2 + $0x1ad0] sm:$0xff]
    %v1964 = vld [vmem:[%s2 + $0x1ad8] sm:$0xff]
    %v1965 = vld [vmem:[%s2 + $0x1ae0] sm:$0xff]
    %v1966 = vld [vmem:[%s2 + $0x1ae8] sm:$0xff]
    %v1967 = vld [vmem:[%s2 + $0x1af0] sm:$0xff]
    %v1968 = vld [vmem:[%s2 + $0x1af8] sm:$0xff]
    %v1969 = vld [vmem:[%s2 + $0x1b00] sm:$0xff]
    %v1970 = vld [vmem:[%s2 + $0x1b08] sm:$0xff]
    %v1971 = vld [vmem:[%s2 + $0x1b10] sm:$0xff]
    %v1972 = vld [vmem:[%s2 + $0x1b18] sm:$0xff]
    %v1973 = vld [vmem:[%s2 + $0x1b20] sm:$0xff]
    %v1974 = vld [vmem:[%s2 + $0x1b28] sm:$0xff]
    %v1975 = vld [vmem:[%s2 + $0x1b30] sm:$0xff]
    %v1976 = vld [vmem:[%s2 + $0x1b38] sm:$0xff]
    %v1977 = vld [vmem:[%s2 + $0x1b40] sm:$0xff]
    %v1978 = vld [vmem:[%s2 + $0x1b48] sm:$0xff]
    %v1979 = vld [vmem:[%s2 + $0x1b50] sm:$0xff]
    %v1980 = vld [vmem:[%s2 + $0x1b58] sm:$0xff]
    %v1981 = vld [vmem:[%s2 + $0x1b60] sm:$0xff]
    %v1982 = vld [vmem:[%s2 + $0x1b68] sm:$0xff]
    %v1983 = vld [vmem:[%s2 + $0x1b70] sm:$0xff]
    %v1984 = vld [vmem:[%s2 + $0x1b78] sm:$0xff]
    %v1985 = vld [vmem:[%s2 + $0x1b80] sm:$0xff]
    %v1986 = vld [vmem:[%s2 + $0x1b88] sm:$0xff]
    %v1987 = vld [vmem:[%s2 + $0x1b90] sm:$0xff]
    %v1988 = vld [vmem:[%s2 + $0x1b98] sm:$0xff]
    %v1989 = vld [vmem:[%s2 + $0x1ba0] sm:$0xff]
    %v1990 = vld [vmem:[%s2 + $0x1ba8] sm:$0xff]
    %v1991 = vld [vmem:[%s2 + $0x1bb0] sm:$0xff]
    %v1992 = vld [vmem:[%s2 + $0x1bb8] sm:$0xff]
    %v1993 = vld [vmem:[%s2 + $0x1bc0] sm:$0xff]
    %v1994 = vld [vmem:[%s2 + $0x1bc8] sm:$0xff]
    %v1995 = vld [vmem:[%s2 + $0x1bd0] sm:$0xff]
    %v1996 = vld [vmem:[%s2 + $0x1bd8] sm:$0xff]
    %v1997 = vld [vmem:[%s2 + $0x1be0] sm:$0xff]
    %v1998 = vld [vmem:[%s2 + $0x1be8] sm:$0xff]
    %v1999 = vld [vmem:[%s2 + $0x1bf0] sm:$0xff]
    %v2000 = vld [vmem:[%s2 + $0x1bf8] sm:$0xff]
    %v2001 = vld [vmem:[%s2 + $0x1c00] sm:$0xff]
    %v2002 = vld [vmem:[%s2 + $0x1c08] sm:$0xff]
    %v2003 = vld [vmem:[%s2 + $0x1c10] sm:$0xff]
    %v2004 = vld [vmem:[%s2 + $0x1c18] sm:$0xff]
    %v2005 = vld [vmem:[%s2 + $0x1c20] sm:$0xff]
    %v2006 = vld [vmem:[%s2 + $0x1c28] sm:$0xff]
    %v2007 = vld [vmem:[%s2 + $0x1c30] sm:$0xff]
    %v2008 = vld [vmem:[%s2 + $0x1c38] sm:$0xff]
    %v2009 = vld [vmem:[%s2 + $0x1c40] sm:$0xff]
    %v2010 = vld [vmem:[%s2 + $0x1c48] sm:$0xff]
    %v2011 = vld [vmem:[%s2 + $0x1c50] sm:$0xff]
    %v2012 = vld [vmem:[%s2 + $0x1c58] sm:$0xff]
    %v2013 = vld [vmem:[%s2 + $0x1c60] sm:$0xff]
    %v2014 = vld [vmem:[%s2 + $0x1c68] sm:$0xff]
    %v2015 = vld [vmem:[%s2 + $0x1c70] sm:$0xff]
    %v2016 = vld [vmem:[%s2 + $0x1c78] sm:$0xff]
    %v2017 = vld [vmem:[%s2 + $0x1c80] sm:$0xff]
    %v2018 = vld [vmem:[%s2 + $0x1c88] sm:$0xff]
    %v2019 = vld [vmem:[%s2 + $0x1c90] sm:$0xff]
    %v2020 = vld [vmem:[%s2 + $0x1c98] sm:$0xff]
    %v2021 = vld [vmem:[%s2 + $0x1ca0] sm:$0xff]
    %v2022 = vld [vmem:[%s2 + $0x1ca8] sm:$0xff]
    %v2023 = vld [vmem:[%s2 + $0x1cb0] sm:$0xff]
    %v2024 = vld [vmem:[%s2 + $0x1cb8] sm:$0xff]
    %v2025 = vld [vmem:[%s2 + $0x1cc0] sm:$0xff]
    %v2026 = vld [vmem:[%s2 + $0x1cc8] sm:$0xff]
    %v2027 = vld [vmem:[%s2 + $0x1cd0] sm:$0xff]
    %v2028 = vld [vmem:[%s2 + $0x1cd8] sm:$0xff]
    %v2029 = vld [vmem:[%s2 + $0x1ce0] sm:$0xff]
    %v2030 = vld [vmem:[%s2 + $0x1ce8] sm:$0xff]
    %v2031 = vld [vmem:[%s2 + $0x1cf0] sm:$0xff]
    %v2032 = vld [vmem:[%s2 + $0x1cf8] sm:$0xff]
    %v2033 = vld [vmem:[%s2 + $0x1d00] sm:$0xff]
    %v2034 = vld [vmem:[%s2 + $0x1d08] sm:$0xff]
    %v2035 = vld [vmem:[%s2 + $0x1d10] sm:$0xff]
    %v2036 = vld [vmem:[%s2 + $0x1d18] sm:$0xff]
    %v2037 = vld [vmem:[%s2 + $0x1d20] sm:$0xff]
    %v2038 = vld [vmem:[%s2 + $0x1d28] sm:$0xff]
    %v2039 = vld [vmem:[%s2 + $0x1d30] sm:$0xff]
    %v2040 = vld [vmem:[%s2 + $0x1d38] sm:$0xff]
    %v2041 = vld [vmem:[%s2 + $0x1d40] sm:$0xff]
    %v2042 = vld [vmem:[%s2 + $0x1d48] sm:$0xff]
    %v2043 = vld [vmem:[%s2 + $0x1d50] sm:$0xff]
    %v2044 = vld [vmem:[%s2 + $0x1d58] sm:$0xff]
    %v2045 = vld [vmem:[%s2 + $0x1d60] sm:$0xff]
    %v2046 = vld [vmem:[%s2 + $0x1d68] sm:$0xff]
    %v2047 = vld [vmem:[%s2 + $0x1d70] sm:$0xff]
    %v2048 = vld [vmem:[%s2 + $0x1d78] sm:$0xff]
    %v2049 = vld [vmem:[%s2 + $0x1d80] sm:$0xff]
    %v2050 = vld [vmem:[%s2 + $0x1d88] sm:$0xff]
    %v2051 = vld [vmem:[%s2 + $0x1d90] sm:$0xff]
    %v2052 = vld [vmem:[%s2 + $0x1d98] sm:$0xff]
    %v2053 = vld [vmem:[%s2 + $0x1da0] sm:$0xff]
    %v2054 = vld [vmem:[%s2 + $0x1da8] sm:$0xff]
    %v2055 = vld [vmem:[%s2 + $0x1db0] sm:$0xff]
    %v2056 = vld [vmem:[%s2 + $0x1db8] sm:$0xff]
    %v2057 = vld [vmem:[%s2 + $0x1dc0] sm:$0xff]
    %v2058 = vld [vmem:[%s2 + $0x1dc8] sm:$0xff]
    %v2059 = vld [vmem:[%s2 + $0x1dd0] sm:$0xff]
    %v2060 = vld [vmem:[%s2 + $0x1dd8] sm:$0xff]
    %v2061 = vld [vmem:[%s2 + $0x1de0] sm:$0xff]
    %v2062 = vld [vmem:[%s2 + $0x1de8] sm:$0xff]
    %v2063 = vld [vmem:[%s2 + $0x1df0] sm:$0xff]
    %v2064 = vld [vmem:[%s2 + $0x1df8] sm:$0xff]
    %v2065 = vld [vmem:[%s2 + $0x1e00] sm:$0xff]
    %v2066 = vld [vmem:[%s2 + $0x1e08] sm:$0xff]
    %v2067 = vld [vmem:[%s2 + $0x1e10] sm:$0xff]
    %v2068 = vld [vmem:[%s2 + $0x1e18] sm:$0xff]
    %v2069 = vld [vmem:[%s2 + $0x1e20] sm:$0xff]
    %v2070 = vld [vmem:[%s2 + $0x1e28] sm:$0xff]
    %v2071 = vld [vmem:[%s2 + $0x1e30] sm:$0xff]
    %v2072 = vld [vmem:[%s2 + $0x1e38] sm:$0xff]
    %v2073 = vld [vmem:[%s2 + $0x1e40] sm:$0xff]
    %v2074 = vld [vmem:[%s2 + $0x1e48] sm:$0xff]
    %v2075 = vld [vmem:[%s2 + $0x1e50] sm:$0xff]
    %v2076 = vld [vmem:[%s2 + $0x1e58] sm:$0xff]
    %v2077 = vld [vmem:[%s2 + $0x1e60] sm:$0xff]
    %v2078 = vld [vmem:[%s2 + $0x1e68] sm:$0xff]
    %v2079 = vld [vmem:[%s2 + $0x1e70] sm:$0xff]
    %v2080 = vld [vmem:[%s2 + $0x1e78] sm:$0xff]
    %v2081 = vld [vmem:[%s2 + $0x1e80] sm:$0xff]
    %v2082 = vld [vmem:[%s2 + $0x1e88] sm:$0xff]
    %v2083 = vld [vmem:[%s2 + $0x1e90] sm:$0xff]
    %v2084 = vld [vmem:[%s2 + $0x1e98] sm:$0xff]
    %v2085 = vld [vmem:[%s2 + $0x1ea0] sm:$0xff]
    %v2086 = vld [vmem:[%s2 + $0x1ea8] sm:$0xff]
    %v2087 = vld [vmem:[%s2 + $0x1eb0] sm:$0xff]
    %v2088 = vld [vmem:[%s2 + $0x1eb8] sm:$0xff]
    %v2089 = vld [vmem:[%s2 + $0x1ec0] sm:$0xff]
    %v2090 = vld [vmem:[%s2 + $0x1ec8] sm:$0xff]
    %v2091 = vld [vmem:[%s2 + $0x1ed0] sm:$0xff]
    %v2092 = vld [vmem:[%s2 + $0x1ed8] sm:$0xff]
    %v2093 = vld [vmem:[%s2 + $0x1ee0] sm:$0xff]
    %v2094 = vld [vmem:[%s2 + $0x1ee8] sm:$0xff]
    %v2095 = vld [vmem:[%s2 + $0x1ef0] sm:$0xff]
    %v2096 = vld [vmem:[%s2 + $0x1ef8] sm:$0xff]
    %v2097 = vld [vmem:[%s2 + $0x1f00] sm:$0xff]
    %v2098 = vld [vmem:[%s2 + $0x1f08] sm:$0xff]
    %v2099 = vld [vmem:[%s2 + $0x1f10] sm:$0xff]
    %v2100 = vld [vmem:[%s2 + $0x1f18] sm:$0xff]
    %v2101 = vld [vmem:[%s2 + $0x1f20] sm:$0xff]
    %v2102 = vld [vmem:[%s2 + $0x1f28] sm:$0xff]
    %v2103 = vld [vmem:[%s2 + $0x1f30] sm:$0xff]
    %v2104 = vld [vmem:[%s2 + $0x1f38] sm:$0xff]
    %v2105 = vld [vmem:[%s2 + $0x1f40] sm:$0xff]
    %v2106 = vld [vmem:[%s2 + $0x1f48] sm:$0xff]
    %v2107 = vld [vmem:[%s2 + $0x1f50] sm:$0xff]
    %v2108 = vld [vmem:[%s2 + $0x1f58] sm:$0xff]
    %v2109 = vld [vmem:[%s2 + $0x1f60] sm:$0xff]
    %v2110 = vld [vmem:[%s2 + $0x1f68] sm:$0xff]
    %v2111 = vld [vmem:[%s2 + $0x1f70] sm:$0xff]
    %v2112 = vld [vmem:[%s2 + $0x1f78] sm:$0xff]
    %v2113 = vld [vmem:[%s2 + $0x1f80] sm:$0xff]
    %v2114 = vld [vmem:[%s2 + $0x1f88] sm:$0xff]
    %v2115 = vld [vmem:[%s2 + $0x1f90] sm:$0xff]
    %v2116 = vld [vmem:[%s2 + $0x1f98] sm:$0xff]
    %v2117 = vld [vmem:[%s2 + $0x1fa0] sm:$0xff]
    %v2118 = vld [vmem:[%s2 + $0x1fa8] sm:$0xff]
    %v2119 = vld [vmem:[%s2 + $0x1fb0] sm:$0xff]
    %v2120 = vld [vmem:[%s2 + $0x1fb8] sm:$0xff]
    %v2121 = vld [vmem:[%s2 + $0x1fc0] sm:$0xff]
    %v2122 = vld [vmem:[%s2 + $0x1fc8] sm:$0xff]
    %v2123 = vld [vmem:[%s2 + $0x1fd0] sm:$0xff]
    %v2124 = vld [vmem:[%s2 + $0x1fd8] sm:$0xff]
    %v2125 = vld [vmem:[%s2 + $0x1fe0] sm:$0xff]
    %v2126 = vld [vmem:[%s2 + $0x1fe8] sm:$0xff]
    %v2127 = vld [vmem:[%s2 + $0x1ff0] sm:$0xff]
    %v2128 = vld [vmem:[%s2 + $0x1ff8] sm:$0xff]
    %v2129 = vld [vmem:[%s2 + $0x2000] sm:$0xff]
    %v2130 = vld [vmem:[%s2 + $0x2008] sm:$0xff]
    %v2131 = vld [vmem:[%s2 + $0x2010] sm:$0xff]
    %v2132 = vld [vmem:[%s2 + $0x2018] sm:$0xff]
    %v2133 = vld [vmem:[%s2 + $0x2020] sm:$0xff]
    %v2134 = vld [vmem:[%s2 + $0x2028] sm:$0xff]
    %v2135 = vld [vmem:[%s2 + $0x2030] sm:$0xff]
    %v2136 = vld [vmem:[%s2 + $0x2038] sm:$0xff]
    %v2137 = vld [vmem:[%s2 + $0x2040] sm:$0xff]
    %v2138 = vld [vmem:[%s2 + $0x2048] sm:$0xff]
    %v2139 = vld [vmem:[%s2 + $0x2050] sm:$0xff]
    %v2140 = vld [vmem:[%s2 + $0x2058] sm:$0xff]
    %v2141 = vld [vmem:[%s2 + $0x2060] sm:$0xff]
    %v2142 = vld [vmem:[%s2 + $0x2068] sm:$0xff]
    %v2143 = vld [vmem:[%s2 + $0x2070] sm:$0xff]
    %v2144 = vld [vmem:[%s2 + $0x2078] sm:$0xff]
    %v2145 = vld [vmem:[%s2 + $0x2080] sm:$0xff]
    %v2146 = vld [vmem:[%s2 + $0x2088] sm:$0xff]
    %v2147 = vld [vmem:[%s2 + $0x2090] sm:$0xff]
    %v2148 = vld [vmem:[%s2 + $0x2098] sm:$0xff]
    %v2149 = vld [vmem:[%s2 + $0x20a0] sm:$0xff]
    %v2150 = vld [vmem:[%s2 + $0x20a8] sm:$0xff]
    %v2151 = vld [vmem:[%s2 + $0x20b0] sm:$0xff]
    %v2152 = vld [vmem:[%s2 + $0x20b8] sm:$0xff]
    %v2153 = vld [vmem:[%s2 + $0x20c0] sm:$0xff]
    %v2154 = vld [vmem:[%s2 + $0x20c8] sm:$0xff]
    %v2155 = vld [vmem:[%s2 + $0x20d0] sm:$0xff]
    %v2156 = vld [vmem:[%s2 + $0x20d8] sm:$0xff]
    %v2157 = vld [vmem:[%s2 + $0x20e0] sm:$0xff]
    %v2158 = vld [vmem:[%s2 + $0x20e8] sm:$0xff]
    %v2159 = vld [vmem:[%s2 + $0x20f0] sm:$0xff]
    %v2160 = vld [vmem:[%s2 + $0x20f8] sm:$0xff]
    %v2161 = vld [vmem:[%s2 + $0x2100] sm:$0xff]
    %v2162 = vld [vmem:[%s2 + $0x2108] sm:$0xff]
    %v2163 = vld [vmem:[%s2 + $0x2110] sm:$0xff]
    %v2164 = vld [vmem:[%s2 + $0x2118] sm:$0xff]
    %v2165 = vld [vmem:[%s2 + $0x2120] sm:$0xff]
    %v2166 = vld [vmem:[%s2 + $0x2128] sm:$0xff]
    %v2167 = vld [vmem:[%s2 + $0x2130] sm:$0xff]
    %v2168 = vld [vmem:[%s2 + $0x2138] sm:$0xff]
    %v2169 = vld [vmem:[%s2 + $0x2140] sm:$0xff]
    %v2170 = vld [vmem:[%s2 + $0x2148] sm:$0xff]
    %v2171 = vld [vmem:[%s2 + $0x2150] sm:$0xff]
    %v2172 = vld [vmem:[%s2 + $0x2158] sm:$0xff]
    %v2173 = vld [vmem:[%s2 + $0x2160] sm:$0xff]
    %v2174 = vld [vmem:[%s2 + $0x2168] sm:$0xff]
    %v2175 = vld [vmem:[%s2 + $0x2170] sm:$0xff]
    %v2176 = vld [vmem:[%s2 + $0x2178] sm:$0xff]
    %v2177 = vld [vmem:[%s2 + $0x2180] sm:$0xff]
    %v2178 = vld [vmem:[%s2 + $0x2188] sm:$0xff]
    %v2179 = vld [vmem:[%s2 + $0x2190] sm:$0xff]
    %v2180 = vld [vmem:[%s2 + $0x2198] sm:$0xff]
    %v2181 = vld [vmem:[%s2 + $0x21a0] sm:$0xff]
    %v2182 = vld [vmem:[%s2 + $0x21a8] sm:$0xff]
    %v2183 = vld [vmem:[%s2 + $0x21b0] sm:$0xff]
    %v2184 = vld [vmem:[%s2 + $0x21b8] sm:$0xff]
    %v2185 = vld [vmem:[%s2 + $0x21c0] sm:$0xff]
    %v2186 = vld [vmem:[%s2 + $0x21c8] sm:$0xff]
    %v2187 = vld [vmem:[%s2 + $0x21d0] sm:$0xff]
    %v2188 = vld [vmem:[%s2 + $0x21d8] sm:$0xff]
    %v2189 = vld [vmem:[%s2 + $0x21e0] sm:$0xff]
    %v2190 = vld [vmem:[%s2 + $0x21e8] sm:$0xff]
    %v2191 = vld [vmem:[%s2 + $0x21f0] sm:$0xff]
    %v2192 = vld [vmem:[%s2 + $0x21f8] sm:$0xff]
    %v2193 = vld [vmem:[%s2 + $0x2200] sm:$0xff]
    %v2194 = vld [vmem:[%s2 + $0x2208] sm:$0xff]
    %v2195 = vld [vmem:[%s2 + $0x2210] sm:$0xff]
    %v2196 = vld [vmem:[%s2 + $0x2218] sm:$0xff]
    %v2197 = vld [vmem:[%s2 + $0x2220] sm:$0xff]
    %v2198 = vld [vmem:[%s2 + $0x2228] sm:$0xff]
    %v2199 = vld [vmem:[%s2 + $0x2230] sm:$0xff]
    %v2200 = vld [vmem:[%s2 + $0x2238] sm:$0xff]
    %v2201 = vld [vmem:[%s2 + $0x2240] sm:$0xff]
    %v2202 = vld [vmem:[%s2 + $0x2248] sm:$0xff]
    %v2203 = vld [vmem:[%s2 + $0x2250] sm:$0xff]
    %v2204 = vld [vmem:[%s2 + $0x2258] sm:$0xff]
    %v2205 = vld [vmem:[%s2 + $0x2260] sm:$0xff]
    %v2206 = vld [vmem:[%s2 + $0x2268] sm:$0xff]
    %v2207 = vld [vmem:[%s2 + $0x2270] sm:$0xff]
    %v2208 = vld [vmem:[%s2 + $0x2278] sm:$0xff]
    %v2209 = vld [vmem:[%s2 + $0x2280] sm:$0xff]
    %v2210 = vld [vmem:[%s2 + $0x2288] sm:$0xff]
    %v2211 = vld [vmem:[%s2 + $0x2290] sm:$0xff]
    %v2212 = vld [vmem:[%s2 + $0x2298] sm:$0xff]
    %v2213 = vld [vmem:[%s2 + $0x22a0] sm:$0xff]
    %v2214 = vld [vmem:[%s2 + $0x22a8] sm:$0xff]
    %v2215 = vld [vmem:[%s2 + $0x22b0] sm:$0xff]
    %v2216 = vld [vmem:[%s2 + $0x22b8] sm:$0xff]
    %v2217 = vld [vmem:[%s2 + $0x22c0] sm:$0xff]
    %v2218 = vld [vmem:[%s2 + $0x22c8] sm:$0xff]
    %v2219 = vld [vmem:[%s2 + $0x22d0] sm:$0xff]
    %v2220 = vld [vmem:[%s2 + $0x22d8] sm:$0xff]
    %v2221 = vld [vmem:[%s2 + $0x22e0] sm:$0xff]
    %v2222 = vld [vmem:[%s2 + $0x22e8] sm:$0xff]
    %v2223 = vld [vmem:[%s2 + $0x22f0] sm:$0xff]
    %v2224 = vld [vmem:[%s2 + $0x22f8] sm:$0xff]
    %v2225 = vld [vmem:[%s2 + $0x2300] sm:$0xff]
    %v2226 = vld [vmem:[%s2 + $0x2308] sm:$0xff]
    %v2227 = vld [vmem:[%s2 + $0x2310] sm:$0xff]
    %v2228 = vld [vmem:[%s2 + $0x2318] sm:$0xff]
    %v2229 = vld [vmem:[%s2 + $0x2320] sm:$0xff]
    %v2230 = vld [vmem:[%s2 + $0x2328] sm:$0xff]
    %v2231 = vld [vmem:[%s2 + $0x2330] sm:$0xff]
    %v2232 = vld [vmem:[%s2 + $0x2338] sm:$0xff]
    %v2233 = vld [vmem:[%s2 + $0x2340] sm:$0xff]
    %v2234 = vld [vmem:[%s2 + $0x2348] sm:$0xff]
    %v2235 = vld [vmem:[%s2 + $0x2350] sm:$0xff]
    %v2236 = vld [vmem:[%s2 + $0x2358] sm:$0xff]
    %v2237 = vld [vmem:[%s2 + $0x2360] sm:$0xff]
    %v2238 = vld [vmem:[%s2 + $0x2368] sm:$0xff]
    %v2239 = vld [vmem:[%s2 + $0x2370] sm:$0xff]
    %v2240 = vld [vmem:[%s2 + $0x2378] sm:$0xff]
    %v2241 = vld [vmem:[%s2 + $0x2380] sm:$0xff]
    %v2242 = vld [vmem:[%s2 + $0x2388] sm:$0xff]
    %v2243 = vld [vmem:[%s2 + $0x2390] sm:$0xff]
    %v2244 = vld [vmem:[%s2 + $0x2398] sm:$0xff]
    %v2245 = vld [vmem:[%s2 + $0x23a0] sm:$0xff]
    %v2246 = vld [vmem:[%s2 + $0x23a8] sm:$0xff]
    %v2247 = vld [vmem:[%s2 + $0x23b0] sm:$0xff]
    %v2248 = vld [vmem:[%s2 + $0x23b8] sm:$0xff]
    %v2249 = vld [vmem:[%s2 + $0x23c0] sm:$0xff]
    %v2250 = vld [vmem:[%s2 + $0x23c8] sm:$0xff]
    %v2251 = vld [vmem:[%s2 + $0x23d0] sm:$0xff]
    %v2252 = vld [vmem:[%s2 + $0x23d8] sm:$0xff]
    %v2253 = vld [vmem:[%s2 + $0x23e0] sm:$0xff]
    %v2254 = vld [vmem:[%s2 + $0x23e8] sm:$0xff]
    %v2255 = vld [vmem:[%s2 + $0x23f0] sm:$0xff]
    %v2256 = vld [vmem:[%s2 + $0x23f8] sm:$0xff]
    %v2257 = vld [vmem:[%s2 + $0x2400] sm:$0xff]
    %v2258 = vld [vmem:[%s2 + $0x2408] sm:$0xff]
    %v2259 = vld [vmem:[%s2 + $0x2410] sm:$0xff]
    %v2260 = vld [vmem:[%s2 + $0x2418] sm:$0xff]
    %v2261 = vld [vmem:[%s2 + $0x2420] sm:$0xff]
    %v2262 = vld [vmem:[%s2 + $0x2428] sm:$0xff]
    %v2263 = vld [vmem:[%s2 + $0x2430] sm:$0xff]
    %v2264 = vld [vmem:[%s2 + $0x2438] sm:$0xff]
    %v2265 = vld [vmem:[%s2 + $0x2440] sm:$0xff]
    %v2266 = vld [vmem:[%s2 + $0x2448] sm:$0xff]
    %v2267 = vld [vmem:[%s2 + $0x2450] sm:$0xff]
    %v2268 = vld [vmem:[%s2 + $0x2458] sm:$0xff]
    %v2269 = vld [vmem:[%s2 + $0x2460] sm:$0xff]
    %v2270 = vld [vmem:[%s2 + $0x2468] sm:$0xff]
    %v2271 = vld [vmem:[%s2 + $0x2470] sm:$0xff]
    %v2272 = vld [vmem:[%s2 + $0x2478] sm:$0xff]
    %v2273 = vld [vmem:[%s2 + $0x2480] sm:$0xff]
    %v2274 = vld [vmem:[%s2 + $0x2488] sm:$0xff]
    %v2275 = vld [vmem:[%s2 + $0x2490] sm:$0xff]
    %v2276 = vld [vmem:[%s2 + $0x2498] sm:$0xff]
    %v2277 = vld [vmem:[%s2 + $0x24a0] sm:$0xff]
    %v2278 = vld [vmem:[%s2 + $0x24a8] sm:$0xff]
    %v2279 = vld [vmem:[%s2 + $0x24b0] sm:$0xff]
    %v2280 = vld [vmem:[%s2 + $0x24b8] sm:$0xff]
    %v2281 = vld [vmem:[%s2 + $0x24c0] sm:$0xff]
    %v2282 = vld [vmem:[%s2 + $0x24c8] sm:$0xff]
    %v2283 = vld [vmem:[%s2 + $0x24d0] sm:$0xff]
    %v2284 = vld [vmem:[%s2 + $0x24d8] sm:$0xff]
    %v2285 = vld [vmem:[%s2 + $0x24e0] sm:$0xff]
    %v2286 = vld [vmem:[%s2 + $0x24e8] sm:$0xff]
    %v2287 = vld [vmem:[%s2 + $0x24f0] sm:$0xff]
    %v2288 = vld [vmem:[%s2 + $0x24f8] sm:$0xff]
    %v2289 = vld [vmem:[%s2 + $0x2500] sm:$0xff]
    %v2290 = vld [vmem:[%s2 + $0x2508] sm:$0xff]
    %v2291 = vld [vmem:[%s2 + $0x2510] sm:$0xff]
    %v2292 = vld [vmem:[%s2 + $0x2518] sm:$0xff]
    %v2293 = vld [vmem:[%s2 + $0x2520] sm:$0xff]
    %v2294 = vld [vmem:[%s2 + $0x2528] sm:$0xff]
    %v2295 = vld [vmem:[%s2 + $0x2530] sm:$0xff]
    %v2296 = vld [vmem:[%s2 + $0x2538] sm:$0xff]
    %v2297 = vld [vmem:[%s2 + $0x2540] sm:$0xff]
    %v2298 = vld [vmem:[%s2 + $0x2548] sm:$0xff]
    %v2299 = vld [vmem:[%s2 + $0x2550] sm:$0xff]
    %v2300 = vld [vmem:[%s2 + $0x2558] sm:$0xff]
    %v2301 = vld [vmem:[%s2 + $0x2560] sm:$0xff]
    %v2302 = vld [vmem:[%s2 + $0x2568] sm:$0xff]
    %v2303 = vld [vmem:[%s2 + $0x2570] sm:$0xff]
    %v2304 = vld [vmem:[%s2 + $0x2578] sm:$0xff]
    %v2305 = vld [vmem:[%s2 + $0x2580] sm:$0xff]
    %v2306 = vld [vmem:[%s2 + $0x2588] sm:$0xff]
    %v2307 = vld [vmem:[%s2 + $0x2590] sm:$0xff]
    %v2308 = vld [vmem:[%s2 + $0x2598] sm:$0xff]
    %v2309 = vld [vmem:[%s2 + $0x25a0] sm:$0xff]
    %v2310 = vld [vmem:[%s2 + $0x25a8] sm:$0xff]
    %v2311 = vld [vmem:[%s2 + $0x25b0] sm:$0xff]
    %v2312 = vld [vmem:[%s2 + $0x25b8] sm:$0xff]
    %v2313 = vld [vmem:[%s2 + $0x25c0] sm:$0xff]
    %v2314 = vld [vmem:[%s2 + $0x25c8] sm:$0xff]
    %v2315 = vld [vmem:[%s2 + $0x25d0] sm:$0xff]
    %v2316 = vld [vmem:[%s2 + $0x25d8] sm:$0xff]
    %v2317 = vld [vmem:[%s2 + $0x25e0] sm:$0xff]
    %v2318 = vld [vmem:[%s2 + $0x25e8] sm:$0xff]
    %v2319 = vld [vmem:[%s2 + $0x25f0] sm:$0xff]
    %v2320 = vld [vmem:[%s2 + $0x25f8] sm:$0xff]
    %v2321 = vld [vmem:[%s2 + $0x2600] sm:$0xff]
    %v2322 = vld [vmem:[%s2 + $0x2608] sm:$0xff]
    %v2323 = vld [vmem:[%s2 + $0x2610] sm:$0xff]
    %v2324 = vld [vmem:[%s2 + $0x2618] sm:$0xff]
    %v2325 = vld [vmem:[%s2 + $0x2620] sm:$0xff]
    %v2326 = vld [vmem:[%s2 + $0x2628] sm:$0xff]
    %v2327 = vld [vmem:[%s2 + $0x2630] sm:$0xff]
    %v2328 = vld [vmem:[%s2 + $0x2638] sm:$0xff]
    %v2329 = vld [vmem:[%s2 + $0x2640] sm:$0xff]
    %v2330 = vld [vmem:[%s2 + $0x2648] sm:$0xff]
    %v2331 = vld [vmem:[%s2 + $0x2650] sm:$0xff]
    %v2332 = vld [vmem:[%s2 + $0x2658] sm:$0xff]
    %v2333 = vld [vmem:[%s2 + $0x2660] sm:$0xff]
    %v2334 = vld [vmem:[%s2 + $0x2668] sm:$0xff]
    %v2335 = vld [vmem:[%s2 + $0x2670] sm:$0xff]
    %v2336 = vld [vmem:[%s2 + $0x2678] sm:$0xff]
    %v2337 = vld [vmem:[%s2 + $0x2680] sm:$0xff]
    %v2338 = vld [vmem:[%s2 + $0x2688] sm:$0xff]
    %v2339 = vld [vmem:[%s2 + $0x2690] sm:$0xff]
    %v2340 = vld [vmem:[%s2 + $0x2698] sm:$0xff]
    %v2341 = vld [vmem:[%s2 + $0x26a0] sm:$0xff]
    %v2342 = vld [vmem:[%s2 + $0x26a8] sm:$0xff]
    %v2343 = vld [vmem:[%s2 + $0x26b0] sm:$0xff]
    %v2344 = vld [vmem:[%s2 + $0x26b8] sm:$0xff]
    %v2345 = vld [vmem:[%s2 + $0x26c0] sm:$0xff]
    %v2346 = vld [vmem:[%s2 + $0x26c8] sm:$0xff]
    %v2347 = vld [vmem:[%s2 + $0x26d0] sm:$0xff]
    %v2348 = vld [vmem:[%s2 + $0x26d8] sm:$0xff]
    %v2349 = vld [vmem:[%s2 + $0x26e0] sm:$0xff]
    %v2350 = vld [vmem:[%s2 + $0x26e8] sm:$0xff]
    %v2351 = vld [vmem:[%s2 + $0x26f0] sm:$0xff]
    %v2352 = vld [vmem:[%s2 + $0x26f8] sm:$0xff]
    %v2353 = vld [vmem:[%s2 + $0x2700] sm:$0xff]
    %v2354 = vld [vmem:[%s2 + $0x2708] sm:$0xff]
    %v2355 = vld [vmem:[%s2 + $0x2710] sm:$0xff]
    %v2356 = vld [vmem:[%s2 + $0x2718] sm:$0xff]
    %v2357 = vld [vmem:[%s2 + $0x2720] sm:$0xff]
    %v2358 = vld [vmem:[%s2 + $0x2728] sm:$0xff]
    %v2359 = vld [vmem:[%s2 + $0x2730] sm:$0xff]
    %v2360 = vld [vmem:[%s2 + $0x2738] sm:$0xff]
    %v2361 = vld [vmem:[%s2 + $0x2740] sm:$0xff]
    %v2362 = vld [vmem:[%s2 + $0x2748] sm:$0xff]
    %v2363 = vld [vmem:[%s2 + $0x2750] sm:$0xff]
    %v2364 = vld [vmem:[%s2 + $0x2758] sm:$0xff]
    %v2365 = vld [vmem:[%s2 + $0x2760] sm:$0xff]
    %v2366 = vld [vmem:[%s2 + $0x2768] sm:$0xff]
    %v2367 = vld [vmem:[%s2 + $0x2770] sm:$0xff]
    %v2368 = vld [vmem:[%s2 + $0x2778] sm:$0xff]
    %v2369 = vld [vmem:[%s2 + $0x2780] sm:$0xff]
    %v2370 = vld [vmem:[%s2 + $0x2788] sm:$0xff]
    %v2371 = vld [vmem:[%s2 + $0x2790] sm:$0xff]
    %v2372 = vld [vmem:[%s2 + $0x2798] sm:$0xff]
    %v2373 = vld [vmem:[%s2 + $0x27a0] sm:$0xff]
    %v2374 = vld [vmem:[%s2 + $0x27a8] sm:$0xff]
    %v2375 = vld [vmem:[%s2 + $0x27b0] sm:$0xff]
    %v2376 = vld [vmem:[%s2 + $0x27b8] sm:$0xff]
    %v2377 = vld [vmem:[%s2 + $0x27c0] sm:$0xff]
    %v2378 = vld [vmem:[%s2 + $0x27c8] sm:$0xff]
    %v2379 = vld [vmem:[%s2 + $0x27d0] sm:$0xff]
    %v2380 = vld [vmem:[%s2 + $0x27d8] sm:$0xff]
    %v2381 = vld [vmem:[%s2 + $0x27e0] sm:$0xff]
    %v2382 = vld [vmem:[%s2 + $0x27e8] sm:$0xff]
    %v2383 = vld [vmem:[%s2 + $0x27f0] sm:$0xff]
    %v2384 = vld [vmem:[%s2 + $0x27f8] sm:$0xff]
    %v2385 = vld [vmem:[%s2 + $0x2800] sm:$0xff]
    %v2386 = vld [vmem:[%s2 + $0x2808] sm:$0xff]
    %v2387 = vld [vmem:[%s2 + $0x2810] sm:$0xff]
    %v2388 = vld [vmem:[%s2 + $0x2818] sm:$0xff]
    %v2389 = vld [vmem:[%s2 + $0x2820] sm:$0xff]
    %v2390 = vld [vmem:[%s2 + $0x2828] sm:$0xff]
    %v2391 = vld [vmem:[%s2 + $0x2830] sm:$0xff]
    %v2392 = vld [vmem:[%s2 + $0x2838] sm:$0xff]
    %v2393 = vld [vmem:[%s2 + $0x2840] sm:$0xff]
    %v2394 = vld [vmem:[%s2 + $0x2848] sm:$0xff]
    %v2395 = vld [vmem:[%s2 + $0x2850] sm:$0xff]
    %v2396 = vld [vmem:[%s2 + $0x2858] sm:$0xff]
    %v2397 = vld [vmem:[%s2 + $0x2860] sm:$0xff]
    %v2398 = vld [vmem:[%s2 + $0x2868] sm:$0xff]
    %v2399 = vld [vmem:[%s2 + $0x2870] sm:$0xff]
    %v2400 = vld [vmem:[%s2 + $0x2878] sm:$0xff]
    %v2401 = vld [vmem:[%s2 + $0x2880] sm:$0xff]
    %v2402 = vld [vmem:[%s2 + $0x2888] sm:$0xff]
    %v2403 = vld [vmem:[%s2 + $0x2890] sm:$0xff]
    %v2404 = vld [vmem:[%s2 + $0x2898] sm:$0xff]
    %v2405 = vld [vmem:[%s2 + $0x28a0] sm:$0xff]
    %v2406 = vld [vmem:[%s2 + $0x28a8] sm:$0xff]
    %v2407 = vld [vmem:[%s2 + $0x28b0] sm:$0xff]
    %v2408 = vld [vmem:[%s2 + $0x28b8] sm:$0xff]
    %v2409 = vld [vmem:[%s2 + $0x28c0] sm:$0xff]
    %v2410 = vld [vmem:[%s2 + $0x28c8] sm:$0xff]
    %v2411 = vld [vmem:[%s2 + $0x28d0] sm:$0xff]
    %v2412 = vld [vmem:[%s2 + $0x28d8] sm:$0xff]
    %v2413 = vld [vmem:[%s2 + $0x28e0] sm:$0xff]
    %v2414 = vld [vmem:[%s2 + $0x28e8] sm:$0xff]
    %v2415 = vld [vmem:[%s2 + $0x28f0] sm:$0xff]
    %v2416 = vld [vmem:[%s2 + $0x28f8] sm:$0xff]
    %v2417 = vld [vmem:[%s2 + $0x2900] sm:$0xff]
    %v2418 = vld [vmem:[%s2 + $0x2908] sm:$0xff]
    %v2419 = vld [vmem:[%s2 + $0x2910] sm:$0xff]
    %v2420 = vld [vmem:[%s2 + $0x2918] sm:$0xff]
    %v2421 = vld [vmem:[%s2 + $0x2920] sm:$0xff]
    %v2422 = vld [vmem:[%s2 + $0x2928] sm:$0xff]
    %v2423 = vld [vmem:[%s2 + $0x2930] sm:$0xff]
    %v2424 = vld [vmem:[%s2 + $0x2938] sm:$0xff]
    %v2425 = vld [vmem:[%s2 + $0x2940] sm:$0xff]
    %v2426 = vld [vmem:[%s2 + $0x2948] sm:$0xff]
    %v2427 = vld [vmem:[%s2 + $0x2950] sm:$0xff]
    %v2428 = vld [vmem:[%s2 + $0x2958] sm:$0xff]
    %v2429 = vld [vmem:[%s2 + $0x2960] sm:$0xff]
    %v2430 = vld [vmem:[%s2 + $0x2968] sm:$0xff]
    %v2431 = vld [vmem:[%s2 + $0x2970] sm:$0xff]
    %v2432 = vld [vmem:[%s2 + $0x2978] sm:$0xff]
    %v2433 = vld [vmem:[%s2 + $0x2980] sm:$0xff]
    %v2434 = vld [vmem:[%s2 + $0x2988] sm:$0xff]
    %v2435 = vld [vmem:[%s2 + $0x2990] sm:$0xff]
    %v2436 = vld [vmem:[%s2 + $0x2998] sm:$0xff]
    %v2437 = vld [vmem:[%s2 + $0x29a0] sm:$0xff]
    %v2438 = vld [vmem:[%s2 + $0x29a8] sm:$0xff]
    %v2439 = vld [vmem:[%s2 + $0x29b0] sm:$0xff]
    %v2440 = vld [vmem:[%s2 + $0x29b8] sm:$0xff]
    %v2441 = vld [vmem:[%s2 + $0x29c0] sm:$0xff]
    %v2442 = vld [vmem:[%s2 + $0x29c8] sm:$0xff]
    %v2443 = vld [vmem:[%s2 + $0x29d0] sm:$0xff]
    %v2444 = vld [vmem:[%s2 + $0x29d8] sm:$0xff]
    %v2445 = vld [vmem:[%s2 + $0x29e0] sm:$0xff]
    %v2446 = vld [vmem:[%s2 + $0x29e8] sm:$0xff]
    %v2447 = vld [vmem:[%s2 + $0x29f0] sm:$0xff]
    %v2448 = vld [vmem:[%s2 + $0x29f8] sm:$0xff]
    %v2449 = vld [vmem:[%s2 + $0x2a00] sm:$0xff]
    %v2450 = vld [vmem:[%s2 + $0x2a08] sm:$0xff]
    %v2451 = vld [vmem:[%s2 + $0x2a10] sm:$0xff]
    %v2452 = vld [vmem:[%s2 + $0x2a18] sm:$0xff]
    %v2453 = vld [vmem:[%s2 + $0x2a20] sm:$0xff]
    %v2454 = vld [vmem:[%s2 + $0x2a28] sm:$0xff]
    %v2455 = vld [vmem:[%s2 + $0x2a30] sm:$0xff]
    %v2456 = vld [vmem:[%s2 + $0x2a38] sm:$0xff]
    %v2457 = vld [vmem:[%s2 + $0x2a40] sm:$0xff]
    %v2458 = vld [vmem:[%s2 + $0x2a48] sm:$0xff]
    %v2459 = vld [vmem:[%s2 + $0x2a50] sm:$0xff]
    %v2460 = vld [vmem:[%s2 + $0x2a58] sm:$0xff]
    %v2461 = vld [vmem:[%s2 + $0x2a60] sm:$0xff]
    %v2462 = vld [vmem:[%s2 + $0x2a68] sm:$0xff]
    %v2463 = vld [vmem:[%s2 + $0x2a70] sm:$0xff]
    %v2464 = vld [vmem:[%s2 + $0x2a78] sm:$0xff]
    %v2465 = vld [vmem:[%s2 + $0x2a80] sm:$0xff]
    %v2466 = vld [vmem:[%s2 + $0x2a88] sm:$0xff]
    %v2467 = vld [vmem:[%s2 + $0x2a90] sm:$0xff]
    %v2468 = vld [vmem:[%s2 + $0x2a98] sm:$0xff]
    %v2469 = vld [vmem:[%s2 + $0x2aa0] sm:$0xff]
    %v2470 = vld [vmem:[%s2 + $0x2aa8] sm:$0xff]
    %v2471 = vld [vmem:[%s2 + $0x2ab0] sm:$0xff]
    %v2472 = vld [vmem:[%s2 + $0x2ab8] sm:$0xff]
    %v2473 = vld [vmem:[%s2 + $0x2ac0] sm:$0xff]
    %v2474 = vld [vmem:[%s2 + $0x2ac8] sm:$0xff]
    %v2475 = vld [vmem:[%s2 + $0x2ad0] sm:$0xff]
    %v2476 = vld [vmem:[%s2 + $0x2ad8] sm:$0xff]
    %v2477 = vld [vmem:[%s2 + $0x2ae0] sm:$0xff]
    %v2478 = vld [vmem:[%s2 + $0x2ae8] sm:$0xff]
    %v2479 = vld [vmem:[%s2 + $0x2af0] sm:$0xff]
    %v2480 = vld [vmem:[%s2 + $0x2af8] sm:$0xff]
    %v2481 = vld [vmem:[%s2 + $0x2b00] sm:$0xff]
    %v2482 = vld [vmem:[%s2 + $0x2b08] sm:$0xff]
    %v2483 = vld [vmem:[%s2 + $0x2b10] sm:$0xff]
    %v2484 = vld [vmem:[%s2 + $0x2b18] sm:$0xff]
    %v2485 = vld [vmem:[%s2 + $0x2b20] sm:$0xff]
    %v2486 = vld [vmem:[%s2 + $0x2b28] sm:$0xff]
    %v2487 = vld [vmem:[%s2 + $0x2b30] sm:$0xff]
    %v2488 = vld [vmem:[%s2 + $0x2b38] sm:$0xff]
    %v2489 = vld [vmem:[%s2 + $0x2b40] sm:$0xff]
    %v2490 = vld [vmem:[%s2 + $0x2b48] sm:$0xff]
    %v2491 = vld [vmem:[%s2 + $0x2b50] sm:$0xff]
    %v2492 = vld [vmem:[%s2 + $0x2b58] sm:$0xff]
    %v2493 = vld [vmem:[%s2 + $0x2b60] sm:$0xff]
    %v2494 = vld [vmem:[%s2 + $0x2b68] sm:$0xff]
    %v2495 = vld [vmem:[%s2 + $0x2b70] sm:$0xff]
    %v2496 = vld [vmem:[%s2 + $0x2b78] sm:$0xff]
    %v2497 = vld [vmem:[%s2 + $0x2b80] sm:$0xff]
    %v2498 = vld [vmem:[%s2 + $0x2b88] sm:$0xff]
    %v2499 = vld [vmem:[%s2 + $0x2b90] sm:$0xff]
    %v2500 = vld [vmem:[%s2 + $0x2b98] sm:$0xff]
    %v2501 = vld [vmem:[%s2 + $0x2ba0] sm:$0xff]
    %v2502 = vld [vmem:[%s2 + $0x2ba8] sm:$0xff]
    %v2503 = vld [vmem:[%s2 + $0x2bb0] sm:$0xff]
    %v2504 = vld [vmem:[%s2 + $0x2bb8] sm:$0xff]
    %v2505 = vld [vmem:[%s2 + $0x2bc0] sm:$0xff]
    %v2506 = vld [vmem:[%s2 + $0x2bc8] sm:$0xff]
    %v2507 = vld [vmem:[%s2 + $0x2bd0] sm:$0xff]
    %v2508 = vld [vmem:[%s2 + $0x2bd8] sm:$0xff]
    %v2509 = vld [vmem:[%s2 + $0x2be0] sm:$0xff]
    %v2510 = vld [vmem:[%s2 + $0x2be8] sm:$0xff]
    %v2511 = vld [vmem:[%s2 + $0x2bf0] sm:$0xff]
    %v2512 = vld [vmem:[%s2 + $0x2bf8] sm:$0xff]
    %v2513 = vld [vmem:[%s2 + $0x2c00] sm:$0xff]
    %v2514 = vld [vmem:[%s2 + $0x2c08] sm:$0xff]
    %v2515 = vld [vmem:[%s2 + $0x2c10] sm:$0xff]
    %v2516 = vld [vmem:[%s2 + $0x2c18] sm:$0xff]
    %v2517 = vld [vmem:[%s2 + $0x2c20] sm:$0xff]
    %v2518 = vld [vmem:[%s2 + $0x2c28] sm:$0xff]
    %v2519 = vld [vmem:[%s2 + $0x2c30] sm:$0xff]
    %v2520 = vld [vmem:[%s2 + $0x2c38] sm:$0xff]
    %v2521 = vld [vmem:[%s2 + $0x2c40] sm:$0xff]
    %v2522 = vld [vmem:[%s2 + $0x2c48] sm:$0xff]
    %v2523 = vld [vmem:[%s2 + $0x2c50] sm:$0xff]
    %v2524 = vld [vmem:[%s2 + $0x2c58] sm:$0xff]
    %v2525 = vld [vmem:[%s2 + $0x2c60] sm:$0xff]
    %v2526 = vld [vmem:[%s2 + $0x2c68] sm:$0xff]
    %v2527 = vld [vmem:[%s2 + $0x2c70] sm:$0xff]
    %v2528 = vld [vmem:[%s2 + $0x2c78] sm:$0xff]
    %v2529 = vld [vmem:[%s2 + $0x2c80] sm:$0xff]
    %v2530 = vld [vmem:[%s2 + $0x2c88] sm:$0xff]
    %v2531 = vld [vmem:[%s2 + $0x2c90] sm:$0xff]
    %v2532 = vld [vmem:[%s2 + $0x2c98] sm:$0xff]
    %v2533 = vld [vmem:[%s2 + $0x2ca0] sm:$0xff]
    %v2534 = vld [vmem:[%s2 + $0x2ca8] sm:$0xff]
    %v2535 = vld [vmem:[%s2 + $0x2cb0] sm:$0xff]
    %v2536 = vld [vmem:[%s2 + $0x2cb8] sm:$0xff]
    %v2537 = vld [vmem:[%s2 + $0x2cc0] sm:$0xff]
    %v2538 = vld [vmem:[%s2 + $0x2cc8] sm:$0xff]
    %v2539 = vld [vmem:[%s2 + $0x2cd0] sm:$0xff]
    %v2540 = vld [vmem:[%s2 + $0x2cd8] sm:$0xff]
    %v2541 = vld [vmem:[%s2 + $0x2ce0] sm:$0xff]
    %v2542 = vld [vmem:[%s2 + $0x2ce8] sm:$0xff]
    %v2543 = vld [vmem:[%s2 + $0x2cf0] sm:$0xff]
    %v2544 = vld [vmem:[%s2 + $0x2cf8] sm:$0xff]
    %v2545 = vld [vmem:[%s2 + $0x2d00] sm:$0xff]
    %v2546 = vld [vmem:[%s2 + $0x2d08] sm:$0xff]
    %v2547 = vld [vmem:[%s2 + $0x2d10] sm:$0xff]
    %v2548 = vld [vmem:[%s2 + $0x2d18] sm:$0xff]
    %v2549 = vld [vmem:[%s2 + $0x2d20] sm:$0xff]
    %v2550 = vld [vmem:[%s2 + $0x2d28] sm:$0xff]
    %v2551 = vld [vmem:[%s2 + $0x2d30] sm:$0xff]
    %v2552 = vld [vmem:[%s2 + $0x2d38] sm:$0xff]
    %v2553 = vld [vmem:[%s2 + $0x2d40] sm:$0xff]
    %v2554 = vld [vmem:[%s2 + $0x2d48] sm:$0xff]
    %v2555 = vld [vmem:[%s2 + $0x2d50] sm:$0xff]
    %v2556 = vld [vmem:[%s2 + $0x2d58] sm:$0xff]
    %v2557 = vld [vmem:[%s2 + $0x2d60] sm:$0xff]
    %v2558 = vld [vmem:[%s2 + $0x2d68] sm:$0xff]
    %v2559 = vld [vmem:[%s2 + $0x2d70] sm:$0xff]
    %v2560 = vld [vmem:[%s2 + $0x2d78] sm:$0xff]
    %v2561 = vld [vmem:[%s2 + $0x2d80] sm:$0xff]
    %v2562 = vld [vmem:[%s2 + $0x2d88] sm:$0xff]
    %v2563 = vld [vmem:[%s2 + $0x2d90] sm:$0xff]
    %v2564 = vld [vmem:[%s2 + $0x2d98] sm:$0xff]
    %v2565 = vld [vmem:[%s2 + $0x2da0] sm:$0xff]
    %v2566 = vld [vmem:[%s2 + $0x2da8] sm:$0xff]
    %v2567 = vld [vmem:[%s2 + $0x2db0] sm:$0xff]
    %v2568 = vld [vmem:[%s2 + $0x2db8] sm:$0xff]
    %v2569 = vld [vmem:[%s2 + $0x2dc0] sm:$0xff]
    %v2570 = vld [vmem:[%s2 + $0x2dc8] sm:$0xff]
    %v2571 = vld [vmem:[%s2 + $0x2dd0] sm:$0xff]
    %v2572 = vld [vmem:[%s2 + $0x2dd8] sm:$0xff]
    %v2573 = vld [vmem:[%s2 + $0x2de0] sm:$0xff]
    %v2574 = vld [vmem:[%s2 + $0x2de8] sm:$0xff]
    %v2575 = vld [vmem:[%s2 + $0x2df0] sm:$0xff]
    %v2576 = vld [vmem:[%s2 + $0x2df8] sm:$0xff]
    %v2577 = vld [vmem:[%s2 + $0x2e00] sm:$0xff]
    %v2578 = vld [vmem:[%s2 + $0x2e08] sm:$0xff]
    %v2579 = vld [vmem:[%s2 + $0x2e10] sm:$0xff]
    %v2580 = vld [vmem:[%s2 + $0x2e18] sm:$0xff]
    %v2581 = vld [vmem:[%s2 + $0x2e20] sm:$0xff]
    %v2582 = vld [vmem:[%s2 + $0x2e28] sm:$0xff]
    %v2583 = vld [vmem:[%s2 + $0x2e30] sm:$0xff]
    %v2584 = vld [vmem:[%s2 + $0x2e38] sm:$0xff]
    %v2585 = vld [vmem:[%s2 + $0x2e40] sm:$0xff]
    %v2586 = vld [vmem:[%s2 + $0x2e48] sm:$0xff]
    %v2587 = vld [vmem:[%s2 + $0x2e50] sm:$0xff]
    %v2588 = vld [vmem:[%s2 + $0x2e58] sm:$0xff]
    %v2589 = vld [vmem:[%s2 + $0x2e60] sm:$0xff]
    %v2590 = vld [vmem:[%s2 + $0x2e68] sm:$0xff]
    %v2591 = vld [vmem:[%s2 + $0x2e70] sm:$0xff]
    %v2592 = vld [vmem:[%s2 + $0x2e78] sm:$0xff]
    %v2593 = vld [vmem:[%s2 + $0x2e80] sm:$0xff]
    %v2594 = vld [vmem:[%s2 + $0x2e88] sm:$0xff]
    %v2595 = vld [vmem:[%s2 + $0x2e90] sm:$0xff]
    %v2596 = vld [vmem:[%s2 + $0x2e98] sm:$0xff]
    %v2597 = vld [vmem:[%s2 + $0x2ea0] sm:$0xff]
    %v2598 = vld [vmem:[%s2 + $0x2ea8] sm:$0xff]
    %v2599 = vld [vmem:[%s2 + $0x2eb0] sm:$0xff]
    %v2600 = vld [vmem:[%s2 + $0x2eb8] sm:$0xff]
    %v2601 = vld [vmem:[%s2 + $0x2ec0] sm:$0xff]
    %v2602 = vld [vmem:[%s2 + $0x2ec8] sm:$0xff]
    %v2603 = vld [vmem:[%s2 + $0x2ed0] sm:$0xff]
    %v2604 = vld [vmem:[%s2 + $0x2ed8] sm:$0xff]
    %v2605 = vld [vmem:[%s2 + $0x2ee0] sm:$0xff]
    %v2606 = vld [vmem:[%s2 + $0x2ee8] sm:$0xff]
    %v2607 = vld [vmem:[%s2 + $0x2ef0] sm:$0xff]
    %v2608 = vld [vmem:[%s2 + $0x2ef8] sm:$0xff]
    %v2609 = vld [vmem:[%s2 + $0x2f00] sm:$0xff]
    %v2610 = vld [vmem:[%s2 + $0x2f08] sm:$0xff]
    %v2611 = vld [vmem:[%s2 + $0x2f10] sm:$0xff]
    %v2612 = vld [vmem:[%s2 + $0x2f18] sm:$0xff]
    %v2613 = vld [vmem:[%s2 + $0x2f20] sm:$0xff]
    %v2614 = vld [vmem:[%s2 + $0x2f28] sm:$0xff]
    %v2615 = vld [vmem:[%s2 + $0x2f30] sm:$0xff]
    %v2616 = vld [vmem:[%s2 + $0x2f38] sm:$0xff]
    %v2617 = vld [vmem:[%s2 + $0x2f40] sm:$0xff]
    %v2618 = vld [vmem:[%s2 + $0x2f48] sm:$0xff]
    %v2619 = vld [vmem:[%s2 + $0x2f50] sm:$0xff]
    %v2620 = vld [vmem:[%s2 + $0x2f58] sm:$0xff]
    %v2621 = vld [vmem:[%s2 + $0x2f60] sm:$0xff]
    %v2622 = vld [vmem:[%s2 + $0x2f68] sm:$0xff]
    %v2623 = vld [vmem:[%s2 + $0x2f70] sm:$0xff]
    %v2624 = vld [vmem:[%s2 + $0x2f78] sm:$0xff]
    %v2625 = vld [vmem:[%s2 + $0x2f80] sm:$0xff]
    %v2626 = vld [vmem:[%s2 + $0x2f88] sm:$0xff]
    %v2627 = vld [vmem:[%s2 + $0x2f90] sm:$0xff]
    %v2628 = vld [vmem:[%s2 + $0x2f98] sm:$0xff]
    %v2629 = vld [vmem:[%s2 + $0x2fa0] sm:$0xff]
    %v2630 = vld [vmem:[%s2 + $0x2fa8] sm:$0xff]
    %v2631 = vld [vmem:[%s2 + $0x2fb0] sm:$0xff]
    %v2632 = vld [vmem:[%s2 + $0x2fb8] sm:$0xff]
    %v2633 = vld [vmem:[%s2 + $0x2fc0] sm:$0xff]
    %v2634 = vld [vmem:[%s2 + $0x2fc8] sm:$0xff]
    %v2635 = vld [vmem:[%s2 + $0x2fd0] sm:$0xff]
    %v2636 = vld [vmem:[%s2 + $0x2fd8] sm:$0xff]
    %v2637 = vld [vmem:[%s2 + $0x2fe0] sm:$0xff]
    %v2638 = vld [vmem:[%s2 + $0x2fe8] sm:$0xff]
    %v2639 = vld [vmem:[%s2 + $0x2ff0] sm:$0xff]
    %v2640 = vld [vmem:[%s2 + $0x2ff8] sm:$0xff]
    %v2641 = vld [vmem:[%s2 + $0x3000] sm:$0xff]
    %v2642 = vld [vmem:[%s2 + $0x3008] sm:$0xff]
    %v2643 = vld [vmem:[%s2 + $0x3010] sm:$0xff]
    %v2644 = vld [vmem:[%s2 + $0x3018] sm:$0xff]
    %v2645 = vld [vmem:[%s2 + $0x3020] sm:$0xff]
    %v2646 = vld [vmem:[%s2 + $0x3028] sm:$0xff]
    %v2647 = vld [vmem:[%s2 + $0x3030] sm:$0xff]
    %v2648 = vld [vmem:[%s2 + $0x3038] sm:$0xff]
    %v2649 = vld [vmem:[%s2 + $0x3040] sm:$0xff]
    %v2650 = vld [vmem:[%s2 + $0x3048] sm:$0xff]
    %v2651 = vld [vmem:[%s2 + $0x3050] sm:$0xff]
    %v2652 = vld [vmem:[%s2 + $0x3058] sm:$0xff]
    %v2653 = vld [vmem:[%s2 + $0x3060] sm:$0xff]
    %v2654 = vld [vmem:[%s2 + $0x3068] sm:$0xff]
    %v2655 = vld [vmem:[%s2 + $0x3070] sm:$0xff]
    %v2656 = vld [vmem:[%s2 + $0x3078] sm:$0xff]
    %v2657 = vld [vmem:[%s2 + $0x3080] sm:$0xff]
    %v2658 = vld [vmem:[%s2 + $0x3088] sm:$0xff]
    %v2659 = vld [vmem:[%s2 + $0x3090] sm:$0xff]
    %v2660 = vld [vmem:[%s2 + $0x3098] sm:$0xff]
    %v2661 = vld [vmem:[%s2 + $0x30a0] sm:$0xff]
    %v2662 = vld [vmem:[%s2 + $0x30a8] sm:$0xff]
    %v2663 = vld [vmem:[%s2 + $0x30b0] sm:$0xff]
    %v2664 = vld [vmem:[%s2 + $0x30b8] sm:$0xff]
    %v2665 = vld [vmem:[%s2 + $0x30c0] sm:$0xff]
    %v2666 = vld [vmem:[%s2 + $0x30c8] sm:$0xff]
    %v2667 = vld [vmem:[%s2 + $0x30d0] sm:$0xff]
    %v2668 = vld [vmem:[%s2 + $0x30d8] sm:$0xff]
    %v2669 = vld [vmem:[%s2 + $0x30e0] sm:$0xff]
    %v2670 = vld [vmem:[%s2 + $0x30e8] sm:$0xff]
    %v2671 = vld [vmem:[%s2 + $0x30f0] sm:$0xff]
    %v2672 = vld [vmem:[%s2 + $0x30f8] sm:$0xff]
    %v2673 = vld [vmem:[%s2 + $0x3100] sm:$0xff]
    %v2674 = vld [vmem:[%s2 + $0x3108] sm:$0xff]
    %v2675 = vld [vmem:[%s2 + $0x3110] sm:$0xff]
    %v2676 = vld [vmem:[%s2 + $0x3118] sm:$0xff]
    %v2677 = vld [vmem:[%s2 + $0x3120] sm:$0xff]
    %v2678 = vld [vmem:[%s2 + $0x3128] sm:$0xff]
    %v2679 = vld [vmem:[%s2 + $0x3130] sm:$0xff]
    %v2680 = vld [vmem:[%s2 + $0x3138] sm:$0xff]
    %v2681 = vld [vmem:[%s2 + $0x3140] sm:$0xff]
    %v2682 = vld [vmem:[%s2 + $0x3148] sm:$0xff]
    %v2683 = vld [vmem:[%s2 + $0x3150] sm:$0xff]
    %v2684 = vld [vmem:[%s2 + $0x3158] sm:$0xff]
    %v2685 = vld [vmem:[%s2 + $0x3160] sm:$0xff]
    %v2686 = vld [vmem:[%s2 + $0x3168] sm:$0xff]
    %v2687 = vld [vmem:[%s2 + $0x3170] sm:$0xff]
    %v2688 = vld [vmem:[%s2 + $0x3178] sm:$0xff]
    %v2689 = vld [vmem:[%s2 + $0x3180] sm:$0xff]
    %v2690 = vld [vmem:[%s2 + $0x3188] sm:$0xff]
    %v2691 = vld [vmem:[%s2 + $0x3190] sm:$0xff]
    %v2692 = vld [vmem:[%s2 + $0x3198] sm:$0xff]
    %v2693 = vld [vmem:[%s2 + $0x31a0] sm:$0xff]
    %v2694 = vld [vmem:[%s2 + $0x31a8] sm:$0xff]
    %v2695 = vld [vmem:[%s2 + $0x31b0] sm:$0xff]
    %v2696 = vld [vmem:[%s2 + $0x31b8] sm:$0xff]
    %v2697 = vld [vmem:[%s2 + $0x31c0] sm:$0xff]
    %v2698 = vld [vmem:[%s2 + $0x31c8] sm:$0xff]
    %v2699 = vld [vmem:[%s2 + $0x31d0] sm:$0xff]
    %v2700 = vld [vmem:[%s2 + $0x31d8] sm:$0xff]
    %v2701 = vld [vmem:[%s2 + $0x31e0] sm:$0xff]
    %v2702 = vld [vmem:[%s2 + $0x31e8] sm:$0xff]
    %v2703 = vld [vmem:[%s2 + $0x31f0] sm:$0xff]
    %v2704 = vld [vmem:[%s2 + $0x31f8] sm:$0xff]
    %2705 = vmatprep.subr.mxu0 0.0
    %2706 = vmatpush1.msra.mxu0 %v1120
    %2707 = vmatprep.subr.mxu0 0.0
    %2708 = vmatpush1.msra.mxu0 %v1119
    %2709 = vmatprep.subr.mxu0 0.0
    %2710 = vmatpush1.msra.mxu0 %v1118
    %2711 = vmatprep.subr.mxu0 0.0
    %2712 = vmatpush1.msra.mxu0 %v1117
    %2713 = vmatprep.subr.mxu0 0.0
    %2714 = vmatpush1.msra.mxu0 %v1116
    %2715 = vmatprep.subr.mxu0 0.0
    %2716 = vmatpush1.msra.mxu0 %v1115
    %2717 = vmatprep.subr.mxu0 0.0
    %2718 = vmatpush1.msra.mxu0 %v1114
    %2719 = vmatprep.subr.mxu0 0.0
    %2720 = vmatpush1.msra.mxu0 %v1113
    %2721 = vmatprep.subr.mxu0 0.0
    %2722 = vmatpush1.msra.mxu0 %v1112
    %2723 = vmatprep.subr.mxu0 0.0
    %2724 = vmatpush1.msra.mxu0 %v1111
    %2725 = vmatprep.subr.mxu0 0.0
    %2726 = vmatpush1.msra.mxu0 %v1110
    %2727 = vmatprep.subr.mxu0 0.0
    %2728 = vmatpush1.msra.mxu0 %v1109
    %2729 = vmatprep.subr.mxu0 0.0
    %2730 = vmatpush1.msra.mxu0 %v1108
    %2731 = vmatprep.subr.mxu0 0.0
    %2732 = vmatpush1.msra.mxu0 %v1107
    %2733 = vmatprep.subr.mxu0 0.0
    %2734 = vmatpush1.msra.mxu0 %v1106
    %2735 = vmatprep.subr.mxu0 0.0
    %2736 = vmatpush1.msra.mxu0 %v1105
    %2737 = vmatprep.subr.mxu0 0.0
    %2738 = vmatpush2.msra.mxu0 0.0
    %2739 = vmatprep.subr.mxu0 0.0
    %2740 = vmatpush2.msra.mxu0 0.0
    %2741 = vmatprep.subr.mxu0 0.0
    %2742 = vmatpush2.msra.mxu0 0.0
    %2743 = vmatprep.subr.mxu0 0.0
    %2744 = vmatpush2.msra.mxu0 0.0
    %2745 = vmatprep.subr.mxu0 0.0
    %2746 = vmatpush2.msra.mxu0 0.0
    %2747 = vmatprep.subr.mxu0 0.0
    %2748 = vmatpush2.msra.mxu0 0.0
    %2749 = vmatprep.subr.mxu0 0.0
    %2750 = vmatpush2.msra.mxu0 0.0
    %2751 = vmatprep.subr.mxu0 0.0
    %2752 = vmatpush2.msra.mxu0 0.0
    %2753 = vmatprep.subr.mxu0 0.0
    %2754 = vmatpush2.msra.mxu0 0.0
    %2755 = vmatprep.subr.mxu0 0.0
    %2756 = vmatpush2.msra.mxu0 0.0
    %2757 = vmatprep.subr.mxu0 0.0
    %2758 = vmatpush2.msra.mxu0 0.0
    %2759 = vmatprep.subr.mxu0 0.0
    %2760 = vmatpush2.msra.mxu0 0.0
    %2761 = vmatprep.subr.mxu0 0.0
    %2762 = vmatpush2.msra.mxu0 0.0
    %2763 = vmatprep.subr.mxu0 0.0
    %2764 = vmatpush2.msra.mxu0 0.0
    %2765 = vmatprep.subr.mxu0 0.0
    %2766 = vmatpush2.msra.mxu0 0.0
    %2767 = vmatprep.subr.mxu0 0.0
    %2768 = vmatpush2.msra.mxu0 0.0
    %2769 = vmatprep.mubr.f32.mxu0 0.0
    %2770 = vmatmul.mubr.f32.gmra.mxu0 %v1005
    %v2771 = vpop.f32.mrf.mxu0
    %v2772 = vadd.f32 0.0, %v2771
    %v2773 = vpop.f32.mrf.mxu0
    %2774 = vdwg.mxu0
    %2775 = vmatprep.subr.mxu0 0.0
    %2776 = vmatpush1.msra.mxu0 %v1136
    %2777 = vmatprep.subr.mxu0 0.0
    %2778 = vmatpush1.msra.mxu0 %v1135
    %2779 = vmatprep.subr.mxu0 0.0
    %2780 = vmatpush1.msra.mxu0 %v1134
    %2781 = vmatprep.subr.mxu0 0.0
    %2782 = vmatpush1.msra.mxu0 %v1133
    %2783 = vmatprep.subr.mxu0 0.0
    %2784 = vmatpush1.msra.mxu0 %v1132
    %2785 = vmatprep.subr.mxu0 0.0
    %2786 = vmatpush1.msra.mxu0 %v1131
    %2787 = vmatprep.subr.mxu0 0.0
    %2788 = vmatpush1.msra.mxu0 %v1130
    %2789 = vmatprep.subr.mxu0 0.0
    %2790 = vmatpush1.msra.mxu0 %v1129
    %2791 = vmatprep.subr.mxu0 0.0
    %2792 = vmatpush1.msra.mxu0 %v1128
    %2793 = vmatprep.subr.mxu0 0.0
    %2794 = vmatpush1.msra.mxu0 %v1127
    %2795 = vmatprep.subr.mxu0 0.0
    %2796 = vmatpush1.msra.mxu0 %v1126
    %2797 = vmatprep.subr.mxu0 0.0
    %2798 = vmatpush1.msra.mxu0 %v1125
    %2799 = vmatprep.subr.mxu0 0.0
    %2800 = vmatpush1.msra.mxu0 %v1124
    %2801 = vmatprep.subr.mxu0 0.0
    %2802 = vmatpush1.msra.mxu0 %v1123
    %2803 = vmatprep.subr.mxu0 0.0
    %2804 = vmatpush1.msra.mxu0 %v1122
    %2805 = vmatprep.subr.mxu0 0.0
    %2806 = vmatpush1.msra.mxu0 %v1121
    %2807 = vmatprep.subr.mxu0 0.0
    %2808 = vmatpush2.msra.mxu0 0.0
    %2809 = vmatprep.subr.mxu0 0.0
    %2810 = vmatpush2.msra.mxu0 0.0
    %2811 = vmatprep.subr.mxu0 0.0
    %2812 = vmatpush2.msra.mxu0 0.0
    %2813 = vmatprep.subr.mxu0 0.0
    %2814 = vmatpush2.msra.mxu0 0.0
    %2815 = vmatprep.subr.mxu0 0.0
    %2816 = vmatpush2.msra.mxu0 0.0
    %2817 = vmatprep.subr.mxu0 0.0
    %2818 = vmatpush2.msra.mxu0 0.0
    %2819 = vmatprep.subr.mxu0 0.0
    %2820 = vmatpush2.msra.mxu0 0.0
    %2821 = vmatprep.subr.mxu0 0.0
    %2822 = vmatpush2.msra.mxu0 0.0
    %2823 = vmatprep.subr.mxu0 0.0
    %2824 = vmatpush2.msra.mxu0 0.0
    %2825 = vmatprep.subr.mxu0 0.0
    %2826 = vmatpush2.msra.mxu0 0.0
    %2827 = vmatprep.subr.mxu0 0.0
    %2828 = vmatpush2.msra.mxu0 0.0
    %2829 = vmatprep.subr.mxu0 0.0
    %2830 = vmatpush2.msra.mxu0 0.0
    %2831 = vmatprep.subr.mxu0 0.0
    %2832 = vmatpush2.msra.mxu0 0.0
    %2833 = vmatprep.subr.mxu0 0.0
    %2834 = vmatpush2.msra.mxu0 0.0
    %2835 = vmatprep.subr.mxu0 0.0
    %2836 = vmatpush2.msra.mxu0 0.0
    %2837 = vmatprep.subr.mxu0 0.0
    %2838 = vmatpush2.msra.mxu0 0.0
    %2839 = vmatprep.mubr.f32.mxu0 0.0
    %2840 = vmatmul.mubr.f32.gmra.mxu0 %v1006
    %v2841 = vpop.f32.mrf.mxu0
    %v2842 = vadd.f32 0.0, %v2841
    %v2843 = vpop.f32.mrf.mxu0
    %2844 = vdwg.mxu0
    %2845 = vmatprep.subr.mxu0 0.0
    %2846 = vmatpush1.msra.mxu0 %v1152
    %2847 = vmatprep.subr.mxu0 0.0
    %2848 = vmatpush1.msra.mxu0 %v1151
    %2849 = vmatprep.subr.mxu0 0.0
    %2850 = vmatpush1.msra.mxu0 %v1150
    %2851 = vmatprep.subr.mxu0 0.0
    %2852 = vmatpush1.msra.mxu0 %v1149
    %2853 = vmatprep.subr.mxu0 0.0
    %2854 = vmatpush1.msra.mxu0 %v1148
    %2855 = vmatprep.subr.mxu0 0.0
    %2856 = vmatpush1.msra.mxu0 %v1147
    %2857 = vmatprep.subr.mxu0 0.0
    %2858 = vmatpush1.msra.mxu0 %v1146
    %2859 = vmatprep.subr.mxu0 0.0
    %2860 = vmatpush1.msra.mxu0 %v1145
    %2861 = vmatprep.subr.mxu0 0.0
    %2862 = vmatpush1.msra.mxu0 %v1144
    %2863 = vmatprep.subr.mxu0 0.0
    %2864 = vmatpush1.msra.mxu0 %v1143
    %2865 = vmatprep.subr.mxu0 0.0
    %2866 = vmatpush1.msra.mxu0 %v1142
    %2867 = vmatprep.subr.mxu0 0.0
    %2868 = vmatpush1.msra.mxu0 %v1141
    %2869 = vmatprep.subr.mxu0 0.0
    %2870 = vmatpush1.msra.mxu0 %v1140
    %2871 = vmatprep.subr.mxu0 0.0
    %2872 = vmatpush1.msra.mxu0 %v1139
    %2873 = vmatprep.subr.mxu0 0.0
    %2874 = vmatpush1.msra.mxu0 %v1138
    %2875 = vmatprep.subr.mxu0 0.0
    %2876 = vmatpush1.msra.mxu0 %v1137
    %2877 = vmatprep.subr.mxu0 0.0
    %2878 = vmatpush2.msra.mxu0 0.0
    %2879 = vmatprep.subr.mxu0 0.0
    %2880 = vmatpush2.msra.mxu0 0.0
    %2881 = vmatprep.subr.mxu0 0.0
    %2882 = vmatpush2.msra.mxu0 0.0
    %2883 = vmatprep.subr.mxu0 0.0
    %2884 = vmatpush2.msra.mxu0 0.0
    %2885 = vmatprep.subr.mxu0 0.0
    %2886 = vmatpush2.msra.mxu0 0.0
    %2887 = vmatprep.subr.mxu0 0.0
    %2888 = vmatpush2.msra.mxu0 0.0
    %2889 = vmatprep.subr.mxu0 0.0
    %2890 = vmatpush2.msra.mxu0 0.0
    %2891 = vmatprep.subr.mxu0 0.0
    %2892 = vmatpush2.msra.mxu0 0.0
    %2893 = vmatprep.subr.mxu0 0.0
    %2894 = vmatpush2.msra.mxu0 0.0
    %2895 = vmatprep.subr.mxu0 0.0
    %2896 = vmatpush2.msra.mxu0 0.0
    %2897 = vmatprep.subr.mxu0 0.0
    %2898 = vmatpush2.msra.mxu0 0.0
    %2899 = vmatprep.subr.mxu0 0.0
    %2900 = vmatpush2.msra.mxu0 0.0
    %2901 = vmatprep.subr.mxu0 0.0
    %2902 = vmatpush2.msra.mxu0 0.0
    %2903 = vmatprep.subr.mxu0 0.0
    %2904 = vmatpush2.msra.mxu0 0.0
    %2905 = vmatprep.subr.mxu0 0.0
    %2906 = vmatpush2.msra.mxu0 0.0
    %2907 = vmatprep.subr.mxu0 0.0
    %2908 = vmatpush2.msra.mxu0 0.0
    %2909 = vmatprep.mubr.f32.mxu0 0.0
    %2910 = vmatmul.mubr.f32.gmra.mxu0 %v1007
    %v2911 = vpop.f32.mrf.mxu0
    %v2912 = vadd.f32 0.0, %v2911
    %v2913 = vpop.f32.mrf.mxu0
    %2914 = vdwg.mxu0
    %2915 = vmatprep.subr.mxu0 0.0
    %2916 = vmatpush1.msra.mxu0 %v1168
    %2917 = vmatprep.subr.mxu0 0.0
    %2918 = vmatpush1.msra.mxu0 %v1167
    %2919 = vmatprep.subr.mxu0 0.0
    %2920 = vmatpush1.msra.mxu0 %v1166
    %2921 = vmatprep.subr.mxu0 0.0
    %2922 = vmatpush1.msra.mxu0 %v1165
    %2923 = vmatprep.subr.mxu0 0.0
    %2924 = vmatpush1.msra.mxu0 %v1164
    %2925 = vmatprep.subr.mxu0 0.0
    %2926 = vmatpush1.msra.mxu0 %v1163
    %2927 = vmatprep.subr.mxu0 0.0
    %2928 = vmatpush1.msra.mxu0 %v1162
    %2929 = vmatprep.subr.mxu0 0.0
    %2930 = vmatpush1.msra.mxu0 %v1161
    %2931 = vmatprep.subr.mxu0 0.0
    %2932 = vmatpush1.msra.mxu0 %v1160
    %2933 = vmatprep.subr.mxu0 0.0
    %2934 = vmatpush1.msra.mxu0 %v1159
    %2935 = vmatprep.subr.mxu0 0.0
    %2936 = vmatpush1.msra.mxu0 %v1158
    %2937 = vmatprep.subr.mxu0 0.0
    %2938 = vmatpush1.msra.mxu0 %v1157
    %2939 = vmatprep.subr.mxu0 0.0
    %2940 = vmatpush1.msra.mxu0 %v1156
    %2941 = vmatprep.subr.mxu0 0.0
    %2942 = vmatpush1.msra.mxu0 %v1155
    %2943 = vmatprep.subr.mxu0 0.0
    %2944 = vmatpush1.msra.mxu0 %v1154
    %2945 = vmatprep.subr.mxu0 0.0
    %2946 = vmatpush1.msra.mxu0 %v1153
    %2947 = vmatprep.subr.mxu0 0.0
    %2948 = vmatpush2.msra.mxu0 0.0
    %2949 = vmatprep.subr.mxu0 0.0
    %2950 = vmatpush2.msra.mxu0 0.0
    %2951 = vmatprep.subr.mxu0 0.0
    %2952 = vmatpush2.msra.mxu0 0.0
    %2953 = vmatprep.subr.mxu0 0.0
    %2954 = vmatpush2.msra.mxu0 0.0
    %2955 = vmatprep.subr.mxu0 0.0
    %2956 = vmatpush2.msra.mxu0 0.0
    %2957 = vmatprep.subr.mxu0 0.0
    %2958 = vmatpush2.msra.mxu0 0.0
    %2959 = vmatprep.subr.mxu0 0.0
    %2960 = vmatpush2.msra.mxu0 0.0
    %2961 = vmatprep.subr.mxu0 0.0
    %2962 = vmatpush2.msra.mxu0 0.0
    %2963 = vmatprep.subr.mxu0 0.0
    %2964 = vmatpush2.msra.mxu0 0.0
    %2965 = vmatprep.subr.mxu0 0.0
    %2966 = vmatpush2.msra.mxu0 0.0
    %2967 = vmatprep.subr.mxu0 0.0
    %2968 = vmatpush2.msra.mxu0 0.0
    %2969 = vmatprep.subr.mxu0 0.0
    %2970 = vmatpush2.msra.mxu0 0.0
    %2971 = vmatprep.subr.mxu0 0.0
    %2972 = vmatpush2.msra.mxu0 0.0
    %2973 = vmatprep.subr.mxu0 0.0
    %2974 = vmatpush2.msra.mxu0 0.0
    %2975 = vmatprep.subr.mxu0 0.0
    %2976 = vmatpush2.msra.mxu0 0.0
    %2977 = vmatprep.subr.mxu0 0.0
    %2978 = vmatpush2.msra.mxu0 0.0
    %2979 = vmatprep.mubr.f32.mxu0 0.0
    %2980 = vmatmul.mubr.f32.gmra.mxu0 %v1008
    %v2981 = vpop.f32.mrf.mxu0
    %v2982 = vadd.f32 0.0, %v2981
    %v2983 = vpop.f32.mrf.mxu0
    %2984 = vdwg.mxu0
    %2985 = vmatprep.subr.mxu0 0.0
    %2986 = vmatpush1.msra.mxu0 %v1184
    %2987 = vmatprep.subr.mxu0 0.0
    %2988 = vmatpush1.msra.mxu0 %v1183
    %2989 = vmatprep.subr.mxu0 0.0
    %2990 = vmatpush1.msra.mxu0 %v1182
    %2991 = vmatprep.subr.mxu0 0.0
    %2992 = vmatpush1.msra.mxu0 %v1181
    %2993 = vmatprep.subr.mxu0 0.0
    %2994 = vmatpush1.msra.mxu0 %v1180
    %2995 = vmatprep.subr.mxu0 0.0
    %2996 = vmatpush1.msra.mxu0 %v1179
    %2997 = vmatprep.subr.mxu0 0.0
    %2998 = vmatpush1.msra.mxu0 %v1178
    %2999 = vmatprep.subr.mxu0 0.0
    %3000 = vmatpush1.msra.mxu0 %v1177
    %3001 = vmatprep.subr.mxu0 0.0
    %3002 = vmatpush1.msra.mxu0 %v1176
    %3003 = vmatprep.subr.mxu0 0.0
    %3004 = vmatpush1.msra.mxu0 %v1175
    %3005 = vmatprep.subr.mxu0 0.0
    %3006 = vmatpush1.msra.mxu0 %v1174
    %3007 = vmatprep.subr.mxu0 0.0
    %3008 = vmatpush1.msra.mxu0 %v1173
    %3009 = vmatprep.subr.mxu0 0.0
    %3010 = vmatpush1.msra.mxu0 %v1172
    %3011 = vmatprep.subr.mxu0 0.0
    %3012 = vmatpush1.msra.mxu0 %v1171
    %3013 = vmatprep.subr.mxu0 0.0
    %3014 = vmatpush1.msra.mxu0 %v1170
    %3015 = vmatprep.subr.mxu0 0.0
    %3016 = vmatpush1.msra.mxu0 %v1169
    %3017 = vmatprep.subr.mxu0 0.0
    %3018 = vmatpush2.msra.mxu0 0.0
    %3019 = vmatprep.subr.mxu0 0.0
    %3020 = vmatpush2.msra.mxu0 0.0
    %3021 = vmatprep.subr.mxu0 0.0
    %3022 = vmatpush2.msra.mxu0 0.0
    %3023 = vmatprep.subr.mxu0 0.0
    %3024 = vmatpush2.msra.mxu0 0.0
    %3025 = vmatprep.subr.mxu0 0.0
    %3026 = vmatpush2.msra.mxu0 0.0
    %3027 = vmatprep.subr.mxu0 0.0
    %3028 = vmatpush2.msra.mxu0 0.0
    %3029 = vmatprep.subr.mxu0 0.0
    %3030 = vmatpush2.msra.mxu0 0.0
    %3031 = vmatprep.subr.mxu0 0.0
    %3032 = vmatpush2.msra.mxu0 0.0
    %3033 = vmatprep.subr.mxu0 0.0
    %3034 = vmatpush2.msra.mxu0 0.0
    %3035 = vmatprep.subr.mxu0 0.0
    %3036 = vmatpush2.msra.mxu0 0.0
    %3037 = vmatprep.subr.mxu0 0.0
    %3038 = vmatpush2.msra.mxu0 0.0
    %3039 = vmatprep.subr.mxu0 0.0
    %3040 = vmatpush2.msra.mxu0 0.0
    %3041 = vmatprep.subr.mxu0 0.0
    %3042 = vmatpush2.msra.mxu0 0.0
    %3043 = vmatprep.subr.mxu0 0.0
    %3044 = vmatpush2.msra.mxu0 0.0
    %3045 = vmatprep.subr.mxu0 0.0
    %3046 = vmatpush2.msra.mxu0 0.0
    %3047 = vmatprep.subr.mxu0 0.0
    %3048 = vmatpush2.msra.mxu0 0.0
    %3049 = vmatprep.mubr.f32.mxu0 0.0
    %3050 = vmatmul.mubr.f32.gmra.mxu0 %v1009
    %v3051 = vpop.f32.mrf.mxu0
    %v3052 = vadd.f32 0.0, %v3051
    %v3053 = vpop.f32.mrf.mxu0
    %3054 = vdwg.mxu0
    %3055 = vmatprep.subr.mxu0 0.0
    %3056 = vmatpush1.msra.mxu0 %v1200
    %3057 = vmatprep.subr.mxu0 0.0
    %3058 = vmatpush1.msra.mxu0 %v1199
    %3059 = vmatprep.subr.mxu0 0.0
    %3060 = vmatpush1.msra.mxu0 %v1198
    %3061 = vmatprep.subr.mxu0 0.0
    %3062 = vmatpush1.msra.mxu0 %v1197
    %3063 = vmatprep.subr.mxu0 0.0
    %3064 = vmatpush1.msra.mxu0 %v1196
    %3065 = vmatprep.subr.mxu0 0.0
    %3066 = vmatpush1.msra.mxu0 %v1195
    %3067 = vmatprep.subr.mxu0 0.0
    %3068 = vmatpush1.msra.mxu0 %v1194
    %3069 = vmatprep.subr.mxu0 0.0
    %3070 = vmatpush1.msra.mxu0 %v1193
    %3071 = vmatprep.subr.mxu0 0.0
    %3072 = vmatpush1.msra.mxu0 %v1192
    %3073 = vmatprep.subr.mxu0 0.0
    %3074 = vmatpush1.msra.mxu0 %v1191
    %3075 = vmatprep.subr.mxu0 0.0
    %3076 = vmatpush1.msra.mxu0 %v1190
    %3077 = vmatprep.subr.mxu0 0.0
    %3078 = vmatpush1.msra.mxu0 %v1189
    %3079 = vmatprep.subr.mxu0 0.0
    %3080 = vmatpush1.msra.mxu0 %v1188
    %3081 = vmatprep.subr.mxu0 0.0
    %3082 = vmatpush1.msra.mxu0 %v1187
    %3083 = vmatprep.subr.mxu0 0.0
    %3084 = vmatpush1.msra.mxu0 %v1186
    %3085 = vmatprep.subr.mxu0 0.0
    %3086 = vmatpush1.msra.mxu0 %v1185
    %3087 = vmatprep.subr.mxu0 0.0
    %3088 = vmatpush2.msra.mxu0 0.0
    %3089 = vmatprep.subr.mxu0 0.0
    %3090 = vmatpush2.msra.mxu0 0.0
    %3091 = vmatprep.subr.mxu0 0.0
    %3092 = vmatpush2.msra.mxu0 0.0
    %3093 = vmatprep.subr.mxu0 0.0
    %3094 = vmatpush2.msra.mxu0 0.0
    %3095 = vmatprep.subr.mxu0 0.0
    %3096 = vmatpush2.msra.mxu0 0.0
    %3097 = vmatprep.subr.mxu0 0.0
    %3098 = vmatpush2.msra.mxu0 0.0
    %3099 = vmatprep.subr.mxu0 0.0
    %3100 = vmatpush2.msra.mxu0 0.0
    %3101 = vmatprep.subr.mxu0 0.0
    %3102 = vmatpush2.msra.mxu0 0.0
    %3103 = vmatprep.subr.mxu0 0.0
    %3104 = vmatpush2.msra.mxu0 0.0
    %3105 = vmatprep.subr.mxu0 0.0
    %3106 = vmatpush2.msra.mxu0 0.0
    %3107 = vmatprep.subr.mxu0 0.0
    %3108 = vmatpush2.msra.mxu0 0.0
    %3109 = vmatprep.subr.mxu0 0.0
    %3110 = vmatpush2.msra.mxu0 0.0
    %3111 = vmatprep.subr.mxu0 0.0
    %3112 = vmatpush2.msra.mxu0 0.0
    %3113 = vmatprep.subr.mxu0 0.0
    %3114 = vmatpush2.msra.mxu0 0.0
    %3115 = vmatprep.subr.mxu0 0.0
    %3116 = vmatpush2.msra.mxu0 0.0
    %3117 = vmatprep.subr.mxu0 0.0
    %3118 = vmatpush2.msra.mxu0 0.0
    %3119 = vmatprep.mubr.f32.mxu0 0.0
    %3120 = vmatmul.mubr.f32.gmra.mxu0 %v1010
    %v3121 = vpop.f32.mrf.mxu0
    %v3122 = vadd.f32 0.0, %v3121
    %v3123 = vpop.f32.mrf.mxu0
    %3124 = vdwg.mxu0
    %3125 = vmatprep.subr.mxu0 0.0
    %3126 = vmatpush1.msra.mxu0 %v1216
    %3127 = vmatprep.subr.mxu0 0.0
    %3128 = vmatpush1.msra.mxu0 %v1215
    %3129 = vmatprep.subr.mxu0 0.0
    %3130 = vmatpush1.msra.mxu0 %v1214
    %3131 = vmatprep.subr.mxu0 0.0
    %3132 = vmatpush1.msra.mxu0 %v1213
    %3133 = vmatprep.subr.mxu0 0.0
    %3134 = vmatpush1.msra.mxu0 %v1212
    %3135 = vmatprep.subr.mxu0 0.0
    %3136 = vmatpush1.msra.mxu0 %v1211
    %3137 = vmatprep.subr.mxu0 0.0
    %3138 = vmatpush1.msra.mxu0 %v1210
    %3139 = vmatprep.subr.mxu0 0.0
    %3140 = vmatpush1.msra.mxu0 %v1209
    %3141 = vmatprep.subr.mxu0 0.0
    %3142 = vmatpush1.msra.mxu0 %v1208
    %3143 = vmatprep.subr.mxu0 0.0
    %3144 = vmatpush1.msra.mxu0 %v1207
    %3145 = vmatprep.subr.mxu0 0.0
    %3146 = vmatpush1.msra.mxu0 %v1206
    %3147 = vmatprep.subr.mxu0 0.0
    %3148 = vmatpush1.msra.mxu0 %v1205
    %3149 = vmatprep.subr.mxu0 0.0
    %3150 = vmatpush1.msra.mxu0 %v1204
    %3151 = vmatprep.subr.mxu0 0.0
    %3152 = vmatpush1.msra.mxu0 %v1203
    %3153 = vmatprep.subr.mxu0 0.0
    %3154 = vmatpush1.msra.mxu0 %v1202
    %3155 = vmatprep.subr.mxu0 0.0
    %3156 = vmatpush1.msra.mxu0 %v1201
    %3157 = vmatprep.subr.mxu0 0.0
    %3158 = vmatpush2.msra.mxu0 0.0
    %3159 = vmatprep.subr.mxu0 0.0
    %3160 = vmatpush2.msra.mxu0 0.0
    %3161 = vmatprep.subr.mxu0 0.0
    %3162 = vmatpush2.msra.mxu0 0.0
    %3163 = vmatprep.subr.mxu0 0.0
    %3164 = vmatpush2.msra.mxu0 0.0
    %3165 = vmatprep.subr.mxu0 0.0
    %3166 = vmatpush2.msra.mxu0 0.0
    %3167 = vmatprep.subr.mxu0 0.0
    %3168 = vmatpush2.msra.mxu0 0.0
    %3169 = vmatprep.subr.mxu0 0.0
    %3170 = vmatpush2.msra.mxu0 0.0
    %3171 = vmatprep.subr.mxu0 0.0
    %3172 = vmatpush2.msra.mxu0 0.0
    %3173 = vmatprep.subr.mxu0 0.0
    %3174 = vmatpush2.msra.mxu0 0.0
    %3175 = vmatprep.subr.mxu0 0.0
    %3176 = vmatpush2.msra.mxu0 0.0
    %3177 = vmatprep.subr.mxu0 0.0
    %3178 = vmatpush2.msra.mxu0 0.0
    %3179 = vmatprep.subr.mxu0 0.0
    %3180 = vmatpush2.msra.mxu0 0.0
    %3181 = vmatprep.subr.mxu0 0.0
    %3182 = vmatpush2.msra.mxu0 0.0
    %3183 = vmatprep.subr.mxu0 0.0
    %3184 = vmatpush2.msra.mxu0 0.0
    %3185 = vmatprep.subr.mxu0 0.0
    %3186 = vmatpush2.msra.mxu0 0.0
    %3187 = vmatprep.subr.mxu0 0.0
    %3188 = vmatpush2.msra.mxu0 0.0
    %3189 = vmatprep.mubr.f32.mxu0 0.0
    %3190 = vmatmul.mubr.f32.gmra.mxu0 %v1011
    %v3191 = vpop.f32.mrf.mxu0
    %v3192 = vadd.f32 0.0, %v3191
    %v3193 = vpop.f32.mrf.mxu0
    %3194 = vdwg.mxu0
    %3195 = vmatprep.subr.mxu0 0.0
    %3196 = vmatpush1.msra.mxu0 %v1232
    %3197 = vmatprep.subr.mxu0 0.0
    %3198 = vmatpush1.msra.mxu0 %v1231
    %3199 = vmatprep.subr.mxu0 0.0
    %3200 = vmatpush1.msra.mxu0 %v1230
    %3201 = vmatprep.subr.mxu0 0.0
    %3202 = vmatpush1.msra.mxu0 %v1229
    %3203 = vmatprep.subr.mxu0 0.0
    %3204 = vmatpush1.msra.mxu0 %v1228
    %3205 = vmatprep.subr.mxu0 0.0
    %3206 = vmatpush1.msra.mxu0 %v1227
    %3207 = vmatprep.subr.mxu0 0.0
    %3208 = vmatpush1.msra.mxu0 %v1226
    %3209 = vmatprep.subr.mxu0 0.0
    %3210 = vmatpush1.msra.mxu0 %v1225
    %3211 = vmatprep.subr.mxu0 0.0
    %3212 = vmatpush1.msra.mxu0 %v1224
    %3213 = vmatprep.subr.mxu0 0.0
    %3214 = vmatpush1.msra.mxu0 %v1223
    %3215 = vmatprep.subr.mxu0 0.0
    %3216 = vmatpush1.msra.mxu0 %v1222
    %3217 = vmatprep.subr.mxu0 0.0
    %3218 = vmatpush1.msra.mxu0 %v1221
    %3219 = vmatprep.subr.mxu0 0.0
    %3220 = vmatpush1.msra.mxu0 %v1220
    %3221 = vmatprep.subr.mxu0 0.0
    %3222 = vmatpush1.msra.mxu0 %v1219
    %3223 = vmatprep.subr.mxu0 0.0
    %3224 = vmatpush1.msra.mxu0 %v1218
    %3225 = vmatprep.subr.mxu0 0.0
    %3226 = vmatpush1.msra.mxu0 %v1217
    %3227 = vmatprep.subr.mxu0 0.0
    %3228 = vmatpush2.msra.mxu0 0.0
    %3229 = vmatprep.subr.mxu0 0.0
    %3230 = vmatpush2.msra.mxu0 0.0
    %3231 = vmatprep.subr.mxu0 0.0
    %3232 = vmatpush2.msra.mxu0 0.0
    %3233 = vmatprep.subr.mxu0 0.0
    %3234 = vmatpush2.msra.mxu0 0.0
    %3235 = vmatprep.subr.mxu0 0.0
    %3236 = vmatpush2.msra.mxu0 0.0
    %3237 = vmatprep.subr.mxu0 0.0
    %3238 = vmatpush2.msra.mxu0 0.0
    %3239 = vmatprep.subr.mxu0 0.0
    %3240 = vmatpush2.msra.mxu0 0.0
    %3241 = vmatprep.subr.mxu0 0.0
    %3242 = vmatpush2.msra.mxu0 0.0
    %3243 = vmatprep.subr.mxu0 0.0
    %3244 = vmatpush2.msra.mxu0 0.0
    %3245 = vmatprep.subr.mxu0 0.0
    %3246 = vmatpush2.msra.mxu0 0.0
    %3247 = vmatprep.subr.mxu0 0.0
    %3248 = vmatpush2.msra.mxu0 0.0
    %3249 = vmatprep.subr.mxu0 0.0
    %3250 = vmatpush2.msra.mxu0 0.0
    %3251 = vmatprep.subr.mxu0 0.0
    %3252 = vmatpush2.msra.mxu0 0.0
    %3253 = vmatprep.subr.mxu0 0.0
    %3254 = vmatpush2.msra.mxu0 0.0
    %3255 = vmatprep.subr.mxu0 0.0
    %3256 = vmatpush2.msra.mxu0 0.0
    %3257 = vmatprep.subr.mxu0 0.0
    %3258 = vmatpush2.msra.mxu0 0.0
    %3259 = vmatprep.mubr.f32.mxu0 0.0
    %3260 = vmatmul.mubr.f32.gmra.mxu0 %v1012
    %v3261 = vpop.f32.mrf.mxu0
    %v3262 = vadd.f32 0.0, %v3261
    %v3263 = vpop.f32.mrf.mxu0
    %3264 = vdwg.mxu0
    %3265 = vmatprep.subr.mxu0 0.0
    %3266 = vmatpush1.msra.mxu0 %v1248
    %3267 = vmatprep.subr.mxu0 0.0
    %3268 = vmatpush1.msra.mxu0 %v1247
    %3269 = vmatprep.subr.mxu0 0.0
    %3270 = vmatpush1.msra.mxu0 %v1246
    %3271 = vmatprep.subr.mxu0 0.0
    %3272 = vmatpush1.msra.mxu0 %v1245
    %3273 = vmatprep.subr.mxu0 0.0
    %3274 = vmatpush1.msra.mxu0 %v1244
    %3275 = vmatprep.subr.mxu0 0.0
    %3276 = vmatpush1.msra.mxu0 %v1243
    %3277 = vmatprep.subr.mxu0 0.0
    %3278 = vmatpush1.msra.mxu0 %v1242
    %3279 = vmatprep.subr.mxu0 0.0
    %3280 = vmatpush1.msra.mxu0 %v1241
    %3281 = vmatprep.subr.mxu0 0.0
    %3282 = vmatpush1.msra.mxu0 %v1240
    %3283 = vmatprep.subr.mxu0 0.0
    %3284 = vmatpush1.msra.mxu0 %v1239
    %3285 = vmatprep.subr.mxu0 0.0
    %3286 = vmatpush1.msra.mxu0 %v1238
    %3287 = vmatprep.subr.mxu0 0.0
    %3288 = vmatpush1.msra.mxu0 %v1237
    %3289 = vmatprep.subr.mxu0 0.0
    %3290 = vmatpush1.msra.mxu0 %v1236
    %3291 = vmatprep.subr.mxu0 0.0
    %3292 = vmatpush1.msra.mxu0 %v1235
    %3293 = vmatprep.subr.mxu0 0.0
    %3294 = vmatpush1.msra.mxu0 %v1234
    %3295 = vmatprep.subr.mxu0 0.0
    %3296 = vmatpush1.msra.mxu0 %v1233
    %3297 = vmatprep.subr.mxu0 0.0
    %3298 = vmatpush2.msra.mxu0 0.0
    %3299 = vmatprep.subr.mxu0 0.0
    %3300 = vmatpush2.msra.mxu0 0.0
    %3301 = vmatprep.subr.mxu0 0.0
    %3302 = vmatpush2.msra.mxu0 0.0
    %3303 = vmatprep.subr.mxu0 0.0
    %3304 = vmatpush2.msra.mxu0 0.0
    %3305 = vmatprep.subr.mxu0 0.0
    %3306 = vmatpush2.msra.mxu0 0.0
    %3307 = vmatprep.subr.mxu0 0.0
    %3308 = vmatpush2.msra.mxu0 0.0
    %3309 = vmatprep.subr.mxu0 0.0
    %3310 = vmatpush2.msra.mxu0 0.0
    %3311 = vmatprep.subr.mxu0 0.0
    %3312 = vmatpush2.msra.mxu0 0.0
    %3313 = vmatprep.subr.mxu0 0.0
    %3314 = vmatpush2.msra.mxu0 0.0
    %3315 = vmatprep.subr.mxu0 0.0
    %3316 = vmatpush2.msra.mxu0 0.0
    %3317 = vmatprep.subr.mxu0 0.0
    %3318 = vmatpush2.msra.mxu0 0.0
    %3319 = vmatprep.subr.mxu0 0.0
    %3320 = vmatpush2.msra.mxu0 0.0
    %3321 = vmatprep.subr.mxu0 0.0
    %3322 = vmatpush2.msra.mxu0 0.0
    %3323 = vmatprep.subr.mxu0 0.0
    %3324 = vmatpush2.msra.mxu0 0.0
    %3325 = vmatprep.subr.mxu0 0.0
    %3326 = vmatpush2.msra.mxu0 0.0
    %3327 = vmatprep.subr.mxu0 0.0
    %3328 = vmatpush2.msra.mxu0 0.0
    %3329 = vmatprep.mubr.f32.mxu0 0.0
    %3330 = vmatmul.mubr.f32.gmra.mxu0 %v1013
    %v3331 = vpop.f32.mrf.mxu0
    %v3332 = vadd.f32 0.0, %v3331
    %v3333 = vpop.f32.mrf.mxu0
    %3334 = vdwg.mxu0
    %3335 = vmatprep.subr.mxu0 0.0
    %3336 = vmatpush1.msra.mxu0 %v1264
    %3337 = vmatprep.subr.mxu0 0.0
    %3338 = vmatpush1.msra.mxu0 %v1263
    %3339 = vmatprep.subr.mxu0 0.0
    %3340 = vmatpush1.msra.mxu0 %v1262
    %3341 = vmatprep.subr.mxu0 0.0
    %3342 = vmatpush1.msra.mxu0 %v1261
    %3343 = vmatprep.subr.mxu0 0.0
    %3344 = vmatpush1.msra.mxu0 %v1260
    %3345 = vmatprep.subr.mxu0 0.0
    %3346 = vmatpush1.msra.mxu0 %v1259
    %3347 = vmatprep.subr.mxu0 0.0
    %3348 = vmatpush1.msra.mxu0 %v1258
    %3349 = vmatprep.subr.mxu0 0.0
    %3350 = vmatpush1.msra.mxu0 %v1257
    %3351 = vmatprep.subr.mxu0 0.0
    %3352 = vmatpush1.msra.mxu0 %v1256
    %3353 = vmatprep.subr.mxu0 0.0
    %3354 = vmatpush1.msra.mxu0 %v1255
    %3355 = vmatprep.subr.mxu0 0.0
    %3356 = vmatpush1.msra.mxu0 %v1254
    %3357 = vmatprep.subr.mxu0 0.0
    %3358 = vmatpush1.msra.mxu0 %v1253
    %3359 = vmatprep.subr.mxu0 0.0
    %3360 = vmatpush1.msra.mxu0 %v1252
    %3361 = vmatprep.subr.mxu0 0.0
    %3362 = vmatpush1.msra.mxu0 %v1251
    %3363 = vmatprep.subr.mxu0 0.0
    %3364 = vmatpush1.msra.mxu0 %v1250
    %3365 = vmatprep.subr.mxu0 0.0
    %3366 = vmatpush1.msra.mxu0 %v1249
    %3367 = vmatprep.subr.mxu0 0.0
    %3368 = vmatpush2.msra.mxu0 0.0
    %3369 = vmatprep.subr.mxu0 0.0
    %3370 = vmatpush2.msra.mxu0 0.0
    %3371 = vmatprep.subr.mxu0 0.0
    %3372 = vmatpush2.msra.mxu0 0.0
    %3373 = vmatprep.subr.mxu0 0.0
    %3374 = vmatpush2.msra.mxu0 0.0
    %3375 = vmatprep.subr.mxu0 0.0
    %3376 = vmatpush2.msra.mxu0 0.0
    %3377 = vmatprep.subr.mxu0 0.0
    %3378 = vmatpush2.msra.mxu0 0.0
    %3379 = vmatprep.subr.mxu0 0.0
    %3380 = vmatpush2.msra.mxu0 0.0
    %3381 = vmatprep.subr.mxu0 0.0
    %3382 = vmatpush2.msra.mxu0 0.0
    %3383 = vmatprep.subr.mxu0 0.0
    %3384 = vmatpush2.msra.mxu0 0.0
    %3385 = vmatprep.subr.mxu0 0.0
    %3386 = vmatpush2.msra.mxu0 0.0
    %3387 = vmatprep.subr.mxu0 0.0
    %3388 = vmatpush2.msra.mxu0 0.0
    %3389 = vmatprep.subr.mxu0 0.0
    %3390 = vmatpush2.msra.mxu0 0.0
    %3391 = vmatprep.subr.mxu0 0.0
    %3392 = vmatpush2.msra.mxu0 0.0
    %3393 = vmatprep.subr.mxu0 0.0
    %3394 = vmatpush2.msra.mxu0 0.0
    %3395 = vmatprep.subr.mxu0 0.0
    %3396 = vmatpush2.msra.mxu0 0.0
    %3397 = vmatprep.subr.mxu0 0.0
    %3398 = vmatpush2.msra.mxu0 0.0
    %3399 = vmatprep.mubr.f32.mxu0 0.0
    %3400 = vmatmul.mubr.f32.gmra.mxu0 %v1014
    %v3401 = vpop.f32.mrf.mxu0
    %v3402 = vadd.f32 0.0, %v3401
    %v3403 = vpop.f32.mrf.mxu0
    %3404 = vdwg.mxu0
    %3405 = vmatprep.subr.mxu0 0.0
    %3406 = vmatpush1.msra.mxu0 %v1280
    %3407 = vmatprep.subr.mxu0 0.0
    %3408 = vmatpush1.msra.mxu0 %v1279
    %3409 = vmatprep.subr.mxu0 0.0
    %3410 = vmatpush1.msra.mxu0 %v1278
    %3411 = vmatprep.subr.mxu0 0.0
    %3412 = vmatpush1.msra.mxu0 %v1277
    %3413 = vmatprep.subr.mxu0 0.0
    %3414 = vmatpush1.msra.mxu0 %v1276
    %3415 = vmatprep.subr.mxu0 0.0
    %3416 = vmatpush1.msra.mxu0 %v1275
    %3417 = vmatprep.subr.mxu0 0.0
    %3418 = vmatpush1.msra.mxu0 %v1274
    %3419 = vmatprep.subr.mxu0 0.0
    %3420 = vmatpush1.msra.mxu0 %v1273
    %3421 = vmatprep.subr.mxu0 0.0
    %3422 = vmatpush1.msra.mxu0 %v1272
    %3423 = vmatprep.subr.mxu0 0.0
    %3424 = vmatpush1.msra.mxu0 %v1271
    %3425 = vmatprep.subr.mxu0 0.0
    %3426 = vmatpush1.msra.mxu0 %v1270
    %3427 = vmatprep.subr.mxu0 0.0
    %3428 = vmatpush1.msra.mxu0 %v1269
    %3429 = vmatprep.subr.mxu0 0.0
    %3430 = vmatpush1.msra.mxu0 %v1268
    %3431 = vmatprep.subr.mxu0 0.0
    %3432 = vmatpush1.msra.mxu0 %v1267
    %3433 = vmatprep.subr.mxu0 0.0
    %3434 = vmatpush1.msra.mxu0 %v1266
    %3435 = vmatprep.subr.mxu0 0.0
    %3436 = vmatpush1.msra.mxu0 %v1265
    %3437 = vmatprep.subr.mxu0 0.0
    %3438 = vmatpush2.msra.mxu0 0.0
    %3439 = vmatprep.subr.mxu0 0.0
    %3440 = vmatpush2.msra.mxu0 0.0
    %3441 = vmatprep.subr.mxu0 0.0
    %3442 = vmatpush2.msra.mxu0 0.0
    %3443 = vmatprep.subr.mxu0 0.0
    %3444 = vmatpush2.msra.mxu0 0.0
    %3445 = vmatprep.subr.mxu0 0.0
    %3446 = vmatpush2.msra.mxu0 0.0
    %3447 = vmatprep.subr.mxu0 0.0
    %3448 = vmatpush2.msra.mxu0 0.0
    %3449 = vmatprep.subr.mxu0 0.0
    %3450 = vmatpush2.msra.mxu0 0.0
    %3451 = vmatprep.subr.mxu0 0.0
    %3452 = vmatpush2.msra.mxu0 0.0
    %3453 = vmatprep.subr.mxu0 0.0
    %3454 = vmatpush2.msra.mxu0 0.0
    %3455 = vmatprep.subr.mxu0 0.0
    %3456 = vmatpush2.msra.mxu0 0.0
    %3457 = vmatprep.subr.mxu0 0.0
    %3458 = vmatpush2.msra.mxu0 0.0
    %3459 = vmatprep.subr.mxu0 0.0
    %3460 = vmatpush2.msra.mxu0 0.0
    %3461 = vmatprep.subr.mxu0 0.0
    %3462 = vmatpush2.msra.mxu0 0.0
    %3463 = vmatprep.subr.mxu0 0.0
    %3464 = vmatpush2.msra.mxu0 0.0
    %3465 = vmatprep.subr.mxu0 0.0
    %3466 = vmatpush2.msra.mxu0 0.0
    %3467 = vmatprep.subr.mxu0 0.0
    %3468 = vmatpush2.msra.mxu0 0.0
    %3469 = vmatprep.mubr.f32.mxu0 0.0
    %3470 = vmatmul.mubr.f32.gmra.mxu0 %v1015
    %v3471 = vpop.f32.mrf.mxu0
    %v3472 = vadd.f32 0.0, %v3471
    %v3473 = vpop.f32.mrf.mxu0
    %3474 = vdwg.mxu0
    %3475 = vmatprep.subr.mxu0 0.0
    %3476 = vmatpush1.msra.mxu0 %v1296
    %3477 = vmatprep.subr.mxu0 0.0
    %3478 = vmatpush1.msra.mxu0 %v1295
    %3479 = vmatprep.subr.mxu0 0.0
    %3480 = vmatpush1.msra.mxu0 %v1294
    %3481 = vmatprep.subr.mxu0 0.0
    %3482 = vmatpush1.msra.mxu0 %v1293
    %3483 = vmatprep.subr.mxu0 0.0
    %3484 = vmatpush1.msra.mxu0 %v1292
    %3485 = vmatprep.subr.mxu0 0.0
    %3486 = vmatpush1.msra.mxu0 %v1291
    %3487 = vmatprep.subr.mxu0 0.0
    %3488 = vmatpush1.msra.mxu0 %v1290
    %3489 = vmatprep.subr.mxu0 0.0
    %3490 = vmatpush1.msra.mxu0 %v1289
    %3491 = vmatprep.subr.mxu0 0.0
    %3492 = vmatpush1.msra.mxu0 %v1288
    %3493 = vmatprep.subr.mxu0 0.0
    %3494 = vmatpush1.msra.mxu0 %v1287
    %3495 = vmatprep.subr.mxu0 0.0
    %3496 = vmatpush1.msra.mxu0 %v1286
    %3497 = vmatprep.subr.mxu0 0.0
    %3498 = vmatpush1.msra.mxu0 %v1285
    %3499 = vmatprep.subr.mxu0 0.0
    %3500 = vmatpush1.msra.mxu0 %v1284
    %3501 = vmatprep.subr.mxu0 0.0
    %3502 = vmatpush1.msra.mxu0 %v1283
    %3503 = vmatprep.subr.mxu0 0.0
    %3504 = vmatpush1.msra.mxu0 %v1282
    %3505 = vmatprep.subr.mxu0 0.0
    %3506 = vmatpush1.msra.mxu0 %v1281
    %3507 = vmatprep.subr.mxu0 0.0
    %3508 = vmatpush2.msra.mxu0 0.0
    %3509 = vmatprep.subr.mxu0 0.0
    %3510 = vmatpush2.msra.mxu0 0.0
    %3511 = vmatprep.subr.mxu0 0.0
    %3512 = vmatpush2.msra.mxu0 0.0
    %3513 = vmatprep.subr.mxu0 0.0
    %3514 = vmatpush2.msra.mxu0 0.0
    %3515 = vmatprep.subr.mxu0 0.0
    %3516 = vmatpush2.msra.mxu0 0.0
    %3517 = vmatprep.subr.mxu0 0.0
    %3518 = vmatpush2.msra.mxu0 0.0
    %3519 = vmatprep.subr.mxu0 0.0
    %3520 = vmatpush2.msra.mxu0 0.0
    %3521 = vmatprep.subr.mxu0 0.0
    %3522 = vmatpush2.msra.mxu0 0.0
    %3523 = vmatprep.subr.mxu0 0.0
    %3524 = vmatpush2.msra.mxu0 0.0
    %3525 = vmatprep.subr.mxu0 0.0
    %3526 = vmatpush2.msra.mxu0 0.0
    %3527 = vmatprep.subr.mxu0 0.0
    %3528 = vmatpush2.msra.mxu0 0.0
    %3529 = vmatprep.subr.mxu0 0.0
    %3530 = vmatpush2.msra.mxu0 0.0
    %3531 = vmatprep.subr.mxu0 0.0
    %3532 = vmatpush2.msra.mxu0 0.0
    %3533 = vmatprep.subr.mxu0 0.0
    %3534 = vmatpush2.msra.mxu0 0.0
    %3535 = vmatprep.subr.mxu0 0.0
    %3536 = vmatpush2.msra.mxu0 0.0
    %3537 = vmatprep.subr.mxu0 0.0
    %3538 = vmatpush2.msra.mxu0 0.0
    %3539 = vmatprep.mubr.f32.mxu0 0.0
    %3540 = vmatmul.mubr.f32.gmra.mxu0 %v1016
    %v3541 = vpop.f32.mrf.mxu0
    %v3542 = vadd.f32 0.0, %v3541
    %v3543 = vpop.f32.mrf.mxu0
    %3544 = vdwg.mxu0
    %3545 = vmatprep.subr.mxu0 0.0
    %3546 = vmatpush1.msra.mxu0 %v1312
    %3547 = vmatprep.subr.mxu0 0.0
    %3548 = vmatpush1.msra.mxu0 %v1311
    %3549 = vmatprep.subr.mxu0 0.0
    %3550 = vmatpush1.msra.mxu0 %v1310
    %3551 = vmatprep.subr.mxu0 0.0
    %3552 = vmatpush1.msra.mxu0 %v1309
    %3553 = vmatprep.subr.mxu0 0.0
    %3554 = vmatpush1.msra.mxu0 %v1308
    %3555 = vmatprep.subr.mxu0 0.0
    %3556 = vmatpush1.msra.mxu0 %v1307
    %3557 = vmatprep.subr.mxu0 0.0
    %3558 = vmatpush1.msra.mxu0 %v1306
    %3559 = vmatprep.subr.mxu0 0.0
    %3560 = vmatpush1.msra.mxu0 %v1305
    %3561 = vmatprep.subr.mxu0 0.0
    %3562 = vmatpush1.msra.mxu0 %v1304
    %3563 = vmatprep.subr.mxu0 0.0
    %3564 = vmatpush1.msra.mxu0 %v1303
    %3565 = vmatprep.subr.mxu0 0.0
    %3566 = vmatpush1.msra.mxu0 %v1302
    %3567 = vmatprep.subr.mxu0 0.0
    %3568 = vmatpush1.msra.mxu0 %v1301
    %3569 = vmatprep.subr.mxu0 0.0
    %3570 = vmatpush1.msra.mxu0 %v1300
    %3571 = vmatprep.subr.mxu0 0.0
    %3572 = vmatpush1.msra.mxu0 %v1299
    %3573 = vmatprep.subr.mxu0 0.0
    %3574 = vmatpush1.msra.mxu0 %v1298
    %3575 = vmatprep.subr.mxu0 0.0
    %3576 = vmatpush1.msra.mxu0 %v1297
    %3577 = vmatprep.subr.mxu0 0.0
    %3578 = vmatpush2.msra.mxu0 0.0
    %3579 = vmatprep.subr.mxu0 0.0
    %3580 = vmatpush2.msra.mxu0 0.0
    %3581 = vmatprep.subr.mxu0 0.0
    %3582 = vmatpush2.msra.mxu0 0.0
    %3583 = vmatprep.subr.mxu0 0.0
    %3584 = vmatpush2.msra.mxu0 0.0
    %3585 = vmatprep.subr.mxu0 0.0
    %3586 = vmatpush2.msra.mxu0 0.0
    %3587 = vmatprep.subr.mxu0 0.0
    %3588 = vmatpush2.msra.mxu0 0.0
    %3589 = vmatprep.subr.mxu0 0.0
    %3590 = vmatpush2.msra.mxu0 0.0
    %3591 = vmatprep.subr.mxu0 0.0
    %3592 = vmatpush2.msra.mxu0 0.0
    %3593 = vmatprep.subr.mxu0 0.0
    %3594 = vmatpush2.msra.mxu0 0.0
    %3595 = vmatprep.subr.mxu0 0.0
    %3596 = vmatpush2.msra.mxu0 0.0
    %3597 = vmatprep.subr.mxu0 0.0
    %3598 = vmatpush2.msra.mxu0 0.0
    %3599 = vmatprep.subr.mxu0 0.0
    %3600 = vmatpush2.msra.mxu0 0.0
    %3601 = vmatprep.subr.mxu0 0.0
    %3602 = vmatpush2.msra.mxu0 0.0
    %3603 = vmatprep.subr.mxu0 0.0
    %3604 = vmatpush2.msra.mxu0 0.0
    %3605 = vmatprep.subr.mxu0 0.0
    %3606 = vmatpush2.msra.mxu0 0.0
    %3607 = vmatprep.subr.mxu0 0.0
    %3608 = vmatpush2.msra.mxu0 0.0
    %3609 = vmatprep.mubr.f32.mxu0 0.0
    %3610 = vmatmul.mubr.f32.gmra.mxu0 %v1017
    %v3611 = vpop.f32.mrf.mxu0
    %v3612 = vadd.f32 0.0, %v3611
    %v3613 = vpop.f32.mrf.mxu0
    %3614 = vdwg.mxu0
    %3615 = vmatprep.subr.mxu0 0.0
    %3616 = vmatpush1.msra.mxu0 %v1328
    %3617 = vmatprep.subr.mxu0 0.0
    %3618 = vmatpush1.msra.mxu0 %v1327
    %3619 = vmatprep.subr.mxu0 0.0
    %3620 = vmatpush1.msra.mxu0 %v1326
    %3621 = vmatprep.subr.mxu0 0.0
    %3622 = vmatpush1.msra.mxu0 %v1325
    %3623 = vmatprep.subr.mxu0 0.0
    %3624 = vmatpush1.msra.mxu0 %v1324
    %3625 = vmatprep.subr.mxu0 0.0
    %3626 = vmatpush1.msra.mxu0 %v1323
    %3627 = vmatprep.subr.mxu0 0.0
    %3628 = vmatpush1.msra.mxu0 %v1322
    %3629 = vmatprep.subr.mxu0 0.0
    %3630 = vmatpush1.msra.mxu0 %v1321
    %3631 = vmatprep.subr.mxu0 0.0
    %3632 = vmatpush1.msra.mxu0 %v1320
    %3633 = vmatprep.subr.mxu0 0.0
    %3634 = vmatpush1.msra.mxu0 %v1319
    %3635 = vmatprep.subr.mxu0 0.0
    %3636 = vmatpush1.msra.mxu0 %v1318
    %3637 = vmatprep.subr.mxu0 0.0
    %3638 = vmatpush1.msra.mxu0 %v1317
    %3639 = vmatprep.subr.mxu0 0.0
    %3640 = vmatpush1.msra.mxu0 %v1316
    %3641 = vmatprep.subr.mxu0 0.0
    %3642 = vmatpush1.msra.mxu0 %v1315
    %3643 = vmatprep.subr.mxu0 0.0
    %3644 = vmatpush1.msra.mxu0 %v1314
    %3645 = vmatprep.subr.mxu0 0.0
    %3646 = vmatpush1.msra.mxu0 %v1313
    %3647 = vmatprep.subr.mxu0 0.0
    %3648 = vmatpush2.msra.mxu0 0.0
    %3649 = vmatprep.subr.mxu0 0.0
    %3650 = vmatpush2.msra.mxu0 0.0
    %3651 = vmatprep.subr.mxu0 0.0
    %3652 = vmatpush2.msra.mxu0 0.0
    %3653 = vmatprep.subr.mxu0 0.0
    %3654 = vmatpush2.msra.mxu0 0.0
    %3655 = vmatprep.subr.mxu0 0.0
    %3656 = vmatpush2.msra.mxu0 0.0
    %3657 = vmatprep.subr.mxu0 0.0
    %3658 = vmatpush2.msra.mxu0 0.0
    %3659 = vmatprep.subr.mxu0 0.0
    %3660 = vmatpush2.msra.mxu0 0.0
    %3661 = vmatprep.subr.mxu0 0.0
    %3662 = vmatpush2.msra.mxu0 0.0
    %3663 = vmatprep.subr.mxu0 0.0
    %3664 = vmatpush2.msra.mxu0 0.0
    %3665 = vmatprep.subr.mxu0 0.0
    %3666 = vmatpush2.msra.mxu0 0.0
    %3667 = vmatprep.subr.mxu0 0.0
    %3668 = vmatpush2.msra.mxu0 0.0
    %3669 = vmatprep.subr.mxu0 0.0
    %3670 = vmatpush2.msra.mxu0 0.0
    %3671 = vmatprep.subr.mxu0 0.0
    %3672 = vmatpush2.msra.mxu0 0.0
    %3673 = vmatprep.subr.mxu0 0.0
    %3674 = vmatpush2.msra.mxu0 0.0
    %3675 = vmatprep.subr.mxu0 0.0
    %3676 = vmatpush2.msra.mxu0 0.0
    %3677 = vmatprep.subr.mxu0 0.0
    %3678 = vmatpush2.msra.mxu0 0.0
    %3679 = vmatprep.mubr.f32.mxu0 0.0
    %3680 = vmatmul.mubr.f32.gmra.mxu0 %v1018
    %v3681 = vpop.f32.mrf.mxu0
    %v3682 = vadd.f32 0.0, %v3681
    %v3683 = vpop.f32.mrf.mxu0
    %3684 = vdwg.mxu0
    %3685 = vmatprep.subr.mxu0 0.0
    %3686 = vmatpush1.msra.mxu0 %v1344
    %3687 = vmatprep.subr.mxu0 0.0
    %3688 = vmatpush1.msra.mxu0 %v1343
    %3689 = vmatprep.subr.mxu0 0.0
    %3690 = vmatpush1.msra.mxu0 %v1342
    %3691 = vmatprep.subr.mxu0 0.0
    %3692 = vmatpush1.msra.mxu0 %v1341
    %3693 = vmatprep.subr.mxu0 0.0
    %3694 = vmatpush1.msra.mxu0 %v1340
    %3695 = vmatprep.subr.mxu0 0.0
    %3696 = vmatpush1.msra.mxu0 %v1339
    %3697 = vmatprep.subr.mxu0 0.0
    %3698 = vmatpush1.msra.mxu0 %v1338
    %3699 = vmatprep.subr.mxu0 0.0
    %3700 = vmatpush1.msra.mxu0 %v1337
    %3701 = vmatprep.subr.mxu0 0.0
    %3702 = vmatpush1.msra.mxu0 %v1336
    %3703 = vmatprep.subr.mxu0 0.0
    %3704 = vmatpush1.msra.mxu0 %v1335
    %3705 = vmatprep.subr.mxu0 0.0
    %3706 = vmatpush1.msra.mxu0 %v1334
    %3707 = vmatprep.subr.mxu0 0.0
    %3708 = vmatpush1.msra.mxu0 %v1333
    %3709 = vmatprep.subr.mxu0 0.0
    %3710 = vmatpush1.msra.mxu0 %v1332
    %3711 = vmatprep.subr.mxu0 0.0
    %3712 = vmatpush1.msra.mxu0 %v1331
    %3713 = vmatprep.subr.mxu0 0.0
    %3714 = vmatpush1.msra.mxu0 %v1330
    %3715 = vmatprep.subr.mxu0 0.0
    %3716 = vmatpush1.msra.mxu0 %v1329
    %3717 = vmatprep.subr.mxu0 0.0
    %3718 = vmatpush2.msra.mxu0 0.0
    %3719 = vmatprep.subr.mxu0 0.0
    %3720 = vmatpush2.msra.mxu0 0.0
    %3721 = vmatprep.subr.mxu0 0.0
    %3722 = vmatpush2.msra.mxu0 0.0
    %3723 = vmatprep.subr.mxu0 0.0
    %3724 = vmatpush2.msra.mxu0 0.0
    %3725 = vmatprep.subr.mxu0 0.0
    %3726 = vmatpush2.msra.mxu0 0.0
    %3727 = vmatprep.subr.mxu0 0.0
    %3728 = vmatpush2.msra.mxu0 0.0
    %3729 = vmatprep.subr.mxu0 0.0
    %3730 = vmatpush2.msra.mxu0 0.0
    %3731 = vmatprep.subr.mxu0 0.0
    %3732 = vmatpush2.msra.mxu0 0.0
    %3733 = vmatprep.subr.mxu0 0.0
    %3734 = vmatpush2.msra.mxu0 0.0
    %3735 = vmatprep.subr.mxu0 0.0
    %3736 = vmatpush2.msra.mxu0 0.0
    %3737 = vmatprep.subr.mxu0 0.0
    %3738 = vmatpush2.msra.mxu0 0.0
    %3739 = vmatprep.subr.mxu0 0.0
    %3740 = vmatpush2.msra.mxu0 0.0
    %3741 = vmatprep.subr.mxu0 0.0
    %3742 = vmatpush2.msra.mxu0 0.0
    %3743 = vmatprep.subr.mxu0 0.0
    %3744 = vmatpush2.msra.mxu0 0.0
    %3745 = vmatprep.subr.mxu0 0.0
    %3746 = vmatpush2.msra.mxu0 0.0
    %3747 = vmatprep.subr.mxu0 0.0
    %3748 = vmatpush2.msra.mxu0 0.0
    %3749 = vmatprep.mubr.f32.mxu0 0.0
    %3750 = vmatmul.mubr.f32.gmra.mxu0 %v1019
    %v3751 = vpop.f32.mrf.mxu0
    %v3752 = vadd.f32 0.0, %v3751
    %v3753 = vpop.f32.mrf.mxu0
    %3754 = vdwg.mxu0
    %3755 = vmatprep.subr.mxu0 0.0
    %3756 = vmatpush1.msra.mxu0 %v1360
    %3757 = vmatprep.subr.mxu0 0.0
    %3758 = vmatpush1.msra.mxu0 %v1359
    %3759 = vmatprep.subr.mxu0 0.0
    %3760 = vmatpush1.msra.mxu0 %v1358
    %3761 = vmatprep.subr.mxu0 0.0
    %3762 = vmatpush1.msra.mxu0 %v1357
    %3763 = vmatprep.subr.mxu0 0.0
    %3764 = vmatpush1.msra.mxu0 %v1356
    %3765 = vmatprep.subr.mxu0 0.0
    %3766 = vmatpush1.msra.mxu0 %v1355
    %3767 = vmatprep.subr.mxu0 0.0
    %3768 = vmatpush1.msra.mxu0 %v1354
    %3769 = vmatprep.subr.mxu0 0.0
    %3770 = vmatpush1.msra.mxu0 %v1353
    %3771 = vmatprep.subr.mxu0 0.0
    %3772 = vmatpush1.msra.mxu0 %v1352
    %3773 = vmatprep.subr.mxu0 0.0
    %3774 = vmatpush1.msra.mxu0 %v1351
    %3775 = vmatprep.subr.mxu0 0.0
    %3776 = vmatpush1.msra.mxu0 %v1350
    %3777 = vmatprep.subr.mxu0 0.0
    %3778 = vmatpush1.msra.mxu0 %v1349
    %3779 = vmatprep.subr.mxu0 0.0
    %3780 = vmatpush1.msra.mxu0 %v1348
    %3781 = vmatprep.subr.mxu0 0.0
    %3782 = vmatpush1.msra.mxu0 %v1347
    %3783 = vmatprep.subr.mxu0 0.0
    %3784 = vmatpush1.msra.mxu0 %v1346
    %3785 = vmatprep.subr.mxu0 0.0
    %3786 = vmatpush1.msra.mxu0 %v1345
    %3787 = vmatprep.subr.mxu0 0.0
    %3788 = vmatpush2.msra.mxu0 0.0
    %3789 = vmatprep.subr.mxu0 0.0
    %3790 = vmatpush2.msra.mxu0 0.0
    %3791 = vmatprep.subr.mxu0 0.0
    %3792 = vmatpush2.msra.mxu0 0.0
    %3793 = vmatprep.subr.mxu0 0.0
    %3794 = vmatpush2.msra.mxu0 0.0
    %3795 = vmatprep.subr.mxu0 0.0
    %3796 = vmatpush2.msra.mxu0 0.0
    %3797 = vmatprep.subr.mxu0 0.0
    %3798 = vmatpush2.msra.mxu0 0.0
    %3799 = vmatprep.subr.mxu0 0.0
    %3800 = vmatpush2.msra.mxu0 0.0
    %3801 = vmatprep.subr.mxu0 0.0
    %3802 = vmatpush2.msra.mxu0 0.0
    %3803 = vmatprep.subr.mxu0 0.0
    %3804 = vmatpush2.msra.mxu0 0.0
    %3805 = vmatprep.subr.mxu0 0.0
    %3806 = vmatpush2.msra.mxu0 0.0
    %3807 = vmatprep.subr.mxu0 0.0
    %3808 = vmatpush2.msra.mxu0 0.0
    %3809 = vmatprep.subr.mxu0 0.0
    %3810 = vmatpush2.msra.mxu0 0.0
    %3811 = vmatprep.subr.mxu0 0.0
    %3812 = vmatpush2.msra.mxu0 0.0
    %3813 = vmatprep.subr.mxu0 0.0
    %3814 = vmatpush2.msra.mxu0 0.0
    %3815 = vmatprep.subr.mxu0 0.0
    %3816 = vmatpush2.msra.mxu0 0.0
    %3817 = vmatprep.subr.mxu0 0.0
    %3818 = vmatpush2.msra.mxu0 0.0
    %3819 = vmatprep.mubr.f32.mxu0 0.0
    %3820 = vmatmul.mubr.f32.gmra.mxu0 %v1020
    %v3821 = vpop.f32.mrf.mxu0
    %v3822 = vadd.f32 0.0, %v3821
    %v3823 = vpop.f32.mrf.mxu0
    %3824 = vdwg.mxu0
    %3825 = vmatprep.subr.mxu0 0.0
    %3826 = vmatpush1.msra.mxu0 %v1376
    %3827 = vmatprep.subr.mxu0 0.0
    %3828 = vmatpush1.msra.mxu0 %v1375
    %3829 = vmatprep.subr.mxu0 0.0
    %3830 = vmatpush1.msra.mxu0 %v1374
    %3831 = vmatprep.subr.mxu0 0.0
    %3832 = vmatpush1.msra.mxu0 %v1373
    %3833 = vmatprep.subr.mxu0 0.0
    %3834 = vmatpush1.msra.mxu0 %v1372
    %3835 = vmatprep.subr.mxu0 0.0
    %3836 = vmatpush1.msra.mxu0 %v1371
    %3837 = vmatprep.subr.mxu0 0.0
    %3838 = vmatpush1.msra.mxu0 %v1370
    %3839 = vmatprep.subr.mxu0 0.0
    %3840 = vmatpush1.msra.mxu0 %v1369
    %3841 = vmatprep.subr.mxu0 0.0
    %3842 = vmatpush1.msra.mxu0 %v1368
    %3843 = vmatprep.subr.mxu0 0.0
    %3844 = vmatpush1.msra.mxu0 %v1367
    %3845 = vmatprep.subr.mxu0 0.0
    %3846 = vmatpush1.msra.mxu0 %v1366
    %3847 = vmatprep.subr.mxu0 0.0
    %3848 = vmatpush1.msra.mxu0 %v1365
    %3849 = vmatprep.subr.mxu0 0.0
    %3850 = vmatpush1.msra.mxu0 %v1364
    %3851 = vmatprep.subr.mxu0 0.0
    %3852 = vmatpush1.msra.mxu0 %v1363
    %3853 = vmatprep.subr.mxu0 0.0
    %3854 = vmatpush1.msra.mxu0 %v1362
    %3855 = vmatprep.subr.mxu0 0.0
    %3856 = vmatpush1.msra.mxu0 %v1361
    %3857 = vmatprep.subr.mxu0 0.0
    %3858 = vmatpush2.msra.mxu0 0.0
    %3859 = vmatprep.subr.mxu0 0.0
    %3860 = vmatpush2.msra.mxu0 0.0
    %3861 = vmatprep.subr.mxu0 0.0
    %3862 = vmatpush2.msra.mxu0 0.0
    %3863 = vmatprep.subr.mxu0 0.0
    %3864 = vmatpush2.msra.mxu0 0.0
    %3865 = vmatprep.subr.mxu0 0.0
    %3866 = vmatpush2.msra.mxu0 0.0
    %3867 = vmatprep.subr.mxu0 0.0
    %3868 = vmatpush2.msra.mxu0 0.0
    %3869 = vmatprep.subr.mxu0 0.0
    %3870 = vmatpush2.msra.mxu0 0.0
    %3871 = vmatprep.subr.mxu0 0.0
    %3872 = vmatpush2.msra.mxu0 0.0
    %3873 = vmatprep.subr.mxu0 0.0
    %3874 = vmatpush2.msra.mxu0 0.0
    %3875 = vmatprep.subr.mxu0 0.0
    %3876 = vmatpush2.msra.mxu0 0.0
    %3877 = vmatprep.subr.mxu0 0.0
    %3878 = vmatpush2.msra.mxu0 0.0
    %3879 = vmatprep.subr.mxu0 0.0
    %3880 = vmatpush2.msra.mxu0 0.0
    %3881 = vmatprep.subr.mxu0 0.0
    %3882 = vmatpush2.msra.mxu0 0.0
    %3883 = vmatprep.subr.mxu0 0.0
    %3884 = vmatpush2.msra.mxu0 0.0
    %3885 = vmatprep.subr.mxu0 0.0
    %3886 = vmatpush2.msra.mxu0 0.0
    %3887 = vmatprep.subr.mxu0 0.0
    %3888 = vmatpush2.msra.mxu0 0.0
    %3889 = vmatprep.mubr.f32.mxu0 0.0
    %3890 = vmatmul.mubr.f32.gmra.mxu0 %v1021
    %v3891 = vpop.f32.mrf.mxu0
    %v3892 = vadd.f32 0.0, %v3891
    %v3893 = vpop.f32.mrf.mxu0
    %3894 = vdwg.mxu0
    %3895 = vmatprep.subr.mxu0 0.0
    %3896 = vmatpush1.msra.mxu0 %v1392
    %3897 = vmatprep.subr.mxu0 0.0
    %3898 = vmatpush1.msra.mxu0 %v1391
    %3899 = vmatprep.subr.mxu0 0.0
    %3900 = vmatpush1.msra.mxu0 %v1390
    %3901 = vmatprep.subr.mxu0 0.0
    %3902 = vmatpush1.msra.mxu0 %v1389
    %3903 = vmatprep.subr.mxu0 0.0
    %3904 = vmatpush1.msra.mxu0 %v1388
    %3905 = vmatprep.subr.mxu0 0.0
    %3906 = vmatpush1.msra.mxu0 %v1387
    %3907 = vmatprep.subr.mxu0 0.0
    %3908 = vmatpush1.msra.mxu0 %v1386
    %3909 = vmatprep.subr.mxu0 0.0
    %3910 = vmatpush1.msra.mxu0 %v1385
    %3911 = vmatprep.subr.mxu0 0.0
    %3912 = vmatpush1.msra.mxu0 %v1384
    %3913 = vmatprep.subr.mxu0 0.0
    %3914 = vmatpush1.msra.mxu0 %v1383
    %3915 = vmatprep.subr.mxu0 0.0
    %3916 = vmatpush1.msra.mxu0 %v1382
    %3917 = vmatprep.subr.mxu0 0.0
    %3918 = vmatpush1.msra.mxu0 %v1381
    %3919 = vmatprep.subr.mxu0 0.0
    %3920 = vmatpush1.msra.mxu0 %v1380
    %3921 = vmatprep.subr.mxu0 0.0
    %3922 = vmatpush1.msra.mxu0 %v1379
    %3923 = vmatprep.subr.mxu0 0.0
    %3924 = vmatpush1.msra.mxu0 %v1378
    %3925 = vmatprep.subr.mxu0 0.0
    %3926 = vmatpush1.msra.mxu0 %v1377
    %3927 = vmatprep.subr.mxu0 0.0
    %3928 = vmatpush2.msra.mxu0 0.0
    %3929 = vmatprep.subr.mxu0 0.0
    %3930 = vmatpush2.msra.mxu0 0.0
    %3931 = vmatprep.subr.mxu0 0.0
    %3932 = vmatpush2.msra.mxu0 0.0
    %3933 = vmatprep.subr.mxu0 0.0
    %3934 = vmatpush2.msra.mxu0 0.0
    %3935 = vmatprep.subr.mxu0 0.0
    %3936 = vmatpush2.msra.mxu0 0.0
    %3937 = vmatprep.subr.mxu0 0.0
    %3938 = vmatpush2.msra.mxu0 0.0
    %3939 = vmatprep.subr.mxu0 0.0
    %3940 = vmatpush2.msra.mxu0 0.0
    %3941 = vmatprep.subr.mxu0 0.0
    %3942 = vmatpush2.msra.mxu0 0.0
    %3943 = vmatprep.subr.mxu0 0.0
    %3944 = vmatpush2.msra.mxu0 0.0
    %3945 = vmatprep.subr.mxu0 0.0
    %3946 = vmatpush2.msra.mxu0 0.0
    %3947 = vmatprep.subr.mxu0 0.0
    %3948 = vmatpush2.msra.mxu0 0.0
    %3949 = vmatprep.subr.mxu0 0.0
    %3950 = vmatpush2.msra.mxu0 0.0
    %3951 = vmatprep.subr.mxu0 0.0
    %3952 = vmatpush2.msra.mxu0 0.0
    %3953 = vmatprep.subr.mxu0 0.0
    %3954 = vmatpush2.msra.mxu0 0.0
    %3955 = vmatprep.subr.mxu0 0.0
    %3956 = vmatpush2.msra.mxu0 0.0
    %3957 = vmatprep.subr.mxu0 0.0
    %3958 = vmatpush2.msra.mxu0 0.0
    %3959 = vmatprep.mubr.f32.mxu0 0.0
    %3960 = vmatmul.mubr.f32.gmra.mxu0 %v1022
    %v3961 = vpop.f32.mrf.mxu0
    %v3962 = vadd.f32 0.0, %v3961
    %v3963 = vpop.f32.mrf.mxu0
    %3964 = vdwg.mxu0
    %3965 = vmatprep.subr.mxu0 0.0
    %3966 = vmatpush1.msra.mxu0 %v1408
    %3967 = vmatprep.subr.mxu0 0.0
    %3968 = vmatpush1.msra.mxu0 %v1407
    %3969 = vmatprep.subr.mxu0 0.0
    %3970 = vmatpush1.msra.mxu0 %v1406
    %3971 = vmatprep.subr.mxu0 0.0
    %3972 = vmatpush1.msra.mxu0 %v1405
    %3973 = vmatprep.subr.mxu0 0.0
    %3974 = vmatpush1.msra.mxu0 %v1404
    %3975 = vmatprep.subr.mxu0 0.0
    %3976 = vmatpush1.msra.mxu0 %v1403
    %3977 = vmatprep.subr.mxu0 0.0
    %3978 = vmatpush1.msra.mxu0 %v1402
    %3979 = vmatprep.subr.mxu0 0.0
    %3980 = vmatpush1.msra.mxu0 %v1401
    %3981 = vmatprep.subr.mxu0 0.0
    %3982 = vmatpush1.msra.mxu0 %v1400
    %3983 = vmatprep.subr.mxu0 0.0
    %3984 = vmatpush1.msra.mxu0 %v1399
    %3985 = vmatprep.subr.mxu0 0.0
    %3986 = vmatpush1.msra.mxu0 %v1398
    %3987 = vmatprep.subr.mxu0 0.0
    %3988 = vmatpush1.msra.mxu0 %v1397
    %3989 = vmatprep.subr.mxu0 0.0
    %3990 = vmatpush1.msra.mxu0 %v1396
    %3991 = vmatprep.subr.mxu0 0.0
    %3992 = vmatpush1.msra.mxu0 %v1395
    %3993 = vmatprep.subr.mxu0 0.0
    %3994 = vmatpush1.msra.mxu0 %v1394
    %3995 = vmatprep.subr.mxu0 0.0
    %3996 = vmatpush1.msra.mxu0 %v1393
    %3997 = vmatprep.subr.mxu0 0.0
    %3998 = vmatpush2.msra.mxu0 0.0
    %3999 = vmatprep.subr.mxu0 0.0
    %4000 = vmatpush2.msra.mxu0 0.0
    %4001 = vmatprep.subr.mxu0 0.0
    %4002 = vmatpush2.msra.mxu0 0.0
    %4003 = vmatprep.subr.mxu0 0.0
    %4004 = vmatpush2.msra.mxu0 0.0
    %4005 = vmatprep.subr.mxu0 0.0
    %4006 = vmatpush2.msra.mxu0 0.0
    %4007 = vmatprep.subr.mxu0 0.0
    %4008 = vmatpush2.msra.mxu0 0.0
    %4009 = vmatprep.subr.mxu0 0.0
    %4010 = vmatpush2.msra.mxu0 0.0
    %4011 = vmatprep.subr.mxu0 0.0
    %4012 = vmatpush2.msra.mxu0 0.0
    %4013 = vmatprep.subr.mxu0 0.0
    %4014 = vmatpush2.msra.mxu0 0.0
    %4015 = vmatprep.subr.mxu0 0.0
    %4016 = vmatpush2.msra.mxu0 0.0
    %4017 = vmatprep.subr.mxu0 0.0
    %4018 = vmatpush2.msra.mxu0 0.0
    %4019 = vmatprep.subr.mxu0 0.0
    %4020 = vmatpush2.msra.mxu0 0.0
    %4021 = vmatprep.subr.mxu0 0.0
    %4022 = vmatpush2.msra.mxu0 0.0
    %4023 = vmatprep.subr.mxu0 0.0
    %4024 = vmatpush2.msra.mxu0 0.0
    %4025 = vmatprep.subr.mxu0 0.0
    %4026 = vmatpush2.msra.mxu0 0.0
    %4027 = vmatprep.subr.mxu0 0.0
    %4028 = vmatpush2.msra.mxu0 0.0
    %4029 = vmatprep.mubr.f32.mxu0 0.0
    %4030 = vmatmul.mubr.f32.gmra.mxu0 %v1023
    %v4031 = vpop.f32.mrf.mxu0
    %v4032 = vadd.f32 0.0, %v4031
    %v4033 = vpop.f32.mrf.mxu0
    %4034 = vdwg.mxu0
    %4035 = vmatprep.subr.mxu0 0.0
    %4036 = vmatpush1.msra.mxu0 %v1424
    %4037 = vmatprep.subr.mxu0 0.0
    %4038 = vmatpush1.msra.mxu0 %v1423
    %4039 = vmatprep.subr.mxu0 0.0
    %4040 = vmatpush1.msra.mxu0 %v1422
    %4041 = vmatprep.subr.mxu0 0.0
    %4042 = vmatpush1.msra.mxu0 %v1421
    %4043 = vmatprep.subr.mxu0 0.0
    %4044 = vmatpush1.msra.mxu0 %v1420
    %4045 = vmatprep.subr.mxu0 0.0
    %4046 = vmatpush1.msra.mxu0 %v1419
    %4047 = vmatprep.subr.mxu0 0.0
    %4048 = vmatpush1.msra.mxu0 %v1418
    %4049 = vmatprep.subr.mxu0 0.0
    %4050 = vmatpush1.msra.mxu0 %v1417
    %4051 = vmatprep.subr.mxu0 0.0
    %4052 = vmatpush1.msra.mxu0 %v1416
    %4053 = vmatprep.subr.mxu0 0.0
    %4054 = vmatpush1.msra.mxu0 %v1415
    %4055 = vmatprep.subr.mxu0 0.0
    %4056 = vmatpush1.msra.mxu0 %v1414
    %4057 = vmatprep.subr.mxu0 0.0
    %4058 = vmatpush1.msra.mxu0 %v1413
    %4059 = vmatprep.subr.mxu0 0.0
    %4060 = vmatpush1.msra.mxu0 %v1412
    %4061 = vmatprep.subr.mxu0 0.0
    %4062 = vmatpush1.msra.mxu0 %v1411
    %4063 = vmatprep.subr.mxu0 0.0
    %4064 = vmatpush1.msra.mxu0 %v1410
    %4065 = vmatprep.subr.mxu0 0.0
    %4066 = vmatpush1.msra.mxu0 %v1409
    %4067 = vmatprep.subr.mxu0 0.0
    %4068 = vmatpush2.msra.mxu0 0.0
    %4069 = vmatprep.subr.mxu0 0.0
    %4070 = vmatpush2.msra.mxu0 0.0
    %4071 = vmatprep.subr.mxu0 0.0
    %4072 = vmatpush2.msra.mxu0 0.0
    %4073 = vmatprep.subr.mxu0 0.0
    %4074 = vmatpush2.msra.mxu0 0.0
    %4075 = vmatprep.subr.mxu0 0.0
    %4076 = vmatpush2.msra.mxu0 0.0
    %4077 = vmatprep.subr.mxu0 0.0
    %4078 = vmatpush2.msra.mxu0 0.0
    %4079 = vmatprep.subr.mxu0 0.0
    %4080 = vmatpush2.msra.mxu0 0.0
    %4081 = vmatprep.subr.mxu0 0.0
    %4082 = vmatpush2.msra.mxu0 0.0
    %4083 = vmatprep.subr.mxu0 0.0
    %4084 = vmatpush2.msra.mxu0 0.0
    %4085 = vmatprep.subr.mxu0 0.0
    %4086 = vmatpush2.msra.mxu0 0.0
    %4087 = vmatprep.subr.mxu0 0.0
    %4088 = vmatpush2.msra.mxu0 0.0
    %4089 = vmatprep.subr.mxu0 0.0
    %4090 = vmatpush2.msra.mxu0 0.0
    %4091 = vmatprep.subr.mxu0 0.0
    %4092 = vmatpush2.msra.mxu0 0.0
    %4093 = vmatprep.subr.mxu0 0.0
    %4094 = vmatpush2.msra.mxu0 0.0
    %4095 = vmatprep.subr.mxu0 0.0
    %4096 = vmatpush2.msra.mxu0 0.0
    %4097 = vmatprep.subr.mxu0 0.0
    %4098 = vmatpush2.msra.mxu0 0.0
    %4099 = vmatprep.mubr.f32.mxu0 0.0
    %4100 = vmatmul.mubr.f32.gmra.mxu0 %v1024
    %v4101 = vpop.f32.mrf.mxu0
    %v4102 = vadd.f32 0.0, %v4101
    %v4103 = vpop.f32.mrf.mxu0
    %4104 = vdwg.mxu0
    %4105 = vmatprep.subr.mxu0 0.0
    %4106 = vmatpush1.msra.mxu0 %v1440
    %4107 = vmatprep.subr.mxu0 0.0
    %4108 = vmatpush1.msra.mxu0 %v1439
    %4109 = vmatprep.subr.mxu0 0.0
    %4110 = vmatpush1.msra.mxu0 %v1438
    %4111 = vmatprep.subr.mxu0 0.0
    %4112 = vmatpush1.msra.mxu0 %v1437
    %4113 = vmatprep.subr.mxu0 0.0
    %4114 = vmatpush1.msra.mxu0 %v1436
    %4115 = vmatprep.subr.mxu0 0.0
    %4116 = vmatpush1.msra.mxu0 %v1435
    %4117 = vmatprep.subr.mxu0 0.0
    %4118 = vmatpush1.msra.mxu0 %v1434
    %4119 = vmatprep.subr.mxu0 0.0
    %4120 = vmatpush1.msra.mxu0 %v1433
    %4121 = vmatprep.subr.mxu0 0.0
    %4122 = vmatpush1.msra.mxu0 %v1432
    %4123 = vmatprep.subr.mxu0 0.0
    %4124 = vmatpush1.msra.mxu0 %v1431
    %4125 = vmatprep.subr.mxu0 0.0
    %4126 = vmatpush1.msra.mxu0 %v1430
    %4127 = vmatprep.subr.mxu0 0.0
    %4128 = vmatpush1.msra.mxu0 %v1429
    %4129 = vmatprep.subr.mxu0 0.0
    %4130 = vmatpush1.msra.mxu0 %v1428
    %4131 = vmatprep.subr.mxu0 0.0
    %4132 = vmatpush1.msra.mxu0 %v1427
    %4133 = vmatprep.subr.mxu0 0.0
    %4134 = vmatpush1.msra.mxu0 %v1426
    %4135 = vmatprep.subr.mxu0 0.0
    %4136 = vmatpush1.msra.mxu0 %v1425
    %4137 = vmatprep.subr.mxu0 0.0
    %4138 = vmatpush2.msra.mxu0 0.0
    %4139 = vmatprep.subr.mxu0 0.0
    %4140 = vmatpush2.msra.mxu0 0.0
    %4141 = vmatprep.subr.mxu0 0.0
    %4142 = vmatpush2.msra.mxu0 0.0
    %4143 = vmatprep.subr.mxu0 0.0
    %4144 = vmatpush2.msra.mxu0 0.0
    %4145 = vmatprep.subr.mxu0 0.0
    %4146 = vmatpush2.msra.mxu0 0.0
    %4147 = vmatprep.subr.mxu0 0.0
    %4148 = vmatpush2.msra.mxu0 0.0
    %4149 = vmatprep.subr.mxu0 0.0
    %4150 = vmatpush2.msra.mxu0 0.0
    %4151 = vmatprep.subr.mxu0 0.0
    %4152 = vmatpush2.msra.mxu0 0.0
    %4153 = vmatprep.subr.mxu0 0.0
    %4154 = vmatpush2.msra.mxu0 0.0
    %4155 = vmatprep.subr.mxu0 0.0
    %4156 = vmatpush2.msra.mxu0 0.0
    %4157 = vmatprep.subr.mxu0 0.0
    %4158 = vmatpush2.msra.mxu0 0.0
    %4159 = vmatprep.subr.mxu0 0.0
    %4160 = vmatpush2.msra.mxu0 0.0
    %4161 = vmatprep.subr.mxu0 0.0
    %4162 = vmatpush2.msra.mxu0 0.0
    %4163 = vmatprep.subr.mxu0 0.0
    %4164 = vmatpush2.msra.mxu0 0.0
    %4165 = vmatprep.subr.mxu0 0.0
    %4166 = vmatpush2.msra.mxu0 0.0
    %4167 = vmatprep.subr.mxu0 0.0
    %4168 = vmatpush2.msra.mxu0 0.0
    %4169 = vmatprep.mubr.f32.mxu0 0.0
    %4170 = vmatmul.mubr.f32.gmra.mxu0 %v1025
    %v4171 = vpop.f32.mrf.mxu0
    %v4172 = vadd.f32 0.0, %v4171
    %v4173 = vpop.f32.mrf.mxu0
    %4174 = vdwg.mxu0
    %4175 = vmatprep.subr.mxu0 0.0
    %4176 = vmatpush1.msra.mxu0 %v1456
    %4177 = vmatprep.subr.mxu0 0.0
    %4178 = vmatpush1.msra.mxu0 %v1455
    %4179 = vmatprep.subr.mxu0 0.0
    %4180 = vmatpush1.msra.mxu0 %v1454
    %4181 = vmatprep.subr.mxu0 0.0
    %4182 = vmatpush1.msra.mxu0 %v1453
    %4183 = vmatprep.subr.mxu0 0.0
    %4184 = vmatpush1.msra.mxu0 %v1452
    %4185 = vmatprep.subr.mxu0 0.0
    %4186 = vmatpush1.msra.mxu0 %v1451
    %4187 = vmatprep.subr.mxu0 0.0
    %4188 = vmatpush1.msra.mxu0 %v1450
    %4189 = vmatprep.subr.mxu0 0.0
    %4190 = vmatpush1.msra.mxu0 %v1449
    %4191 = vmatprep.subr.mxu0 0.0
    %4192 = vmatpush1.msra.mxu0 %v1448
    %4193 = vmatprep.subr.mxu0 0.0
    %4194 = vmatpush1.msra.mxu0 %v1447
    %4195 = vmatprep.subr.mxu0 0.0
    %4196 = vmatpush1.msra.mxu0 %v1446
    %4197 = vmatprep.subr.mxu0 0.0
    %4198 = vmatpush1.msra.mxu0 %v1445
    %4199 = vmatprep.subr.mxu0 0.0
    %4200 = vmatpush1.msra.mxu0 %v1444
    %4201 = vmatprep.subr.mxu0 0.0
    %4202 = vmatpush1.msra.mxu0 %v1443
    %4203 = vmatprep.subr.mxu0 0.0
    %4204 = vmatpush1.msra.mxu0 %v1442
    %4205 = vmatprep.subr.mxu0 0.0
    %4206 = vmatpush1.msra.mxu0 %v1441
    %4207 = vmatprep.subr.mxu0 0.0
    %4208 = vmatpush2.msra.mxu0 0.0
    %4209 = vmatprep.subr.mxu0 0.0
    %4210 = vmatpush2.msra.mxu0 0.0
    %4211 = vmatprep.subr.mxu0 0.0
    %4212 = vmatpush2.msra.mxu0 0.0
    %4213 = vmatprep.subr.mxu0 0.0
    %4214 = vmatpush2.msra.mxu0 0.0
    %4215 = vmatprep.subr.mxu0 0.0
    %4216 = vmatpush2.msra.mxu0 0.0
    %4217 = vmatprep.subr.mxu0 0.0
    %4218 = vmatpush2.msra.mxu0 0.0
    %4219 = vmatprep.subr.mxu0 0.0
    %4220 = vmatpush2.msra.mxu0 0.0
    %4221 = vmatprep.subr.mxu0 0.0
    %4222 = vmatpush2.msra.mxu0 0.0
    %4223 = vmatprep.subr.mxu0 0.0
    %4224 = vmatpush2.msra.mxu0 0.0
    %4225 = vmatprep.subr.mxu0 0.0
    %4226 = vmatpush2.msra.mxu0 0.0
    %4227 = vmatprep.subr.mxu0 0.0
    %4228 = vmatpush2.msra.mxu0 0.0
    %4229 = vmatprep.subr.mxu0 0.0
    %4230 = vmatpush2.msra.mxu0 0.0
    %4231 = vmatprep.subr.mxu0 0.0
    %4232 = vmatpush2.msra.mxu0 0.0
    %4233 = vmatprep.subr.mxu0 0.0
    %4234 = vmatpush2.msra.mxu0 0.0
    %4235 = vmatprep.subr.mxu0 0.0
    %4236 = vmatpush2.msra.mxu0 0.0
    %4237 = vmatprep.subr.mxu0 0.0
    %4238 = vmatpush2.msra.mxu0 0.0
    %4239 = vmatprep.mubr.f32.mxu0 0.0
    %4240 = vmatmul.mubr.f32.gmra.mxu0 %v1026
    %v4241 = vpop.f32.mrf.mxu0
    %v4242 = vadd.f32 0.0, %v4241
    %v4243 = vpop.f32.mrf.mxu0
    %4244 = vdwg.mxu0
    %4245 = vmatprep.subr.mxu0 0.0
    %4246 = vmatpush1.msra.mxu0 %v1472
    %4247 = vmatprep.subr.mxu0 0.0
    %4248 = vmatpush1.msra.mxu0 %v1471
    %4249 = vmatprep.subr.mxu0 0.0
    %4250 = vmatpush1.msra.mxu0 %v1470
    %4251 = vmatprep.subr.mxu0 0.0
    %4252 = vmatpush1.msra.mxu0 %v1469
    %4253 = vmatprep.subr.mxu0 0.0
    %4254 = vmatpush1.msra.mxu0 %v1468
    %4255 = vmatprep.subr.mxu0 0.0
    %4256 = vmatpush1.msra.mxu0 %v1467
    %4257 = vmatprep.subr.mxu0 0.0
    %4258 = vmatpush1.msra.mxu0 %v1466
    %4259 = vmatprep.subr.mxu0 0.0
    %4260 = vmatpush1.msra.mxu0 %v1465
    %4261 = vmatprep.subr.mxu0 0.0
    %4262 = vmatpush1.msra.mxu0 %v1464
    %4263 = vmatprep.subr.mxu0 0.0
    %4264 = vmatpush1.msra.mxu0 %v1463
    %4265 = vmatprep.subr.mxu0 0.0
    %4266 = vmatpush1.msra.mxu0 %v1462
    %4267 = vmatprep.subr.mxu0 0.0
    %4268 = vmatpush1.msra.mxu0 %v1461
    %4269 = vmatprep.subr.mxu0 0.0
    %4270 = vmatpush1.msra.mxu0 %v1460
    %4271 = vmatprep.subr.mxu0 0.0
    %4272 = vmatpush1.msra.mxu0 %v1459
    %4273 = vmatprep.subr.mxu0 0.0
    %4274 = vmatpush1.msra.mxu0 %v1458
    %4275 = vmatprep.subr.mxu0 0.0
    %4276 = vmatpush1.msra.mxu0 %v1457
    %4277 = vmatprep.subr.mxu0 0.0
    %4278 = vmatpush2.msra.mxu0 0.0
    %4279 = vmatprep.subr.mxu0 0.0
    %4280 = vmatpush2.msra.mxu0 0.0
    %4281 = vmatprep.subr.mxu0 0.0
    %4282 = vmatpush2.msra.mxu0 0.0
    %4283 = vmatprep.subr.mxu0 0.0
    %4284 = vmatpush2.msra.mxu0 0.0
    %4285 = vmatprep.subr.mxu0 0.0
    %4286 = vmatpush2.msra.mxu0 0.0
    %4287 = vmatprep.subr.mxu0 0.0
    %4288 = vmatpush2.msra.mxu0 0.0
    %4289 = vmatprep.subr.mxu0 0.0
    %4290 = vmatpush2.msra.mxu0 0.0
    %4291 = vmatprep.subr.mxu0 0.0
    %4292 = vmatpush2.msra.mxu0 0.0
    %4293 = vmatprep.subr.mxu0 0.0
    %4294 = vmatpush2.msra.mxu0 0.0
    %4295 = vmatprep.subr.mxu0 0.0
    %4296 = vmatpush2.msra.mxu0 0.0
    %4297 = vmatprep.subr.mxu0 0.0
    %4298 = vmatpush2.msra.mxu0 0.0
    %4299 = vmatprep.subr.mxu0 0.0
    %4300 = vmatpush2.msra.mxu0 0.0
    %4301 = vmatprep.subr.mxu0 0.0
    %4302 = vmatpush2.msra.mxu0 0.0
    %4303 = vmatprep.subr.mxu0 0.0
    %4304 = vmatpush2.msra.mxu0 0.0
    %4305 = vmatprep.subr.mxu0 0.0
    %4306 = vmatpush2.msra.mxu0 0.0
    %4307 = vmatprep.subr.mxu0 0.0
    %4308 = vmatpush2.msra.mxu0 0.0
    %4309 = vmatprep.mubr.f32.mxu0 0.0
    %4310 = vmatmul.mubr.f32.gmra.mxu0 %v1027
    %v4311 = vpop.f32.mrf.mxu0
    %v4312 = vadd.f32 0.0, %v4311
    %v4313 = vpop.f32.mrf.mxu0
    %4314 = vdwg.mxu0
    %4315 = vmatprep.subr.mxu0 0.0
    %4316 = vmatpush1.msra.mxu0 %v1488
    %4317 = vmatprep.subr.mxu0 0.0
    %4318 = vmatpush1.msra.mxu0 %v1487
    %4319 = vmatprep.subr.mxu0 0.0
    %4320 = vmatpush1.msra.mxu0 %v1486
    %4321 = vmatprep.subr.mxu0 0.0
    %4322 = vmatpush1.msra.mxu0 %v1485
    %4323 = vmatprep.subr.mxu0 0.0
    %4324 = vmatpush1.msra.mxu0 %v1484
    %4325 = vmatprep.subr.mxu0 0.0
    %4326 = vmatpush1.msra.mxu0 %v1483
    %4327 = vmatprep.subr.mxu0 0.0
    %4328 = vmatpush1.msra.mxu0 %v1482
    %4329 = vmatprep.subr.mxu0 0.0
    %4330 = vmatpush1.msra.mxu0 %v1481
    %4331 = vmatprep.subr.mxu0 0.0
    %4332 = vmatpush1.msra.mxu0 %v1480
    %4333 = vmatprep.subr.mxu0 0.0
    %4334 = vmatpush1.msra.mxu0 %v1479
    %4335 = vmatprep.subr.mxu0 0.0
    %4336 = vmatpush1.msra.mxu0 %v1478
    %4337 = vmatprep.subr.mxu0 0.0
    %4338 = vmatpush1.msra.mxu0 %v1477
    %4339 = vmatprep.subr.mxu0 0.0
    %4340 = vmatpush1.msra.mxu0 %v1476
    %4341 = vmatprep.subr.mxu0 0.0
    %4342 = vmatpush1.msra.mxu0 %v1475
    %4343 = vmatprep.subr.mxu0 0.0
    %4344 = vmatpush1.msra.mxu0 %v1474
    %4345 = vmatprep.subr.mxu0 0.0
    %4346 = vmatpush1.msra.mxu0 %v1473
    %4347 = vmatprep.subr.mxu0 0.0
    %4348 = vmatpush2.msra.mxu0 0.0
    %4349 = vmatprep.subr.mxu0 0.0
    %4350 = vmatpush2.msra.mxu0 0.0
    %4351 = vmatprep.subr.mxu0 0.0
    %4352 = vmatpush2.msra.mxu0 0.0
    %4353 = vmatprep.subr.mxu0 0.0
    %4354 = vmatpush2.msra.mxu0 0.0
    %4355 = vmatprep.subr.mxu0 0.0
    %4356 = vmatpush2.msra.mxu0 0.0
    %4357 = vmatprep.subr.mxu0 0.0
    %4358 = vmatpush2.msra.mxu0 0.0
    %4359 = vmatprep.subr.mxu0 0.0
    %4360 = vmatpush2.msra.mxu0 0.0
    %4361 = vmatprep.subr.mxu0 0.0
    %4362 = vmatpush2.msra.mxu0 0.0
    %4363 = vmatprep.subr.mxu0 0.0
    %4364 = vmatpush2.msra.mxu0 0.0
    %4365 = vmatprep.subr.mxu0 0.0
    %4366 = vmatpush2.msra.mxu0 0.0
    %4367 = vmatprep.subr.mxu0 0.0
    %4368 = vmatpush2.msra.mxu0 0.0
    %4369 = vmatprep.subr.mxu0 0.0
    %4370 = vmatpush2.msra.mxu0 0.0
    %4371 = vmatprep.subr.mxu0 0.0
    %4372 = vmatpush2.msra.mxu0 0.0
    %4373 = vmatprep.subr.mxu0 0.0
    %4374 = vmatpush2.msra.mxu0 0.0
    %4375 = vmatprep.subr.mxu0 0.0
    %4376 = vmatpush2.msra.mxu0 0.0
    %4377 = vmatprep.subr.mxu0 0.0
    %4378 = vmatpush2.msra.mxu0 0.0
    %4379 = vmatprep.mubr.f32.mxu0 0.0
    %4380 = vmatmul.mubr.f32.gmra.mxu0 %v1028
    %v4381 = vpop.f32.mrf.mxu0
    %v4382 = vadd.f32 0.0, %v4381
    %v4383 = vpop.f32.mrf.mxu0
    %4384 = vdwg.mxu0
    %4385 = vmatprep.subr.mxu0 0.0
    %4386 = vmatpush1.msra.mxu0 %v1504
    %4387 = vmatprep.subr.mxu0 0.0
    %4388 = vmatpush1.msra.mxu0 %v1503
    %4389 = vmatprep.subr.mxu0 0.0
    %4390 = vmatpush1.msra.mxu0 %v1502
    %4391 = vmatprep.subr.mxu0 0.0
    %4392 = vmatpush1.msra.mxu0 %v1501
    %4393 = vmatprep.subr.mxu0 0.0
    %4394 = vmatpush1.msra.mxu0 %v1500
    %4395 = vmatprep.subr.mxu0 0.0
    %4396 = vmatpush1.msra.mxu0 %v1499
    %4397 = vmatprep.subr.mxu0 0.0
    %4398 = vmatpush1.msra.mxu0 %v1498
    %4399 = vmatprep.subr.mxu0 0.0
    %4400 = vmatpush1.msra.mxu0 %v1497
    %4401 = vmatprep.subr.mxu0 0.0
    %4402 = vmatpush1.msra.mxu0 %v1496
    %4403 = vmatprep.subr.mxu0 0.0
    %4404 = vmatpush1.msra.mxu0 %v1495
    %4405 = vmatprep.subr.mxu0 0.0
    %4406 = vmatpush1.msra.mxu0 %v1494
    %4407 = vmatprep.subr.mxu0 0.0
    %4408 = vmatpush1.msra.mxu0 %v1493
    %4409 = vmatprep.subr.mxu0 0.0
    %4410 = vmatpush1.msra.mxu0 %v1492
    %4411 = vmatprep.subr.mxu0 0.0
    %4412 = vmatpush1.msra.mxu0 %v1491
    %4413 = vmatprep.subr.mxu0 0.0
    %4414 = vmatpush1.msra.mxu0 %v1490
    %4415 = vmatprep.subr.mxu0 0.0
    %4416 = vmatpush1.msra.mxu0 %v1489
    %4417 = vmatprep.subr.mxu0 0.0
    %4418 = vmatpush2.msra.mxu0 0.0
    %4419 = vmatprep.subr.mxu0 0.0
    %4420 = vmatpush2.msra.mxu0 0.0
    %4421 = vmatprep.subr.mxu0 0.0
    %4422 = vmatpush2.msra.mxu0 0.0
    %4423 = vmatprep.subr.mxu0 0.0
    %4424 = vmatpush2.msra.mxu0 0.0
    %4425 = vmatprep.subr.mxu0 0.0
    %4426 = vmatpush2.msra.mxu0 0.0
    %4427 = vmatprep.subr.mxu0 0.0
    %4428 = vmatpush2.msra.mxu0 0.0
    %4429 = vmatprep.subr.mxu0 0.0
    %4430 = vmatpush2.msra.mxu0 0.0
    %4431 = vmatprep.subr.mxu0 0.0
    %4432 = vmatpush2.msra.mxu0 0.0
    %4433 = vmatprep.subr.mxu0 0.0
    %4434 = vmatpush2.msra.mxu0 0.0
    %4435 = vmatprep.subr.mxu0 0.0
    %4436 = vmatpush2.msra.mxu0 0.0
    %4437 = vmatprep.subr.mxu0 0.0
    %4438 = vmatpush2.msra.mxu0 0.0
    %4439 = vmatprep.subr.mxu0 0.0
    %4440 = vmatpush2.msra.mxu0 0.0
    %4441 = vmatprep.subr.mxu0 0.0
    %4442 = vmatpush2.msra.mxu0 0.0
    %4443 = vmatprep.subr.mxu0 0.0
    %4444 = vmatpush2.msra.mxu0 0.0
    %4445 = vmatprep.subr.mxu0 0.0
    %4446 = vmatpush2.msra.mxu0 0.0
    %4447 = vmatprep.subr.mxu0 0.0
    %4448 = vmatpush2.msra.mxu0 0.0
    %4449 = vmatprep.mubr.f32.mxu0 0.0
    %4450 = vmatmul.mubr.f32.gmra.mxu0 %v1029
    %v4451 = vpop.f32.mrf.mxu0
    %v4452 = vadd.f32 0.0, %v4451
    %v4453 = vpop.f32.mrf.mxu0
    %4454 = vdwg.mxu0
    %4455 = vmatprep.subr.mxu0 0.0
    %4456 = vmatpush1.msra.mxu0 %v1520
    %4457 = vmatprep.subr.mxu0 0.0
    %4458 = vmatpush1.msra.mxu0 %v1519
    %4459 = vmatprep.subr.mxu0 0.0
    %4460 = vmatpush1.msra.mxu0 %v1518
    %4461 = vmatprep.subr.mxu0 0.0
    %4462 = vmatpush1.msra.mxu0 %v1517
    %4463 = vmatprep.subr.mxu0 0.0
    %4464 = vmatpush1.msra.mxu0 %v1516
    %4465 = vmatprep.subr.mxu0 0.0
    %4466 = vmatpush1.msra.mxu0 %v1515
    %4467 = vmatprep.subr.mxu0 0.0
    %4468 = vmatpush1.msra.mxu0 %v1514
    %4469 = vmatprep.subr.mxu0 0.0
    %4470 = vmatpush1.msra.mxu0 %v1513
    %4471 = vmatprep.subr.mxu0 0.0
    %4472 = vmatpush1.msra.mxu0 %v1512
    %4473 = vmatprep.subr.mxu0 0.0
    %4474 = vmatpush1.msra.mxu0 %v1511
    %4475 = vmatprep.subr.mxu0 0.0
    %4476 = vmatpush1.msra.mxu0 %v1510
    %4477 = vmatprep.subr.mxu0 0.0
    %4478 = vmatpush1.msra.mxu0 %v1509
    %4479 = vmatprep.subr.mxu0 0.0
    %4480 = vmatpush1.msra.mxu0 %v1508
    %4481 = vmatprep.subr.mxu0 0.0
    %4482 = vmatpush1.msra.mxu0 %v1507
    %4483 = vmatprep.subr.mxu0 0.0
    %4484 = vmatpush1.msra.mxu0 %v1506
    %4485 = vmatprep.subr.mxu0 0.0
    %4486 = vmatpush1.msra.mxu0 %v1505
    %4487 = vmatprep.subr.mxu0 0.0
    %4488 = vmatpush2.msra.mxu0 0.0
    %4489 = vmatprep.subr.mxu0 0.0
    %4490 = vmatpush2.msra.mxu0 0.0
    %4491 = vmatprep.subr.mxu0 0.0
    %4492 = vmatpush2.msra.mxu0 0.0
    %4493 = vmatprep.subr.mxu0 0.0
    %4494 = vmatpush2.msra.mxu0 0.0
    %4495 = vmatprep.subr.mxu0 0.0
    %4496 = vmatpush2.msra.mxu0 0.0
    %4497 = vmatprep.subr.mxu0 0.0
    %4498 = vmatpush2.msra.mxu0 0.0
    %4499 = vmatprep.subr.mxu0 0.0
    %4500 = vmatpush2.msra.mxu0 0.0
    %4501 = vmatprep.subr.mxu0 0.0
    %4502 = vmatpush2.msra.mxu0 0.0
    %4503 = vmatprep.subr.mxu0 0.0
    %4504 = vmatpush2.msra.mxu0 0.0
    %4505 = vmatprep.subr.mxu0 0.0
    %4506 = vmatpush2.msra.mxu0 0.0
    %4507 = vmatprep.subr.mxu0 0.0
    %4508 = vmatpush2.msra.mxu0 0.0
    %4509 = vmatprep.subr.mxu0 0.0
    %4510 = vmatpush2.msra.mxu0 0.0
    %4511 = vmatprep.subr.mxu0 0.0
    %4512 = vmatpush2.msra.mxu0 0.0
    %4513 = vmatprep.subr.mxu0 0.0
    %4514 = vmatpush2.msra.mxu0 0.0
    %4515 = vmatprep.subr.mxu0 0.0
    %4516 = vmatpush2.msra.mxu0 0.0
    %4517 = vmatprep.subr.mxu0 0.0
    %4518 = vmatpush2.msra.mxu0 0.0
    %4519 = vmatprep.mubr.f32.mxu0 0.0
    %4520 = vmatmul.mubr.f32.gmra.mxu0 %v1030
    %v4521 = vpop.f32.mrf.mxu0
    %v4522 = vadd.f32 0.0, %v4521
    %v4523 = vpop.f32.mrf.mxu0
    %4524 = vdwg.mxu0
    %4525 = vmatprep.subr.mxu0 0.0
    %4526 = vmatpush1.msra.mxu0 %v1536
    %4527 = vmatprep.subr.mxu0 0.0
    %4528 = vmatpush1.msra.mxu0 %v1535
    %4529 = vmatprep.subr.mxu0 0.0
    %4530 = vmatpush1.msra.mxu0 %v1534
    %4531 = vmatprep.subr.mxu0 0.0
    %4532 = vmatpush1.msra.mxu0 %v1533
    %4533 = vmatprep.subr.mxu0 0.0
    %4534 = vmatpush1.msra.mxu0 %v1532
    %4535 = vmatprep.subr.mxu0 0.0
    %4536 = vmatpush1.msra.mxu0 %v1531
    %4537 = vmatprep.subr.mxu0 0.0
    %4538 = vmatpush1.msra.mxu0 %v1530
    %4539 = vmatprep.subr.mxu0 0.0
    %4540 = vmatpush1.msra.mxu0 %v1529
    %4541 = vmatprep.subr.mxu0 0.0
    %4542 = vmatpush1.msra.mxu0 %v1528
    %4543 = vmatprep.subr.mxu0 0.0
    %4544 = vmatpush1.msra.mxu0 %v1527
    %4545 = vmatprep.subr.mxu0 0.0
    %4546 = vmatpush1.msra.mxu0 %v1526
    %4547 = vmatprep.subr.mxu0 0.0
    %4548 = vmatpush1.msra.mxu0 %v1525
    %4549 = vmatprep.subr.mxu0 0.0
    %4550 = vmatpush1.msra.mxu0 %v1524
    %4551 = vmatprep.subr.mxu0 0.0
    %4552 = vmatpush1.msra.mxu0 %v1523
    %4553 = vmatprep.subr.mxu0 0.0
    %4554 = vmatpush1.msra.mxu0 %v1522
    %4555 = vmatprep.subr.mxu0 0.0
    %4556 = vmatpush1.msra.mxu0 %v1521
    %4557 = vmatprep.subr.mxu0 0.0
    %4558 = vmatpush2.msra.mxu0 0.0
    %4559 = vmatprep.subr.mxu0 0.0
    %4560 = vmatpush2.msra.mxu0 0.0
    %4561 = vmatprep.subr.mxu0 0.0
    %4562 = vmatpush2.msra.mxu0 0.0
    %4563 = vmatprep.subr.mxu0 0.0
    %4564 = vmatpush2.msra.mxu0 0.0
    %4565 = vmatprep.subr.mxu0 0.0
    %4566 = vmatpush2.msra.mxu0 0.0
    %4567 = vmatprep.subr.mxu0 0.0
    %4568 = vmatpush2.msra.mxu0 0.0
    %4569 = vmatprep.subr.mxu0 0.0
    %4570 = vmatpush2.msra.mxu0 0.0
    %4571 = vmatprep.subr.mxu0 0.0
    %4572 = vmatpush2.msra.mxu0 0.0
    %4573 = vmatprep.subr.mxu0 0.0
    %4574 = vmatpush2.msra.mxu0 0.0
    %4575 = vmatprep.subr.mxu0 0.0
    %4576 = vmatpush2.msra.mxu0 0.0
    %4577 = vmatprep.subr.mxu0 0.0
    %4578 = vmatpush2.msra.mxu0 0.0
    %4579 = vmatprep.subr.mxu0 0.0
    %4580 = vmatpush2.msra.mxu0 0.0
    %4581 = vmatprep.subr.mxu0 0.0
    %4582 = vmatpush2.msra.mxu0 0.0
    %4583 = vmatprep.subr.mxu0 0.0
    %4584 = vmatpush2.msra.mxu0 0.0
    %4585 = vmatprep.subr.mxu0 0.0
    %4586 = vmatpush2.msra.mxu0 0.0
    %4587 = vmatprep.subr.mxu0 0.0
    %4588 = vmatpush2.msra.mxu0 0.0
    %4589 = vmatprep.mubr.f32.mxu0 0.0
    %4590 = vmatmul.mubr.f32.gmra.mxu0 %v1031
    %v4591 = vpop.f32.mrf.mxu0
    %v4592 = vadd.f32 0.0, %v4591
    %v4593 = vpop.f32.mrf.mxu0
    %4594 = vdwg.mxu0
    %4595 = vmatprep.subr.mxu0 0.0
    %4596 = vmatpush1.msra.mxu0 %v1552
    %4597 = vmatprep.subr.mxu0 0.0
    %4598 = vmatpush1.msra.mxu0 %v1551
    %4599 = vmatprep.subr.mxu0 0.0
    %4600 = vmatpush1.msra.mxu0 %v1550
    %4601 = vmatprep.subr.mxu0 0.0
    %4602 = vmatpush1.msra.mxu0 %v1549
    %4603 = vmatprep.subr.mxu0 0.0
    %4604 = vmatpush1.msra.mxu0 %v1548
    %4605 = vmatprep.subr.mxu0 0.0
    %4606 = vmatpush1.msra.mxu0 %v1547
    %4607 = vmatprep.subr.mxu0 0.0
    %4608 = vmatpush1.msra.mxu0 %v1546
    %4609 = vmatprep.subr.mxu0 0.0
    %4610 = vmatpush1.msra.mxu0 %v1545
    %4611 = vmatprep.subr.mxu0 0.0
    %4612 = vmatpush1.msra.mxu0 %v1544
    %4613 = vmatprep.subr.mxu0 0.0
    %4614 = vmatpush1.msra.mxu0 %v1543
    %4615 = vmatprep.subr.mxu0 0.0
    %4616 = vmatpush1.msra.mxu0 %v1542
    %4617 = vmatprep.subr.mxu0 0.0
    %4618 = vmatpush1.msra.mxu0 %v1541
    %4619 = vmatprep.subr.mxu0 0.0
    %4620 = vmatpush1.msra.mxu0 %v1540
    %4621 = vmatprep.subr.mxu0 0.0
    %4622 = vmatpush1.msra.mxu0 %v1539
    %4623 = vmatprep.subr.mxu0 0.0
    %4624 = vmatpush1.msra.mxu0 %v1538
    %4625 = vmatprep.subr.mxu0 0.0
    %4626 = vmatpush1.msra.mxu0 %v1537
    %4627 = vmatprep.subr.mxu0 0.0
    %4628 = vmatpush2.msra.mxu0 0.0
    %4629 = vmatprep.subr.mxu0 0.0
    %4630 = vmatpush2.msra.mxu0 0.0
    %4631 = vmatprep.subr.mxu0 0.0
    %4632 = vmatpush2.msra.mxu0 0.0
    %4633 = vmatprep.subr.mxu0 0.0
    %4634 = vmatpush2.msra.mxu0 0.0
    %4635 = vmatprep.subr.mxu0 0.0
    %4636 = vmatpush2.msra.mxu0 0.0
    %4637 = vmatprep.subr.mxu0 0.0
    %4638 = vmatpush2.msra.mxu0 0.0
    %4639 = vmatprep.subr.mxu0 0.0
    %4640 = vmatpush2.msra.mxu0 0.0
    %4641 = vmatprep.subr.mxu0 0.0
    %4642 = vmatpush2.msra.mxu0 0.0
    %4643 = vmatprep.subr.mxu0 0.0
    %4644 = vmatpush2.msra.mxu0 0.0
    %4645 = vmatprep.subr.mxu0 0.0
    %4646 = vmatpush2.msra.mxu0 0.0
    %4647 = vmatprep.subr.mxu0 0.0
    %4648 = vmatpush2.msra.mxu0 0.0
    %4649 = vmatprep.subr.mxu0 0.0
    %4650 = vmatpush2.msra.mxu0 0.0
    %4651 = vmatprep.subr.mxu0 0.0
    %4652 = vmatpush2.msra.mxu0 0.0
    %4653 = vmatprep.subr.mxu0 0.0
    %4654 = vmatpush2.msra.mxu0 0.0
    %4655 = vmatprep.subr.mxu0 0.0
    %4656 = vmatpush2.msra.mxu0 0.0
    %4657 = vmatprep.subr.mxu0 0.0
    %4658 = vmatpush2.msra.mxu0 0.0
    %4659 = vmatprep.mubr.f32.mxu0 0.0
    %4660 = vmatmul.mubr.f32.gmra.mxu0 %v1032
    %v4661 = vpop.f32.mrf.mxu0
    %v4662 = vadd.f32 0.0, %v4661
    %v4663 = vpop.f32.mrf.mxu0
    %4664 = vdwg.mxu0
    %4665 = vmatprep.subr.mxu0 0.0
    %4666 = vmatpush1.msra.mxu0 %v1568
    %4667 = vmatprep.subr.mxu0 0.0
    %4668 = vmatpush1.msra.mxu0 %v1567
    %4669 = vmatprep.subr.mxu0 0.0
    %4670 = vmatpush1.msra.mxu0 %v1566
    %4671 = vmatprep.subr.mxu0 0.0
    %4672 = vmatpush1.msra.mxu0 %v1565
    %4673 = vmatprep.subr.mxu0 0.0
    %4674 = vmatpush1.msra.mxu0 %v1564
    %4675 = vmatprep.subr.mxu0 0.0
    %4676 = vmatpush1.msra.mxu0 %v1563
    %4677 = vmatprep.subr.mxu0 0.0
    %4678 = vmatpush1.msra.mxu0 %v1562
    %4679 = vmatprep.subr.mxu0 0.0
    %4680 = vmatpush1.msra.mxu0 %v1561
    %4681 = vmatprep.subr.mxu0 0.0
    %4682 = vmatpush1.msra.mxu0 %v1560
    %4683 = vmatprep.subr.mxu0 0.0
    %4684 = vmatpush1.msra.mxu0 %v1559
    %4685 = vmatprep.subr.mxu0 0.0
    %4686 = vmatpush1.msra.mxu0 %v1558
    %4687 = vmatprep.subr.mxu0 0.0
    %4688 = vmatpush1.msra.mxu0 %v1557
    %4689 = vmatprep.subr.mxu0 0.0
    %4690 = vmatpush1.msra.mxu0 %v1556
    %4691 = vmatprep.subr.mxu0 0.0
    %4692 = vmatpush1.msra.mxu0 %v1555
    %4693 = vmatprep.subr.mxu0 0.0
    %4694 = vmatpush1.msra.mxu0 %v1554
    %4695 = vmatprep.subr.mxu0 0.0
    %4696 = vmatpush1.msra.mxu0 %v1553
    %4697 = vmatprep.subr.mxu0 0.0
    %4698 = vmatpush2.msra.mxu0 0.0
    %4699 = vmatprep.subr.mxu0 0.0
    %4700 = vmatpush2.msra.mxu0 0.0
    %4701 = vmatprep.subr.mxu0 0.0
    %4702 = vmatpush2.msra.mxu0 0.0
    %4703 = vmatprep.subr.mxu0 0.0
    %4704 = vmatpush2.msra.mxu0 0.0
    %4705 = vmatprep.subr.mxu0 0.0
    %4706 = vmatpush2.msra.mxu0 0.0
    %4707 = vmatprep.subr.mxu0 0.0
    %4708 = vmatpush2.msra.mxu0 0.0
    %4709 = vmatprep.subr.mxu0 0.0
    %4710 = vmatpush2.msra.mxu0 0.0
    %4711 = vmatprep.subr.mxu0 0.0
    %4712 = vmatpush2.msra.mxu0 0.0
    %4713 = vmatprep.subr.mxu0 0.0
    %4714 = vmatpush2.msra.mxu0 0.0
    %4715 = vmatprep.subr.mxu0 0.0
    %4716 = vmatpush2.msra.mxu0 0.0
    %4717 = vmatprep.subr.mxu0 0.0
    %4718 = vmatpush2.msra.mxu0 0.0
    %4719 = vmatprep.subr.mxu0 0.0
    %4720 = vmatpush2.msra.mxu0 0.0
    %4721 = vmatprep.subr.mxu0 0.0
    %4722 = vmatpush2.msra.mxu0 0.0
    %4723 = vmatprep.subr.mxu0 0.0
    %4724 = vmatpush2.msra.mxu0 0.0
    %4725 = vmatprep.subr.mxu0 0.0
    %4726 = vmatpush2.msra.mxu0 0.0
    %4727 = vmatprep.subr.mxu0 0.0
    %4728 = vmatpush2.msra.mxu0 0.0
    %4729 = vmatprep.mubr.f32.mxu0 0.0
    %4730 = vmatmul.mubr.f32.gmra.mxu0 %v1033
    %v4731 = vpop.f32.mrf.mxu0
    %v4732 = vadd.f32 0.0, %v4731
    %v4733 = vpop.f32.mrf.mxu0
    %4734 = vdwg.mxu0
    %4735 = vmatprep.subr.mxu0 0.0
    %4736 = vmatpush1.msra.mxu0 %v1584
    %4737 = vmatprep.subr.mxu0 0.0
    %4738 = vmatpush1.msra.mxu0 %v1583
    %4739 = vmatprep.subr.mxu0 0.0
    %4740 = vmatpush1.msra.mxu0 %v1582
    %4741 = vmatprep.subr.mxu0 0.0
    %4742 = vmatpush1.msra.mxu0 %v1581
    %4743 = vmatprep.subr.mxu0 0.0
    %4744 = vmatpush1.msra.mxu0 %v1580
    %4745 = vmatprep.subr.mxu0 0.0
    %4746 = vmatpush1.msra.mxu0 %v1579
    %4747 = vmatprep.subr.mxu0 0.0
    %4748 = vmatpush1.msra.mxu0 %v1578
    %4749 = vmatprep.subr.mxu0 0.0
    %4750 = vmatpush1.msra.mxu0 %v1577
    %4751 = vmatprep.subr.mxu0 0.0
    %4752 = vmatpush1.msra.mxu0 %v1576
    %4753 = vmatprep.subr.mxu0 0.0
    %4754 = vmatpush1.msra.mxu0 %v1575
    %4755 = vmatprep.subr.mxu0 0.0
    %4756 = vmatpush1.msra.mxu0 %v1574
    %4757 = vmatprep.subr.mxu0 0.0
    %4758 = vmatpush1.msra.mxu0 %v1573
    %4759 = vmatprep.subr.mxu0 0.0
    %4760 = vmatpush1.msra.mxu0 %v1572
    %4761 = vmatprep.subr.mxu0 0.0
    %4762 = vmatpush1.msra.mxu0 %v1571
    %4763 = vmatprep.subr.mxu0 0.0
    %4764 = vmatpush1.msra.mxu0 %v1570
    %4765 = vmatprep.subr.mxu0 0.0
    %4766 = vmatpush1.msra.mxu0 %v1569
    %4767 = vmatprep.subr.mxu0 0.0
    %4768 = vmatpush2.msra.mxu0 0.0
    %4769 = vmatprep.subr.mxu0 0.0
    %4770 = vmatpush2.msra.mxu0 0.0
    %4771 = vmatprep.subr.mxu0 0.0
    %4772 = vmatpush2.msra.mxu0 0.0
    %4773 = vmatprep.subr.mxu0 0.0
    %4774 = vmatpush2.msra.mxu0 0.0
    %4775 = vmatprep.subr.mxu0 0.0
    %4776 = vmatpush2.msra.mxu0 0.0
    %4777 = vmatprep.subr.mxu0 0.0
    %4778 = vmatpush2.msra.mxu0 0.0
    %4779 = vmatprep.subr.mxu0 0.0
    %4780 = vmatpush2.msra.mxu0 0.0
    %4781 = vmatprep.subr.mxu0 0.0
    %4782 = vmatpush2.msra.mxu0 0.0
    %4783 = vmatprep.subr.mxu0 0.0
    %4784 = vmatpush2.msra.mxu0 0.0
    %4785 = vmatprep.subr.mxu0 0.0
    %4786 = vmatpush2.msra.mxu0 0.0
    %4787 = vmatprep.subr.mxu0 0.0
    %4788 = vmatpush2.msra.mxu0 0.0
    %4789 = vmatprep.subr.mxu0 0.0
    %4790 = vmatpush2.msra.mxu0 0.0
    %4791 = vmatprep.subr.mxu0 0.0
    %4792 = vmatpush2.msra.mxu0 0.0
    %4793 = vmatprep.subr.mxu0 0.0
    %4794 = vmatpush2.msra.mxu0 0.0
    %4795 = vmatprep.subr.mxu0 0.0
    %4796 = vmatpush2.msra.mxu0 0.0
    %4797 = vmatprep.subr.mxu0 0.0
    %4798 = vmatpush2.msra.mxu0 0.0
    %4799 = vmatprep.mubr.f32.mxu0 0.0
    %4800 = vmatmul.mubr.f32.gmra.mxu0 %v1034
    %v4801 = vpop.f32.mrf.mxu0
    %v4802 = vadd.f32 0.0, %v4801
    %v4803 = vpop.f32.mrf.mxu0
    %4804 = vdwg.mxu0
    %4805 = vmatprep.subr.mxu0 0.0
    %4806 = vmatpush1.msra.mxu0 %v1600
    %4807 = vmatprep.subr.mxu0 0.0
    %4808 = vmatpush1.msra.mxu0 %v1599
    %4809 = vmatprep.subr.mxu0 0.0
    %4810 = vmatpush1.msra.mxu0 %v1598
    %4811 = vmatprep.subr.mxu0 0.0
    %4812 = vmatpush1.msra.mxu0 %v1597
    %4813 = vmatprep.subr.mxu0 0.0
    %4814 = vmatpush1.msra.mxu0 %v1596
    %4815 = vmatprep.subr.mxu0 0.0
    %4816 = vmatpush1.msra.mxu0 %v1595
    %4817 = vmatprep.subr.mxu0 0.0
    %4818 = vmatpush1.msra.mxu0 %v1594
    %4819 = vmatprep.subr.mxu0 0.0
    %4820 = vmatpush1.msra.mxu0 %v1593
    %4821 = vmatprep.subr.mxu0 0.0
    %4822 = vmatpush1.msra.mxu0 %v1592
    %4823 = vmatprep.subr.mxu0 0.0
    %4824 = vmatpush1.msra.mxu0 %v1591
    %4825 = vmatprep.subr.mxu0 0.0
    %4826 = vmatpush1.msra.mxu0 %v1590
    %4827 = vmatprep.subr.mxu0 0.0
    %4828 = vmatpush1.msra.mxu0 %v1589
    %4829 = vmatprep.subr.mxu0 0.0
    %4830 = vmatpush1.msra.mxu0 %v1588
    %4831 = vmatprep.subr.mxu0 0.0
    %4832 = vmatpush1.msra.mxu0 %v1587
    %4833 = vmatprep.subr.mxu0 0.0
    %4834 = vmatpush1.msra.mxu0 %v1586
    %4835 = vmatprep.subr.mxu0 0.0
    %4836 = vmatpush1.msra.mxu0 %v1585
    %4837 = vmatprep.subr.mxu0 0.0
    %4838 = vmatpush2.msra.mxu0 0.0
    %4839 = vmatprep.subr.mxu0 0.0
    %4840 = vmatpush2.msra.mxu0 0.0
    %4841 = vmatprep.subr.mxu0 0.0
    %4842 = vmatpush2.msra.mxu0 0.0
    %4843 = vmatprep.subr.mxu0 0.0
    %4844 = vmatpush2.msra.mxu0 0.0
    %4845 = vmatprep.subr.mxu0 0.0
    %4846 = vmatpush2.msra.mxu0 0.0
    %4847 = vmatprep.subr.mxu0 0.0
    %4848 = vmatpush2.msra.mxu0 0.0
    %4849 = vmatprep.subr.mxu0 0.0
    %4850 = vmatpush2.msra.mxu0 0.0
    %4851 = vmatprep.subr.mxu0 0.0
    %4852 = vmatpush2.msra.mxu0 0.0
    %4853 = vmatprep.subr.mxu0 0.0
    %4854 = vmatpush2.msra.mxu0 0.0
    %4855 = vmatprep.subr.mxu0 0.0
    %4856 = vmatpush2.msra.mxu0 0.0
    %4857 = vmatprep.subr.mxu0 0.0
    %4858 = vmatpush2.msra.mxu0 0.0
    %4859 = vmatprep.subr.mxu0 0.0
    %4860 = vmatpush2.msra.mxu0 0.0
    %4861 = vmatprep.subr.mxu0 0.0
    %4862 = vmatpush2.msra.mxu0 0.0
    %4863 = vmatprep.subr.mxu0 0.0
    %4864 = vmatpush2.msra.mxu0 0.0
    %4865 = vmatprep.subr.mxu0 0.0
    %4866 = vmatpush2.msra.mxu0 0.0
    %4867 = vmatprep.subr.mxu0 0.0
    %4868 = vmatpush2.msra.mxu0 0.0
    %4869 = vmatprep.mubr.f32.mxu0 0.0
    %4870 = vmatmul.mubr.f32.gmra.mxu0 %v1035
    %v4871 = vpop.f32.mrf.mxu0
    %v4872 = vadd.f32 0.0, %v4871
    %v4873 = vpop.f32.mrf.mxu0
    %4874 = vdwg.mxu0
    %4875 = vmatprep.subr.mxu0 0.0
    %4876 = vmatpush1.msra.mxu0 %v1616
    %4877 = vmatprep.subr.mxu0 0.0
    %4878 = vmatpush1.msra.mxu0 %v1615
    %4879 = vmatprep.subr.mxu0 0.0
    %4880 = vmatpush1.msra.mxu0 %v1614
    %4881 = vmatprep.subr.mxu0 0.0
    %4882 = vmatpush1.msra.mxu0 %v1613
    %4883 = vmatprep.subr.mxu0 0.0
    %4884 = vmatpush1.msra.mxu0 %v1612
    %4885 = vmatprep.subr.mxu0 0.0
    %4886 = vmatpush1.msra.mxu0 %v1611
    %4887 = vmatprep.subr.mxu0 0.0
    %4888 = vmatpush1.msra.mxu0 %v1610
    %4889 = vmatprep.subr.mxu0 0.0
    %4890 = vmatpush1.msra.mxu0 %v1609
    %4891 = vmatprep.subr.mxu0 0.0
    %4892 = vmatpush1.msra.mxu0 %v1608
    %4893 = vmatprep.subr.mxu0 0.0
    %4894 = vmatpush1.msra.mxu0 %v1607
    %4895 = vmatprep.subr.mxu0 0.0
    %4896 = vmatpush1.msra.mxu0 %v1606
    %4897 = vmatprep.subr.mxu0 0.0
    %4898 = vmatpush1.msra.mxu0 %v1605
    %4899 = vmatprep.subr.mxu0 0.0
    %4900 = vmatpush1.msra.mxu0 %v1604
    %4901 = vmatprep.subr.mxu0 0.0
    %4902 = vmatpush1.msra.mxu0 %v1603
    %4903 = vmatprep.subr.mxu0 0.0
    %4904 = vmatpush1.msra.mxu0 %v1602
    %4905 = vmatprep.subr.mxu0 0.0
    %4906 = vmatpush1.msra.mxu0 %v1601
    %4907 = vmatprep.subr.mxu0 0.0
    %4908 = vmatpush2.msra.mxu0 0.0
    %4909 = vmatprep.subr.mxu0 0.0
    %4910 = vmatpush2.msra.mxu0 0.0
    %4911 = vmatprep.subr.mxu0 0.0
    %4912 = vmatpush2.msra.mxu0 0.0
    %4913 = vmatprep.subr.mxu0 0.0
    %4914 = vmatpush2.msra.mxu0 0.0
    %4915 = vmatprep.subr.mxu0 0.0
    %4916 = vmatpush2.msra.mxu0 0.0
    %4917 = vmatprep.subr.mxu0 0.0
    %4918 = vmatpush2.msra.mxu0 0.0
    %4919 = vmatprep.subr.mxu0 0.0
    %4920 = vmatpush2.msra.mxu0 0.0
    %4921 = vmatprep.subr.mxu0 0.0
    %4922 = vmatpush2.msra.mxu0 0.0
    %4923 = vmatprep.subr.mxu0 0.0
    %4924 = vmatpush2.msra.mxu0 0.0
    %4925 = vmatprep.subr.mxu0 0.0
    %4926 = vmatpush2.msra.mxu0 0.0
    %4927 = vmatprep.subr.mxu0 0.0
    %4928 = vmatpush2.msra.mxu0 0.0
    %4929 = vmatprep.subr.mxu0 0.0
    %4930 = vmatpush2.msra.mxu0 0.0
    %4931 = vmatprep.subr.mxu0 0.0
    %4932 = vmatpush2.msra.mxu0 0.0
    %4933 = vmatprep.subr.mxu0 0.0
    %4934 = vmatpush2.msra.mxu0 0.0
    %4935 = vmatprep.subr.mxu0 0.0
    %4936 = vmatpush2.msra.mxu0 0.0
    %4937 = vmatprep.subr.mxu0 0.0
    %4938 = vmatpush2.msra.mxu0 0.0
    %4939 = vmatprep.mubr.f32.mxu0 0.0
    %4940 = vmatmul.mubr.f32.gmra.mxu0 %v1036
    %v4941 = vpop.f32.mrf.mxu0
    %v4942 = vadd.f32 0.0, %v4941
    %v4943 = vpop.f32.mrf.mxu0
    %4944 = vdwg.mxu0
    %4945 = vmatprep.subr.mxu0 0.0
    %4946 = vmatpush1.msra.mxu0 %v1632
    %4947 = vmatprep.subr.mxu0 0.0
    %4948 = vmatpush1.msra.mxu0 %v1631
    %4949 = vmatprep.subr.mxu0 0.0
    %4950 = vmatpush1.msra.mxu0 %v1630
    %4951 = vmatprep.subr.mxu0 0.0
    %4952 = vmatpush1.msra.mxu0 %v1629
    %4953 = vmatprep.subr.mxu0 0.0
    %4954 = vmatpush1.msra.mxu0 %v1628
    %4955 = vmatprep.subr.mxu0 0.0
    %4956 = vmatpush1.msra.mxu0 %v1627
    %4957 = vmatprep.subr.mxu0 0.0
    %4958 = vmatpush1.msra.mxu0 %v1626
    %4959 = vmatprep.subr.mxu0 0.0
    %4960 = vmatpush1.msra.mxu0 %v1625
    %4961 = vmatprep.subr.mxu0 0.0
    %4962 = vmatpush1.msra.mxu0 %v1624
    %4963 = vmatprep.subr.mxu0 0.0
    %4964 = vmatpush1.msra.mxu0 %v1623
    %4965 = vmatprep.subr.mxu0 0.0
    %4966 = vmatpush1.msra.mxu0 %v1622
    %4967 = vmatprep.subr.mxu0 0.0
    %4968 = vmatpush1.msra.mxu0 %v1621
    %4969 = vmatprep.subr.mxu0 0.0
    %4970 = vmatpush1.msra.mxu0 %v1620
    %4971 = vmatprep.subr.mxu0 0.0
    %4972 = vmatpush1.msra.mxu0 %v1619
    %4973 = vmatprep.subr.mxu0 0.0
    %4974 = vmatpush1.msra.mxu0 %v1618
    %4975 = vmatprep.subr.mxu0 0.0
    %4976 = vmatpush1.msra.mxu0 %v1617
    %4977 = vmatprep.subr.mxu0 0.0
    %4978 = vmatpush2.msra.mxu0 0.0
    %4979 = vmatprep.subr.mxu0 0.0
    %4980 = vmatpush2.msra.mxu0 0.0
    %4981 = vmatprep.subr.mxu0 0.0
    %4982 = vmatpush2.msra.mxu0 0.0
    %4983 = vmatprep.subr.mxu0 0.0
    %4984 = vmatpush2.msra.mxu0 0.0
    %4985 = vmatprep.subr.mxu0 0.0
    %4986 = vmatpush2.msra.mxu0 0.0
    %4987 = vmatprep.subr.mxu0 0.0
    %4988 = vmatpush2.msra.mxu0 0.0
    %4989 = vmatprep.subr.mxu0 0.0
    %4990 = vmatpush2.msra.mxu0 0.0
    %4991 = vmatprep.subr.mxu0 0.0
    %4992 = vmatpush2.msra.mxu0 0.0
    %4993 = vmatprep.subr.mxu0 0.0
    %4994 = vmatpush2.msra.mxu0 0.0
    %4995 = vmatprep.subr.mxu0 0.0
    %4996 = vmatpush2.msra.mxu0 0.0
    %4997 = vmatprep.subr.mxu0 0.0
    %4998 = vmatpush2.msra.mxu0 0.0
    %4999 = vmatprep.subr.mxu0 0.0
    %5000 = vmatpush2.msra.mxu0 0.0
    %5001 = vmatprep.subr.mxu0 0.0
    %5002 = vmatpush2.msra.mxu0 0.0
    %5003 = vmatprep.subr.mxu0 0.0
    %5004 = vmatpush2.msra.mxu0 0.0
    %5005 = vmatprep.subr.mxu0 0.0
    %5006 = vmatpush2.msra.mxu0 0.0
    %5007 = vmatprep.subr.mxu0 0.0
    %5008 = vmatpush2.msra.mxu0 0.0
    %5009 = vmatprep.mubr.f32.mxu0 0.0
    %5010 = vmatmul.mubr.f32.gmra.mxu0 %v1037
    %v5011 = vpop.f32.mrf.mxu0
    %v5012 = vadd.f32 0.0, %v5011
    %v5013 = vpop.f32.mrf.mxu0
    %5014 = vdwg.mxu0
    %5015 = vmatprep.subr.mxu0 0.0
    %5016 = vmatpush1.msra.mxu0 %v1648
    %5017 = vmatprep.subr.mxu0 0.0
    %5018 = vmatpush1.msra.mxu0 %v1647
    %5019 = vmatprep.subr.mxu0 0.0
    %5020 = vmatpush1.msra.mxu0 %v1646
    %5021 = vmatprep.subr.mxu0 0.0
    %5022 = vmatpush1.msra.mxu0 %v1645
    %5023 = vmatprep.subr.mxu0 0.0
    %5024 = vmatpush1.msra.mxu0 %v1644
    %5025 = vmatprep.subr.mxu0 0.0
    %5026 = vmatpush1.msra.mxu0 %v1643
    %5027 = vmatprep.subr.mxu0 0.0
    %5028 = vmatpush1.msra.mxu0 %v1642
    %5029 = vmatprep.subr.mxu0 0.0
    %5030 = vmatpush1.msra.mxu0 %v1641
    %5031 = vmatprep.subr.mxu0 0.0
    %5032 = vmatpush1.msra.mxu0 %v1640
    %5033 = vmatprep.subr.mxu0 0.0
    %5034 = vmatpush1.msra.mxu0 %v1639
    %5035 = vmatprep.subr.mxu0 0.0
    %5036 = vmatpush1.msra.mxu0 %v1638
    %5037 = vmatprep.subr.mxu0 0.0
    %5038 = vmatpush1.msra.mxu0 %v1637
    %5039 = vmatprep.subr.mxu0 0.0
    %5040 = vmatpush1.msra.mxu0 %v1636
    %5041 = vmatprep.subr.mxu0 0.0
    %5042 = vmatpush1.msra.mxu0 %v1635
    %5043 = vmatprep.subr.mxu0 0.0
    %5044 = vmatpush1.msra.mxu0 %v1634
    %5045 = vmatprep.subr.mxu0 0.0
    %5046 = vmatpush1.msra.mxu0 %v1633
    %5047 = vmatprep.subr.mxu0 0.0
    %5048 = vmatpush2.msra.mxu0 0.0
    %5049 = vmatprep.subr.mxu0 0.0
    %5050 = vmatpush2.msra.mxu0 0.0
    %5051 = vmatprep.subr.mxu0 0.0
    %5052 = vmatpush2.msra.mxu0 0.0
    %5053 = vmatprep.subr.mxu0 0.0
    %5054 = vmatpush2.msra.mxu0 0.0
    %5055 = vmatprep.subr.mxu0 0.0
    %5056 = vmatpush2.msra.mxu0 0.0
    %5057 = vmatprep.subr.mxu0 0.0
    %5058 = vmatpush2.msra.mxu0 0.0
    %5059 = vmatprep.subr.mxu0 0.0
    %5060 = vmatpush2.msra.mxu0 0.0
    %5061 = vmatprep.subr.mxu0 0.0
    %5062 = vmatpush2.msra.mxu0 0.0
    %5063 = vmatprep.subr.mxu0 0.0
    %5064 = vmatpush2.msra.mxu0 0.0
    %5065 = vmatprep.subr.mxu0 0.0
    %5066 = vmatpush2.msra.mxu0 0.0
    %5067 = vmatprep.subr.mxu0 0.0
    %5068 = vmatpush2.msra.mxu0 0.0
    %5069 = vmatprep.subr.mxu0 0.0
    %5070 = vmatpush2.msra.mxu0 0.0
    %5071 = vmatprep.subr.mxu0 0.0
    %5072 = vmatpush2.msra.mxu0 0.0
    %5073 = vmatprep.subr.mxu0 0.0
    %5074 = vmatpush2.msra.mxu0 0.0
    %5075 = vmatprep.subr.mxu0 0.0
    %5076 = vmatpush2.msra.mxu0 0.0
    %5077 = vmatprep.subr.mxu0 0.0
    %5078 = vmatpush2.msra.mxu0 0.0
    %5079 = vmatprep.mubr.f32.mxu0 0.0
    %5080 = vmatmul.mubr.f32.gmra.mxu0 %v1038
    %v5081 = vpop.f32.mrf.mxu0
    %v5082 = vadd.f32 0.0, %v5081
    %v5083 = vpop.f32.mrf.mxu0
    %5084 = vdwg.mxu0
    %5085 = vmatprep.subr.mxu0 0.0
    %5086 = vmatpush1.msra.mxu0 %v1664
    %5087 = vmatprep.subr.mxu0 0.0
    %5088 = vmatpush1.msra.mxu0 %v1663
    %5089 = vmatprep.subr.mxu0 0.0
    %5090 = vmatpush1.msra.mxu0 %v1662
    %5091 = vmatprep.subr.mxu0 0.0
    %5092 = vmatpush1.msra.mxu0 %v1661
    %5093 = vmatprep.subr.mxu0 0.0
    %5094 = vmatpush1.msra.mxu0 %v1660
    %5095 = vmatprep.subr.mxu0 0.0
    %5096 = vmatpush1.msra.mxu0 %v1659
    %5097 = vmatprep.subr.mxu0 0.0
    %5098 = vmatpush1.msra.mxu0 %v1658
    %5099 = vmatprep.subr.mxu0 0.0
    %5100 = vmatpush1.msra.mxu0 %v1657
    %5101 = vmatprep.subr.mxu0 0.0
    %5102 = vmatpush1.msra.mxu0 %v1656
    %5103 = vmatprep.subr.mxu0 0.0
    %5104 = vmatpush1.msra.mxu0 %v1655
    %5105 = vmatprep.subr.mxu0 0.0
    %5106 = vmatpush1.msra.mxu0 %v1654
    %5107 = vmatprep.subr.mxu0 0.0
    %5108 = vmatpush1.msra.mxu0 %v1653
    %5109 = vmatprep.subr.mxu0 0.0
    %5110 = vmatpush1.msra.mxu0 %v1652
    %5111 = vmatprep.subr.mxu0 0.0
    %5112 = vmatpush1.msra.mxu0 %v1651
    %5113 = vmatprep.subr.mxu0 0.0
    %5114 = vmatpush1.msra.mxu0 %v1650
    %5115 = vmatprep.subr.mxu0 0.0
    %5116 = vmatpush1.msra.mxu0 %v1649
    %5117 = vmatprep.subr.mxu0 0.0
    %5118 = vmatpush2.msra.mxu0 0.0
    %5119 = vmatprep.subr.mxu0 0.0
    %5120 = vmatpush2.msra.mxu0 0.0
    %5121 = vmatprep.subr.mxu0 0.0
    %5122 = vmatpush2.msra.mxu0 0.0
    %5123 = vmatprep.subr.mxu0 0.0
    %5124 = vmatpush2.msra.mxu0 0.0
    %5125 = vmatprep.subr.mxu0 0.0
    %5126 = vmatpush2.msra.mxu0 0.0
    %5127 = vmatprep.subr.mxu0 0.0
    %5128 = vmatpush2.msra.mxu0 0.0
    %5129 = vmatprep.subr.mxu0 0.0
    %5130 = vmatpush2.msra.mxu0 0.0
    %5131 = vmatprep.subr.mxu0 0.0
    %5132 = vmatpush2.msra.mxu0 0.0
    %5133 = vmatprep.subr.mxu0 0.0
    %5134 = vmatpush2.msra.mxu0 0.0
    %5135 = vmatprep.subr.mxu0 0.0
    %5136 = vmatpush2.msra.mxu0 0.0
    %5137 = vmatprep.subr.mxu0 0.0
    %5138 = vmatpush2.msra.mxu0 0.0
    %5139 = vmatprep.subr.mxu0 0.0
    %5140 = vmatpush2.msra.mxu0 0.0
    %5141 = vmatprep.subr.mxu0 0.0
    %5142 = vmatpush2.msra.mxu0 0.0
    %5143 = vmatprep.subr.mxu0 0.0
    %5144 = vmatpush2.msra.mxu0 0.0
    %5145 = vmatprep.subr.mxu0 0.0
    %5146 = vmatpush2.msra.mxu0 0.0
    %5147 = vmatprep.subr.mxu0 0.0
    %5148 = vmatpush2.msra.mxu0 0.0
    %5149 = vmatprep.mubr.f32.mxu0 0.0
    %5150 = vmatmul.mubr.f32.gmra.mxu0 %v1039
    %v5151 = vpop.f32.mrf.mxu0
    %v5152 = vadd.f32 0.0, %v5151
    %v5153 = vpop.f32.mrf.mxu0
    %5154 = vdwg.mxu0
    %5155 = vmatprep.subr.mxu0 0.0
    %5156 = vmatpush1.msra.mxu0 %v1680
    %5157 = vmatprep.subr.mxu0 0.0
    %5158 = vmatpush1.msra.mxu0 %v1679
    %5159 = vmatprep.subr.mxu0 0.0
    %5160 = vmatpush1.msra.mxu0 %v1678
    %5161 = vmatprep.subr.mxu0 0.0
    %5162 = vmatpush1.msra.mxu0 %v1677
    %5163 = vmatprep.subr.mxu0 0.0
    %5164 = vmatpush1.msra.mxu0 %v1676
    %5165 = vmatprep.subr.mxu0 0.0
    %5166 = vmatpush1.msra.mxu0 %v1675
    %5167 = vmatprep.subr.mxu0 0.0
    %5168 = vmatpush1.msra.mxu0 %v1674
    %5169 = vmatprep.subr.mxu0 0.0
    %5170 = vmatpush1.msra.mxu0 %v1673
    %5171 = vmatprep.subr.mxu0 0.0
    %5172 = vmatpush1.msra.mxu0 %v1672
    %5173 = vmatprep.subr.mxu0 0.0
    %5174 = vmatpush1.msra.mxu0 %v1671
    %5175 = vmatprep.subr.mxu0 0.0
    %5176 = vmatpush1.msra.mxu0 %v1670
    %5177 = vmatprep.subr.mxu0 0.0
    %5178 = vmatpush1.msra.mxu0 %v1669
    %5179 = vmatprep.subr.mxu0 0.0
    %5180 = vmatpush1.msra.mxu0 %v1668
    %5181 = vmatprep.subr.mxu0 0.0
    %5182 = vmatpush1.msra.mxu0 %v1667
    %5183 = vmatprep.subr.mxu0 0.0
    %5184 = vmatpush1.msra.mxu0 %v1666
    %5185 = vmatprep.subr.mxu0 0.0
    %5186 = vmatpush1.msra.mxu0 %v1665
    %5187 = vmatprep.subr.mxu0 0.0
    %5188 = vmatpush2.msra.mxu0 0.0
    %5189 = vmatprep.subr.mxu0 0.0
    %5190 = vmatpush2.msra.mxu0 0.0
    %5191 = vmatprep.subr.mxu0 0.0
    %5192 = vmatpush2.msra.mxu0 0.0
    %5193 = vmatprep.subr.mxu0 0.0
    %5194 = vmatpush2.msra.mxu0 0.0
    %5195 = vmatprep.subr.mxu0 0.0
    %5196 = vmatpush2.msra.mxu0 0.0
    %5197 = vmatprep.subr.mxu0 0.0
    %5198 = vmatpush2.msra.mxu0 0.0
    %5199 = vmatprep.subr.mxu0 0.0
    %5200 = vmatpush2.msra.mxu0 0.0
    %5201 = vmatprep.subr.mxu0 0.0
    %5202 = vmatpush2.msra.mxu0 0.0
    %5203 = vmatprep.subr.mxu0 0.0
    %5204 = vmatpush2.msra.mxu0 0.0
    %5205 = vmatprep.subr.mxu0 0.0
    %5206 = vmatpush2.msra.mxu0 0.0
    %5207 = vmatprep.subr.mxu0 0.0
    %5208 = vmatpush2.msra.mxu0 0.0
    %5209 = vmatprep.subr.mxu0 0.0
    %5210 = vmatpush2.msra.mxu0 0.0
    %5211 = vmatprep.subr.mxu0 0.0
    %5212 = vmatpush2.msra.mxu0 0.0
    %5213 = vmatprep.subr.mxu0 0.0
    %5214 = vmatpush2.msra.mxu0 0.0
    %5215 = vmatprep.subr.mxu0 0.0
    %5216 = vmatpush2.msra.mxu0 0.0
    %5217 = vmatprep.subr.mxu0 0.0
    %5218 = vmatpush2.msra.mxu0 0.0
    %5219 = vmatprep.mubr.f32.mxu0 0.0
    %5220 = vmatmul.mubr.f32.gmra.mxu0 %v1040
    %v5221 = vpop.f32.mrf.mxu0
    %v5222 = vadd.f32 0.0, %v5221
    %v5223 = vpop.f32.mrf.mxu0
    %5224 = vdwg.mxu0
    %5225 = vmatprep.subr.mxu0 0.0
    %5226 = vmatpush1.msra.mxu0 %v1696
    %5227 = vmatprep.subr.mxu0 0.0
    %5228 = vmatpush1.msra.mxu0 %v1695
    %5229 = vmatprep.subr.mxu0 0.0
    %5230 = vmatpush1.msra.mxu0 %v1694
    %5231 = vmatprep.subr.mxu0 0.0
    %5232 = vmatpush1.msra.mxu0 %v1693
    %5233 = vmatprep.subr.mxu0 0.0
    %5234 = vmatpush1.msra.mxu0 %v1692
    %5235 = vmatprep.subr.mxu0 0.0
    %5236 = vmatpush1.msra.mxu0 %v1691
    %5237 = vmatprep.subr.mxu0 0.0
    %5238 = vmatpush1.msra.mxu0 %v1690
    %5239 = vmatprep.subr.mxu0 0.0
    %5240 = vmatpush1.msra.mxu0 %v1689
    %5241 = vmatprep.subr.mxu0 0.0
    %5242 = vmatpush1.msra.mxu0 %v1688
    %5243 = vmatprep.subr.mxu0 0.0
    %5244 = vmatpush1.msra.mxu0 %v1687
    %5245 = vmatprep.subr.mxu0 0.0
    %5246 = vmatpush1.msra.mxu0 %v1686
    %5247 = vmatprep.subr.mxu0 0.0
    %5248 = vmatpush1.msra.mxu0 %v1685
    %5249 = vmatprep.subr.mxu0 0.0
    %5250 = vmatpush1.msra.mxu0 %v1684
    %5251 = vmatprep.subr.mxu0 0.0
    %5252 = vmatpush1.msra.mxu0 %v1683
    %5253 = vmatprep.subr.mxu0 0.0
    %5254 = vmatpush1.msra.mxu0 %v1682
    %5255 = vmatprep.subr.mxu0 0.0
    %5256 = vmatpush1.msra.mxu0 %v1681
    %5257 = vmatprep.subr.mxu0 0.0
    %5258 = vmatpush2.msra.mxu0 0.0
    %5259 = vmatprep.subr.mxu0 0.0
    %5260 = vmatpush2.msra.mxu0 0.0
    %5261 = vmatprep.subr.mxu0 0.0
    %5262 = vmatpush2.msra.mxu0 0.0
    %5263 = vmatprep.subr.mxu0 0.0
    %5264 = vmatpush2.msra.mxu0 0.0
    %5265 = vmatprep.subr.mxu0 0.0
    %5266 = vmatpush2.msra.mxu0 0.0
    %5267 = vmatprep.subr.mxu0 0.0
    %5268 = vmatpush2.msra.mxu0 0.0
    %5269 = vmatprep.subr.mxu0 0.0
    %5270 = vmatpush2.msra.mxu0 0.0
    %5271 = vmatprep.subr.mxu0 0.0
    %5272 = vmatpush2.msra.mxu0 0.0
    %5273 = vmatprep.subr.mxu0 0.0
    %5274 = vmatpush2.msra.mxu0 0.0
    %5275 = vmatprep.subr.mxu0 0.0
    %5276 = vmatpush2.msra.mxu0 0.0
    %5277 = vmatprep.subr.mxu0 0.0
    %5278 = vmatpush2.msra.mxu0 0.0
    %5279 = vmatprep.subr.mxu0 0.0
    %5280 = vmatpush2.msra.mxu0 0.0
    %5281 = vmatprep.subr.mxu0 0.0
    %5282 = vmatpush2.msra.mxu0 0.0
    %5283 = vmatprep.subr.mxu0 0.0
    %5284 = vmatpush2.msra.mxu0 0.0
    %5285 = vmatprep.subr.mxu0 0.0
    %5286 = vmatpush2.msra.mxu0 0.0
    %5287 = vmatprep.subr.mxu0 0.0
    %5288 = vmatpush2.msra.mxu0 0.0
    %5289 = vmatprep.mubr.f32.mxu0 0.0
    %5290 = vmatmul.mubr.f32.gmra.mxu0 %v1041
    %v5291 = vpop.f32.mrf.mxu0
    %v5292 = vadd.f32 0.0, %v5291
    %v5293 = vpop.f32.mrf.mxu0
    %5294 = vdwg.mxu0
    %5295 = vmatprep.subr.mxu0 0.0
    %5296 = vmatpush1.msra.mxu0 %v1712
    %5297 = vmatprep.subr.mxu0 0.0
    %5298 = vmatpush1.msra.mxu0 %v1711
    %5299 = vmatprep.subr.mxu0 0.0
    %5300 = vmatpush1.msra.mxu0 %v1710
    %5301 = vmatprep.subr.mxu0 0.0
    %5302 = vmatpush1.msra.mxu0 %v1709
    %5303 = vmatprep.subr.mxu0 0.0
    %5304 = vmatpush1.msra.mxu0 %v1708
    %5305 = vmatprep.subr.mxu0 0.0
    %5306 = vmatpush1.msra.mxu0 %v1707
    %5307 = vmatprep.subr.mxu0 0.0
    %5308 = vmatpush1.msra.mxu0 %v1706
    %5309 = vmatprep.subr.mxu0 0.0
    %5310 = vmatpush1.msra.mxu0 %v1705
    %5311 = vmatprep.subr.mxu0 0.0
    %5312 = vmatpush1.msra.mxu0 %v1704
    %5313 = vmatprep.subr.mxu0 0.0
    %5314 = vmatpush1.msra.mxu0 %v1703
    %5315 = vmatprep.subr.mxu0 0.0
    %5316 = vmatpush1.msra.mxu0 %v1702
    %5317 = vmatprep.subr.mxu0 0.0
    %5318 = vmatpush1.msra.mxu0 %v1701
    %5319 = vmatprep.subr.mxu0 0.0
    %5320 = vmatpush1.msra.mxu0 %v1700
    %5321 = vmatprep.subr.mxu0 0.0
    %5322 = vmatpush1.msra.mxu0 %v1699
    %5323 = vmatprep.subr.mxu0 0.0
    %5324 = vmatpush1.msra.mxu0 %v1698
    %5325 = vmatprep.subr.mxu0 0.0
    %5326 = vmatpush1.msra.mxu0 %v1697
    %5327 = vmatprep.subr.mxu0 0.0
    %5328 = vmatpush2.msra.mxu0 0.0
    %5329 = vmatprep.subr.mxu0 0.0
    %5330 = vmatpush2.msra.mxu0 0.0
    %5331 = vmatprep.subr.mxu0 0.0
    %5332 = vmatpush2.msra.mxu0 0.0
    %5333 = vmatprep.subr.mxu0 0.0
    %5334 = vmatpush2.msra.mxu0 0.0
    %5335 = vmatprep.subr.mxu0 0.0
    %5336 = vmatpush2.msra.mxu0 0.0
    %5337 = vmatprep.subr.mxu0 0.0
    %5338 = vmatpush2.msra.mxu0 0.0
    %5339 = vmatprep.subr.mxu0 0.0
    %5340 = vmatpush2.msra.mxu0 0.0
    %5341 = vmatprep.subr.mxu0 0.0
    %5342 = vmatpush2.msra.mxu0 0.0
    %5343 = vmatprep.subr.mxu0 0.0
    %5344 = vmatpush2.msra.mxu0 0.0
    %5345 = vmatprep.subr.mxu0 0.0
    %5346 = vmatpush2.msra.mxu0 0.0
    %5347 = vmatprep.subr.mxu0 0.0
    %5348 = vmatpush2.msra.mxu0 0.0
    %5349 = vmatprep.subr.mxu0 0.0
    %5350 = vmatpush2.msra.mxu0 0.0
    %5351 = vmatprep.subr.mxu0 0.0
    %5352 = vmatpush2.msra.mxu0 0.0
    %5353 = vmatprep.subr.mxu0 0.0
    %5354 = vmatpush2.msra.mxu0 0.0
    %5355 = vmatprep.subr.mxu0 0.0
    %5356 = vmatpush2.msra.mxu0 0.0
    %5357 = vmatprep.subr.mxu0 0.0
    %5358 = vmatpush2.msra.mxu0 0.0
    %5359 = vmatprep.mubr.f32.mxu0 0.0
    %5360 = vmatmul.mubr.f32.gmra.mxu0 %v1042
    %v5361 = vpop.f32.mrf.mxu0
    %v5362 = vadd.f32 0.0, %v5361
    %v5363 = vpop.f32.mrf.mxu0
    %5364 = vdwg.mxu0
    %5365 = vmatprep.subr.mxu0 0.0
    %5366 = vmatpush1.msra.mxu0 %v1728
    %5367 = vmatprep.subr.mxu0 0.0
    %5368 = vmatpush1.msra.mxu0 %v1727
    %5369 = vmatprep.subr.mxu0 0.0
    %5370 = vmatpush1.msra.mxu0 %v1726
    %5371 = vmatprep.subr.mxu0 0.0
    %5372 = vmatpush1.msra.mxu0 %v1725
    %5373 = vmatprep.subr.mxu0 0.0
    %5374 = vmatpush1.msra.mxu0 %v1724
    %5375 = vmatprep.subr.mxu0 0.0
    %5376 = vmatpush1.msra.mxu0 %v1723
    %5377 = vmatprep.subr.mxu0 0.0
    %5378 = vmatpush1.msra.mxu0 %v1722
    %5379 = vmatprep.subr.mxu0 0.0
    %5380 = vmatpush1.msra.mxu0 %v1721
    %5381 = vmatprep.subr.mxu0 0.0
    %5382 = vmatpush1.msra.mxu0 %v1720
    %5383 = vmatprep.subr.mxu0 0.0
    %5384 = vmatpush1.msra.mxu0 %v1719
    %5385 = vmatprep.subr.mxu0 0.0
    %5386 = vmatpush1.msra.mxu0 %v1718
    %5387 = vmatprep.subr.mxu0 0.0
    %5388 = vmatpush1.msra.mxu0 %v1717
    %5389 = vmatprep.subr.mxu0 0.0
    %5390 = vmatpush1.msra.mxu0 %v1716
    %5391 = vmatprep.subr.mxu0 0.0
    %5392 = vmatpush1.msra.mxu0 %v1715
    %5393 = vmatprep.subr.mxu0 0.0
    %5394 = vmatpush1.msra.mxu0 %v1714
    %5395 = vmatprep.subr.mxu0 0.0
    %5396 = vmatpush1.msra.mxu0 %v1713
    %5397 = vmatprep.subr.mxu0 0.0
    %5398 = vmatpush2.msra.mxu0 0.0
    %5399 = vmatprep.subr.mxu0 0.0
    %5400 = vmatpush2.msra.mxu0 0.0
    %5401 = vmatprep.subr.mxu0 0.0
    %5402 = vmatpush2.msra.mxu0 0.0
    %5403 = vmatprep.subr.mxu0 0.0
    %5404 = vmatpush2.msra.mxu0 0.0
    %5405 = vmatprep.subr.mxu0 0.0
    %5406 = vmatpush2.msra.mxu0 0.0
    %5407 = vmatprep.subr.mxu0 0.0
    %5408 = vmatpush2.msra.mxu0 0.0
    %5409 = vmatprep.subr.mxu0 0.0
    %5410 = vmatpush2.msra.mxu0 0.0
    %5411 = vmatprep.subr.mxu0 0.0
    %5412 = vmatpush2.msra.mxu0 0.0
    %5413 = vmatprep.subr.mxu0 0.0
    %5414 = vmatpush2.msra.mxu0 0.0
    %5415 = vmatprep.subr.mxu0 0.0
    %5416 = vmatpush2.msra.mxu0 0.0
    %5417 = vmatprep.subr.mxu0 0.0
    %5418 = vmatpush2.msra.mxu0 0.0
    %5419 = vmatprep.subr.mxu0 0.0
    %5420 = vmatpush2.msra.mxu0 0.0
    %5421 = vmatprep.subr.mxu0 0.0
    %5422 = vmatpush2.msra.mxu0 0.0
    %5423 = vmatprep.subr.mxu0 0.0
    %5424 = vmatpush2.msra.mxu0 0.0
    %5425 = vmatprep.subr.mxu0 0.0
    %5426 = vmatpush2.msra.mxu0 0.0
    %5427 = vmatprep.subr.mxu0 0.0
    %5428 = vmatpush2.msra.mxu0 0.0
    %5429 = vmatprep.mubr.f32.mxu0 0.0
    %5430 = vmatmul.mubr.f32.gmra.mxu0 %v1043
    %v5431 = vpop.f32.mrf.mxu0
    %v5432 = vadd.f32 0.0, %v5431
    %v5433 = vpop.f32.mrf.mxu0
    %5434 = vdwg.mxu0
    %5435 = vmatprep.subr.mxu0 0.0
    %5436 = vmatpush1.msra.mxu0 %v1744
    %5437 = vmatprep.subr.mxu0 0.0
    %5438 = vmatpush1.msra.mxu0 %v1743
    %5439 = vmatprep.subr.mxu0 0.0
    %5440 = vmatpush1.msra.mxu0 %v1742
    %5441 = vmatprep.subr.mxu0 0.0
    %5442 = vmatpush1.msra.mxu0 %v1741
    %5443 = vmatprep.subr.mxu0 0.0
    %5444 = vmatpush1.msra.mxu0 %v1740
    %5445 = vmatprep.subr.mxu0 0.0
    %5446 = vmatpush1.msra.mxu0 %v1739
    %5447 = vmatprep.subr.mxu0 0.0
    %5448 = vmatpush1.msra.mxu0 %v1738
    %5449 = vmatprep.subr.mxu0 0.0
    %5450 = vmatpush1.msra.mxu0 %v1737
    %5451 = vmatprep.subr.mxu0 0.0
    %5452 = vmatpush1.msra.mxu0 %v1736
    %5453 = vmatprep.subr.mxu0 0.0
    %5454 = vmatpush1.msra.mxu0 %v1735
    %5455 = vmatprep.subr.mxu0 0.0
    %5456 = vmatpush1.msra.mxu0 %v1734
    %5457 = vmatprep.subr.mxu0 0.0
    %5458 = vmatpush1.msra.mxu0 %v1733
    %5459 = vmatprep.subr.mxu0 0.0
    %5460 = vmatpush1.msra.mxu0 %v1732
    %5461 = vmatprep.subr.mxu0 0.0
    %5462 = vmatpush1.msra.mxu0 %v1731
    %5463 = vmatprep.subr.mxu0 0.0
    %5464 = vmatpush1.msra.mxu0 %v1730
    %5465 = vmatprep.subr.mxu0 0.0
    %5466 = vmatpush1.msra.mxu0 %v1729
    %5467 = vmatprep.subr.mxu0 0.0
    %5468 = vmatpush2.msra.mxu0 0.0
    %5469 = vmatprep.subr.mxu0 0.0
    %5470 = vmatpush2.msra.mxu0 0.0
    %5471 = vmatprep.subr.mxu0 0.0
    %5472 = vmatpush2.msra.mxu0 0.0
    %5473 = vmatprep.subr.mxu0 0.0
    %5474 = vmatpush2.msra.mxu0 0.0
    %5475 = vmatprep.subr.mxu0 0.0
    %5476 = vmatpush2.msra.mxu0 0.0
    %5477 = vmatprep.subr.mxu0 0.0
    %5478 = vmatpush2.msra.mxu0 0.0
    %5479 = vmatprep.subr.mxu0 0.0
    %5480 = vmatpush2.msra.mxu0 0.0
    %5481 = vmatprep.subr.mxu0 0.0
    %5482 = vmatpush2.msra.mxu0 0.0
    %5483 = vmatprep.subr.mxu0 0.0
    %5484 = vmatpush2.msra.mxu0 0.0
    %5485 = vmatprep.subr.mxu0 0.0
    %5486 = vmatpush2.msra.mxu0 0.0
    %5487 = vmatprep.subr.mxu0 0.0
    %5488 = vmatpush2.msra.mxu0 0.0
    %5489 = vmatprep.subr.mxu0 0.0
    %5490 = vmatpush2.msra.mxu0 0.0
    %5491 = vmatprep.subr.mxu0 0.0
    %5492 = vmatpush2.msra.mxu0 0.0
    %5493 = vmatprep.subr.mxu0 0.0
    %5494 = vmatpush2.msra.mxu0 0.0
    %5495 = vmatprep.subr.mxu0 0.0
    %5496 = vmatpush2.msra.mxu0 0.0
    %5497 = vmatprep.subr.mxu0 0.0
    %5498 = vmatpush2.msra.mxu0 0.0
    %5499 = vmatprep.mubr.f32.mxu0 0.0
    %5500 = vmatmul.mubr.f32.gmra.mxu0 %v1044
    %v5501 = vpop.f32.mrf.mxu0
    %v5502 = vadd.f32 0.0, %v5501
    %v5503 = vpop.f32.mrf.mxu0
    %5504 = vdwg.mxu0
    %5505 = vmatprep.subr.mxu0 0.0
    %5506 = vmatpush1.msra.mxu0 %v1760
    %5507 = vmatprep.subr.mxu0 0.0
    %5508 = vmatpush1.msra.mxu0 %v1759
    %5509 = vmatprep.subr.mxu0 0.0
    %5510 = vmatpush1.msra.mxu0 %v1758
    %5511 = vmatprep.subr.mxu0 0.0
    %5512 = vmatpush1.msra.mxu0 %v1757
    %5513 = vmatprep.subr.mxu0 0.0
    %5514 = vmatpush1.msra.mxu0 %v1756
    %5515 = vmatprep.subr.mxu0 0.0
    %5516 = vmatpush1.msra.mxu0 %v1755
    %5517 = vmatprep.subr.mxu0 0.0
    %5518 = vmatpush1.msra.mxu0 %v1754
    %5519 = vmatprep.subr.mxu0 0.0
    %5520 = vmatpush1.msra.mxu0 %v1753
    %5521 = vmatprep.subr.mxu0 0.0
    %5522 = vmatpush1.msra.mxu0 %v1752
    %5523 = vmatprep.subr.mxu0 0.0
    %5524 = vmatpush1.msra.mxu0 %v1751
    %5525 = vmatprep.subr.mxu0 0.0
    %5526 = vmatpush1.msra.mxu0 %v1750
    %5527 = vmatprep.subr.mxu0 0.0
    %5528 = vmatpush1.msra.mxu0 %v1749
    %5529 = vmatprep.subr.mxu0 0.0
    %5530 = vmatpush1.msra.mxu0 %v1748
    %5531 = vmatprep.subr.mxu0 0.0
    %5532 = vmatpush1.msra.mxu0 %v1747
    %5533 = vmatprep.subr.mxu0 0.0
    %5534 = vmatpush1.msra.mxu0 %v1746
    %5535 = vmatprep.subr.mxu0 0.0
    %5536 = vmatpush1.msra.mxu0 %v1745
    %5537 = vmatprep.subr.mxu0 0.0
    %5538 = vmatpush2.msra.mxu0 0.0
    %5539 = vmatprep.subr.mxu0 0.0
    %5540 = vmatpush2.msra.mxu0 0.0
    %5541 = vmatprep.subr.mxu0 0.0
    %5542 = vmatpush2.msra.mxu0 0.0
    %5543 = vmatprep.subr.mxu0 0.0
    %5544 = vmatpush2.msra.mxu0 0.0
    %5545 = vmatprep.subr.mxu0 0.0
    %5546 = vmatpush2.msra.mxu0 0.0
    %5547 = vmatprep.subr.mxu0 0.0
    %5548 = vmatpush2.msra.mxu0 0.0
    %5549 = vmatprep.subr.mxu0 0.0
    %5550 = vmatpush2.msra.mxu0 0.0
    %5551 = vmatprep.subr.mxu0 0.0
    %5552 = vmatpush2.msra.mxu0 0.0
    %5553 = vmatprep.subr.mxu0 0.0
    %5554 = vmatpush2.msra.mxu0 0.0
    %5555 = vmatprep.subr.mxu0 0.0
    %5556 = vmatpush2.msra.mxu0 0.0
    %5557 = vmatprep.subr.mxu0 0.0
    %5558 = vmatpush2.msra.mxu0 0.0
    %5559 = vmatprep.subr.mxu0 0.0
    %5560 = vmatpush2.msra.mxu0 0.0
    %5561 = vmatprep.subr.mxu0 0.0
    %5562 = vmatpush2.msra.mxu0 0.0
    %5563 = vmatprep.subr.mxu0 0.0
    %5564 = vmatpush2.msra.mxu0 0.0
    %5565 = vmatprep.subr.mxu0 0.0
    %5566 = vmatpush2.msra.mxu0 0.0
    %5567 = vmatprep.subr.mxu0 0.0
    %5568 = vmatpush2.msra.mxu0 0.0
    %5569 = vmatprep.mubr.f32.mxu0 0.0
    %5570 = vmatmul.mubr.f32.gmra.mxu0 %v1045
    %v5571 = vpop.f32.mrf.mxu0
    %v5572 = vadd.f32 0.0, %v5571
    %v5573 = vpop.f32.mrf.mxu0
    %5574 = vdwg.mxu0
    %5575 = vmatprep.subr.mxu0 0.0
    %5576 = vmatpush1.msra.mxu0 %v1776
    %5577 = vmatprep.subr.mxu0 0.0
    %5578 = vmatpush1.msra.mxu0 %v1775
    %5579 = vmatprep.subr.mxu0 0.0
    %5580 = vmatpush1.msra.mxu0 %v1774
    %5581 = vmatprep.subr.mxu0 0.0
    %5582 = vmatpush1.msra.mxu0 %v1773
    %5583 = vmatprep.subr.mxu0 0.0
    %5584 = vmatpush1.msra.mxu0 %v1772
    %5585 = vmatprep.subr.mxu0 0.0
    %5586 = vmatpush1.msra.mxu0 %v1771
    %5587 = vmatprep.subr.mxu0 0.0
    %5588 = vmatpush1.msra.mxu0 %v1770
    %5589 = vmatprep.subr.mxu0 0.0
    %5590 = vmatpush1.msra.mxu0 %v1769
    %5591 = vmatprep.subr.mxu0 0.0
    %5592 = vmatpush1.msra.mxu0 %v1768
    %5593 = vmatprep.subr.mxu0 0.0
    %5594 = vmatpush1.msra.mxu0 %v1767
    %5595 = vmatprep.subr.mxu0 0.0
    %5596 = vmatpush1.msra.mxu0 %v1766
    %5597 = vmatprep.subr.mxu0 0.0
    %5598 = vmatpush1.msra.mxu0 %v1765
    %5599 = vmatprep.subr.mxu0 0.0
    %5600 = vmatpush1.msra.mxu0 %v1764
    %5601 = vmatprep.subr.mxu0 0.0
    %5602 = vmatpush1.msra.mxu0 %v1763
    %5603 = vmatprep.subr.mxu0 0.0
    %5604 = vmatpush1.msra.mxu0 %v1762
    %5605 = vmatprep.subr.mxu0 0.0
    %5606 = vmatpush1.msra.mxu0 %v1761
    %5607 = vmatprep.subr.mxu0 0.0
    %5608 = vmatpush2.msra.mxu0 0.0
    %5609 = vmatprep.subr.mxu0 0.0
    %5610 = vmatpush2.msra.mxu0 0.0
    %5611 = vmatprep.subr.mxu0 0.0
    %5612 = vmatpush2.msra.mxu0 0.0
    %5613 = vmatprep.subr.mxu0 0.0
    %5614 = vmatpush2.msra.mxu0 0.0
    %5615 = vmatprep.subr.mxu0 0.0
    %5616 = vmatpush2.msra.mxu0 0.0
    %5617 = vmatprep.subr.mxu0 0.0
    %5618 = vmatpush2.msra.mxu0 0.0
    %5619 = vmatprep.subr.mxu0 0.0
    %5620 = vmatpush2.msra.mxu0 0.0
    %5621 = vmatprep.subr.mxu0 0.0
    %5622 = vmatpush2.msra.mxu0 0.0
    %5623 = vmatprep.subr.mxu0 0.0
    %5624 = vmatpush2.msra.mxu0 0.0
    %5625 = vmatprep.subr.mxu0 0.0
    %5626 = vmatpush2.msra.mxu0 0.0
    %5627 = vmatprep.subr.mxu0 0.0
    %5628 = vmatpush2.msra.mxu0 0.0
    %5629 = vmatprep.subr.mxu0 0.0
    %5630 = vmatpush2.msra.mxu0 0.0
    %5631 = vmatprep.subr.mxu0 0.0
    %5632 = vmatpush2.msra.mxu0 0.0
    %5633 = vmatprep.subr.mxu0 0.0
    %5634 = vmatpush2.msra.mxu0 0.0
    %5635 = vmatprep.subr.mxu0 0.0
    %5636 = vmatpush2.msra.mxu0 0.0
    %5637 = vmatprep.subr.mxu0 0.0
    %5638 = vmatpush2.msra.mxu0 0.0
    %5639 = vmatprep.mubr.f32.mxu0 0.0
    %5640 = vmatmul.mubr.f32.gmra.mxu0 %v1046
    %v5641 = vpop.f32.mrf.mxu0
    %v5642 = vadd.f32 0.0, %v5641
    %v5643 = vpop.f32.mrf.mxu0
    %5644 = vdwg.mxu0
    %5645 = vmatprep.subr.mxu0 0.0
    %5646 = vmatpush1.msra.mxu0 %v1792
    %5647 = vmatprep.subr.mxu0 0.0
    %5648 = vmatpush1.msra.mxu0 %v1791
    %5649 = vmatprep.subr.mxu0 0.0
    %5650 = vmatpush1.msra.mxu0 %v1790
    %5651 = vmatprep.subr.mxu0 0.0
    %5652 = vmatpush1.msra.mxu0 %v1789
    %5653 = vmatprep.subr.mxu0 0.0
    %5654 = vmatpush1.msra.mxu0 %v1788
    %5655 = vmatprep.subr.mxu0 0.0
    %5656 = vmatpush1.msra.mxu0 %v1787
    %5657 = vmatprep.subr.mxu0 0.0
    %5658 = vmatpush1.msra.mxu0 %v1786
    %5659 = vmatprep.subr.mxu0 0.0
    %5660 = vmatpush1.msra.mxu0 %v1785
    %5661 = vmatprep.subr.mxu0 0.0
    %5662 = vmatpush1.msra.mxu0 %v1784
    %5663 = vmatprep.subr.mxu0 0.0
    %5664 = vmatpush1.msra.mxu0 %v1783
    %5665 = vmatprep.subr.mxu0 0.0
    %5666 = vmatpush1.msra.mxu0 %v1782
    %5667 = vmatprep.subr.mxu0 0.0
    %5668 = vmatpush1.msra.mxu0 %v1781
    %5669 = vmatprep.subr.mxu0 0.0
    %5670 = vmatpush1.msra.mxu0 %v1780
    %5671 = vmatprep.subr.mxu0 0.0
    %5672 = vmatpush1.msra.mxu0 %v1779
    %5673 = vmatprep.subr.mxu0 0.0
    %5674 = vmatpush1.msra.mxu0 %v1778
    %5675 = vmatprep.subr.mxu0 0.0
    %5676 = vmatpush1.msra.mxu0 %v1777
    %5677 = vmatprep.subr.mxu0 0.0
    %5678 = vmatpush2.msra.mxu0 0.0
    %5679 = vmatprep.subr.mxu0 0.0
    %5680 = vmatpush2.msra.mxu0 0.0
    %5681 = vmatprep.subr.mxu0 0.0
    %5682 = vmatpush2.msra.mxu0 0.0
    %5683 = vmatprep.subr.mxu0 0.0
    %5684 = vmatpush2.msra.mxu0 0.0
    %5685 = vmatprep.subr.mxu0 0.0
    %5686 = vmatpush2.msra.mxu0 0.0
    %5687 = vmatprep.subr.mxu0 0.0
    %5688 = vmatpush2.msra.mxu0 0.0
    %5689 = vmatprep.subr.mxu0 0.0
    %5690 = vmatpush2.msra.mxu0 0.0
    %5691 = vmatprep.subr.mxu0 0.0
    %5692 = vmatpush2.msra.mxu0 0.0
    %5693 = vmatprep.subr.mxu0 0.0
    %5694 = vmatpush2.msra.mxu0 0.0
    %5695 = vmatprep.subr.mxu0 0.0
    %5696 = vmatpush2.msra.mxu0 0.0
    %5697 = vmatprep.subr.mxu0 0.0
    %5698 = vmatpush2.msra.mxu0 0.0
    %5699 = vmatprep.subr.mxu0 0.0
    %5700 = vmatpush2.msra.mxu0 0.0
    %5701 = vmatprep.subr.mxu0 0.0
    %5702 = vmatpush2.msra.mxu0 0.0
    %5703 = vmatprep.subr.mxu0 0.0
    %5704 = vmatpush2.msra.mxu0 0.0
    %5705 = vmatprep.subr.mxu0 0.0
    %5706 = vmatpush2.msra.mxu0 0.0
    %5707 = vmatprep.subr.mxu0 0.0
    %5708 = vmatpush2.msra.mxu0 0.0
    %5709 = vmatprep.mubr.f32.mxu0 0.0
    %5710 = vmatmul.mubr.f32.gmra.mxu0 %v1047
    %v5711 = vpop.f32.mrf.mxu0
    %v5712 = vadd.f32 0.0, %v5711
    %v5713 = vpop.f32.mrf.mxu0
    %5714 = vdwg.mxu0
    %5715 = vmatprep.subr.mxu0 0.0
    %5716 = vmatpush1.msra.mxu0 %v1808
    %5717 = vmatprep.subr.mxu0 0.0
    %5718 = vmatpush1.msra.mxu0 %v1807
    %5719 = vmatprep.subr.mxu0 0.0
    %5720 = vmatpush1.msra.mxu0 %v1806
    %5721 = vmatprep.subr.mxu0 0.0
    %5722 = vmatpush1.msra.mxu0 %v1805
    %5723 = vmatprep.subr.mxu0 0.0
    %5724 = vmatpush1.msra.mxu0 %v1804
    %5725 = vmatprep.subr.mxu0 0.0
    %5726 = vmatpush1.msra.mxu0 %v1803
    %5727 = vmatprep.subr.mxu0 0.0
    %5728 = vmatpush1.msra.mxu0 %v1802
    %5729 = vmatprep.subr.mxu0 0.0
    %5730 = vmatpush1.msra.mxu0 %v1801
    %5731 = vmatprep.subr.mxu0 0.0
    %5732 = vmatpush1.msra.mxu0 %v1800
    %5733 = vmatprep.subr.mxu0 0.0
    %5734 = vmatpush1.msra.mxu0 %v1799
    %5735 = vmatprep.subr.mxu0 0.0
    %5736 = vmatpush1.msra.mxu0 %v1798
    %5737 = vmatprep.subr.mxu0 0.0
    %5738 = vmatpush1.msra.mxu0 %v1797
    %5739 = vmatprep.subr.mxu0 0.0
    %5740 = vmatpush1.msra.mxu0 %v1796
    %5741 = vmatprep.subr.mxu0 0.0
    %5742 = vmatpush1.msra.mxu0 %v1795
    %5743 = vmatprep.subr.mxu0 0.0
    %5744 = vmatpush1.msra.mxu0 %v1794
    %5745 = vmatprep.subr.mxu0 0.0
    %5746 = vmatpush1.msra.mxu0 %v1793
    %5747 = vmatprep.subr.mxu0 0.0
    %5748 = vmatpush2.msra.mxu0 0.0
    %5749 = vmatprep.subr.mxu0 0.0
    %5750 = vmatpush2.msra.mxu0 0.0
    %5751 = vmatprep.subr.mxu0 0.0
    %5752 = vmatpush2.msra.mxu0 0.0
    %5753 = vmatprep.subr.mxu0 0.0
    %5754 = vmatpush2.msra.mxu0 0.0
    %5755 = vmatprep.subr.mxu0 0.0
    %5756 = vmatpush2.msra.mxu0 0.0
    %5757 = vmatprep.subr.mxu0 0.0
    %5758 = vmatpush2.msra.mxu0 0.0
    %5759 = vmatprep.subr.mxu0 0.0
    %5760 = vmatpush2.msra.mxu0 0.0
    %5761 = vmatprep.subr.mxu0 0.0
    %5762 = vmatpush2.msra.mxu0 0.0
    %5763 = vmatprep.subr.mxu0 0.0
    %5764 = vmatpush2.msra.mxu0 0.0
    %5765 = vmatprep.subr.mxu0 0.0
    %5766 = vmatpush2.msra.mxu0 0.0
    %5767 = vmatprep.subr.mxu0 0.0
    %5768 = vmatpush2.msra.mxu0 0.0
    %5769 = vmatprep.subr.mxu0 0.0
    %5770 = vmatpush2.msra.mxu0 0.0
    %5771 = vmatprep.subr.mxu0 0.0
    %5772 = vmatpush2.msra.mxu0 0.0
    %5773 = vmatprep.subr.mxu0 0.0
    %5774 = vmatpush2.msra.mxu0 0.0
    %5775 = vmatprep.subr.mxu0 0.0
    %5776 = vmatpush2.msra.mxu0 0.0
    %5777 = vmatprep.subr.mxu0 0.0
    %5778 = vmatpush2.msra.mxu0 0.0
    %5779 = vmatprep.mubr.f32.mxu0 0.0
    %5780 = vmatmul.mubr.f32.gmra.mxu0 %v1048
    %v5781 = vpop.f32.mrf.mxu0
    %v5782 = vadd.f32 0.0, %v5781
    %v5783 = vpop.f32.mrf.mxu0
    %5784 = vdwg.mxu0
    %5785 = vmatprep.subr.mxu0 0.0
    %5786 = vmatpush1.msra.mxu0 %v1824
    %5787 = vmatprep.subr.mxu0 0.0
    %5788 = vmatpush1.msra.mxu0 %v1823
    %5789 = vmatprep.subr.mxu0 0.0
    %5790 = vmatpush1.msra.mxu0 %v1822
    %5791 = vmatprep.subr.mxu0 0.0
    %5792 = vmatpush1.msra.mxu0 %v1821
    %5793 = vmatprep.subr.mxu0 0.0
    %5794 = vmatpush1.msra.mxu0 %v1820
    %5795 = vmatprep.subr.mxu0 0.0
    %5796 = vmatpush1.msra.mxu0 %v1819
    %5797 = vmatprep.subr.mxu0 0.0
    %5798 = vmatpush1.msra.mxu0 %v1818
    %5799 = vmatprep.subr.mxu0 0.0
    %5800 = vmatpush1.msra.mxu0 %v1817
    %5801 = vmatprep.subr.mxu0 0.0
    %5802 = vmatpush1.msra.mxu0 %v1816
    %5803 = vmatprep.subr.mxu0 0.0
    %5804 = vmatpush1.msra.mxu0 %v1815
    %5805 = vmatprep.subr.mxu0 0.0
    %5806 = vmatpush1.msra.mxu0 %v1814
    %5807 = vmatprep.subr.mxu0 0.0
    %5808 = vmatpush1.msra.mxu0 %v1813
    %5809 = vmatprep.subr.mxu0 0.0
    %5810 = vmatpush1.msra.mxu0 %v1812
    %5811 = vmatprep.subr.mxu0 0.0
    %5812 = vmatpush1.msra.mxu0 %v1811
    %5813 = vmatprep.subr.mxu0 0.0
    %5814 = vmatpush1.msra.mxu0 %v1810
    %5815 = vmatprep.subr.mxu0 0.0
    %5816 = vmatpush1.msra.mxu0 %v1809
    %5817 = vmatprep.subr.mxu0 0.0
    %5818 = vmatpush2.msra.mxu0 0.0
    %5819 = vmatprep.subr.mxu0 0.0
    %5820 = vmatpush2.msra.mxu0 0.0
    %5821 = vmatprep.subr.mxu0 0.0
    %5822 = vmatpush2.msra.mxu0 0.0
    %5823 = vmatprep.subr.mxu0 0.0
    %5824 = vmatpush2.msra.mxu0 0.0
    %5825 = vmatprep.subr.mxu0 0.0
    %5826 = vmatpush2.msra.mxu0 0.0
    %5827 = vmatprep.subr.mxu0 0.0
    %5828 = vmatpush2.msra.mxu0 0.0
    %5829 = vmatprep.subr.mxu0 0.0
    %5830 = vmatpush2.msra.mxu0 0.0
    %5831 = vmatprep.subr.mxu0 0.0
    %5832 = vmatpush2.msra.mxu0 0.0
    %5833 = vmatprep.subr.mxu0 0.0
    %5834 = vmatpush2.msra.mxu0 0.0
    %5835 = vmatprep.subr.mxu0 0.0
    %5836 = vmatpush2.msra.mxu0 0.0
    %5837 = vmatprep.subr.mxu0 0.0
    %5838 = vmatpush2.msra.mxu0 0.0
    %5839 = vmatprep.subr.mxu0 0.0
    %5840 = vmatpush2.msra.mxu0 0.0
    %5841 = vmatprep.subr.mxu0 0.0
    %5842 = vmatpush2.msra.mxu0 0.0
    %5843 = vmatprep.subr.mxu0 0.0
    %5844 = vmatpush2.msra.mxu0 0.0
    %5845 = vmatprep.subr.mxu0 0.0
    %5846 = vmatpush2.msra.mxu0 0.0
    %5847 = vmatprep.subr.mxu0 0.0
    %5848 = vmatpush2.msra.mxu0 0.0
    %5849 = vmatprep.mubr.f32.mxu0 0.0
    %5850 = vmatmul.mubr.f32.gmra.mxu0 %v1049
    %v5851 = vpop.f32.mrf.mxu0
    %v5852 = vadd.f32 0.0, %v5851
    %v5853 = vpop.f32.mrf.mxu0
    %5854 = vdwg.mxu0
    %5855 = vmatprep.subr.mxu0 0.0
    %5856 = vmatpush1.msra.mxu0 %v1840
    %5857 = vmatprep.subr.mxu0 0.0
    %5858 = vmatpush1.msra.mxu0 %v1839
    %5859 = vmatprep.subr.mxu0 0.0
    %5860 = vmatpush1.msra.mxu0 %v1838
    %5861 = vmatprep.subr.mxu0 0.0
    %5862 = vmatpush1.msra.mxu0 %v1837
    %5863 = vmatprep.subr.mxu0 0.0
    %5864 = vmatpush1.msra.mxu0 %v1836
    %5865 = vmatprep.subr.mxu0 0.0
    %5866 = vmatpush1.msra.mxu0 %v1835
    %5867 = vmatprep.subr.mxu0 0.0
    %5868 = vmatpush1.msra.mxu0 %v1834
    %5869 = vmatprep.subr.mxu0 0.0
    %5870 = vmatpush1.msra.mxu0 %v1833
    %5871 = vmatprep.subr.mxu0 0.0
    %5872 = vmatpush1.msra.mxu0 %v1832
    %5873 = vmatprep.subr.mxu0 0.0
    %5874 = vmatpush1.msra.mxu0 %v1831
    %5875 = vmatprep.subr.mxu0 0.0
    %5876 = vmatpush1.msra.mxu0 %v1830
    %5877 = vmatprep.subr.mxu0 0.0
    %5878 = vmatpush1.msra.mxu0 %v1829
    %5879 = vmatprep.subr.mxu0 0.0
    %5880 = vmatpush1.msra.mxu0 %v1828
    %5881 = vmatprep.subr.mxu0 0.0
    %5882 = vmatpush1.msra.mxu0 %v1827
    %5883 = vmatprep.subr.mxu0 0.0
    %5884 = vmatpush1.msra.mxu0 %v1826
    %5885 = vmatprep.subr.mxu0 0.0
    %5886 = vmatpush1.msra.mxu0 %v1825
    %5887 = vmatprep.subr.mxu0 0.0
    %5888 = vmatpush2.msra.mxu0 0.0
    %5889 = vmatprep.subr.mxu0 0.0
    %5890 = vmatpush2.msra.mxu0 0.0
    %5891 = vmatprep.subr.mxu0 0.0
    %5892 = vmatpush2.msra.mxu0 0.0
    %5893 = vmatprep.subr.mxu0 0.0
    %5894 = vmatpush2.msra.mxu0 0.0
    %5895 = vmatprep.subr.mxu0 0.0
    %5896 = vmatpush2.msra.mxu0 0.0
    %5897 = vmatprep.subr.mxu0 0.0
    %5898 = vmatpush2.msra.mxu0 0.0
    %5899 = vmatprep.subr.mxu0 0.0
    %5900 = vmatpush2.msra.mxu0 0.0
    %5901 = vmatprep.subr.mxu0 0.0
    %5902 = vmatpush2.msra.mxu0 0.0
    %5903 = vmatprep.subr.mxu0 0.0
    %5904 = vmatpush2.msra.mxu0 0.0
    %5905 = vmatprep.subr.mxu0 0.0
    %5906 = vmatpush2.msra.mxu0 0.0
    %5907 = vmatprep.subr.mxu0 0.0
    %5908 = vmatpush2.msra.mxu0 0.0
    %5909 = vmatprep.subr.mxu0 0.0
    %5910 = vmatpush2.msra.mxu0 0.0
    %5911 = vmatprep.subr.mxu0 0.0
    %5912 = vmatpush2.msra.mxu0 0.0
    %5913 = vmatprep.subr.mxu0 0.0
    %5914 = vmatpush2.msra.mxu0 0.0
    %5915 = vmatprep.subr.mxu0 0.0
    %5916 = vmatpush2.msra.mxu0 0.0
    %5917 = vmatprep.subr.mxu0 0.0
    %5918 = vmatpush2.msra.mxu0 0.0
    %5919 = vmatprep.mubr.f32.mxu0 0.0
    %5920 = vmatmul.mubr.f32.gmra.mxu0 %v1050
    %v5921 = vpop.f32.mrf.mxu0
    %v5922 = vadd.f32 0.0, %v5921
    %v5923 = vpop.f32.mrf.mxu0
    %5924 = vdwg.mxu0
    %5925 = vmatprep.subr.mxu0 0.0
    %5926 = vmatpush1.msra.mxu0 %v1856
    %5927 = vmatprep.subr.mxu0 0.0
    %5928 = vmatpush1.msra.mxu0 %v1855
    %5929 = vmatprep.subr.mxu0 0.0
    %5930 = vmatpush1.msra.mxu0 %v1854
    %5931 = vmatprep.subr.mxu0 0.0
    %5932 = vmatpush1.msra.mxu0 %v1853
    %5933 = vmatprep.subr.mxu0 0.0
    %5934 = vmatpush1.msra.mxu0 %v1852
    %5935 = vmatprep.subr.mxu0 0.0
    %5936 = vmatpush1.msra.mxu0 %v1851
    %5937 = vmatprep.subr.mxu0 0.0
    %5938 = vmatpush1.msra.mxu0 %v1850
    %5939 = vmatprep.subr.mxu0 0.0
    %5940 = vmatpush1.msra.mxu0 %v1849
    %5941 = vmatprep.subr.mxu0 0.0
    %5942 = vmatpush1.msra.mxu0 %v1848
    %5943 = vmatprep.subr.mxu0 0.0
    %5944 = vmatpush1.msra.mxu0 %v1847
    %5945 = vmatprep.subr.mxu0 0.0
    %5946 = vmatpush1.msra.mxu0 %v1846
    %5947 = vmatprep.subr.mxu0 0.0
    %5948 = vmatpush1.msra.mxu0 %v1845
    %5949 = vmatprep.subr.mxu0 0.0
    %5950 = vmatpush1.msra.mxu0 %v1844
    %5951 = vmatprep.subr.mxu0 0.0
    %5952 = vmatpush1.msra.mxu0 %v1843
    %5953 = vmatprep.subr.mxu0 0.0
    %5954 = vmatpush1.msra.mxu0 %v1842
    %5955 = vmatprep.subr.mxu0 0.0
    %5956 = vmatpush1.msra.mxu0 %v1841
    %5957 = vmatprep.subr.mxu0 0.0
    %5958 = vmatpush2.msra.mxu0 0.0
    %5959 = vmatprep.subr.mxu0 0.0
    %5960 = vmatpush2.msra.mxu0 0.0
    %5961 = vmatprep.subr.mxu0 0.0
    %5962 = vmatpush2.msra.mxu0 0.0
    %5963 = vmatprep.subr.mxu0 0.0
    %5964 = vmatpush2.msra.mxu0 0.0
    %5965 = vmatprep.subr.mxu0 0.0
    %5966 = vmatpush2.msra.mxu0 0.0
    %5967 = vmatprep.subr.mxu0 0.0
    %5968 = vmatpush2.msra.mxu0 0.0
    %5969 = vmatprep.subr.mxu0 0.0
    %5970 = vmatpush2.msra.mxu0 0.0
    %5971 = vmatprep.subr.mxu0 0.0
    %5972 = vmatpush2.msra.mxu0 0.0
    %5973 = vmatprep.subr.mxu0 0.0
    %5974 = vmatpush2.msra.mxu0 0.0
    %5975 = vmatprep.subr.mxu0 0.0
    %5976 = vmatpush2.msra.mxu0 0.0
    %5977 = vmatprep.subr.mxu0 0.0
    %5978 = vmatpush2.msra.mxu0 0.0
    %5979 = vmatprep.subr.mxu0 0.0
    %5980 = vmatpush2.msra.mxu0 0.0
    %5981 = vmatprep.subr.mxu0 0.0
    %5982 = vmatpush2.msra.mxu0 0.0
    %5983 = vmatprep.subr.mxu0 0.0
    %5984 = vmatpush2.msra.mxu0 0.0
    %5985 = vmatprep.subr.mxu0 0.0
    %5986 = vmatpush2.msra.mxu0 0.0
    %5987 = vmatprep.subr.mxu0 0.0
    %5988 = vmatpush2.msra.mxu0 0.0
    %5989 = vmatprep.mubr.f32.mxu0 0.0
    %5990 = vmatmul.mubr.f32.gmra.mxu0 %v1051
    %v5991 = vpop.f32.mrf.mxu0
    %v5992 = vadd.f32 0.0, %v5991
    %v5993 = vpop.f32.mrf.mxu0
    %5994 = vdwg.mxu0
    %5995 = vmatprep.subr.mxu0 0.0
    %5996 = vmatpush1.msra.mxu0 %v1872
    %5997 = vmatprep.subr.mxu0 0.0
    %5998 = vmatpush1.msra.mxu0 %v1871
    %5999 = vmatprep.subr.mxu0 0.0
    %6000 = vmatpush1.msra.mxu0 %v1870
    %6001 = vmatprep.subr.mxu0 0.0
    %6002 = vmatpush1.msra.mxu0 %v1869
    %6003 = vmatprep.subr.mxu0 0.0
    %6004 = vmatpush1.msra.mxu0 %v1868
    %6005 = vmatprep.subr.mxu0 0.0
    %6006 = vmatpush1.msra.mxu0 %v1867
    %6007 = vmatprep.subr.mxu0 0.0
    %6008 = vmatpush1.msra.mxu0 %v1866
    %6009 = vmatprep.subr.mxu0 0.0
    %6010 = vmatpush1.msra.mxu0 %v1865
    %6011 = vmatprep.subr.mxu0 0.0
    %6012 = vmatpush1.msra.mxu0 %v1864
    %6013 = vmatprep.subr.mxu0 0.0
    %6014 = vmatpush1.msra.mxu0 %v1863
    %6015 = vmatprep.subr.mxu0 0.0
    %6016 = vmatpush1.msra.mxu0 %v1862
    %6017 = vmatprep.subr.mxu0 0.0
    %6018 = vmatpush1.msra.mxu0 %v1861
    %6019 = vmatprep.subr.mxu0 0.0
    %6020 = vmatpush1.msra.mxu0 %v1860
    %6021 = vmatprep.subr.mxu0 0.0
    %6022 = vmatpush1.msra.mxu0 %v1859
    %6023 = vmatprep.subr.mxu0 0.0
    %6024 = vmatpush1.msra.mxu0 %v1858
    %6025 = vmatprep.subr.mxu0 0.0
    %6026 = vmatpush1.msra.mxu0 %v1857
    %6027 = vmatprep.subr.mxu0 0.0
    %6028 = vmatpush2.msra.mxu0 0.0
    %6029 = vmatprep.subr.mxu0 0.0
    %6030 = vmatpush2.msra.mxu0 0.0
    %6031 = vmatprep.subr.mxu0 0.0
    %6032 = vmatpush2.msra.mxu0 0.0
    %6033 = vmatprep.subr.mxu0 0.0
    %6034 = vmatpush2.msra.mxu0 0.0
    %6035 = vmatprep.subr.mxu0 0.0
    %6036 = vmatpush2.msra.mxu0 0.0
    %6037 = vmatprep.subr.mxu0 0.0
    %6038 = vmatpush2.msra.mxu0 0.0
    %6039 = vmatprep.subr.mxu0 0.0
    %6040 = vmatpush2.msra.mxu0 0.0
    %6041 = vmatprep.subr.mxu0 0.0
    %6042 = vmatpush2.msra.mxu0 0.0
    %6043 = vmatprep.subr.mxu0 0.0
    %6044 = vmatpush2.msra.mxu0 0.0
    %6045 = vmatprep.subr.mxu0 0.0
    %6046 = vmatpush2.msra.mxu0 0.0
    %6047 = vmatprep.subr.mxu0 0.0
    %6048 = vmatpush2.msra.mxu0 0.0
    %6049 = vmatprep.subr.mxu0 0.0
    %6050 = vmatpush2.msra.mxu0 0.0
    %6051 = vmatprep.subr.mxu0 0.0
    %6052 = vmatpush2.msra.mxu0 0.0
    %6053 = vmatprep.subr.mxu0 0.0
    %6054 = vmatpush2.msra.mxu0 0.0
    %6055 = vmatprep.subr.mxu0 0.0
    %6056 = vmatpush2.msra.mxu0 0.0
    %6057 = vmatprep.subr.mxu0 0.0
    %6058 = vmatpush2.msra.mxu0 0.0
    %6059 = vmatprep.mubr.f32.mxu0 0.0
    %6060 = vmatmul.mubr.f32.gmra.mxu0 %v1052
    %v6061 = vpop.f32.mrf.mxu0
    %v6062 = vadd.f32 0.0, %v6061
    %v6063 = vpop.f32.mrf.mxu0
    %6064 = vdwg.mxu0
    %6065 = vmatprep.subr.mxu0 0.0
    %6066 = vmatpush1.msra.mxu0 %v1888
    %6067 = vmatprep.subr.mxu0 0.0
    %6068 = vmatpush1.msra.mxu0 %v1887
    %6069 = vmatprep.subr.mxu0 0.0
    %6070 = vmatpush1.msra.mxu0 %v1886
    %6071 = vmatprep.subr.mxu0 0.0
    %6072 = vmatpush1.msra.mxu0 %v1885
    %6073 = vmatprep.subr.mxu0 0.0
    %6074 = vmatpush1.msra.mxu0 %v1884
    %6075 = vmatprep.subr.mxu0 0.0
    %6076 = vmatpush1.msra.mxu0 %v1883
    %6077 = vmatprep.subr.mxu0 0.0
    %6078 = vmatpush1.msra.mxu0 %v1882
    %6079 = vmatprep.subr.mxu0 0.0
    %6080 = vmatpush1.msra.mxu0 %v1881
    %6081 = vmatprep.subr.mxu0 0.0
    %6082 = vmatpush1.msra.mxu0 %v1880
    %6083 = vmatprep.subr.mxu0 0.0
    %6084 = vmatpush1.msra.mxu0 %v1879
    %6085 = vmatprep.subr.mxu0 0.0
    %6086 = vmatpush1.msra.mxu0 %v1878
    %6087 = vmatprep.subr.mxu0 0.0
    %6088 = vmatpush1.msra.mxu0 %v1877
    %6089 = vmatprep.subr.mxu0 0.0
    %6090 = vmatpush1.msra.mxu0 %v1876
    %6091 = vmatprep.subr.mxu0 0.0
    %6092 = vmatpush1.msra.mxu0 %v1875
    %6093 = vmatprep.subr.mxu0 0.0
    %6094 = vmatpush1.msra.mxu0 %v1874
    %6095 = vmatprep.subr.mxu0 0.0
    %6096 = vmatpush1.msra.mxu0 %v1873
    %6097 = vmatprep.subr.mxu0 0.0
    %6098 = vmatpush2.msra.mxu0 0.0
    %6099 = vmatprep.subr.mxu0 0.0
    %6100 = vmatpush2.msra.mxu0 0.0
    %6101 = vmatprep.subr.mxu0 0.0
    %6102 = vmatpush2.msra.mxu0 0.0
    %6103 = vmatprep.subr.mxu0 0.0
    %6104 = vmatpush2.msra.mxu0 0.0
    %6105 = vmatprep.subr.mxu0 0.0
    %6106 = vmatpush2.msra.mxu0 0.0
    %6107 = vmatprep.subr.mxu0 0.0
    %6108 = vmatpush2.msra.mxu0 0.0
    %6109 = vmatprep.subr.mxu0 0.0
    %6110 = vmatpush2.msra.mxu0 0.0
    %6111 = vmatprep.subr.mxu0 0.0
    %6112 = vmatpush2.msra.mxu0 0.0
    %6113 = vmatprep.subr.mxu0 0.0
    %6114 = vmatpush2.msra.mxu0 0.0
    %6115 = vmatprep.subr.mxu0 0.0
    %6116 = vmatpush2.msra.mxu0 0.0
    %6117 = vmatprep.subr.mxu0 0.0
    %6118 = vmatpush2.msra.mxu0 0.0
    %6119 = vmatprep.subr.mxu0 0.0
    %6120 = vmatpush2.msra.mxu0 0.0
    %6121 = vmatprep.subr.mxu0 0.0
    %6122 = vmatpush2.msra.mxu0 0.0
    %6123 = vmatprep.subr.mxu0 0.0
    %6124 = vmatpush2.msra.mxu0 0.0
    %6125 = vmatprep.subr.mxu0 0.0
    %6126 = vmatpush2.msra.mxu0 0.0
    %6127 = vmatprep.subr.mxu0 0.0
    %6128 = vmatpush2.msra.mxu0 0.0
    %6129 = vmatprep.mubr.f32.mxu0 0.0
    %6130 = vmatmul.mubr.f32.gmra.mxu0 %v1053
    %v6131 = vpop.f32.mrf.mxu0
    %v6132 = vadd.f32 0.0, %v6131
    %v6133 = vpop.f32.mrf.mxu0
    %6134 = vdwg.mxu0
    %6135 = vmatprep.subr.mxu0 0.0
    %6136 = vmatpush1.msra.mxu0 %v1904
    %6137 = vmatprep.subr.mxu0 0.0
    %6138 = vmatpush1.msra.mxu0 %v1903
    %6139 = vmatprep.subr.mxu0 0.0
    %6140 = vmatpush1.msra.mxu0 %v1902
    %6141 = vmatprep.subr.mxu0 0.0
    %6142 = vmatpush1.msra.mxu0 %v1901
    %6143 = vmatprep.subr.mxu0 0.0
    %6144 = vmatpush1.msra.mxu0 %v1900
    %6145 = vmatprep.subr.mxu0 0.0
    %6146 = vmatpush1.msra.mxu0 %v1899
    %6147 = vmatprep.subr.mxu0 0.0
    %6148 = vmatpush1.msra.mxu0 %v1898
    %6149 = vmatprep.subr.mxu0 0.0
    %6150 = vmatpush1.msra.mxu0 %v1897
    %6151 = vmatprep.subr.mxu0 0.0
    %6152 = vmatpush1.msra.mxu0 %v1896
    %6153 = vmatprep.subr.mxu0 0.0
    %6154 = vmatpush1.msra.mxu0 %v1895
    %6155 = vmatprep.subr.mxu0 0.0
    %6156 = vmatpush1.msra.mxu0 %v1894
    %6157 = vmatprep.subr.mxu0 0.0
    %6158 = vmatpush1.msra.mxu0 %v1893
    %6159 = vmatprep.subr.mxu0 0.0
    %6160 = vmatpush1.msra.mxu0 %v1892
    %6161 = vmatprep.subr.mxu0 0.0
    %6162 = vmatpush1.msra.mxu0 %v1891
    %6163 = vmatprep.subr.mxu0 0.0
    %6164 = vmatpush1.msra.mxu0 %v1890
    %6165 = vmatprep.subr.mxu0 0.0
    %6166 = vmatpush1.msra.mxu0 %v1889
    %6167 = vmatprep.subr.mxu0 0.0
    %6168 = vmatpush2.msra.mxu0 0.0
    %6169 = vmatprep.subr.mxu0 0.0
    %6170 = vmatpush2.msra.mxu0 0.0
    %6171 = vmatprep.subr.mxu0 0.0
    %6172 = vmatpush2.msra.mxu0 0.0
    %6173 = vmatprep.subr.mxu0 0.0
    %6174 = vmatpush2.msra.mxu0 0.0
    %6175 = vmatprep.subr.mxu0 0.0
    %6176 = vmatpush2.msra.mxu0 0.0
    %6177 = vmatprep.subr.mxu0 0.0
    %6178 = vmatpush2.msra.mxu0 0.0
    %6179 = vmatprep.subr.mxu0 0.0
    %6180 = vmatpush2.msra.mxu0 0.0
    %6181 = vmatprep.subr.mxu0 0.0
    %6182 = vmatpush2.msra.mxu0 0.0
    %6183 = vmatprep.subr.mxu0 0.0
    %6184 = vmatpush2.msra.mxu0 0.0
    %6185 = vmatprep.subr.mxu0 0.0
    %6186 = vmatpush2.msra.mxu0 0.0
    %6187 = vmatprep.subr.mxu0 0.0
    %6188 = vmatpush2.msra.mxu0 0.0
    %6189 = vmatprep.subr.mxu0 0.0
    %6190 = vmatpush2.msra.mxu0 0.0
    %6191 = vmatprep.subr.mxu0 0.0
    %6192 = vmatpush2.msra.mxu0 0.0
    %6193 = vmatprep.subr.mxu0 0.0
    %6194 = vmatpush2.msra.mxu0 0.0
    %6195 = vmatprep.subr.mxu0 0.0
    %6196 = vmatpush2.msra.mxu0 0.0
    %6197 = vmatprep.subr.mxu0 0.0
    %6198 = vmatpush2.msra.mxu0 0.0
    %6199 = vmatprep.mubr.f32.mxu0 0.0
    %6200 = vmatmul.mubr.f32.gmra.mxu0 %v1054
    %v6201 = vpop.f32.mrf.mxu0
    %v6202 = vadd.f32 0.0, %v6201
    %v6203 = vpop.f32.mrf.mxu0
    %6204 = vdwg.mxu0
    %6205 = vmatprep.subr.mxu0 0.0
    %6206 = vmatpush1.msra.mxu0 %v1920
    %6207 = vmatprep.subr.mxu0 0.0
    %6208 = vmatpush1.msra.mxu0 %v1919
    %6209 = vmatprep.subr.mxu0 0.0
    %6210 = vmatpush1.msra.mxu0 %v1918
    %6211 = vmatprep.subr.mxu0 0.0
    %6212 = vmatpush1.msra.mxu0 %v1917
    %6213 = vmatprep.subr.mxu0 0.0
    %6214 = vmatpush1.msra.mxu0 %v1916
    %6215 = vmatprep.subr.mxu0 0.0
    %6216 = vmatpush1.msra.mxu0 %v1915
    %6217 = vmatprep.subr.mxu0 0.0
    %6218 = vmatpush1.msra.mxu0 %v1914
    %6219 = vmatprep.subr.mxu0 0.0
    %6220 = vmatpush1.msra.mxu0 %v1913
    %6221 = vmatprep.subr.mxu0 0.0
    %6222 = vmatpush1.msra.mxu0 %v1912
    %6223 = vmatprep.subr.mxu0 0.0
    %6224 = vmatpush1.msra.mxu0 %v1911
    %6225 = vmatprep.subr.mxu0 0.0
    %6226 = vmatpush1.msra.mxu0 %v1910
    %6227 = vmatprep.subr.mxu0 0.0
    %6228 = vmatpush1.msra.mxu0 %v1909
    %6229 = vmatprep.subr.mxu0 0.0
    %6230 = vmatpush1.msra.mxu0 %v1908
    %6231 = vmatprep.subr.mxu0 0.0
    %6232 = vmatpush1.msra.mxu0 %v1907
    %6233 = vmatprep.subr.mxu0 0.0
    %6234 = vmatpush1.msra.mxu0 %v1906
    %6235 = vmatprep.subr.mxu0 0.0
    %6236 = vmatpush1.msra.mxu0 %v1905
    %6237 = vmatprep.subr.mxu0 0.0
    %6238 = vmatpush2.msra.mxu0 0.0
    %6239 = vmatprep.subr.mxu0 0.0
    %6240 = vmatpush2.msra.mxu0 0.0
    %6241 = vmatprep.subr.mxu0 0.0
    %6242 = vmatpush2.msra.mxu0 0.0
    %6243 = vmatprep.subr.mxu0 0.0
    %6244 = vmatpush2.msra.mxu0 0.0
    %6245 = vmatprep.subr.mxu0 0.0
    %6246 = vmatpush2.msra.mxu0 0.0
    %6247 = vmatprep.subr.mxu0 0.0
    %6248 = vmatpush2.msra.mxu0 0.0
    %6249 = vmatprep.subr.mxu0 0.0
    %6250 = vmatpush2.msra.mxu0 0.0
    %6251 = vmatprep.subr.mxu0 0.0
    %6252 = vmatpush2.msra.mxu0 0.0
    %6253 = vmatprep.subr.mxu0 0.0
    %6254 = vmatpush2.msra.mxu0 0.0
    %6255 = vmatprep.subr.mxu0 0.0
    %6256 = vmatpush2.msra.mxu0 0.0
    %6257 = vmatprep.subr.mxu0 0.0
    %6258 = vmatpush2.msra.mxu0 0.0
    %6259 = vmatprep.subr.mxu0 0.0
    %6260 = vmatpush2.msra.mxu0 0.0
    %6261 = vmatprep.subr.mxu0 0.0
    %6262 = vmatpush2.msra.mxu0 0.0
    %6263 = vmatprep.subr.mxu0 0.0
    %6264 = vmatpush2.msra.mxu0 0.0
    %6265 = vmatprep.subr.mxu0 0.0
    %6266 = vmatpush2.msra.mxu0 0.0
    %6267 = vmatprep.subr.mxu0 0.0
    %6268 = vmatpush2.msra.mxu0 0.0
    %6269 = vmatprep.mubr.f32.mxu0 0.0
    %6270 = vmatmul.mubr.f32.gmra.mxu0 %v1055
    %v6271 = vpop.f32.mrf.mxu0
    %v6272 = vadd.f32 0.0, %v6271
    %v6273 = vpop.f32.mrf.mxu0
    %6274 = vdwg.mxu0
    %6275 = vmatprep.subr.mxu0 0.0
    %6276 = vmatpush1.msra.mxu0 %v1936
    %6277 = vmatprep.subr.mxu0 0.0
    %6278 = vmatpush1.msra.mxu0 %v1935
    %6279 = vmatprep.subr.mxu0 0.0
    %6280 = vmatpush1.msra.mxu0 %v1934
    %6281 = vmatprep.subr.mxu0 0.0
    %6282 = vmatpush1.msra.mxu0 %v1933
    %6283 = vmatprep.subr.mxu0 0.0
    %6284 = vmatpush1.msra.mxu0 %v1932
    %6285 = vmatprep.subr.mxu0 0.0
    %6286 = vmatpush1.msra.mxu0 %v1931
    %6287 = vmatprep.subr.mxu0 0.0
    %6288 = vmatpush1.msra.mxu0 %v1930
    %6289 = vmatprep.subr.mxu0 0.0
    %6290 = vmatpush1.msra.mxu0 %v1929
    %6291 = vmatprep.subr.mxu0 0.0
    %6292 = vmatpush1.msra.mxu0 %v1928
    %6293 = vmatprep.subr.mxu0 0.0
    %6294 = vmatpush1.msra.mxu0 %v1927
    %6295 = vmatprep.subr.mxu0 0.0
    %6296 = vmatpush1.msra.mxu0 %v1926
    %6297 = vmatprep.subr.mxu0 0.0
    %6298 = vmatpush1.msra.mxu0 %v1925
    %6299 = vmatprep.subr.mxu0 0.0
    %6300 = vmatpush1.msra.mxu0 %v1924
    %6301 = vmatprep.subr.mxu0 0.0
    %6302 = vmatpush1.msra.mxu0 %v1923
    %6303 = vmatprep.subr.mxu0 0.0
    %6304 = vmatpush1.msra.mxu0 %v1922
    %6305 = vmatprep.subr.mxu0 0.0
    %6306 = vmatpush1.msra.mxu0 %v1921
    %6307 = vmatprep.subr.mxu0 0.0
    %6308 = vmatpush2.msra.mxu0 0.0
    %6309 = vmatprep.subr.mxu0 0.0
    %6310 = vmatpush2.msra.mxu0 0.0
    %6311 = vmatprep.subr.mxu0 0.0
    %6312 = vmatpush2.msra.mxu0 0.0
    %6313 = vmatprep.subr.mxu0 0.0
    %6314 = vmatpush2.msra.mxu0 0.0
    %6315 = vmatprep.subr.mxu0 0.0
    %6316 = vmatpush2.msra.mxu0 0.0
    %6317 = vmatprep.subr.mxu0 0.0
    %6318 = vmatpush2.msra.mxu0 0.0
    %6319 = vmatprep.subr.mxu0 0.0
    %6320 = vmatpush2.msra.mxu0 0.0
    %6321 = vmatprep.subr.mxu0 0.0
    %6322 = vmatpush2.msra.mxu0 0.0
    %6323 = vmatprep.subr.mxu0 0.0
    %6324 = vmatpush2.msra.mxu0 0.0
    %6325 = vmatprep.subr.mxu0 0.0
    %6326 = vmatpush2.msra.mxu0 0.0
    %6327 = vmatprep.subr.mxu0 0.0
    %6328 = vmatpush2.msra.mxu0 0.0
    %6329 = vmatprep.subr.mxu0 0.0
    %6330 = vmatpush2.msra.mxu0 0.0
    %6331 = vmatprep.subr.mxu0 0.0
    %6332 = vmatpush2.msra.mxu0 0.0
    %6333 = vmatprep.subr.mxu0 0.0
    %6334 = vmatpush2.msra.mxu0 0.0
    %6335 = vmatprep.subr.mxu0 0.0
    %6336 = vmatpush2.msra.mxu0 0.0
    %6337 = vmatprep.subr.mxu0 0.0
    %6338 = vmatpush2.msra.mxu0 0.0
    %6339 = vmatprep.mubr.f32.mxu0 0.0
    %6340 = vmatmul.mubr.f32.gmra.mxu0 %v1056
    %v6341 = vpop.f32.mrf.mxu0
    %v6342 = vadd.f32 0.0, %v6341
    %v6343 = vpop.f32.mrf.mxu0
    %6344 = vdwg.mxu0
    %6345 = vmatprep.subr.mxu0 0.0
    %6346 = vmatpush1.msra.mxu0 %v1952
    %6347 = vmatprep.subr.mxu0 0.0
    %6348 = vmatpush1.msra.mxu0 %v1951
    %6349 = vmatprep.subr.mxu0 0.0
    %6350 = vmatpush1.msra.mxu0 %v1950
    %6351 = vmatprep.subr.mxu0 0.0
    %6352 = vmatpush1.msra.mxu0 %v1949
    %6353 = vmatprep.subr.mxu0 0.0
    %6354 = vmatpush1.msra.mxu0 %v1948
    %6355 = vmatprep.subr.mxu0 0.0
    %6356 = vmatpush1.msra.mxu0 %v1947
    %6357 = vmatprep.subr.mxu0 0.0
    %6358 = vmatpush1.msra.mxu0 %v1946
    %6359 = vmatprep.subr.mxu0 0.0
    %6360 = vmatpush1.msra.mxu0 %v1945
    %6361 = vmatprep.subr.mxu0 0.0
    %6362 = vmatpush1.msra.mxu0 %v1944
    %6363 = vmatprep.subr.mxu0 0.0
    %6364 = vmatpush1.msra.mxu0 %v1943
    %6365 = vmatprep.subr.mxu0 0.0
    %6366 = vmatpush1.msra.mxu0 %v1942
    %6367 = vmatprep.subr.mxu0 0.0
    %6368 = vmatpush1.msra.mxu0 %v1941
    %6369 = vmatprep.subr.mxu0 0.0
    %6370 = vmatpush1.msra.mxu0 %v1940
    %6371 = vmatprep.subr.mxu0 0.0
    %6372 = vmatpush1.msra.mxu0 %v1939
    %6373 = vmatprep.subr.mxu0 0.0
    %6374 = vmatpush1.msra.mxu0 %v1938
    %6375 = vmatprep.subr.mxu0 0.0
    %6376 = vmatpush1.msra.mxu0 %v1937
    %6377 = vmatprep.subr.mxu0 0.0
    %6378 = vmatpush2.msra.mxu0 0.0
    %6379 = vmatprep.subr.mxu0 0.0
    %6380 = vmatpush2.msra.mxu0 0.0
    %6381 = vmatprep.subr.mxu0 0.0
    %6382 = vmatpush2.msra.mxu0 0.0
    %6383 = vmatprep.subr.mxu0 0.0
    %6384 = vmatpush2.msra.mxu0 0.0
    %6385 = vmatprep.subr.mxu0 0.0
    %6386 = vmatpush2.msra.mxu0 0.0
    %6387 = vmatprep.subr.mxu0 0.0
    %6388 = vmatpush2.msra.mxu0 0.0
    %6389 = vmatprep.subr.mxu0 0.0
    %6390 = vmatpush2.msra.mxu0 0.0
    %6391 = vmatprep.subr.mxu0 0.0
    %6392 = vmatpush2.msra.mxu0 0.0
    %6393 = vmatprep.subr.mxu0 0.0
    %6394 = vmatpush2.msra.mxu0 0.0
    %6395 = vmatprep.subr.mxu0 0.0
    %6396 = vmatpush2.msra.mxu0 0.0
    %6397 = vmatprep.subr.mxu0 0.0
    %6398 = vmatpush2.msra.mxu0 0.0
    %6399 = vmatprep.subr.mxu0 0.0
    %6400 = vmatpush2.msra.mxu0 0.0
    %6401 = vmatprep.subr.mxu0 0.0
    %6402 = vmatpush2.msra.mxu0 0.0
    %6403 = vmatprep.subr.mxu0 0.0
    %6404 = vmatpush2.msra.mxu0 0.0
    %6405 = vmatprep.subr.mxu0 0.0
    %6406 = vmatpush2.msra.mxu0 0.0
    %6407 = vmatprep.subr.mxu0 0.0
    %6408 = vmatpush2.msra.mxu0 0.0
    %6409 = vmatprep.mubr.f32.mxu0 0.0
    %6410 = vmatmul.mubr.f32.gmra.mxu0 %v1057
    %v6411 = vpop.f32.mrf.mxu0
    %v6412 = vadd.f32 0.0, %v6411
    %v6413 = vpop.f32.mrf.mxu0
    %6414 = vdwg.mxu0
    %6415 = vmatprep.subr.mxu0 0.0
    %6416 = vmatpush1.msra.mxu0 %v1968
    %6417 = vmatprep.subr.mxu0 0.0
    %6418 = vmatpush1.msra.mxu0 %v1967
    %6419 = vmatprep.subr.mxu0 0.0
    %6420 = vmatpush1.msra.mxu0 %v1966
    %6421 = vmatprep.subr.mxu0 0.0
    %6422 = vmatpush1.msra.mxu0 %v1965
    %6423 = vmatprep.subr.mxu0 0.0
    %6424 = vmatpush1.msra.mxu0 %v1964
    %6425 = vmatprep.subr.mxu0 0.0
    %6426 = vmatpush1.msra.mxu0 %v1963
    %6427 = vmatprep.subr.mxu0 0.0
    %6428 = vmatpush1.msra.mxu0 %v1962
    %6429 = vmatprep.subr.mxu0 0.0
    %6430 = vmatpush1.msra.mxu0 %v1961
    %6431 = vmatprep.subr.mxu0 0.0
    %6432 = vmatpush1.msra.mxu0 %v1960
    %6433 = vmatprep.subr.mxu0 0.0
    %6434 = vmatpush1.msra.mxu0 %v1959
    %6435 = vmatprep.subr.mxu0 0.0
    %6436 = vmatpush1.msra.mxu0 %v1958
    %6437 = vmatprep.subr.mxu0 0.0
    %6438 = vmatpush1.msra.mxu0 %v1957
    %6439 = vmatprep.subr.mxu0 0.0
    %6440 = vmatpush1.msra.mxu0 %v1956
    %6441 = vmatprep.subr.mxu0 0.0
    %6442 = vmatpush1.msra.mxu0 %v1955
    %6443 = vmatprep.subr.mxu0 0.0
    %6444 = vmatpush1.msra.mxu0 %v1954
    %6445 = vmatprep.subr.mxu0 0.0
    %6446 = vmatpush1.msra.mxu0 %v1953
    %6447 = vmatprep.subr.mxu0 0.0
    %6448 = vmatpush2.msra.mxu0 0.0
    %6449 = vmatprep.subr.mxu0 0.0
    %6450 = vmatpush2.msra.mxu0 0.0
    %6451 = vmatprep.subr.mxu0 0.0
    %6452 = vmatpush2.msra.mxu0 0.0
    %6453 = vmatprep.subr.mxu0 0.0
    %6454 = vmatpush2.msra.mxu0 0.0
    %6455 = vmatprep.subr.mxu0 0.0
    %6456 = vmatpush2.msra.mxu0 0.0
    %6457 = vmatprep.subr.mxu0 0.0
    %6458 = vmatpush2.msra.mxu0 0.0
    %6459 = vmatprep.subr.mxu0 0.0
    %6460 = vmatpush2.msra.mxu0 0.0
    %6461 = vmatprep.subr.mxu0 0.0
    %6462 = vmatpush2.msra.mxu0 0.0
    %6463 = vmatprep.subr.mxu0 0.0
    %6464 = vmatpush2.msra.mxu0 0.0
    %6465 = vmatprep.subr.mxu0 0.0
    %6466 = vmatpush2.msra.mxu0 0.0
    %6467 = vmatprep.subr.mxu0 0.0
    %6468 = vmatpush2.msra.mxu0 0.0
    %6469 = vmatprep.subr.mxu0 0.0
    %6470 = vmatpush2.msra.mxu0 0.0
    %6471 = vmatprep.subr.mxu0 0.0
    %6472 = vmatpush2.msra.mxu0 0.0
    %6473 = vmatprep.subr.mxu0 0.0
    %6474 = vmatpush2.msra.mxu0 0.0
    %6475 = vmatprep.subr.mxu0 0.0
    %6476 = vmatpush2.msra.mxu0 0.0
    %6477 = vmatprep.subr.mxu0 0.0
    %6478 = vmatpush2.msra.mxu0 0.0
    %6479 = vmatprep.mubr.f32.mxu0 0.0
    %6480 = vmatmul.mubr.f32.gmra.mxu0 %v1058
    %v6481 = vpop.f32.mrf.mxu0
    %v6482 = vadd.f32 0.0, %v6481
    %v6483 = vpop.f32.mrf.mxu0
    %6484 = vdwg.mxu0
    %6485 = vmatprep.subr.mxu0 0.0
    %6486 = vmatpush1.msra.mxu0 %v1984
    %6487 = vmatprep.subr.mxu0 0.0
    %6488 = vmatpush1.msra.mxu0 %v1983
    %6489 = vmatprep.subr.mxu0 0.0
    %6490 = vmatpush1.msra.mxu0 %v1982
    %6491 = vmatprep.subr.mxu0 0.0
    %6492 = vmatpush1.msra.mxu0 %v1981
    %6493 = vmatprep.subr.mxu0 0.0
    %6494 = vmatpush1.msra.mxu0 %v1980
    %6495 = vmatprep.subr.mxu0 0.0
    %6496 = vmatpush1.msra.mxu0 %v1979
    %6497 = vmatprep.subr.mxu0 0.0
    %6498 = vmatpush1.msra.mxu0 %v1978
    %6499 = vmatprep.subr.mxu0 0.0
    %6500 = vmatpush1.msra.mxu0 %v1977
    %6501 = vmatprep.subr.mxu0 0.0
    %6502 = vmatpush1.msra.mxu0 %v1976
    %6503 = vmatprep.subr.mxu0 0.0
    %6504 = vmatpush1.msra.mxu0 %v1975
    %6505 = vmatprep.subr.mxu0 0.0
    %6506 = vmatpush1.msra.mxu0 %v1974
    %6507 = vmatprep.subr.mxu0 0.0
    %6508 = vmatpush1.msra.mxu0 %v1973
    %6509 = vmatprep.subr.mxu0 0.0
    %6510 = vmatpush1.msra.mxu0 %v1972
    %6511 = vmatprep.subr.mxu0 0.0
    %6512 = vmatpush1.msra.mxu0 %v1971
    %6513 = vmatprep.subr.mxu0 0.0
    %6514 = vmatpush1.msra.mxu0 %v1970
    %6515 = vmatprep.subr.mxu0 0.0
    %6516 = vmatpush1.msra.mxu0 %v1969
    %6517 = vmatprep.subr.mxu0 0.0
    %6518 = vmatpush2.msra.mxu0 0.0
    %6519 = vmatprep.subr.mxu0 0.0
    %6520 = vmatpush2.msra.mxu0 0.0
    %6521 = vmatprep.subr.mxu0 0.0
    %6522 = vmatpush2.msra.mxu0 0.0
    %6523 = vmatprep.subr.mxu0 0.0
    %6524 = vmatpush2.msra.mxu0 0.0
    %6525 = vmatprep.subr.mxu0 0.0
    %6526 = vmatpush2.msra.mxu0 0.0
    %6527 = vmatprep.subr.mxu0 0.0
    %6528 = vmatpush2.msra.mxu0 0.0
    %6529 = vmatprep.subr.mxu0 0.0
    %6530 = vmatpush2.msra.mxu0 0.0
    %6531 = vmatprep.subr.mxu0 0.0
    %6532 = vmatpush2.msra.mxu0 0.0
    %6533 = vmatprep.subr.mxu0 0.0
    %6534 = vmatpush2.msra.mxu0 0.0
    %6535 = vmatprep.subr.mxu0 0.0
    %6536 = vmatpush2.msra.mxu0 0.0
    %6537 = vmatprep.subr.mxu0 0.0
    %6538 = vmatpush2.msra.mxu0 0.0
    %6539 = vmatprep.subr.mxu0 0.0
    %6540 = vmatpush2.msra.mxu0 0.0
    %6541 = vmatprep.subr.mxu0 0.0
    %6542 = vmatpush2.msra.mxu0 0.0
    %6543 = vmatprep.subr.mxu0 0.0
    %6544 = vmatpush2.msra.mxu0 0.0
    %6545 = vmatprep.subr.mxu0 0.0
    %6546 = vmatpush2.msra.mxu0 0.0
    %6547 = vmatprep.subr.mxu0 0.0
    %6548 = vmatpush2.msra.mxu0 0.0
    %6549 = vmatprep.mubr.f32.mxu0 0.0
    %6550 = vmatmul.mubr.f32.gmra.mxu0 %v1059
    %v6551 = vpop.f32.mrf.mxu0
    %v6552 = vadd.f32 0.0, %v6551
    %v6553 = vpop.f32.mrf.mxu0
    %6554 = vdwg.mxu0
    %6555 = vmatprep.subr.mxu0 0.0
    %6556 = vmatpush1.msra.mxu0 %v2000
    %6557 = vmatprep.subr.mxu0 0.0
    %6558 = vmatpush1.msra.mxu0 %v1999
    %6559 = vmatprep.subr.mxu0 0.0
    %6560 = vmatpush1.msra.mxu0 %v1998
    %6561 = vmatprep.subr.mxu0 0.0
    %6562 = vmatpush1.msra.mxu0 %v1997
    %6563 = vmatprep.subr.mxu0 0.0
    %6564 = vmatpush1.msra.mxu0 %v1996
    %6565 = vmatprep.subr.mxu0 0.0
    %6566 = vmatpush1.msra.mxu0 %v1995
    %6567 = vmatprep.subr.mxu0 0.0
    %6568 = vmatpush1.msra.mxu0 %v1994
    %6569 = vmatprep.subr.mxu0 0.0
    %6570 = vmatpush1.msra.mxu0 %v1993
    %6571 = vmatprep.subr.mxu0 0.0
    %6572 = vmatpush1.msra.mxu0 %v1992
    %6573 = vmatprep.subr.mxu0 0.0
    %6574 = vmatpush1.msra.mxu0 %v1991
    %6575 = vmatprep.subr.mxu0 0.0
    %6576 = vmatpush1.msra.mxu0 %v1990
    %6577 = vmatprep.subr.mxu0 0.0
    %6578 = vmatpush1.msra.mxu0 %v1989
    %6579 = vmatprep.subr.mxu0 0.0
    %6580 = vmatpush1.msra.mxu0 %v1988
    %6581 = vmatprep.subr.mxu0 0.0
    %6582 = vmatpush1.msra.mxu0 %v1987
    %6583 = vmatprep.subr.mxu0 0.0
    %6584 = vmatpush1.msra.mxu0 %v1986
    %6585 = vmatprep.subr.mxu0 0.0
    %6586 = vmatpush1.msra.mxu0 %v1985
    %6587 = vmatprep.subr.mxu0 0.0
    %6588 = vmatpush2.msra.mxu0 0.0
    %6589 = vmatprep.subr.mxu0 0.0
    %6590 = vmatpush2.msra.mxu0 0.0
    %6591 = vmatprep.subr.mxu0 0.0
    %6592 = vmatpush2.msra.mxu0 0.0
    %6593 = vmatprep.subr.mxu0 0.0
    %6594 = vmatpush2.msra.mxu0 0.0
    %6595 = vmatprep.subr.mxu0 0.0
    %6596 = vmatpush2.msra.mxu0 0.0
    %6597 = vmatprep.subr.mxu0 0.0
    %6598 = vmatpush2.msra.mxu0 0.0
    %6599 = vmatprep.subr.mxu0 0.0
    %6600 = vmatpush2.msra.mxu0 0.0
    %6601 = vmatprep.subr.mxu0 0.0
    %6602 = vmatpush2.msra.mxu0 0.0
    %6603 = vmatprep.subr.mxu0 0.0
    %6604 = vmatpush2.msra.mxu0 0.0
    %6605 = vmatprep.subr.mxu0 0.0
    %6606 = vmatpush2.msra.mxu0 0.0
    %6607 = vmatprep.subr.mxu0 0.0
    %6608 = vmatpush2.msra.mxu0 0.0
    %6609 = vmatprep.subr.mxu0 0.0
    %6610 = vmatpush2.msra.mxu0 0.0
    %6611 = vmatprep.subr.mxu0 0.0
    %6612 = vmatpush2.msra.mxu0 0.0
    %6613 = vmatprep.subr.mxu0 0.0
    %6614 = vmatpush2.msra.mxu0 0.0
    %6615 = vmatprep.subr.mxu0 0.0
    %6616 = vmatpush2.msra.mxu0 0.0
    %6617 = vmatprep.subr.mxu0 0.0
    %6618 = vmatpush2.msra.mxu0 0.0
    %6619 = vmatprep.mubr.f32.mxu0 0.0
    %6620 = vmatmul.mubr.f32.gmra.mxu0 %v1060
    %v6621 = vpop.f32.mrf.mxu0
    %v6622 = vadd.f32 0.0, %v6621
    %v6623 = vpop.f32.mrf.mxu0
    %6624 = vdwg.mxu0
    %6625 = vmatprep.subr.mxu0 0.0
    %6626 = vmatpush1.msra.mxu0 %v2016
    %6627 = vmatprep.subr.mxu0 0.0
    %6628 = vmatpush1.msra.mxu0 %v2015
    %6629 = vmatprep.subr.mxu0 0.0
    %6630 = vmatpush1.msra.mxu0 %v2014
    %6631 = vmatprep.subr.mxu0 0.0
    %6632 = vmatpush1.msra.mxu0 %v2013
    %6633 = vmatprep.subr.mxu0 0.0
    %6634 = vmatpush1.msra.mxu0 %v2012
    %6635 = vmatprep.subr.mxu0 0.0
    %6636 = vmatpush1.msra.mxu0 %v2011
    %6637 = vmatprep.subr.mxu0 0.0
    %6638 = vmatpush1.msra.mxu0 %v2010
    %6639 = vmatprep.subr.mxu0 0.0
    %6640 = vmatpush1.msra.mxu0 %v2009
    %6641 = vmatprep.subr.mxu0 0.0
    %6642 = vmatpush1.msra.mxu0 %v2008
    %6643 = vmatprep.subr.mxu0 0.0
    %6644 = vmatpush1.msra.mxu0 %v2007
    %6645 = vmatprep.subr.mxu0 0.0
    %6646 = vmatpush1.msra.mxu0 %v2006
    %6647 = vmatprep.subr.mxu0 0.0
    %6648 = vmatpush1.msra.mxu0 %v2005
    %6649 = vmatprep.subr.mxu0 0.0
    %6650 = vmatpush1.msra.mxu0 %v2004
    %6651 = vmatprep.subr.mxu0 0.0
    %6652 = vmatpush1.msra.mxu0 %v2003
    %6653 = vmatprep.subr.mxu0 0.0
    %6654 = vmatpush1.msra.mxu0 %v2002
    %6655 = vmatprep.subr.mxu0 0.0
    %6656 = vmatpush1.msra.mxu0 %v2001
    %6657 = vmatprep.subr.mxu0 0.0
    %6658 = vmatpush2.msra.mxu0 0.0
    %6659 = vmatprep.subr.mxu0 0.0
    %6660 = vmatpush2.msra.mxu0 0.0
    %6661 = vmatprep.subr.mxu0 0.0
    %6662 = vmatpush2.msra.mxu0 0.0
    %6663 = vmatprep.subr.mxu0 0.0
    %6664 = vmatpush2.msra.mxu0 0.0
    %6665 = vmatprep.subr.mxu0 0.0
    %6666 = vmatpush2.msra.mxu0 0.0
    %6667 = vmatprep.subr.mxu0 0.0
    %6668 = vmatpush2.msra.mxu0 0.0
    %6669 = vmatprep.subr.mxu0 0.0
    %6670 = vmatpush2.msra.mxu0 0.0
    %6671 = vmatprep.subr.mxu0 0.0
    %6672 = vmatpush2.msra.mxu0 0.0
    %6673 = vmatprep.subr.mxu0 0.0
    %6674 = vmatpush2.msra.mxu0 0.0
    %6675 = vmatprep.subr.mxu0 0.0
    %6676 = vmatpush2.msra.mxu0 0.0
    %6677 = vmatprep.subr.mxu0 0.0
    %6678 = vmatpush2.msra.mxu0 0.0
    %6679 = vmatprep.subr.mxu0 0.0
    %6680 = vmatpush2.msra.mxu0 0.0
    %6681 = vmatprep.subr.mxu0 0.0
    %6682 = vmatpush2.msra.mxu0 0.0
    %6683 = vmatprep.subr.mxu0 0.0
    %6684 = vmatpush2.msra.mxu0 0.0
    %6685 = vmatprep.subr.mxu0 0.0
    %6686 = vmatpush2.msra.mxu0 0.0
    %6687 = vmatprep.subr.mxu0 0.0
    %6688 = vmatpush2.msra.mxu0 0.0
    %6689 = vmatprep.mubr.f32.mxu0 0.0
    %6690 = vmatmul.mubr.f32.gmra.mxu0 %v1061
    %v6691 = vpop.f32.mrf.mxu0
    %v6692 = vadd.f32 0.0, %v6691
    %v6693 = vpop.f32.mrf.mxu0
    %6694 = vdwg.mxu0
    %6695 = vmatprep.subr.mxu0 0.0
    %6696 = vmatpush1.msra.mxu0 %v2032
    %6697 = vmatprep.subr.mxu0 0.0
    %6698 = vmatpush1.msra.mxu0 %v2031
    %6699 = vmatprep.subr.mxu0 0.0
    %6700 = vmatpush1.msra.mxu0 %v2030
    %6701 = vmatprep.subr.mxu0 0.0
    %6702 = vmatpush1.msra.mxu0 %v2029
    %6703 = vmatprep.subr.mxu0 0.0
    %6704 = vmatpush1.msra.mxu0 %v2028
    %6705 = vmatprep.subr.mxu0 0.0
    %6706 = vmatpush1.msra.mxu0 %v2027
    %6707 = vmatprep.subr.mxu0 0.0
    %6708 = vmatpush1.msra.mxu0 %v2026
    %6709 = vmatprep.subr.mxu0 0.0
    %6710 = vmatpush1.msra.mxu0 %v2025
    %6711 = vmatprep.subr.mxu0 0.0
    %6712 = vmatpush1.msra.mxu0 %v2024
    %6713 = vmatprep.subr.mxu0 0.0
    %6714 = vmatpush1.msra.mxu0 %v2023
    %6715 = vmatprep.subr.mxu0 0.0
    %6716 = vmatpush1.msra.mxu0 %v2022
    %6717 = vmatprep.subr.mxu0 0.0
    %6718 = vmatpush1.msra.mxu0 %v2021
    %6719 = vmatprep.subr.mxu0 0.0
    %6720 = vmatpush1.msra.mxu0 %v2020
    %6721 = vmatprep.subr.mxu0 0.0
    %6722 = vmatpush1.msra.mxu0 %v2019
    %6723 = vmatprep.subr.mxu0 0.0
    %6724 = vmatpush1.msra.mxu0 %v2018
    %6725 = vmatprep.subr.mxu0 0.0
    %6726 = vmatpush1.msra.mxu0 %v2017
    %6727 = vmatprep.subr.mxu0 0.0
    %6728 = vmatpush2.msra.mxu0 0.0
    %6729 = vmatprep.subr.mxu0 0.0
    %6730 = vmatpush2.msra.mxu0 0.0
    %6731 = vmatprep.subr.mxu0 0.0
    %6732 = vmatpush2.msra.mxu0 0.0
    %6733 = vmatprep.subr.mxu0 0.0
    %6734 = vmatpush2.msra.mxu0 0.0
    %6735 = vmatprep.subr.mxu0 0.0
    %6736 = vmatpush2.msra.mxu0 0.0
    %6737 = vmatprep.subr.mxu0 0.0
    %6738 = vmatpush2.msra.mxu0 0.0
    %6739 = vmatprep.subr.mxu0 0.0
    %6740 = vmatpush2.msra.mxu0 0.0
    %6741 = vmatprep.subr.mxu0 0.0
    %6742 = vmatpush2.msra.mxu0 0.0
    %6743 = vmatprep.subr.mxu0 0.0
    %6744 = vmatpush2.msra.mxu0 0.0
    %6745 = vmatprep.subr.mxu0 0.0
    %6746 = vmatpush2.msra.mxu0 0.0
    %6747 = vmatprep.subr.mxu0 0.0
    %6748 = vmatpush2.msra.mxu0 0.0
    %6749 = vmatprep.subr.mxu0 0.0
    %6750 = vmatpush2.msra.mxu0 0.0
    %6751 = vmatprep.subr.mxu0 0.0
    %6752 = vmatpush2.msra.mxu0 0.0
    %6753 = vmatprep.subr.mxu0 0.0
    %6754 = vmatpush2.msra.mxu0 0.0
    %6755 = vmatprep.subr.mxu0 0.0
    %6756 = vmatpush2.msra.mxu0 0.0
    %6757 = vmatprep.subr.mxu0 0.0
    %6758 = vmatpush2.msra.mxu0 0.0
    %6759 = vmatprep.mubr.f32.mxu0 0.0
    %6760 = vmatmul.mubr.f32.gmra.mxu0 %v1062
    %v6761 = vpop.f32.mrf.mxu0
    %v6762 = vadd.f32 0.0, %v6761
    %v6763 = vpop.f32.mrf.mxu0
    %6764 = vdwg.mxu0
    %6765 = vmatprep.subr.mxu0 0.0
    %6766 = vmatpush1.msra.mxu0 %v2048
    %6767 = vmatprep.subr.mxu0 0.0
    %6768 = vmatpush1.msra.mxu0 %v2047
    %6769 = vmatprep.subr.mxu0 0.0
    %6770 = vmatpush1.msra.mxu0 %v2046
    %6771 = vmatprep.subr.mxu0 0.0
    %6772 = vmatpush1.msra.mxu0 %v2045
    %6773 = vmatprep.subr.mxu0 0.0
    %6774 = vmatpush1.msra.mxu0 %v2044
    %6775 = vmatprep.subr.mxu0 0.0
    %6776 = vmatpush1.msra.mxu0 %v2043
    %6777 = vmatprep.subr.mxu0 0.0
    %6778 = vmatpush1.msra.mxu0 %v2042
    %6779 = vmatprep.subr.mxu0 0.0
    %6780 = vmatpush1.msra.mxu0 %v2041
    %6781 = vmatprep.subr.mxu0 0.0
    %6782 = vmatpush1.msra.mxu0 %v2040
    %6783 = vmatprep.subr.mxu0 0.0
    %6784 = vmatpush1.msra.mxu0 %v2039
    %6785 = vmatprep.subr.mxu0 0.0
    %6786 = vmatpush1.msra.mxu0 %v2038
    %6787 = vmatprep.subr.mxu0 0.0
    %6788 = vmatpush1.msra.mxu0 %v2037
    %6789 = vmatprep.subr.mxu0 0.0
    %6790 = vmatpush1.msra.mxu0 %v2036
    %6791 = vmatprep.subr.mxu0 0.0
    %6792 = vmatpush1.msra.mxu0 %v2035
    %6793 = vmatprep.subr.mxu0 0.0
    %6794 = vmatpush1.msra.mxu0 %v2034
    %6795 = vmatprep.subr.mxu0 0.0
    %6796 = vmatpush1.msra.mxu0 %v2033
    %6797 = vmatprep.subr.mxu0 0.0
    %6798 = vmatpush2.msra.mxu0 0.0
    %6799 = vmatprep.subr.mxu0 0.0
    %6800 = vmatpush2.msra.mxu0 0.0
    %6801 = vmatprep.subr.mxu0 0.0
    %6802 = vmatpush2.msra.mxu0 0.0
    %6803 = vmatprep.subr.mxu0 0.0
    %6804 = vmatpush2.msra.mxu0 0.0
    %6805 = vmatprep.subr.mxu0 0.0
    %6806 = vmatpush2.msra.mxu0 0.0
    %6807 = vmatprep.subr.mxu0 0.0
    %6808 = vmatpush2.msra.mxu0 0.0
    %6809 = vmatprep.subr.mxu0 0.0
    %6810 = vmatpush2.msra.mxu0 0.0
    %6811 = vmatprep.subr.mxu0 0.0
    %6812 = vmatpush2.msra.mxu0 0.0
    %6813 = vmatprep.subr.mxu0 0.0
    %6814 = vmatpush2.msra.mxu0 0.0
    %6815 = vmatprep.subr.mxu0 0.0
    %6816 = vmatpush2.msra.mxu0 0.0
    %6817 = vmatprep.subr.mxu0 0.0
    %6818 = vmatpush2.msra.mxu0 0.0
    %6819 = vmatprep.subr.mxu0 0.0
    %6820 = vmatpush2.msra.mxu0 0.0
    %6821 = vmatprep.subr.mxu0 0.0
    %6822 = vmatpush2.msra.mxu0 0.0
    %6823 = vmatprep.subr.mxu0 0.0
    %6824 = vmatpush2.msra.mxu0 0.0
    %6825 = vmatprep.subr.mxu0 0.0
    %6826 = vmatpush2.msra.mxu0 0.0
    %6827 = vmatprep.subr.mxu0 0.0
    %6828 = vmatpush2.msra.mxu0 0.0
    %6829 = vmatprep.mubr.f32.mxu0 0.0
    %6830 = vmatmul.mubr.f32.gmra.mxu0 %v1063
    %v6831 = vpop.f32.mrf.mxu0
    %v6832 = vadd.f32 0.0, %v6831
    %v6833 = vpop.f32.mrf.mxu0
    %6834 = vdwg.mxu0
    %6835 = vmatprep.subr.mxu0 0.0
    %6836 = vmatpush1.msra.mxu0 %v2064
    %6837 = vmatprep.subr.mxu0 0.0
    %6838 = vmatpush1.msra.mxu0 %v2063
    %6839 = vmatprep.subr.mxu0 0.0
    %6840 = vmatpush1.msra.mxu0 %v2062
    %6841 = vmatprep.subr.mxu0 0.0
    %6842 = vmatpush1.msra.mxu0 %v2061
    %6843 = vmatprep.subr.mxu0 0.0
    %6844 = vmatpush1.msra.mxu0 %v2060
    %6845 = vmatprep.subr.mxu0 0.0
    %6846 = vmatpush1.msra.mxu0 %v2059
    %6847 = vmatprep.subr.mxu0 0.0
    %6848 = vmatpush1.msra.mxu0 %v2058
    %6849 = vmatprep.subr.mxu0 0.0
    %6850 = vmatpush1.msra.mxu0 %v2057
    %6851 = vmatprep.subr.mxu0 0.0
    %6852 = vmatpush1.msra.mxu0 %v2056
    %6853 = vmatprep.subr.mxu0 0.0
    %6854 = vmatpush1.msra.mxu0 %v2055
    %6855 = vmatprep.subr.mxu0 0.0
    %6856 = vmatpush1.msra.mxu0 %v2054
    %6857 = vmatprep.subr.mxu0 0.0
    %6858 = vmatpush1.msra.mxu0 %v2053
    %6859 = vmatprep.subr.mxu0 0.0
    %6860 = vmatpush1.msra.mxu0 %v2052
    %6861 = vmatprep.subr.mxu0 0.0
    %6862 = vmatpush1.msra.mxu0 %v2051
    %6863 = vmatprep.subr.mxu0 0.0
    %6864 = vmatpush1.msra.mxu0 %v2050
    %6865 = vmatprep.subr.mxu0 0.0
    %6866 = vmatpush1.msra.mxu0 %v2049
    %6867 = vmatprep.subr.mxu0 0.0
    %6868 = vmatpush2.msra.mxu0 0.0
    %6869 = vmatprep.subr.mxu0 0.0
    %6870 = vmatpush2.msra.mxu0 0.0
    %6871 = vmatprep.subr.mxu0 0.0
    %6872 = vmatpush2.msra.mxu0 0.0
    %6873 = vmatprep.subr.mxu0 0.0
    %6874 = vmatpush2.msra.mxu0 0.0
    %6875 = vmatprep.subr.mxu0 0.0
    %6876 = vmatpush2.msra.mxu0 0.0
    %6877 = vmatprep.subr.mxu0 0.0
    %6878 = vmatpush2.msra.mxu0 0.0
    %6879 = vmatprep.subr.mxu0 0.0
    %6880 = vmatpush2.msra.mxu0 0.0
    %6881 = vmatprep.subr.mxu0 0.0
    %6882 = vmatpush2.msra.mxu0 0.0
    %6883 = vmatprep.subr.mxu0 0.0
    %6884 = vmatpush2.msra.mxu0 0.0
    %6885 = vmatprep.subr.mxu0 0.0
    %6886 = vmatpush2.msra.mxu0 0.0
    %6887 = vmatprep.subr.mxu0 0.0
    %6888 = vmatpush2.msra.mxu0 0.0
    %6889 = vmatprep.subr.mxu0 0.0
    %6890 = vmatpush2.msra.mxu0 0.0
    %6891 = vmatprep.subr.mxu0 0.0
    %6892 = vmatpush2.msra.mxu0 0.0
    %6893 = vmatprep.subr.mxu0 0.0
    %6894 = vmatpush2.msra.mxu0 0.0
    %6895 = vmatprep.subr.mxu0 0.0
    %6896 = vmatpush2.msra.mxu0 0.0
    %6897 = vmatprep.subr.mxu0 0.0
    %6898 = vmatpush2.msra.mxu0 0.0
    %6899 = vmatprep.mubr.f32.mxu0 0.0
    %6900 = vmatmul.mubr.f32.gmra.mxu0 %v1064
    %v6901 = vpop.f32.mrf.mxu0
    %v6902 = vadd.f32 0.0, %v6901
    %v6903 = vpop.f32.mrf.mxu0
    %6904 = vdwg.mxu0
    %6905 = vmatprep.subr.mxu0 0.0
    %6906 = vmatpush1.msra.mxu0 %v2080
    %6907 = vmatprep.subr.mxu0 0.0
    %6908 = vmatpush1.msra.mxu0 %v2079
    %6909 = vmatprep.subr.mxu0 0.0
    %6910 = vmatpush1.msra.mxu0 %v2078
    %6911 = vmatprep.subr.mxu0 0.0
    %6912 = vmatpush1.msra.mxu0 %v2077
    %6913 = vmatprep.subr.mxu0 0.0
    %6914 = vmatpush1.msra.mxu0 %v2076
    %6915 = vmatprep.subr.mxu0 0.0
    %6916 = vmatpush1.msra.mxu0 %v2075
    %6917 = vmatprep.subr.mxu0 0.0
    %6918 = vmatpush1.msra.mxu0 %v2074
    %6919 = vmatprep.subr.mxu0 0.0
    %6920 = vmatpush1.msra.mxu0 %v2073
    %6921 = vmatprep.subr.mxu0 0.0
    %6922 = vmatpush1.msra.mxu0 %v2072
    %6923 = vmatprep.subr.mxu0 0.0
    %6924 = vmatpush1.msra.mxu0 %v2071
    %6925 = vmatprep.subr.mxu0 0.0
    %6926 = vmatpush1.msra.mxu0 %v2070
    %6927 = vmatprep.subr.mxu0 0.0
    %6928 = vmatpush1.msra.mxu0 %v2069
    %6929 = vmatprep.subr.mxu0 0.0
    %6930 = vmatpush1.msra.mxu0 %v2068
    %6931 = vmatprep.subr.mxu0 0.0
    %6932 = vmatpush1.msra.mxu0 %v2067
    %6933 = vmatprep.subr.mxu0 0.0
    %6934 = vmatpush1.msra.mxu0 %v2066
    %6935 = vmatprep.subr.mxu0 0.0
    %6936 = vmatpush1.msra.mxu0 %v2065
    %6937 = vmatprep.subr.mxu0 0.0
    %6938 = vmatpush2.msra.mxu0 0.0
    %6939 = vmatprep.subr.mxu0 0.0
    %6940 = vmatpush2.msra.mxu0 0.0
    %6941 = vmatprep.subr.mxu0 0.0
    %6942 = vmatpush2.msra.mxu0 0.0
    %6943 = vmatprep.subr.mxu0 0.0
    %6944 = vmatpush2.msra.mxu0 0.0
    %6945 = vmatprep.subr.mxu0 0.0
    %6946 = vmatpush2.msra.mxu0 0.0
    %6947 = vmatprep.subr.mxu0 0.0
    %6948 = vmatpush2.msra.mxu0 0.0
    %6949 = vmatprep.subr.mxu0 0.0
    %6950 = vmatpush2.msra.mxu0 0.0
    %6951 = vmatprep.subr.mxu0 0.0
    %6952 = vmatpush2.msra.mxu0 0.0
    %6953 = vmatprep.subr.mxu0 0.0
    %6954 = vmatpush2.msra.mxu0 0.0
    %6955 = vmatprep.subr.mxu0 0.0
    %6956 = vmatpush2.msra.mxu0 0.0
    %6957 = vmatprep.subr.mxu0 0.0
    %6958 = vmatpush2.msra.mxu0 0.0
    %6959 = vmatprep.subr.mxu0 0.0
    %6960 = vmatpush2.msra.mxu0 0.0
    %6961 = vmatprep.subr.mxu0 0.0
    %6962 = vmatpush2.msra.mxu0 0.0
    %6963 = vmatprep.subr.mxu0 0.0
    %6964 = vmatpush2.msra.mxu0 0.0
    %6965 = vmatprep.subr.mxu0 0.0
    %6966 = vmatpush2.msra.mxu0 0.0
    %6967 = vmatprep.subr.mxu0 0.0
    %6968 = vmatpush2.msra.mxu0 0.0
    %6969 = vmatprep.mubr.f32.mxu0 0.0
    %6970 = vmatmul.mubr.f32.gmra.mxu0 %v1065
    %v6971 = vpop.f32.mrf.mxu0
    %v6972 = vadd.f32 0.0, %v6971
    %v6973 = vpop.f32.mrf.mxu0
    %6974 = vdwg.mxu0
    %6975 = vmatprep.subr.mxu0 0.0
    %6976 = vmatpush1.msra.mxu0 %v2096
    %6977 = vmatprep.subr.mxu0 0.0
    %6978 = vmatpush1.msra.mxu0 %v2095
    %6979 = vmatprep.subr.mxu0 0.0
    %6980 = vmatpush1.msra.mxu0 %v2094
    %6981 = vmatprep.subr.mxu0 0.0
    %6982 = vmatpush1.msra.mxu0 %v2093
    %6983 = vmatprep.subr.mxu0 0.0
    %6984 = vmatpush1.msra.mxu0 %v2092
    %6985 = vmatprep.subr.mxu0 0.0
    %6986 = vmatpush1.msra.mxu0 %v2091
    %6987 = vmatprep.subr.mxu0 0.0
    %6988 = vmatpush1.msra.mxu0 %v2090
    %6989 = vmatprep.subr.mxu0 0.0
    %6990 = vmatpush1.msra.mxu0 %v2089
    %6991 = vmatprep.subr.mxu0 0.0
    %6992 = vmatpush1.msra.mxu0 %v2088
    %6993 = vmatprep.subr.mxu0 0.0
    %6994 = vmatpush1.msra.mxu0 %v2087
    %6995 = vmatprep.subr.mxu0 0.0
    %6996 = vmatpush1.msra.mxu0 %v2086
    %6997 = vmatprep.subr.mxu0 0.0
    %6998 = vmatpush1.msra.mxu0 %v2085
    %6999 = vmatprep.subr.mxu0 0.0
    %7000 = vmatpush1.msra.mxu0 %v2084
    %7001 = vmatprep.subr.mxu0 0.0
    %7002 = vmatpush1.msra.mxu0 %v2083
    %7003 = vmatprep.subr.mxu0 0.0
    %7004 = vmatpush1.msra.mxu0 %v2082
    %7005 = vmatprep.subr.mxu0 0.0
    %7006 = vmatpush1.msra.mxu0 %v2081
    %7007 = vmatprep.subr.mxu0 0.0
    %7008 = vmatpush2.msra.mxu0 0.0
    %7009 = vmatprep.subr.mxu0 0.0
    %7010 = vmatpush2.msra.mxu0 0.0
    %7011 = vmatprep.subr.mxu0 0.0
    %7012 = vmatpush2.msra.mxu0 0.0
    %7013 = vmatprep.subr.mxu0 0.0
    %7014 = vmatpush2.msra.mxu0 0.0
    %7015 = vmatprep.subr.mxu0 0.0
    %7016 = vmatpush2.msra.mxu0 0.0
    %7017 = vmatprep.subr.mxu0 0.0
    %7018 = vmatpush2.msra.mxu0 0.0
    %7019 = vmatprep.subr.mxu0 0.0
    %7020 = vmatpush2.msra.mxu0 0.0
    %7021 = vmatprep.subr.mxu0 0.0
    %7022 = vmatpush2.msra.mxu0 0.0
    %7023 = vmatprep.subr.mxu0 0.0
    %7024 = vmatpush2.msra.mxu0 0.0
    %7025 = vmatprep.subr.mxu0 0.0
    %7026 = vmatpush2.msra.mxu0 0.0
    %7027 = vmatprep.subr.mxu0 0.0
    %7028 = vmatpush2.msra.mxu0 0.0
    %7029 = vmatprep.subr.mxu0 0.0
    %7030 = vmatpush2.msra.mxu0 0.0
    %7031 = vmatprep.subr.mxu0 0.0
    %7032 = vmatpush2.msra.mxu0 0.0
    %7033 = vmatprep.subr.mxu0 0.0
    %7034 = vmatpush2.msra.mxu0 0.0
    %7035 = vmatprep.subr.mxu0 0.0
    %7036 = vmatpush2.msra.mxu0 0.0
    %7037 = vmatprep.subr.mxu0 0.0
    %7038 = vmatpush2.msra.mxu0 0.0
    %7039 = vmatprep.mubr.f32.mxu0 0.0
    %7040 = vmatmul.mubr.f32.gmra.mxu0 %v1066
    %v7041 = vpop.f32.mrf.mxu0
    %v7042 = vadd.f32 0.0, %v7041
    %v7043 = vpop.f32.mrf.mxu0
    %7044 = vdwg.mxu0
    %7045 = vmatprep.subr.mxu0 0.0
    %7046 = vmatpush1.msra.mxu0 %v2112
    %7047 = vmatprep.subr.mxu0 0.0
    %7048 = vmatpush1.msra.mxu0 %v2111
    %7049 = vmatprep.subr.mxu0 0.0
    %7050 = vmatpush1.msra.mxu0 %v2110
    %7051 = vmatprep.subr.mxu0 0.0
    %7052 = vmatpush1.msra.mxu0 %v2109
    %7053 = vmatprep.subr.mxu0 0.0
    %7054 = vmatpush1.msra.mxu0 %v2108
    %7055 = vmatprep.subr.mxu0 0.0
    %7056 = vmatpush1.msra.mxu0 %v2107
    %7057 = vmatprep.subr.mxu0 0.0
    %7058 = vmatpush1.msra.mxu0 %v2106
    %7059 = vmatprep.subr.mxu0 0.0
    %7060 = vmatpush1.msra.mxu0 %v2105
    %7061 = vmatprep.subr.mxu0 0.0
    %7062 = vmatpush1.msra.mxu0 %v2104
    %7063 = vmatprep.subr.mxu0 0.0
    %7064 = vmatpush1.msra.mxu0 %v2103
    %7065 = vmatprep.subr.mxu0 0.0
    %7066 = vmatpush1.msra.mxu0 %v2102
    %7067 = vmatprep.subr.mxu0 0.0
    %7068 = vmatpush1.msra.mxu0 %v2101
    %7069 = vmatprep.subr.mxu0 0.0
    %7070 = vmatpush1.msra.mxu0 %v2100
    %7071 = vmatprep.subr.mxu0 0.0
    %7072 = vmatpush1.msra.mxu0 %v2099
    %7073 = vmatprep.subr.mxu0 0.0
    %7074 = vmatpush1.msra.mxu0 %v2098
    %7075 = vmatprep.subr.mxu0 0.0
    %7076 = vmatpush1.msra.mxu0 %v2097
    %7077 = vmatprep.subr.mxu0 0.0
    %7078 = vmatpush2.msra.mxu0 0.0
    %7079 = vmatprep.subr.mxu0 0.0
    %7080 = vmatpush2.msra.mxu0 0.0
    %7081 = vmatprep.subr.mxu0 0.0
    %7082 = vmatpush2.msra.mxu0 0.0
    %7083 = vmatprep.subr.mxu0 0.0
    %7084 = vmatpush2.msra.mxu0 0.0
    %7085 = vmatprep.subr.mxu0 0.0
    %7086 = vmatpush2.msra.mxu0 0.0
    %7087 = vmatprep.subr.mxu0 0.0
    %7088 = vmatpush2.msra.mxu0 0.0
    %7089 = vmatprep.subr.mxu0 0.0
    %7090 = vmatpush2.msra.mxu0 0.0
    %7091 = vmatprep.subr.mxu0 0.0
    %7092 = vmatpush2.msra.mxu0 0.0
    %7093 = vmatprep.subr.mxu0 0.0
    %7094 = vmatpush2.msra.mxu0 0.0
    %7095 = vmatprep.subr.mxu0 0.0
    %7096 = vmatpush2.msra.mxu0 0.0
    %7097 = vmatprep.subr.mxu0 0.0
    %7098 = vmatpush2.msra.mxu0 0.0
    %7099 = vmatprep.subr.mxu0 0.0
    %7100 = vmatpush2.msra.mxu0 0.0
    %7101 = vmatprep.subr.mxu0 0.0
    %7102 = vmatpush2.msra.mxu0 0.0
    %7103 = vmatprep.subr.mxu0 0.0
    %7104 = vmatpush2.msra.mxu0 0.0
    %7105 = vmatprep.subr.mxu0 0.0
    %7106 = vmatpush2.msra.mxu0 0.0
    %7107 = vmatprep.subr.mxu0 0.0
    %7108 = vmatpush2.msra.mxu0 0.0
    %7109 = vmatprep.mubr.f32.mxu0 0.0
    %7110 = vmatmul.mubr.f32.gmra.mxu0 %v1067
    %v7111 = vpop.f32.mrf.mxu0
    %v7112 = vadd.f32 0.0, %v7111
    %v7113 = vpop.f32.mrf.mxu0
    %7114 = vdwg.mxu0
    %7115 = vmatprep.subr.mxu0 0.0
    %7116 = vmatpush1.msra.mxu0 %v2128
    %7117 = vmatprep.subr.mxu0 0.0
    %7118 = vmatpush1.msra.mxu0 %v2127
    %7119 = vmatprep.subr.mxu0 0.0
    %7120 = vmatpush1.msra.mxu0 %v2126
    %7121 = vmatprep.subr.mxu0 0.0
    %7122 = vmatpush1.msra.mxu0 %v2125
    %7123 = vmatprep.subr.mxu0 0.0
    %7124 = vmatpush1.msra.mxu0 %v2124
    %7125 = vmatprep.subr.mxu0 0.0
    %7126 = vmatpush1.msra.mxu0 %v2123
    %7127 = vmatprep.subr.mxu0 0.0
    %7128 = vmatpush1.msra.mxu0 %v2122
    %7129 = vmatprep.subr.mxu0 0.0
    %7130 = vmatpush1.msra.mxu0 %v2121
    %7131 = vmatprep.subr.mxu0 0.0
    %7132 = vmatpush1.msra.mxu0 %v2120
    %7133 = vmatprep.subr.mxu0 0.0
    %7134 = vmatpush1.msra.mxu0 %v2119
    %7135 = vmatprep.subr.mxu0 0.0
    %7136 = vmatpush1.msra.mxu0 %v2118
    %7137 = vmatprep.subr.mxu0 0.0
    %7138 = vmatpush1.msra.mxu0 %v2117
    %7139 = vmatprep.subr.mxu0 0.0
    %7140 = vmatpush1.msra.mxu0 %v2116
    %7141 = vmatprep.subr.mxu0 0.0
    %7142 = vmatpush1.msra.mxu0 %v2115
    %7143 = vmatprep.subr.mxu0 0.0
    %7144 = vmatpush1.msra.mxu0 %v2114
    %7145 = vmatprep.subr.mxu0 0.0
    %7146 = vmatpush1.msra.mxu0 %v2113
    %7147 = vmatprep.subr.mxu0 0.0
    %7148 = vmatpush2.msra.mxu0 0.0
    %7149 = vmatprep.subr.mxu0 0.0
    %7150 = vmatpush2.msra.mxu0 0.0
    %7151 = vmatprep.subr.mxu0 0.0
    %7152 = vmatpush2.msra.mxu0 0.0
    %7153 = vmatprep.subr.mxu0 0.0
    %7154 = vmatpush2.msra.mxu0 0.0
    %7155 = vmatprep.subr.mxu0 0.0
    %7156 = vmatpush2.msra.mxu0 0.0
    %7157 = vmatprep.subr.mxu0 0.0
    %7158 = vmatpush2.msra.mxu0 0.0
    %7159 = vmatprep.subr.mxu0 0.0
    %7160 = vmatpush2.msra.mxu0 0.0
    %7161 = vmatprep.subr.mxu0 0.0
    %7162 = vmatpush2.msra.mxu0 0.0
    %7163 = vmatprep.subr.mxu0 0.0
    %7164 = vmatpush2.msra.mxu0 0.0
    %7165 = vmatprep.subr.mxu0 0.0
    %7166 = vmatpush2.msra.mxu0 0.0
    %7167 = vmatprep.subr.mxu0 0.0
    %7168 = vmatpush2.msra.mxu0 0.0
    %7169 = vmatprep.subr.mxu0 0.0
    %7170 = vmatpush2.msra.mxu0 0.0
    %7171 = vmatprep.subr.mxu0 0.0
    %7172 = vmatpush2.msra.mxu0 0.0
    %7173 = vmatprep.subr.mxu0 0.0
    %7174 = vmatpush2.msra.mxu0 0.0
    %7175 = vmatprep.subr.mxu0 0.0
    %7176 = vmatpush2.msra.mxu0 0.0
    %7177 = vmatprep.subr.mxu0 0.0
    %7178 = vmatpush2.msra.mxu0 0.0
    %7179 = vmatprep.mubr.f32.mxu0 0.0
    %7180 = vmatmul.mubr.f32.gmra.mxu0 %v1068
    %v7181 = vpop.f32.mrf.mxu0
    %v7182 = vadd.f32 0.0, %v7181
    %v7183 = vpop.f32.mrf.mxu0
    %7184 = vdwg.mxu0
    %7185 = vmatprep.subr.mxu0 0.0
    %7186 = vmatpush1.msra.mxu0 %v2144
    %7187 = vmatprep.subr.mxu0 0.0
    %7188 = vmatpush1.msra.mxu0 %v2143
    %7189 = vmatprep.subr.mxu0 0.0
    %7190 = vmatpush1.msra.mxu0 %v2142
    %7191 = vmatprep.subr.mxu0 0.0
    %7192 = vmatpush1.msra.mxu0 %v2141
    %7193 = vmatprep.subr.mxu0 0.0
    %7194 = vmatpush1.msra.mxu0 %v2140
    %7195 = vmatprep.subr.mxu0 0.0
    %7196 = vmatpush1.msra.mxu0 %v2139
    %7197 = vmatprep.subr.mxu0 0.0
    %7198 = vmatpush1.msra.mxu0 %v2138
    %7199 = vmatprep.subr.mxu0 0.0
    %7200 = vmatpush1.msra.mxu0 %v2137
    %7201 = vmatprep.subr.mxu0 0.0
    %7202 = vmatpush1.msra.mxu0 %v2136
    %7203 = vmatprep.subr.mxu0 0.0
    %7204 = vmatpush1.msra.mxu0 %v2135
    %7205 = vmatprep.subr.mxu0 0.0
    %7206 = vmatpush1.msra.mxu0 %v2134
    %7207 = vmatprep.subr.mxu0 0.0
    %7208 = vmatpush1.msra.mxu0 %v2133
    %7209 = vmatprep.subr.mxu0 0.0
    %7210 = vmatpush1.msra.mxu0 %v2132
    %7211 = vmatprep.subr.mxu0 0.0
    %7212 = vmatpush1.msra.mxu0 %v2131
    %7213 = vmatprep.subr.mxu0 0.0
    %7214 = vmatpush1.msra.mxu0 %v2130
    %7215 = vmatprep.subr.mxu0 0.0
    %7216 = vmatpush1.msra.mxu0 %v2129
    %7217 = vmatprep.subr.mxu0 0.0
    %7218 = vmatpush2.msra.mxu0 0.0
    %7219 = vmatprep.subr.mxu0 0.0
    %7220 = vmatpush2.msra.mxu0 0.0
    %7221 = vmatprep.subr.mxu0 0.0
    %7222 = vmatpush2.msra.mxu0 0.0
    %7223 = vmatprep.subr.mxu0 0.0
    %7224 = vmatpush2.msra.mxu0 0.0
    %7225 = vmatprep.subr.mxu0 0.0
    %7226 = vmatpush2.msra.mxu0 0.0
    %7227 = vmatprep.subr.mxu0 0.0
    %7228 = vmatpush2.msra.mxu0 0.0
    %7229 = vmatprep.subr.mxu0 0.0
    %7230 = vmatpush2.msra.mxu0 0.0
    %7231 = vmatprep.subr.mxu0 0.0
    %7232 = vmatpush2.msra.mxu0 0.0
    %7233 = vmatprep.subr.mxu0 0.0
    %7234 = vmatpush2.msra.mxu0 0.0
    %7235 = vmatprep.subr.mxu0 0.0
    %7236 = vmatpush2.msra.mxu0 0.0
    %7237 = vmatprep.subr.mxu0 0.0
    %7238 = vmatpush2.msra.mxu0 0.0
    %7239 = vmatprep.subr.mxu0 0.0
    %7240 = vmatpush2.msra.mxu0 0.0
    %7241 = vmatprep.subr.mxu0 0.0
    %7242 = vmatpush2.msra.mxu0 0.0
    %7243 = vmatprep.subr.mxu0 0.0
    %7244 = vmatpush2.msra.mxu0 0.0
    %7245 = vmatprep.subr.mxu0 0.0
    %7246 = vmatpush2.msra.mxu0 0.0
    %7247 = vmatprep.subr.mxu0 0.0
    %7248 = vmatpush2.msra.mxu0 0.0
    %7249 = vmatprep.mubr.f32.mxu0 0.0
    %7250 = vmatmul.mubr.f32.gmra.mxu0 %v1069
    %v7251 = vpop.f32.mrf.mxu0
    %v7252 = vadd.f32 0.0, %v7251
    %v7253 = vpop.f32.mrf.mxu0
    %7254 = vdwg.mxu0
    %7255 = vmatprep.subr.mxu0 0.0
    %7256 = vmatpush1.msra.mxu0 %v2160
    %7257 = vmatprep.subr.mxu0 0.0
    %7258 = vmatpush1.msra.mxu0 %v2159
    %7259 = vmatprep.subr.mxu0 0.0
    %7260 = vmatpush1.msra.mxu0 %v2158
    %7261 = vmatprep.subr.mxu0 0.0
    %7262 = vmatpush1.msra.mxu0 %v2157
    %7263 = vmatprep.subr.mxu0 0.0
    %7264 = vmatpush1.msra.mxu0 %v2156
    %7265 = vmatprep.subr.mxu0 0.0
    %7266 = vmatpush1.msra.mxu0 %v2155
    %7267 = vmatprep.subr.mxu0 0.0
    %7268 = vmatpush1.msra.mxu0 %v2154
    %7269 = vmatprep.subr.mxu0 0.0
    %7270 = vmatpush1.msra.mxu0 %v2153
    %7271 = vmatprep.subr.mxu0 0.0
    %7272 = vmatpush1.msra.mxu0 %v2152
    %7273 = vmatprep.subr.mxu0 0.0
    %7274 = vmatpush1.msra.mxu0 %v2151
    %7275 = vmatprep.subr.mxu0 0.0
    %7276 = vmatpush1.msra.mxu0 %v2150
    %7277 = vmatprep.subr.mxu0 0.0
    %7278 = vmatpush1.msra.mxu0 %v2149
    %7279 = vmatprep.subr.mxu0 0.0
    %7280 = vmatpush1.msra.mxu0 %v2148
    %7281 = vmatprep.subr.mxu0 0.0
    %7282 = vmatpush1.msra.mxu0 %v2147
    %7283 = vmatprep.subr.mxu0 0.0
    %7284 = vmatpush1.msra.mxu0 %v2146
    %7285 = vmatprep.subr.mxu0 0.0
    %7286 = vmatpush1.msra.mxu0 %v2145
    %7287 = vmatprep.subr.mxu0 0.0
    %7288 = vmatpush2.msra.mxu0 0.0
    %7289 = vmatprep.subr.mxu0 0.0
    %7290 = vmatpush2.msra.mxu0 0.0
    %7291 = vmatprep.subr.mxu0 0.0
    %7292 = vmatpush2.msra.mxu0 0.0
    %7293 = vmatprep.subr.mxu0 0.0
    %7294 = vmatpush2.msra.mxu0 0.0
    %7295 = vmatprep.subr.mxu0 0.0
    %7296 = vmatpush2.msra.mxu0 0.0
    %7297 = vmatprep.subr.mxu0 0.0
    %7298 = vmatpush2.msra.mxu0 0.0
    %7299 = vmatprep.subr.mxu0 0.0
    %7300 = vmatpush2.msra.mxu0 0.0
    %7301 = vmatprep.subr.mxu0 0.0
    %7302 = vmatpush2.msra.mxu0 0.0
    %7303 = vmatprep.subr.mxu0 0.0
    %7304 = vmatpush2.msra.mxu0 0.0
    %7305 = vmatprep.subr.mxu0 0.0
    %7306 = vmatpush2.msra.mxu0 0.0
    %7307 = vmatprep.subr.mxu0 0.0
    %7308 = vmatpush2.msra.mxu0 0.0
    %7309 = vmatprep.subr.mxu0 0.0
    %7310 = vmatpush2.msra.mxu0 0.0
    %7311 = vmatprep.subr.mxu0 0.0
    %7312 = vmatpush2.msra.mxu0 0.0
    %7313 = vmatprep.subr.mxu0 0.0
    %7314 = vmatpush2.msra.mxu0 0.0
    %7315 = vmatprep.subr.mxu0 0.0
    %7316 = vmatpush2.msra.mxu0 0.0
    %7317 = vmatprep.subr.mxu0 0.0
    %7318 = vmatpush2.msra.mxu0 0.0
    %7319 = vmatprep.mubr.f32.mxu0 0.0
    %7320 = vmatmul.mubr.f32.gmra.mxu0 %v1070
    %v7321 = vpop.f32.mrf.mxu0
    %v7322 = vadd.f32 0.0, %v7321
    %v7323 = vpop.f32.mrf.mxu0
    %7324 = vdwg.mxu0
    %7325 = vmatprep.subr.mxu0 0.0
    %7326 = vmatpush1.msra.mxu0 %v2176
    %7327 = vmatprep.subr.mxu0 0.0
    %7328 = vmatpush1.msra.mxu0 %v2175
    %7329 = vmatprep.subr.mxu0 0.0
    %7330 = vmatpush1.msra.mxu0 %v2174
    %7331 = vmatprep.subr.mxu0 0.0
    %7332 = vmatpush1.msra.mxu0 %v2173
    %7333 = vmatprep.subr.mxu0 0.0
    %7334 = vmatpush1.msra.mxu0 %v2172
    %7335 = vmatprep.subr.mxu0 0.0
    %7336 = vmatpush1.msra.mxu0 %v2171
    %7337 = vmatprep.subr.mxu0 0.0
    %7338 = vmatpush1.msra.mxu0 %v2170
    %7339 = vmatprep.subr.mxu0 0.0
    %7340 = vmatpush1.msra.mxu0 %v2169
    %7341 = vmatprep.subr.mxu0 0.0
    %7342 = vmatpush1.msra.mxu0 %v2168
    %7343 = vmatprep.subr.mxu0 0.0
    %7344 = vmatpush1.msra.mxu0 %v2167
    %7345 = vmatprep.subr.mxu0 0.0
    %7346 = vmatpush1.msra.mxu0 %v2166
    %7347 = vmatprep.subr.mxu0 0.0
    %7348 = vmatpush1.msra.mxu0 %v2165
    %7349 = vmatprep.subr.mxu0 0.0
    %7350 = vmatpush1.msra.mxu0 %v2164
    %7351 = vmatprep.subr.mxu0 0.0
    %7352 = vmatpush1.msra.mxu0 %v2163
    %7353 = vmatprep.subr.mxu0 0.0
    %7354 = vmatpush1.msra.mxu0 %v2162
    %7355 = vmatprep.subr.mxu0 0.0
    %7356 = vmatpush1.msra.mxu0 %v2161
    %7357 = vmatprep.subr.mxu0 0.0
    %7358 = vmatpush2.msra.mxu0 0.0
    %7359 = vmatprep.subr.mxu0 0.0
    %7360 = vmatpush2.msra.mxu0 0.0
    %7361 = vmatprep.subr.mxu0 0.0
    %7362 = vmatpush2.msra.mxu0 0.0
    %7363 = vmatprep.subr.mxu0 0.0
    %7364 = vmatpush2.msra.mxu0 0.0
    %7365 = vmatprep.subr.mxu0 0.0
    %7366 = vmatpush2.msra.mxu0 0.0
    %7367 = vmatprep.subr.mxu0 0.0
    %7368 = vmatpush2.msra.mxu0 0.0
    %7369 = vmatprep.subr.mxu0 0.0
    %7370 = vmatpush2.msra.mxu0 0.0
    %7371 = vmatprep.subr.mxu0 0.0
    %7372 = vmatpush2.msra.mxu0 0.0
    %7373 = vmatprep.subr.mxu0 0.0
    %7374 = vmatpush2.msra.mxu0 0.0
    %7375 = vmatprep.subr.mxu0 0.0
    %7376 = vmatpush2.msra.mxu0 0.0
    %7377 = vmatprep.subr.mxu0 0.0
    %7378 = vmatpush2.msra.mxu0 0.0
    %7379 = vmatprep.subr.mxu0 0.0
    %7380 = vmatpush2.msra.mxu0 0.0
    %7381 = vmatprep.subr.mxu0 0.0
    %7382 = vmatpush2.msra.mxu0 0.0
    %7383 = vmatprep.subr.mxu0 0.0
    %7384 = vmatpush2.msra.mxu0 0.0
    %7385 = vmatprep.subr.mxu0 0.0
    %7386 = vmatpush2.msra.mxu0 0.0
    %7387 = vmatprep.subr.mxu0 0.0
    %7388 = vmatpush2.msra.mxu0 0.0
    %7389 = vmatprep.mubr.f32.mxu0 0.0
    %7390 = vmatmul.mubr.f32.gmra.mxu0 %v1071
    %v7391 = vpop.f32.mrf.mxu0
    %v7392 = vadd.f32 0.0, %v7391
    %v7393 = vpop.f32.mrf.mxu0
    %7394 = vdwg.mxu0
    %7395 = vmatprep.subr.mxu0 0.0
    %7396 = vmatpush1.msra.mxu0 %v2192
    %7397 = vmatprep.subr.mxu0 0.0
    %7398 = vmatpush1.msra.mxu0 %v2191
    %7399 = vmatprep.subr.mxu0 0.0
    %7400 = vmatpush1.msra.mxu0 %v2190
    %7401 = vmatprep.subr.mxu0 0.0
    %7402 = vmatpush1.msra.mxu0 %v2189
    %7403 = vmatprep.subr.mxu0 0.0
    %7404 = vmatpush1.msra.mxu0 %v2188
    %7405 = vmatprep.subr.mxu0 0.0
    %7406 = vmatpush1.msra.mxu0 %v2187
    %7407 = vmatprep.subr.mxu0 0.0
    %7408 = vmatpush1.msra.mxu0 %v2186
    %7409 = vmatprep.subr.mxu0 0.0
    %7410 = vmatpush1.msra.mxu0 %v2185
    %7411 = vmatprep.subr.mxu0 0.0
    %7412 = vmatpush1.msra.mxu0 %v2184
    %7413 = vmatprep.subr.mxu0 0.0
    %7414 = vmatpush1.msra.mxu0 %v2183
    %7415 = vmatprep.subr.mxu0 0.0
    %7416 = vmatpush1.msra.mxu0 %v2182
    %7417 = vmatprep.subr.mxu0 0.0
    %7418 = vmatpush1.msra.mxu0 %v2181
    %7419 = vmatprep.subr.mxu0 0.0
    %7420 = vmatpush1.msra.mxu0 %v2180
    %7421 = vmatprep.subr.mxu0 0.0
    %7422 = vmatpush1.msra.mxu0 %v2179
    %7423 = vmatprep.subr.mxu0 0.0
    %7424 = vmatpush1.msra.mxu0 %v2178
    %7425 = vmatprep.subr.mxu0 0.0
    %7426 = vmatpush1.msra.mxu0 %v2177
    %7427 = vmatprep.subr.mxu0 0.0
    %7428 = vmatpush2.msra.mxu0 0.0
    %7429 = vmatprep.subr.mxu0 0.0
    %7430 = vmatpush2.msra.mxu0 0.0
    %7431 = vmatprep.subr.mxu0 0.0
    %7432 = vmatpush2.msra.mxu0 0.0
    %7433 = vmatprep.subr.mxu0 0.0
    %7434 = vmatpush2.msra.mxu0 0.0
    %7435 = vmatprep.subr.mxu0 0.0
    %7436 = vmatpush2.msra.mxu0 0.0
    %7437 = vmatprep.subr.mxu0 0.0
    %7438 = vmatpush2.msra.mxu0 0.0
    %7439 = vmatprep.subr.mxu0 0.0
    %7440 = vmatpush2.msra.mxu0 0.0
    %7441 = vmatprep.subr.mxu0 0.0
    %7442 = vmatpush2.msra.mxu0 0.0
    %7443 = vmatprep.subr.mxu0 0.0
    %7444 = vmatpush2.msra.mxu0 0.0
    %7445 = vmatprep.subr.mxu0 0.0
    %7446 = vmatpush2.msra.mxu0 0.0
    %7447 = vmatprep.subr.mxu0 0.0
    %7448 = vmatpush2.msra.mxu0 0.0
    %7449 = vmatprep.subr.mxu0 0.0
    %7450 = vmatpush2.msra.mxu0 0.0
    %7451 = vmatprep.subr.mxu0 0.0
    %7452 = vmatpush2.msra.mxu0 0.0
    %7453 = vmatprep.subr.mxu0 0.0
    %7454 = vmatpush2.msra.mxu0 0.0
    %7455 = vmatprep.subr.mxu0 0.0
    %7456 = vmatpush2.msra.mxu0 0.0
    %7457 = vmatprep.subr.mxu0 0.0
    %7458 = vmatpush2.msra.mxu0 0.0
    %7459 = vmatprep.mubr.f32.mxu0 0.0
    %7460 = vmatmul.mubr.f32.gmra.mxu0 %v1072
    %v7461 = vpop.f32.mrf.mxu0
    %v7462 = vadd.f32 0.0, %v7461
    %v7463 = vpop.f32.mrf.mxu0
    %7464 = vdwg.mxu0
    %7465 = vmatprep.subr.mxu0 0.0
    %7466 = vmatpush1.msra.mxu0 %v2208
    %7467 = vmatprep.subr.mxu0 0.0
    %7468 = vmatpush1.msra.mxu0 %v2207
    %7469 = vmatprep.subr.mxu0 0.0
    %7470 = vmatpush1.msra.mxu0 %v2206
    %7471 = vmatprep.subr.mxu0 0.0
    %7472 = vmatpush1.msra.mxu0 %v2205
    %7473 = vmatprep.subr.mxu0 0.0
    %7474 = vmatpush1.msra.mxu0 %v2204
    %7475 = vmatprep.subr.mxu0 0.0
    %7476 = vmatpush1.msra.mxu0 %v2203
    %7477 = vmatprep.subr.mxu0 0.0
    %7478 = vmatpush1.msra.mxu0 %v2202
    %7479 = vmatprep.subr.mxu0 0.0
    %7480 = vmatpush1.msra.mxu0 %v2201
    %7481 = vmatprep.subr.mxu0 0.0
    %7482 = vmatpush1.msra.mxu0 %v2200
    %7483 = vmatprep.subr.mxu0 0.0
    %7484 = vmatpush1.msra.mxu0 %v2199
    %7485 = vmatprep.subr.mxu0 0.0
    %7486 = vmatpush1.msra.mxu0 %v2198
    %7487 = vmatprep.subr.mxu0 0.0
    %7488 = vmatpush1.msra.mxu0 %v2197
    %7489 = vmatprep.subr.mxu0 0.0
    %7490 = vmatpush1.msra.mxu0 %v2196
    %7491 = vmatprep.subr.mxu0 0.0
    %7492 = vmatpush1.msra.mxu0 %v2195
    %7493 = vmatprep.subr.mxu0 0.0
    %7494 = vmatpush1.msra.mxu0 %v2194
    %7495 = vmatprep.subr.mxu0 0.0
    %7496 = vmatpush1.msra.mxu0 %v2193
    %7497 = vmatprep.subr.mxu0 0.0
    %7498 = vmatpush2.msra.mxu0 0.0
    %7499 = vmatprep.subr.mxu0 0.0
    %7500 = vmatpush2.msra.mxu0 0.0
    %7501 = vmatprep.subr.mxu0 0.0
    %7502 = vmatpush2.msra.mxu0 0.0
    %7503 = vmatprep.subr.mxu0 0.0
    %7504 = vmatpush2.msra.mxu0 0.0
    %7505 = vmatprep.subr.mxu0 0.0
    %7506 = vmatpush2.msra.mxu0 0.0
    %7507 = vmatprep.subr.mxu0 0.0
    %7508 = vmatpush2.msra.mxu0 0.0
    %7509 = vmatprep.subr.mxu0 0.0
    %7510 = vmatpush2.msra.mxu0 0.0
    %7511 = vmatprep.subr.mxu0 0.0
    %7512 = vmatpush2.msra.mxu0 0.0
    %7513 = vmatprep.subr.mxu0 0.0
    %7514 = vmatpush2.msra.mxu0 0.0
    %7515 = vmatprep.subr.mxu0 0.0
    %7516 = vmatpush2.msra.mxu0 0.0
    %7517 = vmatprep.subr.mxu0 0.0
    %7518 = vmatpush2.msra.mxu0 0.0
    %7519 = vmatprep.subr.mxu0 0.0
    %7520 = vmatpush2.msra.mxu0 0.0
    %7521 = vmatprep.subr.mxu0 0.0
    %7522 = vmatpush2.msra.mxu0 0.0
    %7523 = vmatprep.subr.mxu0 0.0
    %7524 = vmatpush2.msra.mxu0 0.0
    %7525 = vmatprep.subr.mxu0 0.0
    %7526 = vmatpush2.msra.mxu0 0.0
    %7527 = vmatprep.subr.mxu0 0.0
    %7528 = vmatpush2.msra.mxu0 0.0
    %7529 = vmatprep.mubr.f32.mxu0 0.0
    %7530 = vmatmul.mubr.f32.gmra.mxu0 %v1073
    %v7531 = vpop.f32.mrf.mxu0
    %v7532 = vadd.f32 0.0, %v7531
    %v7533 = vpop.f32.mrf.mxu0
    %7534 = vdwg.mxu0
    %7535 = vmatprep.subr.mxu0 0.0
    %7536 = vmatpush1.msra.mxu0 %v2224
    %7537 = vmatprep.subr.mxu0 0.0
    %7538 = vmatpush1.msra.mxu0 %v2223
    %7539 = vmatprep.subr.mxu0 0.0
    %7540 = vmatpush1.msra.mxu0 %v2222
    %7541 = vmatprep.subr.mxu0 0.0
    %7542 = vmatpush1.msra.mxu0 %v2221
    %7543 = vmatprep.subr.mxu0 0.0
    %7544 = vmatpush1.msra.mxu0 %v2220
    %7545 = vmatprep.subr.mxu0 0.0
    %7546 = vmatpush1.msra.mxu0 %v2219
    %7547 = vmatprep.subr.mxu0 0.0
    %7548 = vmatpush1.msra.mxu0 %v2218
    %7549 = vmatprep.subr.mxu0 0.0
    %7550 = vmatpush1.msra.mxu0 %v2217
    %7551 = vmatprep.subr.mxu0 0.0
    %7552 = vmatpush1.msra.mxu0 %v2216
    %7553 = vmatprep.subr.mxu0 0.0
    %7554 = vmatpush1.msra.mxu0 %v2215
    %7555 = vmatprep.subr.mxu0 0.0
    %7556 = vmatpush1.msra.mxu0 %v2214
    %7557 = vmatprep.subr.mxu0 0.0
    %7558 = vmatpush1.msra.mxu0 %v2213
    %7559 = vmatprep.subr.mxu0 0.0
    %7560 = vmatpush1.msra.mxu0 %v2212
    %7561 = vmatprep.subr.mxu0 0.0
    %7562 = vmatpush1.msra.mxu0 %v2211
    %7563 = vmatprep.subr.mxu0 0.0
    %7564 = vmatpush1.msra.mxu0 %v2210
    %7565 = vmatprep.subr.mxu0 0.0
    %7566 = vmatpush1.msra.mxu0 %v2209
    %7567 = vmatprep.subr.mxu0 0.0
    %7568 = vmatpush2.msra.mxu0 0.0
    %7569 = vmatprep.subr.mxu0 0.0
    %7570 = vmatpush2.msra.mxu0 0.0
    %7571 = vmatprep.subr.mxu0 0.0
    %7572 = vmatpush2.msra.mxu0 0.0
    %7573 = vmatprep.subr.mxu0 0.0
    %7574 = vmatpush2.msra.mxu0 0.0
    %7575 = vmatprep.subr.mxu0 0.0
    %7576 = vmatpush2.msra.mxu0 0.0
    %7577 = vmatprep.subr.mxu0 0.0
    %7578 = vmatpush2.msra.mxu0 0.0
    %7579 = vmatprep.subr.mxu0 0.0
    %7580 = vmatpush2.msra.mxu0 0.0
    %7581 = vmatprep.subr.mxu0 0.0
    %7582 = vmatpush2.msra.mxu0 0.0
    %7583 = vmatprep.subr.mxu0 0.0
    %7584 = vmatpush2.msra.mxu0 0.0
    %7585 = vmatprep.subr.mxu0 0.0
    %7586 = vmatpush2.msra.mxu0 0.0
    %7587 = vmatprep.subr.mxu0 0.0
    %7588 = vmatpush2.msra.mxu0 0.0
    %7589 = vmatprep.subr.mxu0 0.0
    %7590 = vmatpush2.msra.mxu0 0.0
    %7591 = vmatprep.subr.mxu0 0.0
    %7592 = vmatpush2.msra.mxu0 0.0
    %7593 = vmatprep.subr.mxu0 0.0
    %7594 = vmatpush2.msra.mxu0 0.0
    %7595 = vmatprep.subr.mxu0 0.0
    %7596 = vmatpush2.msra.mxu0 0.0
    %7597 = vmatprep.subr.mxu0 0.0
    %7598 = vmatpush2.msra.mxu0 0.0
    %7599 = vmatprep.mubr.f32.mxu0 0.0
    %7600 = vmatmul.mubr.f32.gmra.mxu0 %v1074
    %v7601 = vpop.f32.mrf.mxu0
    %v7602 = vadd.f32 0.0, %v7601
    %v7603 = vpop.f32.mrf.mxu0
    %7604 = vdwg.mxu0
    %7605 = vmatprep.subr.mxu0 0.0
    %7606 = vmatpush1.msra.mxu0 %v2240
    %7607 = vmatprep.subr.mxu0 0.0
    %7608 = vmatpush1.msra.mxu0 %v2239
    %7609 = vmatprep.subr.mxu0 0.0
    %7610 = vmatpush1.msra.mxu0 %v2238
    %7611 = vmatprep.subr.mxu0 0.0
    %7612 = vmatpush1.msra.mxu0 %v2237
    %7613 = vmatprep.subr.mxu0 0.0
    %7614 = vmatpush1.msra.mxu0 %v2236
    %7615 = vmatprep.subr.mxu0 0.0
    %7616 = vmatpush1.msra.mxu0 %v2235
    %7617 = vmatprep.subr.mxu0 0.0
    %7618 = vmatpush1.msra.mxu0 %v2234
    %7619 = vmatprep.subr.mxu0 0.0
    %7620 = vmatpush1.msra.mxu0 %v2233
    %7621 = vmatprep.subr.mxu0 0.0
    %7622 = vmatpush1.msra.mxu0 %v2232
    %7623 = vmatprep.subr.mxu0 0.0
    %7624 = vmatpush1.msra.mxu0 %v2231
    %7625 = vmatprep.subr.mxu0 0.0
    %7626 = vmatpush1.msra.mxu0 %v2230
    %7627 = vmatprep.subr.mxu0 0.0
    %7628 = vmatpush1.msra.mxu0 %v2229
    %7629 = vmatprep.subr.mxu0 0.0
    %7630 = vmatpush1.msra.mxu0 %v2228
    %7631 = vmatprep.subr.mxu0 0.0
    %7632 = vmatpush1.msra.mxu0 %v2227
    %7633 = vmatprep.subr.mxu0 0.0
    %7634 = vmatpush1.msra.mxu0 %v2226
    %7635 = vmatprep.subr.mxu0 0.0
    %7636 = vmatpush1.msra.mxu0 %v2225
    %7637 = vmatprep.subr.mxu0 0.0
    %7638 = vmatpush2.msra.mxu0 0.0
    %7639 = vmatprep.subr.mxu0 0.0
    %7640 = vmatpush2.msra.mxu0 0.0
    %7641 = vmatprep.subr.mxu0 0.0
    %7642 = vmatpush2.msra.mxu0 0.0
    %7643 = vmatprep.subr.mxu0 0.0
    %7644 = vmatpush2.msra.mxu0 0.0
    %7645 = vmatprep.subr.mxu0 0.0
    %7646 = vmatpush2.msra.mxu0 0.0
    %7647 = vmatprep.subr.mxu0 0.0
    %7648 = vmatpush2.msra.mxu0 0.0
    %7649 = vmatprep.subr.mxu0 0.0
    %7650 = vmatpush2.msra.mxu0 0.0
    %7651 = vmatprep.subr.mxu0 0.0
    %7652 = vmatpush2.msra.mxu0 0.0
    %7653 = vmatprep.subr.mxu0 0.0
    %7654 = vmatpush2.msra.mxu0 0.0
    %7655 = vmatprep.subr.mxu0 0.0
    %7656 = vmatpush2.msra.mxu0 0.0
    %7657 = vmatprep.subr.mxu0 0.0
    %7658 = vmatpush2.msra.mxu0 0.0
    %7659 = vmatprep.subr.mxu0 0.0
    %7660 = vmatpush2.msra.mxu0 0.0
    %7661 = vmatprep.subr.mxu0 0.0
    %7662 = vmatpush2.msra.mxu0 0.0
    %7663 = vmatprep.subr.mxu0 0.0
    %7664 = vmatpush2.msra.mxu0 0.0
    %7665 = vmatprep.subr.mxu0 0.0
    %7666 = vmatpush2.msra.mxu0 0.0
    %7667 = vmatprep.subr.mxu0 0.0
    %7668 = vmatpush2.msra.mxu0 0.0
    %7669 = vmatprep.mubr.f32.mxu0 0.0
    %7670 = vmatmul.mubr.f32.gmra.mxu0 %v1075
    %v7671 = vpop.f32.mrf.mxu0
    %v7672 = vadd.f32 0.0, %v7671
    %v7673 = vpop.f32.mrf.mxu0
    %7674 = vdwg.mxu0
    %7675 = vmatprep.subr.mxu0 0.0
    %7676 = vmatpush1.msra.mxu0 %v2256
    %7677 = vmatprep.subr.mxu0 0.0
    %7678 = vmatpush1.msra.mxu0 %v2255
    %7679 = vmatprep.subr.mxu0 0.0
    %7680 = vmatpush1.msra.mxu0 %v2254
    %7681 = vmatprep.subr.mxu0 0.0
    %7682 = vmatpush1.msra.mxu0 %v2253
    %7683 = vmatprep.subr.mxu0 0.0
    %7684 = vmatpush1.msra.mxu0 %v2252
    %7685 = vmatprep.subr.mxu0 0.0
    %7686 = vmatpush1.msra.mxu0 %v2251
    %7687 = vmatprep.subr.mxu0 0.0
    %7688 = vmatpush1.msra.mxu0 %v2250
    %7689 = vmatprep.subr.mxu0 0.0
    %7690 = vmatpush1.msra.mxu0 %v2249
    %7691 = vmatprep.subr.mxu0 0.0
    %7692 = vmatpush1.msra.mxu0 %v2248
    %7693 = vmatprep.subr.mxu0 0.0
    %7694 = vmatpush1.msra.mxu0 %v2247
    %7695 = vmatprep.subr.mxu0 0.0
    %7696 = vmatpush1.msra.mxu0 %v2246
    %7697 = vmatprep.subr.mxu0 0.0
    %7698 = vmatpush1.msra.mxu0 %v2245
    %7699 = vmatprep.subr.mxu0 0.0
    %7700 = vmatpush1.msra.mxu0 %v2244
    %7701 = vmatprep.subr.mxu0 0.0
    %7702 = vmatpush1.msra.mxu0 %v2243
    %7703 = vmatprep.subr.mxu0 0.0
    %7704 = vmatpush1.msra.mxu0 %v2242
    %7705 = vmatprep.subr.mxu0 0.0
    %7706 = vmatpush1.msra.mxu0 %v2241
    %7707 = vmatprep.subr.mxu0 0.0
    %7708 = vmatpush2.msra.mxu0 0.0
    %7709 = vmatprep.subr.mxu0 0.0
    %7710 = vmatpush2.msra.mxu0 0.0
    %7711 = vmatprep.subr.mxu0 0.0
    %7712 = vmatpush2.msra.mxu0 0.0
    %7713 = vmatprep.subr.mxu0 0.0
    %7714 = vmatpush2.msra.mxu0 0.0
    %7715 = vmatprep.subr.mxu0 0.0
    %7716 = vmatpush2.msra.mxu0 0.0
    %7717 = vmatprep.subr.mxu0 0.0
    %7718 = vmatpush2.msra.mxu0 0.0
    %7719 = vmatprep.subr.mxu0 0.0
    %7720 = vmatpush2.msra.mxu0 0.0
    %7721 = vmatprep.subr.mxu0 0.0
    %7722 = vmatpush2.msra.mxu0 0.0
    %7723 = vmatprep.subr.mxu0 0.0
    %7724 = vmatpush2.msra.mxu0 0.0
    %7725 = vmatprep.subr.mxu0 0.0
    %7726 = vmatpush2.msra.mxu0 0.0
    %7727 = vmatprep.subr.mxu0 0.0
    %7728 = vmatpush2.msra.mxu0 0.0
    %7729 = vmatprep.subr.mxu0 0.0
    %7730 = vmatpush2.msra.mxu0 0.0
    %7731 = vmatprep.subr.mxu0 0.0
    %7732 = vmatpush2.msra.mxu0 0.0
    %7733 = vmatprep.subr.mxu0 0.0
    %7734 = vmatpush2.msra.mxu0 0.0
    %7735 = vmatprep.subr.mxu0 0.0
    %7736 = vmatpush2.msra.mxu0 0.0
    %7737 = vmatprep.subr.mxu0 0.0
    %7738 = vmatpush2.msra.mxu0 0.0
    %7739 = vmatprep.mubr.f32.mxu0 0.0
    %7740 = vmatmul.mubr.f32.gmra.mxu0 %v1076
    %v7741 = vpop.f32.mrf.mxu0
    %v7742 = vadd.f32 0.0, %v7741
    %v7743 = vpop.f32.mrf.mxu0
    %7744 = vdwg.mxu0
    %7745 = vmatprep.subr.mxu0 0.0
    %7746 = vmatpush1.msra.mxu0 %v2272
    %7747 = vmatprep.subr.mxu0 0.0
    %7748 = vmatpush1.msra.mxu0 %v2271
    %7749 = vmatprep.subr.mxu0 0.0
    %7750 = vmatpush1.msra.mxu0 %v2270
    %7751 = vmatprep.subr.mxu0 0.0
    %7752 = vmatpush1.msra.mxu0 %v2269
    %7753 = vmatprep.subr.mxu0 0.0
    %7754 = vmatpush1.msra.mxu0 %v2268
    %7755 = vmatprep.subr.mxu0 0.0
    %7756 = vmatpush1.msra.mxu0 %v2267
    %7757 = vmatprep.subr.mxu0 0.0
    %7758 = vmatpush1.msra.mxu0 %v2266
    %7759 = vmatprep.subr.mxu0 0.0
    %7760 = vmatpush1.msra.mxu0 %v2265
    %7761 = vmatprep.subr.mxu0 0.0
    %7762 = vmatpush1.msra.mxu0 %v2264
    %7763 = vmatprep.subr.mxu0 0.0
    %7764 = vmatpush1.msra.mxu0 %v2263
    %7765 = vmatprep.subr.mxu0 0.0
    %7766 = vmatpush1.msra.mxu0 %v2262
    %7767 = vmatprep.subr.mxu0 0.0
    %7768 = vmatpush1.msra.mxu0 %v2261
    %7769 = vmatprep.subr.mxu0 0.0
    %7770 = vmatpush1.msra.mxu0 %v2260
    %7771 = vmatprep.subr.mxu0 0.0
    %7772 = vmatpush1.msra.mxu0 %v2259
    %7773 = vmatprep.subr.mxu0 0.0
    %7774 = vmatpush1.msra.mxu0 %v2258
    %7775 = vmatprep.subr.mxu0 0.0
    %7776 = vmatpush1.msra.mxu0 %v2257
    %7777 = vmatprep.subr.mxu0 0.0
    %7778 = vmatpush2.msra.mxu0 0.0
    %7779 = vmatprep.subr.mxu0 0.0
    %7780 = vmatpush2.msra.mxu0 0.0
    %7781 = vmatprep.subr.mxu0 0.0
    %7782 = vmatpush2.msra.mxu0 0.0
    %7783 = vmatprep.subr.mxu0 0.0
    %7784 = vmatpush2.msra.mxu0 0.0
    %7785 = vmatprep.subr.mxu0 0.0
    %7786 = vmatpush2.msra.mxu0 0.0
    %7787 = vmatprep.subr.mxu0 0.0
    %7788 = vmatpush2.msra.mxu0 0.0
    %7789 = vmatprep.subr.mxu0 0.0
    %7790 = vmatpush2.msra.mxu0 0.0
    %7791 = vmatprep.subr.mxu0 0.0
    %7792 = vmatpush2.msra.mxu0 0.0
    %7793 = vmatprep.subr.mxu0 0.0
    %7794 = vmatpush2.msra.mxu0 0.0
    %7795 = vmatprep.subr.mxu0 0.0
    %7796 = vmatpush2.msra.mxu0 0.0
    %7797 = vmatprep.subr.mxu0 0.0
    %7798 = vmatpush2.msra.mxu0 0.0
    %7799 = vmatprep.subr.mxu0 0.0
    %7800 = vmatpush2.msra.mxu0 0.0
    %7801 = vmatprep.subr.mxu0 0.0
    %7802 = vmatpush2.msra.mxu0 0.0
    %7803 = vmatprep.subr.mxu0 0.0
    %7804 = vmatpush2.msra.mxu0 0.0
    %7805 = vmatprep.subr.mxu0 0.0
    %7806 = vmatpush2.msra.mxu0 0.0
    %7807 = vmatprep.subr.mxu0 0.0
    %7808 = vmatpush2.msra.mxu0 0.0
    %7809 = vmatprep.mubr.f32.mxu0 0.0
    %7810 = vmatmul.mubr.f32.gmra.mxu0 %v1077
    %v7811 = vpop.f32.mrf.mxu0
    %v7812 = vadd.f32 0.0, %v7811
    %v7813 = vpop.f32.mrf.mxu0
    %7814 = vdwg.mxu0
    %7815 = vmatprep.subr.mxu0 0.0
    %7816 = vmatpush1.msra.mxu0 %v2288
    %7817 = vmatprep.subr.mxu0 0.0
    %7818 = vmatpush1.msra.mxu0 %v2287
    %7819 = vmatprep.subr.mxu0 0.0
    %7820 = vmatpush1.msra.mxu0 %v2286
    %7821 = vmatprep.subr.mxu0 0.0
    %7822 = vmatpush1.msra.mxu0 %v2285
    %7823 = vmatprep.subr.mxu0 0.0
    %7824 = vmatpush1.msra.mxu0 %v2284
    %7825 = vmatprep.subr.mxu0 0.0
    %7826 = vmatpush1.msra.mxu0 %v2283
    %7827 = vmatprep.subr.mxu0 0.0
    %7828 = vmatpush1.msra.mxu0 %v2282
    %7829 = vmatprep.subr.mxu0 0.0
    %7830 = vmatpush1.msra.mxu0 %v2281
    %7831 = vmatprep.subr.mxu0 0.0
    %7832 = vmatpush1.msra.mxu0 %v2280
    %7833 = vmatprep.subr.mxu0 0.0
    %7834 = vmatpush1.msra.mxu0 %v2279
    %7835 = vmatprep.subr.mxu0 0.0
    %7836 = vmatpush1.msra.mxu0 %v2278
    %7837 = vmatprep.subr.mxu0 0.0
    %7838 = vmatpush1.msra.mxu0 %v2277
    %7839 = vmatprep.subr.mxu0 0.0
    %7840 = vmatpush1.msra.mxu0 %v2276
    %7841 = vmatprep.subr.mxu0 0.0
    %7842 = vmatpush1.msra.mxu0 %v2275
    %7843 = vmatprep.subr.mxu0 0.0
    %7844 = vmatpush1.msra.mxu0 %v2274
    %7845 = vmatprep.subr.mxu0 0.0
    %7846 = vmatpush1.msra.mxu0 %v2273
    %7847 = vmatprep.subr.mxu0 0.0
    %7848 = vmatpush2.msra.mxu0 0.0
    %7849 = vmatprep.subr.mxu0 0.0
    %7850 = vmatpush2.msra.mxu0 0.0
    %7851 = vmatprep.subr.mxu0 0.0
    %7852 = vmatpush2.msra.mxu0 0.0
    %7853 = vmatprep.subr.mxu0 0.0
    %7854 = vmatpush2.msra.mxu0 0.0
    %7855 = vmatprep.subr.mxu0 0.0
    %7856 = vmatpush2.msra.mxu0 0.0
    %7857 = vmatprep.subr.mxu0 0.0
    %7858 = vmatpush2.msra.mxu0 0.0
    %7859 = vmatprep.subr.mxu0 0.0
    %7860 = vmatpush2.msra.mxu0 0.0
    %7861 = vmatprep.subr.mxu0 0.0
    %7862 = vmatpush2.msra.mxu0 0.0
    %7863 = vmatprep.subr.mxu0 0.0
    %7864 = vmatpush2.msra.mxu0 0.0
    %7865 = vmatprep.subr.mxu0 0.0
    %7866 = vmatpush2.msra.mxu0 0.0
    %7867 = vmatprep.subr.mxu0 0.0
    %7868 = vmatpush2.msra.mxu0 0.0
    %7869 = vmatprep.subr.mxu0 0.0
    %7870 = vmatpush2.msra.mxu0 0.0
    %7871 = vmatprep.subr.mxu0 0.0
    %7872 = vmatpush2.msra.mxu0 0.0
    %7873 = vmatprep.subr.mxu0 0.0
    %7874 = vmatpush2.msra.mxu0 0.0
    %7875 = vmatprep.subr.mxu0 0.0
    %7876 = vmatpush2.msra.mxu0 0.0
    %7877 = vmatprep.subr.mxu0 0.0
    %7878 = vmatpush2.msra.mxu0 0.0
    %7879 = vmatprep.mubr.f32.mxu0 0.0
    %7880 = vmatmul.mubr.f32.gmra.mxu0 %v1078
    %v7881 = vpop.f32.mrf.mxu0
    %v7882 = vadd.f32 0.0, %v7881
    %v7883 = vpop.f32.mrf.mxu0
    %7884 = vdwg.mxu0
    %7885 = vmatprep.subr.mxu0 0.0
    %7886 = vmatpush1.msra.mxu0 %v2304
    %7887 = vmatprep.subr.mxu0 0.0
    %7888 = vmatpush1.msra.mxu0 %v2303
    %7889 = vmatprep.subr.mxu0 0.0
    %7890 = vmatpush1.msra.mxu0 %v2302
    %7891 = vmatprep.subr.mxu0 0.0
    %7892 = vmatpush1.msra.mxu0 %v2301
    %7893 = vmatprep.subr.mxu0 0.0
    %7894 = vmatpush1.msra.mxu0 %v2300
    %7895 = vmatprep.subr.mxu0 0.0
    %7896 = vmatpush1.msra.mxu0 %v2299
    %7897 = vmatprep.subr.mxu0 0.0
    %7898 = vmatpush1.msra.mxu0 %v2298
    %7899 = vmatprep.subr.mxu0 0.0
    %7900 = vmatpush1.msra.mxu0 %v2297
    %7901 = vmatprep.subr.mxu0 0.0
    %7902 = vmatpush1.msra.mxu0 %v2296
    %7903 = vmatprep.subr.mxu0 0.0
    %7904 = vmatpush1.msra.mxu0 %v2295
    %7905 = vmatprep.subr.mxu0 0.0
    %7906 = vmatpush1.msra.mxu0 %v2294
    %7907 = vmatprep.subr.mxu0 0.0
    %7908 = vmatpush1.msra.mxu0 %v2293
    %7909 = vmatprep.subr.mxu0 0.0
    %7910 = vmatpush1.msra.mxu0 %v2292
    %7911 = vmatprep.subr.mxu0 0.0
    %7912 = vmatpush1.msra.mxu0 %v2291
    %7913 = vmatprep.subr.mxu0 0.0
    %7914 = vmatpush1.msra.mxu0 %v2290
    %7915 = vmatprep.subr.mxu0 0.0
    %7916 = vmatpush1.msra.mxu0 %v2289
    %7917 = vmatprep.subr.mxu0 0.0
    %7918 = vmatpush2.msra.mxu0 0.0
    %7919 = vmatprep.subr.mxu0 0.0
    %7920 = vmatpush2.msra.mxu0 0.0
    %7921 = vmatprep.subr.mxu0 0.0
    %7922 = vmatpush2.msra.mxu0 0.0
    %7923 = vmatprep.subr.mxu0 0.0
    %7924 = vmatpush2.msra.mxu0 0.0
    %7925 = vmatprep.subr.mxu0 0.0
    %7926 = vmatpush2.msra.mxu0 0.0
    %7927 = vmatprep.subr.mxu0 0.0
    %7928 = vmatpush2.msra.mxu0 0.0
    %7929 = vmatprep.subr.mxu0 0.0
    %7930 = vmatpush2.msra.mxu0 0.0
    %7931 = vmatprep.subr.mxu0 0.0
    %7932 = vmatpush2.msra.mxu0 0.0
    %7933 = vmatprep.subr.mxu0 0.0
    %7934 = vmatpush2.msra.mxu0 0.0
    %7935 = vmatprep.subr.mxu0 0.0
    %7936 = vmatpush2.msra.mxu0 0.0
    %7937 = vmatprep.subr.mxu0 0.0
    %7938 = vmatpush2.msra.mxu0 0.0
    %7939 = vmatprep.subr.mxu0 0.0
    %7940 = vmatpush2.msra.mxu0 0.0
    %7941 = vmatprep.subr.mxu0 0.0
    %7942 = vmatpush2.msra.mxu0 0.0
    %7943 = vmatprep.subr.mxu0 0.0
    %7944 = vmatpush2.msra.mxu0 0.0
    %7945 = vmatprep.subr.mxu0 0.0
    %7946 = vmatpush2.msra.mxu0 0.0
    %7947 = vmatprep.subr.mxu0 0.0
    %7948 = vmatpush2.msra.mxu0 0.0
    %7949 = vmatprep.mubr.f32.mxu0 0.0
    %7950 = vmatmul.mubr.f32.gmra.mxu0 %v1079
    %v7951 = vpop.f32.mrf.mxu0
    %v7952 = vadd.f32 0.0, %v7951
    %v7953 = vpop.f32.mrf.mxu0
    %7954 = vdwg.mxu0
    %7955 = vmatprep.subr.mxu0 0.0
    %7956 = vmatpush1.msra.mxu0 %v2320
    %7957 = vmatprep.subr.mxu0 0.0
    %7958 = vmatpush1.msra.mxu0 %v2319
    %7959 = vmatprep.subr.mxu0 0.0
    %7960 = vmatpush1.msra.mxu0 %v2318
    %7961 = vmatprep.subr.mxu0 0.0
    %7962 = vmatpush1.msra.mxu0 %v2317
    %7963 = vmatprep.subr.mxu0 0.0
    %7964 = vmatpush1.msra.mxu0 %v2316
    %7965 = vmatprep.subr.mxu0 0.0
    %7966 = vmatpush1.msra.mxu0 %v2315
    %7967 = vmatprep.subr.mxu0 0.0
    %7968 = vmatpush1.msra.mxu0 %v2314
    %7969 = vmatprep.subr.mxu0 0.0
    %7970 = vmatpush1.msra.mxu0 %v2313
    %7971 = vmatprep.subr.mxu0 0.0
    %7972 = vmatpush1.msra.mxu0 %v2312
    %7973 = vmatprep.subr.mxu0 0.0
    %7974 = vmatpush1.msra.mxu0 %v2311
    %7975 = vmatprep.subr.mxu0 0.0
    %7976 = vmatpush1.msra.mxu0 %v2310
    %7977 = vmatprep.subr.mxu0 0.0
    %7978 = vmatpush1.msra.mxu0 %v2309
    %7979 = vmatprep.subr.mxu0 0.0
    %7980 = vmatpush1.msra.mxu0 %v2308
    %7981 = vmatprep.subr.mxu0 0.0
    %7982 = vmatpush1.msra.mxu0 %v2307
    %7983 = vmatprep.subr.mxu0 0.0
    %7984 = vmatpush1.msra.mxu0 %v2306
    %7985 = vmatprep.subr.mxu0 0.0
    %7986 = vmatpush1.msra.mxu0 %v2305
    %7987 = vmatprep.subr.mxu0 0.0
    %7988 = vmatpush2.msra.mxu0 0.0
    %7989 = vmatprep.subr.mxu0 0.0
    %7990 = vmatpush2.msra.mxu0 0.0
    %7991 = vmatprep.subr.mxu0 0.0
    %7992 = vmatpush2.msra.mxu0 0.0
    %7993 = vmatprep.subr.mxu0 0.0
    %7994 = vmatpush2.msra.mxu0 0.0
    %7995 = vmatprep.subr.mxu0 0.0
    %7996 = vmatpush2.msra.mxu0 0.0
    %7997 = vmatprep.subr.mxu0 0.0
    %7998 = vmatpush2.msra.mxu0 0.0
    %7999 = vmatprep.subr.mxu0 0.0
    %8000 = vmatpush2.msra.mxu0 0.0
    %8001 = vmatprep.subr.mxu0 0.0
    %8002 = vmatpush2.msra.mxu0 0.0
    %8003 = vmatprep.subr.mxu0 0.0
    %8004 = vmatpush2.msra.mxu0 0.0
    %8005 = vmatprep.subr.mxu0 0.0
    %8006 = vmatpush2.msra.mxu0 0.0
    %8007 = vmatprep.subr.mxu0 0.0
    %8008 = vmatpush2.msra.mxu0 0.0
    %8009 = vmatprep.subr.mxu0 0.0
    %8010 = vmatpush2.msra.mxu0 0.0
    %8011 = vmatprep.subr.mxu0 0.0
    %8012 = vmatpush2.msra.mxu0 0.0
    %8013 = vmatprep.subr.mxu0 0.0
    %8014 = vmatpush2.msra.mxu0 0.0
    %8015 = vmatprep.subr.mxu0 0.0
    %8016 = vmatpush2.msra.mxu0 0.0
    %8017 = vmatprep.subr.mxu0 0.0
    %8018 = vmatpush2.msra.mxu0 0.0
    %8019 = vmatprep.mubr.f32.mxu0 0.0
    %8020 = vmatmul.mubr.f32.gmra.mxu0 %v1080
    %v8021 = vpop.f32.mrf.mxu0
    %v8022 = vadd.f32 0.0, %v8021
    %v8023 = vpop.f32.mrf.mxu0
    %8024 = vdwg.mxu0
    %8025 = vmatprep.subr.mxu0 0.0
    %8026 = vmatpush1.msra.mxu0 %v2336
    %8027 = vmatprep.subr.mxu0 0.0
    %8028 = vmatpush1.msra.mxu0 %v2335
    %8029 = vmatprep.subr.mxu0 0.0
    %8030 = vmatpush1.msra.mxu0 %v2334
    %8031 = vmatprep.subr.mxu0 0.0
    %8032 = vmatpush1.msra.mxu0 %v2333
    %8033 = vmatprep.subr.mxu0 0.0
    %8034 = vmatpush1.msra.mxu0 %v2332
    %8035 = vmatprep.subr.mxu0 0.0
    %8036 = vmatpush1.msra.mxu0 %v2331
    %8037 = vmatprep.subr.mxu0 0.0
    %8038 = vmatpush1.msra.mxu0 %v2330
    %8039 = vmatprep.subr.mxu0 0.0
    %8040 = vmatpush1.msra.mxu0 %v2329
    %8041 = vmatprep.subr.mxu0 0.0
    %8042 = vmatpush1.msra.mxu0 %v2328
    %8043 = vmatprep.subr.mxu0 0.0
    %8044 = vmatpush1.msra.mxu0 %v2327
    %8045 = vmatprep.subr.mxu0 0.0
    %8046 = vmatpush1.msra.mxu0 %v2326
    %8047 = vmatprep.subr.mxu0 0.0
    %8048 = vmatpush1.msra.mxu0 %v2325
    %8049 = vmatprep.subr.mxu0 0.0
    %8050 = vmatpush1.msra.mxu0 %v2324
    %8051 = vmatprep.subr.mxu0 0.0
    %8052 = vmatpush1.msra.mxu0 %v2323
    %8053 = vmatprep.subr.mxu0 0.0
    %8054 = vmatpush1.msra.mxu0 %v2322
    %8055 = vmatprep.subr.mxu0 0.0
    %8056 = vmatpush1.msra.mxu0 %v2321
    %8057 = vmatprep.subr.mxu0 0.0
    %8058 = vmatpush2.msra.mxu0 0.0
    %8059 = vmatprep.subr.mxu0 0.0
    %8060 = vmatpush2.msra.mxu0 0.0
    %8061 = vmatprep.subr.mxu0 0.0
    %8062 = vmatpush2.msra.mxu0 0.0
    %8063 = vmatprep.subr.mxu0 0.0
    %8064 = vmatpush2.msra.mxu0 0.0
    %8065 = vmatprep.subr.mxu0 0.0
    %8066 = vmatpush2.msra.mxu0 0.0
    %8067 = vmatprep.subr.mxu0 0.0
    %8068 = vmatpush2.msra.mxu0 0.0
    %8069 = vmatprep.subr.mxu0 0.0
    %8070 = vmatpush2.msra.mxu0 0.0
    %8071 = vmatprep.subr.mxu0 0.0
    %8072 = vmatpush2.msra.mxu0 0.0
    %8073 = vmatprep.subr.mxu0 0.0
    %8074 = vmatpush2.msra.mxu0 0.0
    %8075 = vmatprep.subr.mxu0 0.0
    %8076 = vmatpush2.msra.mxu0 0.0
    %8077 = vmatprep.subr.mxu0 0.0
    %8078 = vmatpush2.msra.mxu0 0.0
    %8079 = vmatprep.subr.mxu0 0.0
    %8080 = vmatpush2.msra.mxu0 0.0
    %8081 = vmatprep.subr.mxu0 0.0
    %8082 = vmatpush2.msra.mxu0 0.0
    %8083 = vmatprep.subr.mxu0 0.0
    %8084 = vmatpush2.msra.mxu0 0.0
    %8085 = vmatprep.subr.mxu0 0.0
    %8086 = vmatpush2.msra.mxu0 0.0
    %8087 = vmatprep.subr.mxu0 0.0
    %8088 = vmatpush2.msra.mxu0 0.0
    %8089 = vmatprep.mubr.f32.mxu0 0.0
    %8090 = vmatmul.mubr.f32.gmra.mxu0 %v1081
    %v8091 = vpop.f32.mrf.mxu0
    %v8092 = vadd.f32 0.0, %v8091
    %v8093 = vpop.f32.mrf.mxu0
    %8094 = vdwg.mxu0
    %8095 = vmatprep.subr.mxu0 0.0
    %8096 = vmatpush1.msra.mxu0 %v2352
    %8097 = vmatprep.subr.mxu0 0.0
    %8098 = vmatpush1.msra.mxu0 %v2351
    %8099 = vmatprep.subr.mxu0 0.0
    %8100 = vmatpush1.msra.mxu0 %v2350
    %8101 = vmatprep.subr.mxu0 0.0
    %8102 = vmatpush1.msra.mxu0 %v2349
    %8103 = vmatprep.subr.mxu0 0.0
    %8104 = vmatpush1.msra.mxu0 %v2348
    %8105 = vmatprep.subr.mxu0 0.0
    %8106 = vmatpush1.msra.mxu0 %v2347
    %8107 = vmatprep.subr.mxu0 0.0
    %8108 = vmatpush1.msra.mxu0 %v2346
    %8109 = vmatprep.subr.mxu0 0.0
    %8110 = vmatpush1.msra.mxu0 %v2345
    %8111 = vmatprep.subr.mxu0 0.0
    %8112 = vmatpush1.msra.mxu0 %v2344
    %8113 = vmatprep.subr.mxu0 0.0
    %8114 = vmatpush1.msra.mxu0 %v2343
    %8115 = vmatprep.subr.mxu0 0.0
    %8116 = vmatpush1.msra.mxu0 %v2342
    %8117 = vmatprep.subr.mxu0 0.0
    %8118 = vmatpush1.msra.mxu0 %v2341
    %8119 = vmatprep.subr.mxu0 0.0
    %8120 = vmatpush1.msra.mxu0 %v2340
    %8121 = vmatprep.subr.mxu0 0.0
    %8122 = vmatpush1.msra.mxu0 %v2339
    %8123 = vmatprep.subr.mxu0 0.0
    %8124 = vmatpush1.msra.mxu0 %v2338
    %8125 = vmatprep.subr.mxu0 0.0
    %8126 = vmatpush1.msra.mxu0 %v2337
    %8127 = vmatprep.subr.mxu0 0.0
    %8128 = vmatpush2.msra.mxu0 0.0
    %8129 = vmatprep.subr.mxu0 0.0
    %8130 = vmatpush2.msra.mxu0 0.0
    %8131 = vmatprep.subr.mxu0 0.0
    %8132 = vmatpush2.msra.mxu0 0.0
    %8133 = vmatprep.subr.mxu0 0.0
    %8134 = vmatpush2.msra.mxu0 0.0
    %8135 = vmatprep.subr.mxu0 0.0
    %8136 = vmatpush2.msra.mxu0 0.0
    %8137 = vmatprep.subr.mxu0 0.0
    %8138 = vmatpush2.msra.mxu0 0.0
    %8139 = vmatprep.subr.mxu0 0.0
    %8140 = vmatpush2.msra.mxu0 0.0
    %8141 = vmatprep.subr.mxu0 0.0
    %8142 = vmatpush2.msra.mxu0 0.0
    %8143 = vmatprep.subr.mxu0 0.0
    %8144 = vmatpush2.msra.mxu0 0.0
    %8145 = vmatprep.subr.mxu0 0.0
    %8146 = vmatpush2.msra.mxu0 0.0
    %8147 = vmatprep.subr.mxu0 0.0
    %8148 = vmatpush2.msra.mxu0 0.0
    %8149 = vmatprep.subr.mxu0 0.0
    %8150 = vmatpush2.msra.mxu0 0.0
    %8151 = vmatprep.subr.mxu0 0.0
    %8152 = vmatpush2.msra.mxu0 0.0
    %8153 = vmatprep.subr.mxu0 0.0
    %8154 = vmatpush2.msra.mxu0 0.0
    %8155 = vmatprep.subr.mxu0 0.0
    %8156 = vmatpush2.msra.mxu0 0.0
    %8157 = vmatprep.subr.mxu0 0.0
    %8158 = vmatpush2.msra.mxu0 0.0
    %8159 = vmatprep.mubr.f32.mxu0 0.0
    %8160 = vmatmul.mubr.f32.gmra.mxu0 %v1082
    %v8161 = vpop.f32.mrf.mxu0
    %v8162 = vadd.f32 0.0, %v8161
    %v8163 = vpop.f32.mrf.mxu0
    %8164 = vdwg.mxu0
    %8165 = vmatprep.subr.mxu0 0.0
    %8166 = vmatpush1.msra.mxu0 %v2368
    %8167 = vmatprep.subr.mxu0 0.0
    %8168 = vmatpush1.msra.mxu0 %v2367
    %8169 = vmatprep.subr.mxu0 0.0
    %8170 = vmatpush1.msra.mxu0 %v2366
    %8171 = vmatprep.subr.mxu0 0.0
    %8172 = vmatpush1.msra.mxu0 %v2365
    %8173 = vmatprep.subr.mxu0 0.0
    %8174 = vmatpush1.msra.mxu0 %v2364
    %8175 = vmatprep.subr.mxu0 0.0
    %8176 = vmatpush1.msra.mxu0 %v2363
    %8177 = vmatprep.subr.mxu0 0.0
    %8178 = vmatpush1.msra.mxu0 %v2362
    %8179 = vmatprep.subr.mxu0 0.0
    %8180 = vmatpush1.msra.mxu0 %v2361
    %8181 = vmatprep.subr.mxu0 0.0
    %8182 = vmatpush1.msra.mxu0 %v2360
    %8183 = vmatprep.subr.mxu0 0.0
    %8184 = vmatpush1.msra.mxu0 %v2359
    %8185 = vmatprep.subr.mxu0 0.0
    %8186 = vmatpush1.msra.mxu0 %v2358
    %8187 = vmatprep.subr.mxu0 0.0
    %8188 = vmatpush1.msra.mxu0 %v2357
    %8189 = vmatprep.subr.mxu0 0.0
    %8190 = vmatpush1.msra.mxu0 %v2356
    %8191 = vmatprep.subr.mxu0 0.0
    %8192 = vmatpush1.msra.mxu0 %v2355
    %8193 = vmatprep.subr.mxu0 0.0
    %8194 = vmatpush1.msra.mxu0 %v2354
    %8195 = vmatprep.subr.mxu0 0.0
    %8196 = vmatpush1.msra.mxu0 %v2353
    %8197 = vmatprep.subr.mxu0 0.0
    %8198 = vmatpush2.msra.mxu0 0.0
    %8199 = vmatprep.subr.mxu0 0.0
    %8200 = vmatpush2.msra.mxu0 0.0
    %8201 = vmatprep.subr.mxu0 0.0
    %8202 = vmatpush2.msra.mxu0 0.0
    %8203 = vmatprep.subr.mxu0 0.0
    %8204 = vmatpush2.msra.mxu0 0.0
    %8205 = vmatprep.subr.mxu0 0.0
    %8206 = vmatpush2.msra.mxu0 0.0
    %8207 = vmatprep.subr.mxu0 0.0
    %8208 = vmatpush2.msra.mxu0 0.0
    %8209 = vmatprep.subr.mxu0 0.0
    %8210 = vmatpush2.msra.mxu0 0.0
    %8211 = vmatprep.subr.mxu0 0.0
    %8212 = vmatpush2.msra.mxu0 0.0
    %8213 = vmatprep.subr.mxu0 0.0
    %8214 = vmatpush2.msra.mxu0 0.0
    %8215 = vmatprep.subr.mxu0 0.0
    %8216 = vmatpush2.msra.mxu0 0.0
    %8217 = vmatprep.subr.mxu0 0.0
    %8218 = vmatpush2.msra.mxu0 0.0
    %8219 = vmatprep.subr.mxu0 0.0
    %8220 = vmatpush2.msra.mxu0 0.0
    %8221 = vmatprep.subr.mxu0 0.0
    %8222 = vmatpush2.msra.mxu0 0.0
    %8223 = vmatprep.subr.mxu0 0.0
    %8224 = vmatpush2.msra.mxu0 0.0
    %8225 = vmatprep.subr.mxu0 0.0
    %8226 = vmatpush2.msra.mxu0 0.0
    %8227 = vmatprep.subr.mxu0 0.0
    %8228 = vmatpush2.msra.mxu0 0.0
    %8229 = vmatprep.mubr.f32.mxu0 0.0
    %8230 = vmatmul.mubr.f32.gmra.mxu0 %v1083
    %v8231 = vpop.f32.mrf.mxu0
    %v8232 = vadd.f32 0.0, %v8231
    %v8233 = vpop.f32.mrf.mxu0
    %8234 = vdwg.mxu0
    %8235 = vmatprep.subr.mxu0 0.0
    %8236 = vmatpush1.msra.mxu0 %v2384
    %8237 = vmatprep.subr.mxu0 0.0
    %8238 = vmatpush1.msra.mxu0 %v2383
    %8239 = vmatprep.subr.mxu0 0.0
    %8240 = vmatpush1.msra.mxu0 %v2382
    %8241 = vmatprep.subr.mxu0 0.0
    %8242 = vmatpush1.msra.mxu0 %v2381
    %8243 = vmatprep.subr.mxu0 0.0
    %8244 = vmatpush1.msra.mxu0 %v2380
    %8245 = vmatprep.subr.mxu0 0.0
    %8246 = vmatpush1.msra.mxu0 %v2379
    %8247 = vmatprep.subr.mxu0 0.0
    %8248 = vmatpush1.msra.mxu0 %v2378
    %8249 = vmatprep.subr.mxu0 0.0
    %8250 = vmatpush1.msra.mxu0 %v2377
    %8251 = vmatprep.subr.mxu0 0.0
    %8252 = vmatpush1.msra.mxu0 %v2376
    %8253 = vmatprep.subr.mxu0 0.0
    %8254 = vmatpush1.msra.mxu0 %v2375
    %8255 = vmatprep.subr.mxu0 0.0
    %8256 = vmatpush1.msra.mxu0 %v2374
    %8257 = vmatprep.subr.mxu0 0.0
    %8258 = vmatpush1.msra.mxu0 %v2373
    %8259 = vmatprep.subr.mxu0 0.0
    %8260 = vmatpush1.msra.mxu0 %v2372
    %8261 = vmatprep.subr.mxu0 0.0
    %8262 = vmatpush1.msra.mxu0 %v2371
    %8263 = vmatprep.subr.mxu0 0.0
    %8264 = vmatpush1.msra.mxu0 %v2370
    %8265 = vmatprep.subr.mxu0 0.0
    %8266 = vmatpush1.msra.mxu0 %v2369
    %8267 = vmatprep.subr.mxu0 0.0
    %8268 = vmatpush2.msra.mxu0 0.0
    %8269 = vmatprep.subr.mxu0 0.0
    %8270 = vmatpush2.msra.mxu0 0.0
    %8271 = vmatprep.subr.mxu0 0.0
    %8272 = vmatpush2.msra.mxu0 0.0
    %8273 = vmatprep.subr.mxu0 0.0
    %8274 = vmatpush2.msra.mxu0 0.0
    %8275 = vmatprep.subr.mxu0 0.0
    %8276 = vmatpush2.msra.mxu0 0.0
    %8277 = vmatprep.subr.mxu0 0.0
    %8278 = vmatpush2.msra.mxu0 0.0
    %8279 = vmatprep.subr.mxu0 0.0
    %8280 = vmatpush2.msra.mxu0 0.0
    %8281 = vmatprep.subr.mxu0 0.0
    %8282 = vmatpush2.msra.mxu0 0.0
    %8283 = vmatprep.subr.mxu0 0.0
    %8284 = vmatpush2.msra.mxu0 0.0
    %8285 = vmatprep.subr.mxu0 0.0
    %8286 = vmatpush2.msra.mxu0 0.0
    %8287 = vmatprep.subr.mxu0 0.0
    %8288 = vmatpush2.msra.mxu0 0.0
    %8289 = vmatprep.subr.mxu0 0.0
    %8290 = vmatpush2.msra.mxu0 0.0
    %8291 = vmatprep.subr.mxu0 0.0
    %8292 = vmatpush2.msra.mxu0 0.0
    %8293 = vmatprep.subr.mxu0 0.0
    %8294 = vmatpush2.msra.mxu0 0.0
    %8295 = vmatprep.subr.mxu0 0.0
    %8296 = vmatpush2.msra.mxu0 0.0
    %8297 = vmatprep.subr.mxu0 0.0
    %8298 = vmatpush2.msra.mxu0 0.0
    %8299 = vmatprep.mubr.f32.mxu0 0.0
    %8300 = vmatmul.mubr.f32.gmra.mxu0 %v1084
    %v8301 = vpop.f32.mrf.mxu0
    %v8302 = vadd.f32 0.0, %v8301
    %v8303 = vpop.f32.mrf.mxu0
    %8304 = vdwg.mxu0
    %8305 = vmatprep.subr.mxu0 0.0
    %8306 = vmatpush1.msra.mxu0 %v2400
    %8307 = vmatprep.subr.mxu0 0.0
    %8308 = vmatpush1.msra.mxu0 %v2399
    %8309 = vmatprep.subr.mxu0 0.0
    %8310 = vmatpush1.msra.mxu0 %v2398
    %8311 = vmatprep.subr.mxu0 0.0
    %8312 = vmatpush1.msra.mxu0 %v2397
    %8313 = vmatprep.subr.mxu0 0.0
    %8314 = vmatpush1.msra.mxu0 %v2396
    %8315 = vmatprep.subr.mxu0 0.0
    %8316 = vmatpush1.msra.mxu0 %v2395
    %8317 = vmatprep.subr.mxu0 0.0
    %8318 = vmatpush1.msra.mxu0 %v2394
    %8319 = vmatprep.subr.mxu0 0.0
    %8320 = vmatpush1.msra.mxu0 %v2393
    %8321 = vmatprep.subr.mxu0 0.0
    %8322 = vmatpush1.msra.mxu0 %v2392
    %8323 = vmatprep.subr.mxu0 0.0
    %8324 = vmatpush1.msra.mxu0 %v2391
    %8325 = vmatprep.subr.mxu0 0.0
    %8326 = vmatpush1.msra.mxu0 %v2390
    %8327 = vmatprep.subr.mxu0 0.0
    %8328 = vmatpush1.msra.mxu0 %v2389
    %8329 = vmatprep.subr.mxu0 0.0
    %8330 = vmatpush1.msra.mxu0 %v2388
    %8331 = vmatprep.subr.mxu0 0.0
    %8332 = vmatpush1.msra.mxu0 %v2387
    %8333 = vmatprep.subr.mxu0 0.0
    %8334 = vmatpush1.msra.mxu0 %v2386
    %8335 = vmatprep.subr.mxu0 0.0
    %8336 = vmatpush1.msra.mxu0 %v2385
    %8337 = vmatprep.subr.mxu0 0.0
    %8338 = vmatpush2.msra.mxu0 0.0
    %8339 = vmatprep.subr.mxu0 0.0
    %8340 = vmatpush2.msra.mxu0 0.0
    %8341 = vmatprep.subr.mxu0 0.0
    %8342 = vmatpush2.msra.mxu0 0.0
    %8343 = vmatprep.subr.mxu0 0.0
    %8344 = vmatpush2.msra.mxu0 0.0
    %8345 = vmatprep.subr.mxu0 0.0
    %8346 = vmatpush2.msra.mxu0 0.0
    %8347 = vmatprep.subr.mxu0 0.0
    %8348 = vmatpush2.msra.mxu0 0.0
    %8349 = vmatprep.subr.mxu0 0.0
    %8350 = vmatpush2.msra.mxu0 0.0
    %8351 = vmatprep.subr.mxu0 0.0
    %8352 = vmatpush2.msra.mxu0 0.0
    %8353 = vmatprep.subr.mxu0 0.0
    %8354 = vmatpush2.msra.mxu0 0.0
    %8355 = vmatprep.subr.mxu0 0.0
    %8356 = vmatpush2.msra.mxu0 0.0
    %8357 = vmatprep.subr.mxu0 0.0
    %8358 = vmatpush2.msra.mxu0 0.0
    %8359 = vmatprep.subr.mxu0 0.0
    %8360 = vmatpush2.msra.mxu0 0.0
    %8361 = vmatprep.subr.mxu0 0.0
    %8362 = vmatpush2.msra.mxu0 0.0
    %8363 = vmatprep.subr.mxu0 0.0
    %8364 = vmatpush2.msra.mxu0 0.0
    %8365 = vmatprep.subr.mxu0 0.0
    %8366 = vmatpush2.msra.mxu0 0.0
    %8367 = vmatprep.subr.mxu0 0.0
    %8368 = vmatpush2.msra.mxu0 0.0
    %8369 = vmatprep.mubr.f32.mxu0 0.0
    %8370 = vmatmul.mubr.f32.gmra.mxu0 %v1085
    %v8371 = vpop.f32.mrf.mxu0
    %v8372 = vadd.f32 0.0, %v8371
    %v8373 = vpop.f32.mrf.mxu0
    %8374 = vdwg.mxu0
    %8375 = vmatprep.subr.mxu0 0.0
    %8376 = vmatpush1.msra.mxu0 %v2416
    %8377 = vmatprep.subr.mxu0 0.0
    %8378 = vmatpush1.msra.mxu0 %v2415
    %8379 = vmatprep.subr.mxu0 0.0
    %8380 = vmatpush1.msra.mxu0 %v2414
    %8381 = vmatprep.subr.mxu0 0.0
    %8382 = vmatpush1.msra.mxu0 %v2413
    %8383 = vmatprep.subr.mxu0 0.0
    %8384 = vmatpush1.msra.mxu0 %v2412
    %8385 = vmatprep.subr.mxu0 0.0
    %8386 = vmatpush1.msra.mxu0 %v2411
    %8387 = vmatprep.subr.mxu0 0.0
    %8388 = vmatpush1.msra.mxu0 %v2410
    %8389 = vmatprep.subr.mxu0 0.0
    %8390 = vmatpush1.msra.mxu0 %v2409
    %8391 = vmatprep.subr.mxu0 0.0
    %8392 = vmatpush1.msra.mxu0 %v2408
    %8393 = vmatprep.subr.mxu0 0.0
    %8394 = vmatpush1.msra.mxu0 %v2407
    %8395 = vmatprep.subr.mxu0 0.0
    %8396 = vmatpush1.msra.mxu0 %v2406
    %8397 = vmatprep.subr.mxu0 0.0
    %8398 = vmatpush1.msra.mxu0 %v2405
    %8399 = vmatprep.subr.mxu0 0.0
    %8400 = vmatpush1.msra.mxu0 %v2404
    %8401 = vmatprep.subr.mxu0 0.0
    %8402 = vmatpush1.msra.mxu0 %v2403
    %8403 = vmatprep.subr.mxu0 0.0
    %8404 = vmatpush1.msra.mxu0 %v2402
    %8405 = vmatprep.subr.mxu0 0.0
    %8406 = vmatpush1.msra.mxu0 %v2401
    %8407 = vmatprep.subr.mxu0 0.0
    %8408 = vmatpush2.msra.mxu0 0.0
    %8409 = vmatprep.subr.mxu0 0.0
    %8410 = vmatpush2.msra.mxu0 0.0
    %8411 = vmatprep.subr.mxu0 0.0
    %8412 = vmatpush2.msra.mxu0 0.0
    %8413 = vmatprep.subr.mxu0 0.0
    %8414 = vmatpush2.msra.mxu0 0.0
    %8415 = vmatprep.subr.mxu0 0.0
    %8416 = vmatpush2.msra.mxu0 0.0
    %8417 = vmatprep.subr.mxu0 0.0
    %8418 = vmatpush2.msra.mxu0 0.0
    %8419 = vmatprep.subr.mxu0 0.0
    %8420 = vmatpush2.msra.mxu0 0.0
    %8421 = vmatprep.subr.mxu0 0.0
    %8422 = vmatpush2.msra.mxu0 0.0
    %8423 = vmatprep.subr.mxu0 0.0
    %8424 = vmatpush2.msra.mxu0 0.0
    %8425 = vmatprep.subr.mxu0 0.0
    %8426 = vmatpush2.msra.mxu0 0.0
    %8427 = vmatprep.subr.mxu0 0.0
    %8428 = vmatpush2.msra.mxu0 0.0
    %8429 = vmatprep.subr.mxu0 0.0
    %8430 = vmatpush2.msra.mxu0 0.0
    %8431 = vmatprep.subr.mxu0 0.0
    %8432 = vmatpush2.msra.mxu0 0.0
    %8433 = vmatprep.subr.mxu0 0.0
    %8434 = vmatpush2.msra.mxu0 0.0
    %8435 = vmatprep.subr.mxu0 0.0
    %8436 = vmatpush2.msra.mxu0 0.0
    %8437 = vmatprep.subr.mxu0 0.0
    %8438 = vmatpush2.msra.mxu0 0.0
    %8439 = vmatprep.mubr.f32.mxu0 0.0
    %8440 = vmatmul.mubr.f32.gmra.mxu0 %v1086
    %v8441 = vpop.f32.mrf.mxu0
    %v8442 = vadd.f32 0.0, %v8441
    %v8443 = vpop.f32.mrf.mxu0
    %8444 = vdwg.mxu0
    %8445 = vmatprep.subr.mxu0 0.0
    %8446 = vmatpush1.msra.mxu0 %v2432
    %8447 = vmatprep.subr.mxu0 0.0
    %8448 = vmatpush1.msra.mxu0 %v2431
    %8449 = vmatprep.subr.mxu0 0.0
    %8450 = vmatpush1.msra.mxu0 %v2430
    %8451 = vmatprep.subr.mxu0 0.0
    %8452 = vmatpush1.msra.mxu0 %v2429
    %8453 = vmatprep.subr.mxu0 0.0
    %8454 = vmatpush1.msra.mxu0 %v2428
    %8455 = vmatprep.subr.mxu0 0.0
    %8456 = vmatpush1.msra.mxu0 %v2427
    %8457 = vmatprep.subr.mxu0 0.0
    %8458 = vmatpush1.msra.mxu0 %v2426
    %8459 = vmatprep.subr.mxu0 0.0
    %8460 = vmatpush1.msra.mxu0 %v2425
    %8461 = vmatprep.subr.mxu0 0.0
    %8462 = vmatpush1.msra.mxu0 %v2424
    %8463 = vmatprep.subr.mxu0 0.0
    %8464 = vmatpush1.msra.mxu0 %v2423
    %8465 = vmatprep.subr.mxu0 0.0
    %8466 = vmatpush1.msra.mxu0 %v2422
    %8467 = vmatprep.subr.mxu0 0.0
    %8468 = vmatpush1.msra.mxu0 %v2421
    %8469 = vmatprep.subr.mxu0 0.0
    %8470 = vmatpush1.msra.mxu0 %v2420
    %8471 = vmatprep.subr.mxu0 0.0
    %8472 = vmatpush1.msra.mxu0 %v2419
    %8473 = vmatprep.subr.mxu0 0.0
    %8474 = vmatpush1.msra.mxu0 %v2418
    %8475 = vmatprep.subr.mxu0 0.0
    %8476 = vmatpush1.msra.mxu0 %v2417
    %8477 = vmatprep.subr.mxu0 0.0
    %8478 = vmatpush2.msra.mxu0 0.0
    %8479 = vmatprep.subr.mxu0 0.0
    %8480 = vmatpush2.msra.mxu0 0.0
    %8481 = vmatprep.subr.mxu0 0.0
    %8482 = vmatpush2.msra.mxu0 0.0
    %8483 = vmatprep.subr.mxu0 0.0
    %8484 = vmatpush2.msra.mxu0 0.0
    %8485 = vmatprep.subr.mxu0 0.0
    %8486 = vmatpush2.msra.mxu0 0.0
    %8487 = vmatprep.subr.mxu0 0.0
    %8488 = vmatpush2.msra.mxu0 0.0
    %8489 = vmatprep.subr.mxu0 0.0
    %8490 = vmatpush2.msra.mxu0 0.0
    %8491 = vmatprep.subr.mxu0 0.0
    %8492 = vmatpush2.msra.mxu0 0.0
    %8493 = vmatprep.subr.mxu0 0.0
    %8494 = vmatpush2.msra.mxu0 0.0
    %8495 = vmatprep.subr.mxu0 0.0
    %8496 = vmatpush2.msra.mxu0 0.0
    %8497 = vmatprep.subr.mxu0 0.0
    %8498 = vmatpush2.msra.mxu0 0.0
    %8499 = vmatprep.subr.mxu0 0.0
    %8500 = vmatpush2.msra.mxu0 0.0
    %8501 = vmatprep.subr.mxu0 0.0
    %8502 = vmatpush2.msra.mxu0 0.0
    %8503 = vmatprep.subr.mxu0 0.0
    %8504 = vmatpush2.msra.mxu0 0.0
    %8505 = vmatprep.subr.mxu0 0.0
    %8506 = vmatpush2.msra.mxu0 0.0
    %8507 = vmatprep.subr.mxu0 0.0
    %8508 = vmatpush2.msra.mxu0 0.0
    %8509 = vmatprep.mubr.f32.mxu0 0.0
    %8510 = vmatmul.mubr.f32.gmra.mxu0 %v1087
    %v8511 = vpop.f32.mrf.mxu0
    %v8512 = vadd.f32 0.0, %v8511
    %v8513 = vpop.f32.mrf.mxu0
    %8514 = vdwg.mxu0
    %8515 = vmatprep.subr.mxu0 0.0
    %8516 = vmatpush1.msra.mxu0 %v2448
    %8517 = vmatprep.subr.mxu0 0.0
    %8518 = vmatpush1.msra.mxu0 %v2447
    %8519 = vmatprep.subr.mxu0 0.0
    %8520 = vmatpush1.msra.mxu0 %v2446
    %8521 = vmatprep.subr.mxu0 0.0
    %8522 = vmatpush1.msra.mxu0 %v2445
    %8523 = vmatprep.subr.mxu0 0.0
    %8524 = vmatpush1.msra.mxu0 %v2444
    %8525 = vmatprep.subr.mxu0 0.0
    %8526 = vmatpush1.msra.mxu0 %v2443
    %8527 = vmatprep.subr.mxu0 0.0
    %8528 = vmatpush1.msra.mxu0 %v2442
    %8529 = vmatprep.subr.mxu0 0.0
    %8530 = vmatpush1.msra.mxu0 %v2441
    %8531 = vmatprep.subr.mxu0 0.0
    %8532 = vmatpush1.msra.mxu0 %v2440
    %8533 = vmatprep.subr.mxu0 0.0
    %8534 = vmatpush1.msra.mxu0 %v2439
    %8535 = vmatprep.subr.mxu0 0.0
    %8536 = vmatpush1.msra.mxu0 %v2438
    %8537 = vmatprep.subr.mxu0 0.0
    %8538 = vmatpush1.msra.mxu0 %v2437
    %8539 = vmatprep.subr.mxu0 0.0
    %8540 = vmatpush1.msra.mxu0 %v2436
    %8541 = vmatprep.subr.mxu0 0.0
    %8542 = vmatpush1.msra.mxu0 %v2435
    %8543 = vmatprep.subr.mxu0 0.0
    %8544 = vmatpush1.msra.mxu0 %v2434
    %8545 = vmatprep.subr.mxu0 0.0
    %8546 = vmatpush1.msra.mxu0 %v2433
    %8547 = vmatprep.subr.mxu0 0.0
    %8548 = vmatpush2.msra.mxu0 0.0
    %8549 = vmatprep.subr.mxu0 0.0
    %8550 = vmatpush2.msra.mxu0 0.0
    %8551 = vmatprep.subr.mxu0 0.0
    %8552 = vmatpush2.msra.mxu0 0.0
    %8553 = vmatprep.subr.mxu0 0.0
    %8554 = vmatpush2.msra.mxu0 0.0
    %8555 = vmatprep.subr.mxu0 0.0
    %8556 = vmatpush2.msra.mxu0 0.0
    %8557 = vmatprep.subr.mxu0 0.0
    %8558 = vmatpush2.msra.mxu0 0.0
    %8559 = vmatprep.subr.mxu0 0.0
    %8560 = vmatpush2.msra.mxu0 0.0
    %8561 = vmatprep.subr.mxu0 0.0
    %8562 = vmatpush2.msra.mxu0 0.0
    %8563 = vmatprep.subr.mxu0 0.0
    %8564 = vmatpush2.msra.mxu0 0.0
    %8565 = vmatprep.subr.mxu0 0.0
    %8566 = vmatpush2.msra.mxu0 0.0
    %8567 = vmatprep.subr.mxu0 0.0
    %8568 = vmatpush2.msra.mxu0 0.0
    %8569 = vmatprep.subr.mxu0 0.0
    %8570 = vmatpush2.msra.mxu0 0.0
    %8571 = vmatprep.subr.mxu0 0.0
    %8572 = vmatpush2.msra.mxu0 0.0
    %8573 = vmatprep.subr.mxu0 0.0
    %8574 = vmatpush2.msra.mxu0 0.0
    %8575 = vmatprep.subr.mxu0 0.0
    %8576 = vmatpush2.msra.mxu0 0.0
    %8577 = vmatprep.subr.mxu0 0.0
    %8578 = vmatpush2.msra.mxu0 0.0
    %8579 = vmatprep.mubr.f32.mxu0 0.0
    %8580 = vmatmul.mubr.f32.gmra.mxu0 %v1088
    %v8581 = vpop.f32.mrf.mxu0
    %v8582 = vadd.f32 0.0, %v8581
    %v8583 = vpop.f32.mrf.mxu0
    %8584 = vdwg.mxu0
    %8585 = vmatprep.subr.mxu0 0.0
    %8586 = vmatpush1.msra.mxu0 %v2464
    %8587 = vmatprep.subr.mxu0 0.0
    %8588 = vmatpush1.msra.mxu0 %v2463
    %8589 = vmatprep.subr.mxu0 0.0
    %8590 = vmatpush1.msra.mxu0 %v2462
    %8591 = vmatprep.subr.mxu0 0.0
    %8592 = vmatpush1.msra.mxu0 %v2461
    %8593 = vmatprep.subr.mxu0 0.0
    %8594 = vmatpush1.msra.mxu0 %v2460
    %8595 = vmatprep.subr.mxu0 0.0
    %8596 = vmatpush1.msra.mxu0 %v2459
    %8597 = vmatprep.subr.mxu0 0.0
    %8598 = vmatpush1.msra.mxu0 %v2458
    %8599 = vmatprep.subr.mxu0 0.0
    %8600 = vmatpush1.msra.mxu0 %v2457
    %8601 = vmatprep.subr.mxu0 0.0
    %8602 = vmatpush1.msra.mxu0 %v2456
    %8603 = vmatprep.subr.mxu0 0.0
    %8604 = vmatpush1.msra.mxu0 %v2455
    %8605 = vmatprep.subr.mxu0 0.0
    %8606 = vmatpush1.msra.mxu0 %v2454
    %8607 = vmatprep.subr.mxu0 0.0
    %8608 = vmatpush1.msra.mxu0 %v2453
    %8609 = vmatprep.subr.mxu0 0.0
    %8610 = vmatpush1.msra.mxu0 %v2452
    %8611 = vmatprep.subr.mxu0 0.0
    %8612 = vmatpush1.msra.mxu0 %v2451
    %8613 = vmatprep.subr.mxu0 0.0
    %8614 = vmatpush1.msra.mxu0 %v2450
    %8615 = vmatprep.subr.mxu0 0.0
    %8616 = vmatpush1.msra.mxu0 %v2449
    %8617 = vmatprep.subr.mxu0 0.0
    %8618 = vmatpush2.msra.mxu0 0.0
    %8619 = vmatprep.subr.mxu0 0.0
    %8620 = vmatpush2.msra.mxu0 0.0
    %8621 = vmatprep.subr.mxu0 0.0
    %8622 = vmatpush2.msra.mxu0 0.0
    %8623 = vmatprep.subr.mxu0 0.0
    %8624 = vmatpush2.msra.mxu0 0.0
    %8625 = vmatprep.subr.mxu0 0.0
    %8626 = vmatpush2.msra.mxu0 0.0
    %8627 = vmatprep.subr.mxu0 0.0
    %8628 = vmatpush2.msra.mxu0 0.0
    %8629 = vmatprep.subr.mxu0 0.0
    %8630 = vmatpush2.msra.mxu0 0.0
    %8631 = vmatprep.subr.mxu0 0.0
    %8632 = vmatpush2.msra.mxu0 0.0
    %8633 = vmatprep.subr.mxu0 0.0
    %8634 = vmatpush2.msra.mxu0 0.0
    %8635 = vmatprep.subr.mxu0 0.0
    %8636 = vmatpush2.msra.mxu0 0.0
    %8637 = vmatprep.subr.mxu0 0.0
    %8638 = vmatpush2.msra.mxu0 0.0
    %8639 = vmatprep.subr.mxu0 0.0
    %8640 = vmatpush2.msra.mxu0 0.0
    %8641 = vmatprep.subr.mxu0 0.0
    %8642 = vmatpush2.msra.mxu0 0.0
    %8643 = vmatprep.subr.mxu0 0.0
    %8644 = vmatpush2.msra.mxu0 0.0
    %8645 = vmatprep.subr.mxu0 0.0
    %8646 = vmatpush2.msra.mxu0 0.0
    %8647 = vmatprep.subr.mxu0 0.0
    %8648 = vmatpush2.msra.mxu0 0.0
    %8649 = vmatprep.mubr.f32.mxu0 0.0
    %8650 = vmatmul.mubr.f32.gmra.mxu0 %v1089
    %v8651 = vpop.f32.mrf.mxu0
    %v8652 = vadd.f32 0.0, %v8651
    %v8653 = vpop.f32.mrf.mxu0
    %8654 = vdwg.mxu0
    %8655 = vmatprep.subr.mxu0 0.0
    %8656 = vmatpush1.msra.mxu0 %v2480
    %8657 = vmatprep.subr.mxu0 0.0
    %8658 = vmatpush1.msra.mxu0 %v2479
    %8659 = vmatprep.subr.mxu0 0.0
    %8660 = vmatpush1.msra.mxu0 %v2478
    %8661 = vmatprep.subr.mxu0 0.0
    %8662 = vmatpush1.msra.mxu0 %v2477
    %8663 = vmatprep.subr.mxu0 0.0
    %8664 = vmatpush1.msra.mxu0 %v2476
    %8665 = vmatprep.subr.mxu0 0.0
    %8666 = vmatpush1.msra.mxu0 %v2475
    %8667 = vmatprep.subr.mxu0 0.0
    %8668 = vmatpush1.msra.mxu0 %v2474
    %8669 = vmatprep.subr.mxu0 0.0
    %8670 = vmatpush1.msra.mxu0 %v2473
    %8671 = vmatprep.subr.mxu0 0.0
    %8672 = vmatpush1.msra.mxu0 %v2472
    %8673 = vmatprep.subr.mxu0 0.0
    %8674 = vmatpush1.msra.mxu0 %v2471
    %8675 = vmatprep.subr.mxu0 0.0
    %8676 = vmatpush1.msra.mxu0 %v2470
    %8677 = vmatprep.subr.mxu0 0.0
    %8678 = vmatpush1.msra.mxu0 %v2469
    %8679 = vmatprep.subr.mxu0 0.0
    %8680 = vmatpush1.msra.mxu0 %v2468
    %8681 = vmatprep.subr.mxu0 0.0
    %8682 = vmatpush1.msra.mxu0 %v2467
    %8683 = vmatprep.subr.mxu0 0.0
    %8684 = vmatpush1.msra.mxu0 %v2466
    %8685 = vmatprep.subr.mxu0 0.0
    %8686 = vmatpush1.msra.mxu0 %v2465
    %8687 = vmatprep.subr.mxu0 0.0
    %8688 = vmatpush2.msra.mxu0 0.0
    %8689 = vmatprep.subr.mxu0 0.0
    %8690 = vmatpush2.msra.mxu0 0.0
    %8691 = vmatprep.subr.mxu0 0.0
    %8692 = vmatpush2.msra.mxu0 0.0
    %8693 = vmatprep.subr.mxu0 0.0
    %8694 = vmatpush2.msra.mxu0 0.0
    %8695 = vmatprep.subr.mxu0 0.0
    %8696 = vmatpush2.msra.mxu0 0.0
    %8697 = vmatprep.subr.mxu0 0.0
    %8698 = vmatpush2.msra.mxu0 0.0
    %8699 = vmatprep.subr.mxu0 0.0
    %8700 = vmatpush2.msra.mxu0 0.0
    %8701 = vmatprep.subr.mxu0 0.0
    %8702 = vmatpush2.msra.mxu0 0.0
    %8703 = vmatprep.subr.mxu0 0.0
    %8704 = vmatpush2.msra.mxu0 0.0
    %8705 = vmatprep.subr.mxu0 0.0
    %8706 = vmatpush2.msra.mxu0 0.0
    %8707 = vmatprep.subr.mxu0 0.0
    %8708 = vmatpush2.msra.mxu0 0.0
    %8709 = vmatprep.subr.mxu0 0.0
    %8710 = vmatpush2.msra.mxu0 0.0
    %8711 = vmatprep.subr.mxu0 0.0
    %8712 = vmatpush2.msra.mxu0 0.0
    %8713 = vmatprep.subr.mxu0 0.0
    %8714 = vmatpush2.msra.mxu0 0.0
    %8715 = vmatprep.subr.mxu0 0.0
    %8716 = vmatpush2.msra.mxu0 0.0
    %8717 = vmatprep.subr.mxu0 0.0
    %8718 = vmatpush2.msra.mxu0 0.0
    %8719 = vmatprep.mubr.f32.mxu0 0.0
    %8720 = vmatmul.mubr.f32.gmra.mxu0 %v1090
    %v8721 = vpop.f32.mrf.mxu0
    %v8722 = vadd.f32 0.0, %v8721
    %v8723 = vpop.f32.mrf.mxu0
    %8724 = vdwg.mxu0
    %8725 = vmatprep.subr.mxu0 0.0
    %8726 = vmatpush1.msra.mxu0 %v2496
    %8727 = vmatprep.subr.mxu0 0.0
    %8728 = vmatpush1.msra.mxu0 %v2495
    %8729 = vmatprep.subr.mxu0 0.0
    %8730 = vmatpush1.msra.mxu0 %v2494
    %8731 = vmatprep.subr.mxu0 0.0
    %8732 = vmatpush1.msra.mxu0 %v2493
    %8733 = vmatprep.subr.mxu0 0.0
    %8734 = vmatpush1.msra.mxu0 %v2492
    %8735 = vmatprep.subr.mxu0 0.0
    %8736 = vmatpush1.msra.mxu0 %v2491
    %8737 = vmatprep.subr.mxu0 0.0
    %8738 = vmatpush1.msra.mxu0 %v2490
    %8739 = vmatprep.subr.mxu0 0.0
    %8740 = vmatpush1.msra.mxu0 %v2489
    %8741 = vmatprep.subr.mxu0 0.0
    %8742 = vmatpush1.msra.mxu0 %v2488
    %8743 = vmatprep.subr.mxu0 0.0
    %8744 = vmatpush1.msra.mxu0 %v2487
    %8745 = vmatprep.subr.mxu0 0.0
    %8746 = vmatpush1.msra.mxu0 %v2486
    %8747 = vmatprep.subr.mxu0 0.0
    %8748 = vmatpush1.msra.mxu0 %v2485
    %8749 = vmatprep.subr.mxu0 0.0
    %8750 = vmatpush1.msra.mxu0 %v2484
    %8751 = vmatprep.subr.mxu0 0.0
    %8752 = vmatpush1.msra.mxu0 %v2483
    %8753 = vmatprep.subr.mxu0 0.0
    %8754 = vmatpush1.msra.mxu0 %v2482
    %8755 = vmatprep.subr.mxu0 0.0
    %8756 = vmatpush1.msra.mxu0 %v2481
    %8757 = vmatprep.subr.mxu0 0.0
    %8758 = vmatpush2.msra.mxu0 0.0
    %8759 = vmatprep.subr.mxu0 0.0
    %8760 = vmatpush2.msra.mxu0 0.0
    %8761 = vmatprep.subr.mxu0 0.0
    %8762 = vmatpush2.msra.mxu0 0.0
    %8763 = vmatprep.subr.mxu0 0.0
    %8764 = vmatpush2.msra.mxu0 0.0
    %8765 = vmatprep.subr.mxu0 0.0
    %8766 = vmatpush2.msra.mxu0 0.0
    %8767 = vmatprep.subr.mxu0 0.0
    %8768 = vmatpush2.msra.mxu0 0.0
    %8769 = vmatprep.subr.mxu0 0.0
    %8770 = vmatpush2.msra.mxu0 0.0
    %8771 = vmatprep.subr.mxu0 0.0
    %8772 = vmatpush2.msra.mxu0 0.0
    %8773 = vmatprep.subr.mxu0 0.0
    %8774 = vmatpush2.msra.mxu0 0.0
    %8775 = vmatprep.subr.mxu0 0.0
    %8776 = vmatpush2.msra.mxu0 0.0
    %8777 = vmatprep.subr.mxu0 0.0
    %8778 = vmatpush2.msra.mxu0 0.0
    %8779 = vmatprep.subr.mxu0 0.0
    %8780 = vmatpush2.msra.mxu0 0.0
    %8781 = vmatprep.subr.mxu0 0.0
    %8782 = vmatpush2.msra.mxu0 0.0
    %8783 = vmatprep.subr.mxu0 0.0
    %8784 = vmatpush2.msra.mxu0 0.0
    %8785 = vmatprep.subr.mxu0 0.0
    %8786 = vmatpush2.msra.mxu0 0.0
    %8787 = vmatprep.subr.mxu0 0.0
    %8788 = vmatpush2.msra.mxu0 0.0
    %8789 = vmatprep.mubr.f32.mxu0 0.0
    %8790 = vmatmul.mubr.f32.gmra.mxu0 %v1091
    %v8791 = vpop.f32.mrf.mxu0
    %v8792 = vadd.f32 0.0, %v8791
    %v8793 = vpop.f32.mrf.mxu0
    %8794 = vdwg.mxu0
    %8795 = vmatprep.subr.mxu0 0.0
    %8796 = vmatpush1.msra.mxu0 %v2512
    %8797 = vmatprep.subr.mxu0 0.0
    %8798 = vmatpush1.msra.mxu0 %v2511
    %8799 = vmatprep.subr.mxu0 0.0
    %8800 = vmatpush1.msra.mxu0 %v2510
    %8801 = vmatprep.subr.mxu0 0.0
    %8802 = vmatpush1.msra.mxu0 %v2509
    %8803 = vmatprep.subr.mxu0 0.0
    %8804 = vmatpush1.msra.mxu0 %v2508
    %8805 = vmatprep.subr.mxu0 0.0
    %8806 = vmatpush1.msra.mxu0 %v2507
    %8807 = vmatprep.subr.mxu0 0.0
    %8808 = vmatpush1.msra.mxu0 %v2506
    %8809 = vmatprep.subr.mxu0 0.0
    %8810 = vmatpush1.msra.mxu0 %v2505
    %8811 = vmatprep.subr.mxu0 0.0
    %8812 = vmatpush1.msra.mxu0 %v2504
    %8813 = vmatprep.subr.mxu0 0.0
    %8814 = vmatpush1.msra.mxu0 %v2503
    %8815 = vmatprep.subr.mxu0 0.0
    %8816 = vmatpush1.msra.mxu0 %v2502
    %8817 = vmatprep.subr.mxu0 0.0
    %8818 = vmatpush1.msra.mxu0 %v2501
    %8819 = vmatprep.subr.mxu0 0.0
    %8820 = vmatpush1.msra.mxu0 %v2500
    %8821 = vmatprep.subr.mxu0 0.0
    %8822 = vmatpush1.msra.mxu0 %v2499
    %8823 = vmatprep.subr.mxu0 0.0
    %8824 = vmatpush1.msra.mxu0 %v2498
    %8825 = vmatprep.subr.mxu0 0.0
    %8826 = vmatpush1.msra.mxu0 %v2497
    %8827 = vmatprep.subr.mxu0 0.0
    %8828 = vmatpush2.msra.mxu0 0.0
    %8829 = vmatprep.subr.mxu0 0.0
    %8830 = vmatpush2.msra.mxu0 0.0
    %8831 = vmatprep.subr.mxu0 0.0
    %8832 = vmatpush2.msra.mxu0 0.0
    %8833 = vmatprep.subr.mxu0 0.0
    %8834 = vmatpush2.msra.mxu0 0.0
    %8835 = vmatprep.subr.mxu0 0.0
    %8836 = vmatpush2.msra.mxu0 0.0
    %8837 = vmatprep.subr.mxu0 0.0
    %8838 = vmatpush2.msra.mxu0 0.0
    %8839 = vmatprep.subr.mxu0 0.0
    %8840 = vmatpush2.msra.mxu0 0.0
    %8841 = vmatprep.subr.mxu0 0.0
    %8842 = vmatpush2.msra.mxu0 0.0
    %8843 = vmatprep.subr.mxu0 0.0
    %8844 = vmatpush2.msra.mxu0 0.0
    %8845 = vmatprep.subr.mxu0 0.0
    %8846 = vmatpush2.msra.mxu0 0.0
    %8847 = vmatprep.subr.mxu0 0.0
    %8848 = vmatpush2.msra.mxu0 0.0
    %8849 = vmatprep.subr.mxu0 0.0
    %8850 = vmatpush2.msra.mxu0 0.0
    %8851 = vmatprep.subr.mxu0 0.0
    %8852 = vmatpush2.msra.mxu0 0.0
    %8853 = vmatprep.subr.mxu0 0.0
    %8854 = vmatpush2.msra.mxu0 0.0
    %8855 = vmatprep.subr.mxu0 0.0
    %8856 = vmatpush2.msra.mxu0 0.0
    %8857 = vmatprep.subr.mxu0 0.0
    %8858 = vmatpush2.msra.mxu0 0.0
    %8859 = vmatprep.mubr.f32.mxu0 0.0
    %8860 = vmatmul.mubr.f32.gmra.mxu0 %v1092
    %v8861 = vpop.f32.mrf.mxu0
    %v8862 = vadd.f32 0.0, %v8861
    %v8863 = vpop.f32.mrf.mxu0
    %8864 = vdwg.mxu0
    %8865 = vmatprep.subr.mxu0 0.0
    %8866 = vmatpush1.msra.mxu0 %v2528
    %8867 = vmatprep.subr.mxu0 0.0
    %8868 = vmatpush1.msra.mxu0 %v2527
    %8869 = vmatprep.subr.mxu0 0.0
    %8870 = vmatpush1.msra.mxu0 %v2526
    %8871 = vmatprep.subr.mxu0 0.0
    %8872 = vmatpush1.msra.mxu0 %v2525
    %8873 = vmatprep.subr.mxu0 0.0
    %8874 = vmatpush1.msra.mxu0 %v2524
    %8875 = vmatprep.subr.mxu0 0.0
    %8876 = vmatpush1.msra.mxu0 %v2523
    %8877 = vmatprep.subr.mxu0 0.0
    %8878 = vmatpush1.msra.mxu0 %v2522
    %8879 = vmatprep.subr.mxu0 0.0
    %8880 = vmatpush1.msra.mxu0 %v2521
    %8881 = vmatprep.subr.mxu0 0.0
    %8882 = vmatpush1.msra.mxu0 %v2520
    %8883 = vmatprep.subr.mxu0 0.0
    %8884 = vmatpush1.msra.mxu0 %v2519
    %8885 = vmatprep.subr.mxu0 0.0
    %8886 = vmatpush1.msra.mxu0 %v2518
    %8887 = vmatprep.subr.mxu0 0.0
    %8888 = vmatpush1.msra.mxu0 %v2517
    %8889 = vmatprep.subr.mxu0 0.0
    %8890 = vmatpush1.msra.mxu0 %v2516
    %8891 = vmatprep.subr.mxu0 0.0
    %8892 = vmatpush1.msra.mxu0 %v2515
    %8893 = vmatprep.subr.mxu0 0.0
    %8894 = vmatpush1.msra.mxu0 %v2514
    %8895 = vmatprep.subr.mxu0 0.0
    %8896 = vmatpush1.msra.mxu0 %v2513
    %8897 = vmatprep.subr.mxu0 0.0
    %8898 = vmatpush2.msra.mxu0 0.0
    %8899 = vmatprep.subr.mxu0 0.0
    %8900 = vmatpush2.msra.mxu0 0.0
    %8901 = vmatprep.subr.mxu0 0.0
    %8902 = vmatpush2.msra.mxu0 0.0
    %8903 = vmatprep.subr.mxu0 0.0
    %8904 = vmatpush2.msra.mxu0 0.0
    %8905 = vmatprep.subr.mxu0 0.0
    %8906 = vmatpush2.msra.mxu0 0.0
    %8907 = vmatprep.subr.mxu0 0.0
    %8908 = vmatpush2.msra.mxu0 0.0
    %8909 = vmatprep.subr.mxu0 0.0
    %8910 = vmatpush2.msra.mxu0 0.0
    %8911 = vmatprep.subr.mxu0 0.0
    %8912 = vmatpush2.msra.mxu0 0.0
    %8913 = vmatprep.subr.mxu0 0.0
    %8914 = vmatpush2.msra.mxu0 0.0
    %8915 = vmatprep.subr.mxu0 0.0
    %8916 = vmatpush2.msra.mxu0 0.0
    %8917 = vmatprep.subr.mxu0 0.0
    %8918 = vmatpush2.msra.mxu0 0.0
    %8919 = vmatprep.subr.mxu0 0.0
    %8920 = vmatpush2.msra.mxu0 0.0
    %8921 = vmatprep.subr.mxu0 0.0
    %8922 = vmatpush2.msra.mxu0 0.0
    %8923 = vmatprep.subr.mxu0 0.0
    %8924 = vmatpush2.msra.mxu0 0.0
    %8925 = vmatprep.subr.mxu0 0.0
    %8926 = vmatpush2.msra.mxu0 0.0
    %8927 = vmatprep.subr.mxu0 0.0
    %8928 = vmatpush2.msra.mxu0 0.0
    %8929 = vmatprep.mubr.f32.mxu0 0.0
    %8930 = vmatmul.mubr.f32.gmra.mxu0 %v1093
    %v8931 = vpop.f32.mrf.mxu0
    %v8932 = vadd.f32 0.0, %v8931
    %v8933 = vpop.f32.mrf.mxu0
    %8934 = vdwg.mxu0
    %8935 = vmatprep.subr.mxu0 0.0
    %8936 = vmatpush1.msra.mxu0 %v2544
    %8937 = vmatprep.subr.mxu0 0.0
    %8938 = vmatpush1.msra.mxu0 %v2543
    %8939 = vmatprep.subr.mxu0 0.0
    %8940 = vmatpush1.msra.mxu0 %v2542
    %8941 = vmatprep.subr.mxu0 0.0
    %8942 = vmatpush1.msra.mxu0 %v2541
    %8943 = vmatprep.subr.mxu0 0.0
    %8944 = vmatpush1.msra.mxu0 %v2540
    %8945 = vmatprep.subr.mxu0 0.0
    %8946 = vmatpush1.msra.mxu0 %v2539
    %8947 = vmatprep.subr.mxu0 0.0
    %8948 = vmatpush1.msra.mxu0 %v2538
    %8949 = vmatprep.subr.mxu0 0.0
    %8950 = vmatpush1.msra.mxu0 %v2537
    %8951 = vmatprep.subr.mxu0 0.0
    %8952 = vmatpush1.msra.mxu0 %v2536
    %8953 = vmatprep.subr.mxu0 0.0
    %8954 = vmatpush1.msra.mxu0 %v2535
    %8955 = vmatprep.subr.mxu0 0.0
    %8956 = vmatpush1.msra.mxu0 %v2534
    %8957 = vmatprep.subr.mxu0 0.0
    %8958 = vmatpush1.msra.mxu0 %v2533
    %8959 = vmatprep.subr.mxu0 0.0
    %8960 = vmatpush1.msra.mxu0 %v2532
    %8961 = vmatprep.subr.mxu0 0.0
    %8962 = vmatpush1.msra.mxu0 %v2531
    %8963 = vmatprep.subr.mxu0 0.0
    %8964 = vmatpush1.msra.mxu0 %v2530
    %8965 = vmatprep.subr.mxu0 0.0
    %8966 = vmatpush1.msra.mxu0 %v2529
    %8967 = vmatprep.subr.mxu0 0.0
    %8968 = vmatpush2.msra.mxu0 0.0
    %8969 = vmatprep.subr.mxu0 0.0
    %8970 = vmatpush2.msra.mxu0 0.0
    %8971 = vmatprep.subr.mxu0 0.0
    %8972 = vmatpush2.msra.mxu0 0.0
    %8973 = vmatprep.subr.mxu0 0.0
    %8974 = vmatpush2.msra.mxu0 0.0
    %8975 = vmatprep.subr.mxu0 0.0
    %8976 = vmatpush2.msra.mxu0 0.0
    %8977 = vmatprep.subr.mxu0 0.0
    %8978 = vmatpush2.msra.mxu0 0.0
    %8979 = vmatprep.subr.mxu0 0.0
    %8980 = vmatpush2.msra.mxu0 0.0
    %8981 = vmatprep.subr.mxu0 0.0
    %8982 = vmatpush2.msra.mxu0 0.0
    %8983 = vmatprep.subr.mxu0 0.0
    %8984 = vmatpush2.msra.mxu0 0.0
    %8985 = vmatprep.subr.mxu0 0.0
    %8986 = vmatpush2.msra.mxu0 0.0
    %8987 = vmatprep.subr.mxu0 0.0
    %8988 = vmatpush2.msra.mxu0 0.0
    %8989 = vmatprep.subr.mxu0 0.0
    %8990 = vmatpush2.msra.mxu0 0.0
    %8991 = vmatprep.subr.mxu0 0.0
    %8992 = vmatpush2.msra.mxu0 0.0
    %8993 = vmatprep.subr.mxu0 0.0
    %8994 = vmatpush2.msra.mxu0 0.0
    %8995 = vmatprep.subr.mxu0 0.0
    %8996 = vmatpush2.msra.mxu0 0.0
    %8997 = vmatprep.subr.mxu0 0.0
    %8998 = vmatpush2.msra.mxu0 0.0
    %8999 = vmatprep.mubr.f32.mxu0 0.0
    %9000 = vmatmul.mubr.f32.gmra.mxu0 %v1094
    %v9001 = vpop.f32.mrf.mxu0
    %v9002 = vadd.f32 0.0, %v9001
    %v9003 = vpop.f32.mrf.mxu0
    %9004 = vdwg.mxu0
    %9005 = vmatprep.subr.mxu0 0.0
    %9006 = vmatpush1.msra.mxu0 %v2560
    %9007 = vmatprep.subr.mxu0 0.0
    %9008 = vmatpush1.msra.mxu0 %v2559
    %9009 = vmatprep.subr.mxu0 0.0
    %9010 = vmatpush1.msra.mxu0 %v2558
    %9011 = vmatprep.subr.mxu0 0.0
    %9012 = vmatpush1.msra.mxu0 %v2557
    %9013 = vmatprep.subr.mxu0 0.0
    %9014 = vmatpush1.msra.mxu0 %v2556
    %9015 = vmatprep.subr.mxu0 0.0
    %9016 = vmatpush1.msra.mxu0 %v2555
    %9017 = vmatprep.subr.mxu0 0.0
    %9018 = vmatpush1.msra.mxu0 %v2554
    %9019 = vmatprep.subr.mxu0 0.0
    %9020 = vmatpush1.msra.mxu0 %v2553
    %9021 = vmatprep.subr.mxu0 0.0
    %9022 = vmatpush1.msra.mxu0 %v2552
    %9023 = vmatprep.subr.mxu0 0.0
    %9024 = vmatpush1.msra.mxu0 %v2551
    %9025 = vmatprep.subr.mxu0 0.0
    %9026 = vmatpush1.msra.mxu0 %v2550
    %9027 = vmatprep.subr.mxu0 0.0
    %9028 = vmatpush1.msra.mxu0 %v2549
    %9029 = vmatprep.subr.mxu0 0.0
    %9030 = vmatpush1.msra.mxu0 %v2548
    %9031 = vmatprep.subr.mxu0 0.0
    %9032 = vmatpush1.msra.mxu0 %v2547
    %9033 = vmatprep.subr.mxu0 0.0
    %9034 = vmatpush1.msra.mxu0 %v2546
    %9035 = vmatprep.subr.mxu0 0.0
    %9036 = vmatpush1.msra.mxu0 %v2545
    %9037 = vmatprep.subr.mxu0 0.0
    %9038 = vmatpush2.msra.mxu0 0.0
    %9039 = vmatprep.subr.mxu0 0.0
    %9040 = vmatpush2.msra.mxu0 0.0
    %9041 = vmatprep.subr.mxu0 0.0
    %9042 = vmatpush2.msra.mxu0 0.0
    %9043 = vmatprep.subr.mxu0 0.0
    %9044 = vmatpush2.msra.mxu0 0.0
    %9045 = vmatprep.subr.mxu0 0.0
    %9046 = vmatpush2.msra.mxu0 0.0
    %9047 = vmatprep.subr.mxu0 0.0
    %9048 = vmatpush2.msra.mxu0 0.0
    %9049 = vmatprep.subr.mxu0 0.0
    %9050 = vmatpush2.msra.mxu0 0.0
    %9051 = vmatprep.subr.mxu0 0.0
    %9052 = vmatpush2.msra.mxu0 0.0
    %9053 = vmatprep.subr.mxu0 0.0
    %9054 = vmatpush2.msra.mxu0 0.0
    %9055 = vmatprep.subr.mxu0 0.0
    %9056 = vmatpush2.msra.mxu0 0.0
    %9057 = vmatprep.subr.mxu0 0.0
    %9058 = vmatpush2.msra.mxu0 0.0
    %9059 = vmatprep.subr.mxu0 0.0
    %9060 = vmatpush2.msra.mxu0 0.0
    %9061 = vmatprep.subr.mxu0 0.0
    %9062 = vmatpush2.msra.mxu0 0.0
    %9063 = vmatprep.subr.mxu0 0.0
    %9064 = vmatpush2.msra.mxu0 0.0
    %9065 = vmatprep.subr.mxu0 0.0
    %9066 = vmatpush2.msra.mxu0 0.0
    %9067 = vmatprep.subr.mxu0 0.0
    %9068 = vmatpush2.msra.mxu0 0.0
    %9069 = vmatprep.mubr.f32.mxu0 0.0
    %9070 = vmatmul.mubr.f32.gmra.mxu0 %v1095
    %v9071 = vpop.f32.mrf.mxu0
    %v9072 = vadd.f32 0.0, %v9071
    %v9073 = vpop.f32.mrf.mxu0
    %9074 = vdwg.mxu0
    %9075 = vmatprep.subr.mxu0 0.0
    %9076 = vmatpush1.msra.mxu0 %v2576
    %9077 = vmatprep.subr.mxu0 0.0
    %9078 = vmatpush1.msra.mxu0 %v2575
    %9079 = vmatprep.subr.mxu0 0.0
    %9080 = vmatpush1.msra.mxu0 %v2574
    %9081 = vmatprep.subr.mxu0 0.0
    %9082 = vmatpush1.msra.mxu0 %v2573
    %9083 = vmatprep.subr.mxu0 0.0
    %9084 = vmatpush1.msra.mxu0 %v2572
    %9085 = vmatprep.subr.mxu0 0.0
    %9086 = vmatpush1.msra.mxu0 %v2571
    %9087 = vmatprep.subr.mxu0 0.0
    %9088 = vmatpush1.msra.mxu0 %v2570
    %9089 = vmatprep.subr.mxu0 0.0
    %9090 = vmatpush1.msra.mxu0 %v2569
    %9091 = vmatprep.subr.mxu0 0.0
    %9092 = vmatpush1.msra.mxu0 %v2568
    %9093 = vmatprep.subr.mxu0 0.0
    %9094 = vmatpush1.msra.mxu0 %v2567
    %9095 = vmatprep.subr.mxu0 0.0
    %9096 = vmatpush1.msra.mxu0 %v2566
    %9097 = vmatprep.subr.mxu0 0.0
    %9098 = vmatpush1.msra.mxu0 %v2565
    %9099 = vmatprep.subr.mxu0 0.0
    %9100 = vmatpush1.msra.mxu0 %v2564
    %9101 = vmatprep.subr.mxu0 0.0
    %9102 = vmatpush1.msra.mxu0 %v2563
    %9103 = vmatprep.subr.mxu0 0.0
    %9104 = vmatpush1.msra.mxu0 %v2562
    %9105 = vmatprep.subr.mxu0 0.0
    %9106 = vmatpush1.msra.mxu0 %v2561
    %9107 = vmatprep.subr.mxu0 0.0
    %9108 = vmatpush2.msra.mxu0 0.0
    %9109 = vmatprep.subr.mxu0 0.0
    %9110 = vmatpush2.msra.mxu0 0.0
    %9111 = vmatprep.subr.mxu0 0.0
    %9112 = vmatpush2.msra.mxu0 0.0
    %9113 = vmatprep.subr.mxu0 0.0
    %9114 = vmatpush2.msra.mxu0 0.0
    %9115 = vmatprep.subr.mxu0 0.0
    %9116 = vmatpush2.msra.mxu0 0.0
    %9117 = vmatprep.subr.mxu0 0.0
    %9118 = vmatpush2.msra.mxu0 0.0
    %9119 = vmatprep.subr.mxu0 0.0
    %9120 = vmatpush2.msra.mxu0 0.0
    %9121 = vmatprep.subr.mxu0 0.0
    %9122 = vmatpush2.msra.mxu0 0.0
    %9123 = vmatprep.subr.mxu0 0.0
    %9124 = vmatpush2.msra.mxu0 0.0
    %9125 = vmatprep.subr.mxu0 0.0
    %9126 = vmatpush2.msra.mxu0 0.0
    %9127 = vmatprep.subr.mxu0 0.0
    %9128 = vmatpush2.msra.mxu0 0.0
    %9129 = vmatprep.subr.mxu0 0.0
    %9130 = vmatpush2.msra.mxu0 0.0
    %9131 = vmatprep.subr.mxu0 0.0
    %9132 = vmatpush2.msra.mxu0 0.0
    %9133 = vmatprep.subr.mxu0 0.0
    %9134 = vmatpush2.msra.mxu0 0.0
    %9135 = vmatprep.subr.mxu0 0.0
    %9136 = vmatpush2.msra.mxu0 0.0
    %9137 = vmatprep.subr.mxu0 0.0
    %9138 = vmatpush2.msra.mxu0 0.0
    %9139 = vmatprep.mubr.f32.mxu0 0.0
    %9140 = vmatmul.mubr.f32.gmra.mxu0 %v1096
    %v9141 = vpop.f32.mrf.mxu0
    %v9142 = vadd.f32 0.0, %v9141
    %v9143 = vpop.f32.mrf.mxu0
    %9144 = vdwg.mxu0
    %9145 = vmatprep.subr.mxu0 0.0
    %9146 = vmatpush1.msra.mxu0 %v2592
    %9147 = vmatprep.subr.mxu0 0.0
    %9148 = vmatpush1.msra.mxu0 %v2591
    %9149 = vmatprep.subr.mxu0 0.0
    %9150 = vmatpush1.msra.mxu0 %v2590
    %9151 = vmatprep.subr.mxu0 0.0
    %9152 = vmatpush1.msra.mxu0 %v2589
    %9153 = vmatprep.subr.mxu0 0.0
    %9154 = vmatpush1.msra.mxu0 %v2588
    %9155 = vmatprep.subr.mxu0 0.0
    %9156 = vmatpush1.msra.mxu0 %v2587
    %9157 = vmatprep.subr.mxu0 0.0
    %9158 = vmatpush1.msra.mxu0 %v2586
    %9159 = vmatprep.subr.mxu0 0.0
    %9160 = vmatpush1.msra.mxu0 %v2585
    %9161 = vmatprep.subr.mxu0 0.0
    %9162 = vmatpush1.msra.mxu0 %v2584
    %9163 = vmatprep.subr.mxu0 0.0
    %9164 = vmatpush1.msra.mxu0 %v2583
    %9165 = vmatprep.subr.mxu0 0.0
    %9166 = vmatpush1.msra.mxu0 %v2582
    %9167 = vmatprep.subr.mxu0 0.0
    %9168 = vmatpush1.msra.mxu0 %v2581
    %9169 = vmatprep.subr.mxu0 0.0
    %9170 = vmatpush1.msra.mxu0 %v2580
    %9171 = vmatprep.subr.mxu0 0.0
    %9172 = vmatpush1.msra.mxu0 %v2579
    %9173 = vmatprep.subr.mxu0 0.0
    %9174 = vmatpush1.msra.mxu0 %v2578
    %9175 = vmatprep.subr.mxu0 0.0
    %9176 = vmatpush1.msra.mxu0 %v2577
    %9177 = vmatprep.subr.mxu0 0.0
    %9178 = vmatpush2.msra.mxu0 0.0
    %9179 = vmatprep.subr.mxu0 0.0
    %9180 = vmatpush2.msra.mxu0 0.0
    %9181 = vmatprep.subr.mxu0 0.0
    %9182 = vmatpush2.msra.mxu0 0.0
    %9183 = vmatprep.subr.mxu0 0.0
    %9184 = vmatpush2.msra.mxu0 0.0
    %9185 = vmatprep.subr.mxu0 0.0
    %9186 = vmatpush2.msra.mxu0 0.0
    %9187 = vmatprep.subr.mxu0 0.0
    %9188 = vmatpush2.msra.mxu0 0.0
    %9189 = vmatprep.subr.mxu0 0.0
    %9190 = vmatpush2.msra.mxu0 0.0
    %9191 = vmatprep.subr.mxu0 0.0
    %9192 = vmatpush2.msra.mxu0 0.0
    %9193 = vmatprep.subr.mxu0 0.0
    %9194 = vmatpush2.msra.mxu0 0.0
    %9195 = vmatprep.subr.mxu0 0.0
    %9196 = vmatpush2.msra.mxu0 0.0
    %9197 = vmatprep.subr.mxu0 0.0
    %9198 = vmatpush2.msra.mxu0 0.0
    %9199 = vmatprep.subr.mxu0 0.0
    %9200 = vmatpush2.msra.mxu0 0.0
    %9201 = vmatprep.subr.mxu0 0.0
    %9202 = vmatpush2.msra.mxu0 0.0
    %9203 = vmatprep.subr.mxu0 0.0
    %9204 = vmatpush2.msra.mxu0 0.0
    %9205 = vmatprep.subr.mxu0 0.0
    %9206 = vmatpush2.msra.mxu0 0.0
    %9207 = vmatprep.subr.mxu0 0.0
    %9208 = vmatpush2.msra.mxu0 0.0
    %9209 = vmatprep.mubr.f32.mxu0 0.0
    %9210 = vmatmul.mubr.f32.gmra.mxu0 %v1097
    %v9211 = vpop.f32.mrf.mxu0
    %v9212 = vadd.f32 0.0, %v9211
    %v9213 = vpop.f32.mrf.mxu0
    %9214 = vdwg.mxu0
    %9215 = vmatprep.subr.mxu0 0.0
    %9216 = vmatpush1.msra.mxu0 %v2608
    %9217 = vmatprep.subr.mxu0 0.0
    %9218 = vmatpush1.msra.mxu0 %v2607
    %9219 = vmatprep.subr.mxu0 0.0
    %9220 = vmatpush1.msra.mxu0 %v2606
    %9221 = vmatprep.subr.mxu0 0.0
    %9222 = vmatpush1.msra.mxu0 %v2605
    %9223 = vmatprep.subr.mxu0 0.0
    %9224 = vmatpush1.msra.mxu0 %v2604
    %9225 = vmatprep.subr.mxu0 0.0
    %9226 = vmatpush1.msra.mxu0 %v2603
    %9227 = vmatprep.subr.mxu0 0.0
    %9228 = vmatpush1.msra.mxu0 %v2602
    %9229 = vmatprep.subr.mxu0 0.0
    %9230 = vmatpush1.msra.mxu0 %v2601
    %9231 = vmatprep.subr.mxu0 0.0
    %9232 = vmatpush1.msra.mxu0 %v2600
    %9233 = vmatprep.subr.mxu0 0.0
    %9234 = vmatpush1.msra.mxu0 %v2599
    %9235 = vmatprep.subr.mxu0 0.0
    %9236 = vmatpush1.msra.mxu0 %v2598
    %9237 = vmatprep.subr.mxu0 0.0
    %9238 = vmatpush1.msra.mxu0 %v2597
    %9239 = vmatprep.subr.mxu0 0.0
    %9240 = vmatpush1.msra.mxu0 %v2596
    %9241 = vmatprep.subr.mxu0 0.0
    %9242 = vmatpush1.msra.mxu0 %v2595
    %9243 = vmatprep.subr.mxu0 0.0
    %9244 = vmatpush1.msra.mxu0 %v2594
    %9245 = vmatprep.subr.mxu0 0.0
    %9246 = vmatpush1.msra.mxu0 %v2593
    %9247 = vmatprep.subr.mxu0 0.0
    %9248 = vmatpush2.msra.mxu0 0.0
    %9249 = vmatprep.subr.mxu0 0.0
    %9250 = vmatpush2.msra.mxu0 0.0
    %9251 = vmatprep.subr.mxu0 0.0
    %9252 = vmatpush2.msra.mxu0 0.0
    %9253 = vmatprep.subr.mxu0 0.0
    %9254 = vmatpush2.msra.mxu0 0.0
    %9255 = vmatprep.subr.mxu0 0.0
    %9256 = vmatpush2.msra.mxu0 0.0
    %9257 = vmatprep.subr.mxu0 0.0
    %9258 = vmatpush2.msra.mxu0 0.0
    %9259 = vmatprep.subr.mxu0 0.0
    %9260 = vmatpush2.msra.mxu0 0.0
    %9261 = vmatprep.subr.mxu0 0.0
    %9262 = vmatpush2.msra.mxu0 0.0
    %9263 = vmatprep.subr.mxu0 0.0
    %9264 = vmatpush2.msra.mxu0 0.0
    %9265 = vmatprep.subr.mxu0 0.0
    %9266 = vmatpush2.msra.mxu0 0.0
    %9267 = vmatprep.subr.mxu0 0.0
    %9268 = vmatpush2.msra.mxu0 0.0
    %9269 = vmatprep.subr.mxu0 0.0
    %9270 = vmatpush2.msra.mxu0 0.0
    %9271 = vmatprep.subr.mxu0 0.0
    %9272 = vmatpush2.msra.mxu0 0.0
    %9273 = vmatprep.subr.mxu0 0.0
    %9274 = vmatpush2.msra.mxu0 0.0
    %9275 = vmatprep.subr.mxu0 0.0
    %9276 = vmatpush2.msra.mxu0 0.0
    %9277 = vmatprep.subr.mxu0 0.0
    %9278 = vmatpush2.msra.mxu0 0.0
    %9279 = vmatprep.mubr.f32.mxu0 0.0
    %9280 = vmatmul.mubr.f32.gmra.mxu0 %v1098
    %v9281 = vpop.f32.mrf.mxu0
    %v9282 = vadd.f32 0.0, %v9281
    %v9283 = vpop.f32.mrf.mxu0
    %9284 = vdwg.mxu0
    %9285 = vmatprep.subr.mxu0 0.0
    %9286 = vmatpush1.msra.mxu0 %v2624
    %9287 = vmatprep.subr.mxu0 0.0
    %9288 = vmatpush1.msra.mxu0 %v2623
    %9289 = vmatprep.subr.mxu0 0.0
    %9290 = vmatpush1.msra.mxu0 %v2622
    %9291 = vmatprep.subr.mxu0 0.0
    %9292 = vmatpush1.msra.mxu0 %v2621
    %9293 = vmatprep.subr.mxu0 0.0
    %9294 = vmatpush1.msra.mxu0 %v2620
    %9295 = vmatprep.subr.mxu0 0.0
    %9296 = vmatpush1.msra.mxu0 %v2619
    %9297 = vmatprep.subr.mxu0 0.0
    %9298 = vmatpush1.msra.mxu0 %v2618
    %9299 = vmatprep.subr.mxu0 0.0
    %9300 = vmatpush1.msra.mxu0 %v2617
    %9301 = vmatprep.subr.mxu0 0.0
    %9302 = vmatpush1.msra.mxu0 %v2616
    %9303 = vmatprep.subr.mxu0 0.0
    %9304 = vmatpush1.msra.mxu0 %v2615
    %9305 = vmatprep.subr.mxu0 0.0
    %9306 = vmatpush1.msra.mxu0 %v2614
    %9307 = vmatprep.subr.mxu0 0.0
    %9308 = vmatpush1.msra.mxu0 %v2613
    %9309 = vmatprep.subr.mxu0 0.0
    %9310 = vmatpush1.msra.mxu0 %v2612
    %9311 = vmatprep.subr.mxu0 0.0
    %9312 = vmatpush1.msra.mxu0 %v2611
    %9313 = vmatprep.subr.mxu0 0.0
    %9314 = vmatpush1.msra.mxu0 %v2610
    %9315 = vmatprep.subr.mxu0 0.0
    %9316 = vmatpush1.msra.mxu0 %v2609
    %9317 = vmatprep.subr.mxu0 0.0
    %9318 = vmatpush2.msra.mxu0 0.0
    %9319 = vmatprep.subr.mxu0 0.0
    %9320 = vmatpush2.msra.mxu0 0.0
    %9321 = vmatprep.subr.mxu0 0.0
    %9322 = vmatpush2.msra.mxu0 0.0
    %9323 = vmatprep.subr.mxu0 0.0
    %9324 = vmatpush2.msra.mxu0 0.0
    %9325 = vmatprep.subr.mxu0 0.0
    %9326 = vmatpush2.msra.mxu0 0.0
    %9327 = vmatprep.subr.mxu0 0.0
    %9328 = vmatpush2.msra.mxu0 0.0
    %9329 = vmatprep.subr.mxu0 0.0
    %9330 = vmatpush2.msra.mxu0 0.0
    %9331 = vmatprep.subr.mxu0 0.0
    %9332 = vmatpush2.msra.mxu0 0.0
    %9333 = vmatprep.subr.mxu0 0.0
    %9334 = vmatpush2.msra.mxu0 0.0
    %9335 = vmatprep.subr.mxu0 0.0
    %9336 = vmatpush2.msra.mxu0 0.0
    %9337 = vmatprep.subr.mxu0 0.0
    %9338 = vmatpush2.msra.mxu0 0.0
    %9339 = vmatprep.subr.mxu0 0.0
    %9340 = vmatpush2.msra.mxu0 0.0
    %9341 = vmatprep.subr.mxu0 0.0
    %9342 = vmatpush2.msra.mxu0 0.0
    %9343 = vmatprep.subr.mxu0 0.0
    %9344 = vmatpush2.msra.mxu0 0.0
    %9345 = vmatprep.subr.mxu0 0.0
    %9346 = vmatpush2.msra.mxu0 0.0
    %9347 = vmatprep.subr.mxu0 0.0
    %9348 = vmatpush2.msra.mxu0 0.0
    %9349 = vmatprep.mubr.f32.mxu0 0.0
    %9350 = vmatmul.mubr.f32.gmra.mxu0 %v1099
    %v9351 = vpop.f32.mrf.mxu0
    %v9352 = vadd.f32 0.0, %v9351
    %v9353 = vpop.f32.mrf.mxu0
    %9354 = vdwg.mxu0
    %9355 = vmatprep.subr.mxu0 0.0
    %9356 = vmatpush1.msra.mxu0 %v2640
    %9357 = vmatprep.subr.mxu0 0.0
    %9358 = vmatpush1.msra.mxu0 %v2639
    %9359 = vmatprep.subr.mxu0 0.0
    %9360 = vmatpush1.msra.mxu0 %v2638
    %9361 = vmatprep.subr.mxu0 0.0
    %9362 = vmatpush1.msra.mxu0 %v2637
    %9363 = vmatprep.subr.mxu0 0.0
    %9364 = vmatpush1.msra.mxu0 %v2636
    %9365 = vmatprep.subr.mxu0 0.0
    %9366 = vmatpush1.msra.mxu0 %v2635
    %9367 = vmatprep.subr.mxu0 0.0
    %9368 = vmatpush1.msra.mxu0 %v2634
    %9369 = vmatprep.subr.mxu0 0.0
    %9370 = vmatpush1.msra.mxu0 %v2633
    %9371 = vmatprep.subr.mxu0 0.0
    %9372 = vmatpush1.msra.mxu0 %v2632
    %9373 = vmatprep.subr.mxu0 0.0
    %9374 = vmatpush1.msra.mxu0 %v2631
    %9375 = vmatprep.subr.mxu0 0.0
    %9376 = vmatpush1.msra.mxu0 %v2630
    %9377 = vmatprep.subr.mxu0 0.0
    %9378 = vmatpush1.msra.mxu0 %v2629
    %9379 = vmatprep.subr.mxu0 0.0
    %9380 = vmatpush1.msra.mxu0 %v2628
    %9381 = vmatprep.subr.mxu0 0.0
    %9382 = vmatpush1.msra.mxu0 %v2627
    %9383 = vmatprep.subr.mxu0 0.0
    %9384 = vmatpush1.msra.mxu0 %v2626
    %9385 = vmatprep.subr.mxu0 0.0
    %9386 = vmatpush1.msra.mxu0 %v2625
    %9387 = vmatprep.subr.mxu0 0.0
    %9388 = vmatpush2.msra.mxu0 0.0
    %9389 = vmatprep.subr.mxu0 0.0
    %9390 = vmatpush2.msra.mxu0 0.0
    %9391 = vmatprep.subr.mxu0 0.0
    %9392 = vmatpush2.msra.mxu0 0.0
    %9393 = vmatprep.subr.mxu0 0.0
    %9394 = vmatpush2.msra.mxu0 0.0
    %9395 = vmatprep.subr.mxu0 0.0
    %9396 = vmatpush2.msra.mxu0 0.0
    %9397 = vmatprep.subr.mxu0 0.0
    %9398 = vmatpush2.msra.mxu0 0.0
    %9399 = vmatprep.subr.mxu0 0.0
    %9400 = vmatpush2.msra.mxu0 0.0
    %9401 = vmatprep.subr.mxu0 0.0
    %9402 = vmatpush2.msra.mxu0 0.0
    %9403 = vmatprep.subr.mxu0 0.0
    %9404 = vmatpush2.msra.mxu0 0.0
    %9405 = vmatprep.subr.mxu0 0.0
    %9406 = vmatpush2.msra.mxu0 0.0
    %9407 = vmatprep.subr.mxu0 0.0
    %9408 = vmatpush2.msra.mxu0 0.0
    %9409 = vmatprep.subr.mxu0 0.0
    %9410 = vmatpush2.msra.mxu0 0.0
    %9411 = vmatprep.subr.mxu0 0.0
    %9412 = vmatpush2.msra.mxu0 0.0
    %9413 = vmatprep.subr.mxu0 0.0
    %9414 = vmatpush2.msra.mxu0 0.0
    %9415 = vmatprep.subr.mxu0 0.0
    %9416 = vmatpush2.msra.mxu0 0.0
    %9417 = vmatprep.subr.mxu0 0.0
    %9418 = vmatpush2.msra.mxu0 0.0
    %9419 = vmatprep.mubr.f32.mxu0 0.0
    %9420 = vmatmul.mubr.f32.gmra.mxu0 %v1100
    %v9421 = vpop.f32.mrf.mxu0
    %v9422 = vadd.f32 0.0, %v9421
    %v9423 = vpop.f32.mrf.mxu0
    %9424 = vdwg.mxu0
    %9425 = vmatprep.subr.mxu0 0.0
    %9426 = vmatpush1.msra.mxu0 %v2656
    %9427 = vmatprep.subr.mxu0 0.0
    %9428 = vmatpush1.msra.mxu0 %v2655
    %9429 = vmatprep.subr.mxu0 0.0
    %9430 = vmatpush1.msra.mxu0 %v2654
    %9431 = vmatprep.subr.mxu0 0.0
    %9432 = vmatpush1.msra.mxu0 %v2653
    %9433 = vmatprep.subr.mxu0 0.0
    %9434 = vmatpush1.msra.mxu0 %v2652
    %9435 = vmatprep.subr.mxu0 0.0
    %9436 = vmatpush1.msra.mxu0 %v2651
    %9437 = vmatprep.subr.mxu0 0.0
    %9438 = vmatpush1.msra.mxu0 %v2650
    %9439 = vmatprep.subr.mxu0 0.0
    %9440 = vmatpush1.msra.mxu0 %v2649
    %9441 = vmatprep.subr.mxu0 0.0
    %9442 = vmatpush1.msra.mxu0 %v2648
    %9443 = vmatprep.subr.mxu0 0.0
    %9444 = vmatpush1.msra.mxu0 %v2647
    %9445 = vmatprep.subr.mxu0 0.0
    %9446 = vmatpush1.msra.mxu0 %v2646
    %9447 = vmatprep.subr.mxu0 0.0
    %9448 = vmatpush1.msra.mxu0 %v2645
    %9449 = vmatprep.subr.mxu0 0.0
    %9450 = vmatpush1.msra.mxu0 %v2644
    %9451 = vmatprep.subr.mxu0 0.0
    %9452 = vmatpush1.msra.mxu0 %v2643
    %9453 = vmatprep.subr.mxu0 0.0
    %9454 = vmatpush1.msra.mxu0 %v2642
    %9455 = vmatprep.subr.mxu0 0.0
    %9456 = vmatpush1.msra.mxu0 %v2641
    %9457 = vmatprep.subr.mxu0 0.0
    %9458 = vmatpush2.msra.mxu0 0.0
    %9459 = vmatprep.subr.mxu0 0.0
    %9460 = vmatpush2.msra.mxu0 0.0
    %9461 = vmatprep.subr.mxu0 0.0
    %9462 = vmatpush2.msra.mxu0 0.0
    %9463 = vmatprep.subr.mxu0 0.0
    %9464 = vmatpush2.msra.mxu0 0.0
    %9465 = vmatprep.subr.mxu0 0.0
    %9466 = vmatpush2.msra.mxu0 0.0
    %9467 = vmatprep.subr.mxu0 0.0
    %9468 = vmatpush2.msra.mxu0 0.0
    %9469 = vmatprep.subr.mxu0 0.0
    %9470 = vmatpush2.msra.mxu0 0.0
    %9471 = vmatprep.subr.mxu0 0.0
    %9472 = vmatpush2.msra.mxu0 0.0
    %9473 = vmatprep.subr.mxu0 0.0
    %9474 = vmatpush2.msra.mxu0 0.0
    %9475 = vmatprep.subr.mxu0 0.0
    %9476 = vmatpush2.msra.mxu0 0.0
    %9477 = vmatprep.subr.mxu0 0.0
    %9478 = vmatpush2.msra.mxu0 0.0
    %9479 = vmatprep.subr.mxu0 0.0
    %9480 = vmatpush2.msra.mxu0 0.0
    %9481 = vmatprep.subr.mxu0 0.0
    %9482 = vmatpush2.msra.mxu0 0.0
    %9483 = vmatprep.subr.mxu0 0.0
    %9484 = vmatpush2.msra.mxu0 0.0
    %9485 = vmatprep.subr.mxu0 0.0
    %9486 = vmatpush2.msra.mxu0 0.0
    %9487 = vmatprep.subr.mxu0 0.0
    %9488 = vmatpush2.msra.mxu0 0.0
    %9489 = vmatprep.mubr.f32.mxu0 0.0
    %9490 = vmatmul.mubr.f32.gmra.mxu0 %v1101
    %v9491 = vpop.f32.mrf.mxu0
    %v9492 = vadd.f32 0.0, %v9491
    %v9493 = vpop.f32.mrf.mxu0
    %9494 = vdwg.mxu0
    %9495 = vmatprep.subr.mxu0 0.0
    %9496 = vmatpush1.msra.mxu0 %v2672
    %9497 = vmatprep.subr.mxu0 0.0
    %9498 = vmatpush1.msra.mxu0 %v2671
    %9499 = vmatprep.subr.mxu0 0.0
    %9500 = vmatpush1.msra.mxu0 %v2670
    %9501 = vmatprep.subr.mxu0 0.0
    %9502 = vmatpush1.msra.mxu0 %v2669
    %9503 = vmatprep.subr.mxu0 0.0
    %9504 = vmatpush1.msra.mxu0 %v2668
    %9505 = vmatprep.subr.mxu0 0.0
    %9506 = vmatpush1.msra.mxu0 %v2667
    %9507 = vmatprep.subr.mxu0 0.0
    %9508 = vmatpush1.msra.mxu0 %v2666
    %9509 = vmatprep.subr.mxu0 0.0
    %9510 = vmatpush1.msra.mxu0 %v2665
    %9511 = vmatprep.subr.mxu0 0.0
    %9512 = vmatpush1.msra.mxu0 %v2664
    %9513 = vmatprep.subr.mxu0 0.0
    %9514 = vmatpush1.msra.mxu0 %v2663
    %9515 = vmatprep.subr.mxu0 0.0
    %9516 = vmatpush1.msra.mxu0 %v2662
    %9517 = vmatprep.subr.mxu0 0.0
    %9518 = vmatpush1.msra.mxu0 %v2661
    %9519 = vmatprep.subr.mxu0 0.0
    %9520 = vmatpush1.msra.mxu0 %v2660
    %9521 = vmatprep.subr.mxu0 0.0
    %9522 = vmatpush1.msra.mxu0 %v2659
    %9523 = vmatprep.subr.mxu0 0.0
    %9524 = vmatpush1.msra.mxu0 %v2658
    %9525 = vmatprep.subr.mxu0 0.0
    %9526 = vmatpush1.msra.mxu0 %v2657
    %9527 = vmatprep.subr.mxu0 0.0
    %9528 = vmatpush2.msra.mxu0 0.0
    %9529 = vmatprep.subr.mxu0 0.0
    %9530 = vmatpush2.msra.mxu0 0.0
    %9531 = vmatprep.subr.mxu0 0.0
    %9532 = vmatpush2.msra.mxu0 0.0
    %9533 = vmatprep.subr.mxu0 0.0
    %9534 = vmatpush2.msra.mxu0 0.0
    %9535 = vmatprep.subr.mxu0 0.0
    %9536 = vmatpush2.msra.mxu0 0.0
    %9537 = vmatprep.subr.mxu0 0.0
    %9538 = vmatpush2.msra.mxu0 0.0
    %9539 = vmatprep.subr.mxu0 0.0
    %9540 = vmatpush2.msra.mxu0 0.0
    %9541 = vmatprep.subr.mxu0 0.0
    %9542 = vmatpush2.msra.mxu0 0.0
    %9543 = vmatprep.subr.mxu0 0.0
    %9544 = vmatpush2.msra.mxu0 0.0
    %9545 = vmatprep.subr.mxu0 0.0
    %9546 = vmatpush2.msra.mxu0 0.0
    %9547 = vmatprep.subr.mxu0 0.0
    %9548 = vmatpush2.msra.mxu0 0.0
    %9549 = vmatprep.subr.mxu0 0.0
    %9550 = vmatpush2.msra.mxu0 0.0
    %9551 = vmatprep.subr.mxu0 0.0
    %9552 = vmatpush2.msra.mxu0 0.0
    %9553 = vmatprep.subr.mxu0 0.0
    %9554 = vmatpush2.msra.mxu0 0.0
    %9555 = vmatprep.subr.mxu0 0.0
    %9556 = vmatpush2.msra.mxu0 0.0
    %9557 = vmatprep.subr.mxu0 0.0
    %9558 = vmatpush2.msra.mxu0 0.0
    %9559 = vmatprep.mubr.f32.mxu0 0.0
    %9560 = vmatmul.mubr.f32.gmra.mxu0 %v1102
    %v9561 = vpop.f32.mrf.mxu0
    %v9562 = vadd.f32 0.0, %v9561
    %v9563 = vpop.f32.mrf.mxu0
    %9564 = vdwg.mxu0
    %9565 = vmatprep.subr.mxu0 0.0
    %9566 = vmatpush1.msra.mxu0 %v2688
    %9567 = vmatprep.subr.mxu0 0.0
    %9568 = vmatpush1.msra.mxu0 %v2687
    %9569 = vmatprep.subr.mxu0 0.0
    %9570 = vmatpush1.msra.mxu0 %v2686
    %9571 = vmatprep.subr.mxu0 0.0
    %9572 = vmatpush1.msra.mxu0 %v2685
    %9573 = vmatprep.subr.mxu0 0.0
    %9574 = vmatpush1.msra.mxu0 %v2684
    %9575 = vmatprep.subr.mxu0 0.0
    %9576 = vmatpush1.msra.mxu0 %v2683
    %9577 = vmatprep.subr.mxu0 0.0
    %9578 = vmatpush1.msra.mxu0 %v2682
    %9579 = vmatprep.subr.mxu0 0.0
    %9580 = vmatpush1.msra.mxu0 %v2681
    %9581 = vmatprep.subr.mxu0 0.0
    %9582 = vmatpush1.msra.mxu0 %v2680
    %9583 = vmatprep.subr.mxu0 0.0
    %9584 = vmatpush1.msra.mxu0 %v2679
    %9585 = vmatprep.subr.mxu0 0.0
    %9586 = vmatpush1.msra.mxu0 %v2678
    %9587 = vmatprep.subr.mxu0 0.0
    %9588 = vmatpush1.msra.mxu0 %v2677
    %9589 = vmatprep.subr.mxu0 0.0
    %9590 = vmatpush1.msra.mxu0 %v2676
    %9591 = vmatprep.subr.mxu0 0.0
    %9592 = vmatpush1.msra.mxu0 %v2675
    %9593 = vmatprep.subr.mxu0 0.0
    %9594 = vmatpush1.msra.mxu0 %v2674
    %9595 = vmatprep.subr.mxu0 0.0
    %9596 = vmatpush1.msra.mxu0 %v2673
    %9597 = vmatprep.subr.mxu0 0.0
    %9598 = vmatpush2.msra.mxu0 0.0
    %9599 = vmatprep.subr.mxu0 0.0
    %9600 = vmatpush2.msra.mxu0 0.0
    %9601 = vmatprep.subr.mxu0 0.0
    %9602 = vmatpush2.msra.mxu0 0.0
    %9603 = vmatprep.subr.mxu0 0.0
    %9604 = vmatpush2.msra.mxu0 0.0
    %9605 = vmatprep.subr.mxu0 0.0
    %9606 = vmatpush2.msra.mxu0 0.0
    %9607 = vmatprep.subr.mxu0 0.0
    %9608 = vmatpush2.msra.mxu0 0.0
    %9609 = vmatprep.subr.mxu0 0.0
    %9610 = vmatpush2.msra.mxu0 0.0
    %9611 = vmatprep.subr.mxu0 0.0
    %9612 = vmatpush2.msra.mxu0 0.0
    %9613 = vmatprep.subr.mxu0 0.0
    %9614 = vmatpush2.msra.mxu0 0.0
    %9615 = vmatprep.subr.mxu0 0.0
    %9616 = vmatpush2.msra.mxu0 0.0
    %9617 = vmatprep.subr.mxu0 0.0
    %9618 = vmatpush2.msra.mxu0 0.0
    %9619 = vmatprep.subr.mxu0 0.0
    %9620 = vmatpush2.msra.mxu0 0.0
    %9621 = vmatprep.subr.mxu0 0.0
    %9622 = vmatpush2.msra.mxu0 0.0
    %9623 = vmatprep.subr.mxu0 0.0
    %9624 = vmatpush2.msra.mxu0 0.0
    %9625 = vmatprep.subr.mxu0 0.0
    %9626 = vmatpush2.msra.mxu0 0.0
    %9627 = vmatprep.subr.mxu0 0.0
    %9628 = vmatpush2.msra.mxu0 0.0
    %9629 = vmatprep.mubr.f32.mxu0 0.0
    %9630 = vmatmul.mubr.f32.gmra.mxu0 %v1103
    %v9631 = vpop.f32.mrf.mxu0
    %v9632 = vadd.f32 0.0, %v9631
    %v9633 = vpop.f32.mrf.mxu0
    %9634 = vdwg.mxu0
    %9635 = vmatprep.subr.mxu0 0.0
    %9636 = vmatpush1.msra.mxu0 %v2704
    %9637 = vmatprep.subr.mxu0 0.0
    %9638 = vmatpush1.msra.mxu0 %v2703
    %9639 = vmatprep.subr.mxu0 0.0
    %9640 = vmatpush1.msra.mxu0 %v2702
    %9641 = vmatprep.subr.mxu0 0.0
    %9642 = vmatpush1.msra.mxu0 %v2701
    %9643 = vmatprep.subr.mxu0 0.0
    %9644 = vmatpush1.msra.mxu0 %v2700
    %9645 = vmatprep.subr.mxu0 0.0
    %9646 = vmatpush1.msra.mxu0 %v2699
    %9647 = vmatprep.subr.mxu0 0.0
    %9648 = vmatpush1.msra.mxu0 %v2698
    %9649 = vmatprep.subr.mxu0 0.0
    %9650 = vmatpush1.msra.mxu0 %v2697
    %9651 = vmatprep.subr.mxu0 0.0
    %9652 = vmatpush1.msra.mxu0 %v2696
    %9653 = vmatprep.subr.mxu0 0.0
    %9654 = vmatpush1.msra.mxu0 %v2695
    %9655 = vmatprep.subr.mxu0 0.0
    %9656 = vmatpush1.msra.mxu0 %v2694
    %9657 = vmatprep.subr.mxu0 0.0
    %9658 = vmatpush1.msra.mxu0 %v2693
    %9659 = vmatprep.subr.mxu0 0.0
    %9660 = vmatpush1.msra.mxu0 %v2692
    %9661 = vmatprep.subr.mxu0 0.0
    %9662 = vmatpush1.msra.mxu0 %v2691
    %9663 = vmatprep.subr.mxu0 0.0
    %9664 = vmatpush1.msra.mxu0 %v2690
    %9665 = vmatprep.subr.mxu0 0.0
    %9666 = vmatpush1.msra.mxu0 %v2689
    %9667 = vmatprep.subr.mxu0 0.0
    %9668 = vmatpush2.msra.mxu0 0.0
    %9669 = vmatprep.subr.mxu0 0.0
    %9670 = vmatpush2.msra.mxu0 0.0
    %9671 = vmatprep.subr.mxu0 0.0
    %9672 = vmatpush2.msra.mxu0 0.0
    %9673 = vmatprep.subr.mxu0 0.0
    %9674 = vmatpush2.msra.mxu0 0.0
    %9675 = vmatprep.subr.mxu0 0.0
    %9676 = vmatpush2.msra.mxu0 0.0
    %9677 = vmatprep.subr.mxu0 0.0
    %9678 = vmatpush2.msra.mxu0 0.0
    %9679 = vmatprep.subr.mxu0 0.0
    %9680 = vmatpush2.msra.mxu0 0.0
    %9681 = vmatprep.subr.mxu0 0.0
    %9682 = vmatpush2.msra.mxu0 0.0
    %9683 = vmatprep.subr.mxu0 0.0
    %9684 = vmatpush2.msra.mxu0 0.0
    %9685 = vmatprep.subr.mxu0 0.0
    %9686 = vmatpush2.msra.mxu0 0.0
    %9687 = vmatprep.subr.mxu0 0.0
    %9688 = vmatpush2.msra.mxu0 0.0
    %9689 = vmatprep.subr.mxu0 0.0
    %9690 = vmatpush2.msra.mxu0 0.0
    %9691 = vmatprep.subr.mxu0 0.0
    %9692 = vmatpush2.msra.mxu0 0.0
    %9693 = vmatprep.subr.mxu0 0.0
    %9694 = vmatpush2.msra.mxu0 0.0
    %9695 = vmatprep.subr.mxu0 0.0
    %9696 = vmatpush2.msra.mxu0 0.0
    %9697 = vmatprep.subr.mxu0 0.0
    %9698 = vmatpush2.msra.mxu0 0.0
    %9699 = vmatprep.mubr.f32.mxu0 0.0
    %9700 = vmatmul.mubr.f32.gmra.mxu0 %v1104
    %v9701 = vpop.f32.mrf.mxu0
    %v9702 = vadd.f32 0.0, %v9701
    %v9703 = vpop.f32.mrf.mxu0
    %9704 = vdwg.mxu0
    %vm9705 = vcmask 523264
    %v9706 = vsel %vm9705, %v2772, 0.0
    %v9707 = vsel %vm9705, %v2842, 0.0
    %v9708 = vadd.f32 %v9706, %v9707
    %v9709 = vsel %vm9705, %v2912, 0.0
    %v9710 = vadd.f32 %v9708, %v9709
    %v9711 = vsel %vm9705, %v2982, 0.0
    %v9712 = vadd.f32 %v9710, %v9711
    %v9713 = vsel %vm9705, %v3052, 0.0
    %v9714 = vadd.f32 %v9712, %v9713
    %v9715 = vsel %vm9705, %v3122, 0.0
    %v9716 = vadd.f32 %v9714, %v9715
    %v9717 = vsel %vm9705, %v3192, 0.0
    %v9718 = vadd.f32 %v9716, %v9717
    %v9719 = vsel %vm9705, %v3262, 0.0
    %v9720 = vadd.f32 %v9718, %v9719
    %v9721 = vsel %vm9705, %v3332, 0.0
    %v9722 = vadd.f32 %v9720, %v9721
    %v9723 = vsel %vm9705, %v3402, 0.0
    %v9724 = vadd.f32 %v9722, %v9723
    %v9725 = vsel %vm9705, %v3472, 0.0
    %v9726 = vadd.f32 %v9724, %v9725
    %v9727 = vsel %vm9705, %v3542, 0.0
    %v9728 = vadd.f32 %v9726, %v9727
    %v9729 = vsel %vm9705, %v3612, 0.0
    %v9730 = vadd.f32 %v9728, %v9729
    %v9731 = vsel %vm9705, %v3682, 0.0
    %v9732 = vadd.f32 %v9730, %v9731
    %v9733 = vsel %vm9705, %v3752, 0.0
    %v9734 = vadd.f32 %v9732, %v9733
    %v9735 = vsel %vm9705, %v3822, 0.0
    %v9736 = vadd.f32 %v9734, %v9735
    %v9737 = vsel %vm9705, %v3892, 0.0
    %v9738 = vadd.f32 %v9736, %v9737
    %v9739 = vsel %vm9705, %v3962, 0.0
    %v9740 = vadd.f32 %v9738, %v9739
    %v9741 = vsel %vm9705, %v4032, 0.0
    %v9742 = vadd.f32 %v9740, %v9741
    %v9743 = vsel %vm9705, %v4102, 0.0
    %v9744 = vadd.f32 %v9742, %v9743
    %v9745 = vsel %vm9705, %v4172, 0.0
    %v9746 = vadd.f32 %v9744, %v9745
    %v9747 = vsel %vm9705, %v4242, 0.0
    %v9748 = vadd.f32 %v9746, %v9747
    %v9749 = vsel %vm9705, %v4312, 0.0
    %v9750 = vadd.f32 %v9748, %v9749
    %v9751 = vsel %vm9705, %v4382, 0.0
    %v9752 = vadd.f32 %v9750, %v9751
    %v9753 = vsel %vm9705, %v4452, 0.0
    %v9754 = vadd.f32 %v9752, %v9753
    %v9755 = vsel %vm9705, %v4522, 0.0
    %v9756 = vadd.f32 %v9754, %v9755
    %v9757 = vsel %vm9705, %v4592, 0.0
    %v9758 = vadd.f32 %v9756, %v9757
    %v9759 = vsel %vm9705, %v4662, 0.0
    %v9760 = vadd.f32 %v9758, %v9759
    %v9761 = vsel %vm9705, %v4732, 0.0
    %v9762 = vadd.f32 %v9760, %v9761
    %v9763 = vsel %vm9705, %v4802, 0.0
    %v9764 = vadd.f32 %v9762, %v9763
    %v9765 = vsel %vm9705, %v4872, 0.0
    %v9766 = vadd.f32 %v9764, %v9765
    %v9767 = vsel %vm9705, %v4942, 0.0
    %v9768 = vadd.f32 %v9766, %v9767
    %v9769 = vsel %vm9705, %v5012, 0.0
    %v9770 = vadd.f32 %v9768, %v9769
    %v9771 = vsel %vm9705, %v5082, 0.0
    %v9772 = vadd.f32 %v9770, %v9771
    %v9773 = vsel %vm9705, %v5152, 0.0
    %v9774 = vadd.f32 %v9772, %v9773
    %v9775 = vsel %vm9705, %v5222, 0.0
    %v9776 = vadd.f32 %v9774, %v9775
    %v9777 = vsel %vm9705, %v5292, 0.0
    %v9778 = vadd.f32 %v9776, %v9777
    %v9779 = vsel %vm9705, %v5362, 0.0
    %v9780 = vadd.f32 %v9778, %v9779
    %v9781 = vsel %vm9705, %v5432, 0.0
    %v9782 = vadd.f32 %v9780, %v9781
    %v9783 = vsel %vm9705, %v5502, 0.0
    %v9784 = vadd.f32 %v9782, %v9783
    %v9785 = vsel %vm9705, %v5572, 0.0
    %v9786 = vadd.f32 %v9784, %v9785
    %v9787 = vsel %vm9705, %v5642, 0.0
    %v9788 = vadd.f32 %v9786, %v9787
    %v9789 = vsel %vm9705, %v5712, 0.0
    %v9790 = vadd.f32 %v9788, %v9789
    %v9791 = vsel %vm9705, %v5782, 0.0
    %v9792 = vadd.f32 %v9790, %v9791
    %v9793 = vsel %vm9705, %v5852, 0.0
    %v9794 = vadd.f32 %v9792, %v9793
    %v9795 = vsel %vm9705, %v5922, 0.0
    %v9796 = vadd.f32 %v9794, %v9795
    %v9797 = vsel %vm9705, %v5992, 0.0
    %v9798 = vadd.f32 %v9796, %v9797
    %v9799 = vsel %vm9705, %v6062, 0.0
    %v9800 = vadd.f32 %v9798, %v9799
    %v9801 = vsel %vm9705, %v6132, 0.0
    %v9802 = vadd.f32 %v9800, %v9801
    %v9803 = vsel %vm9705, %v6202, 0.0
    %v9804 = vadd.f32 %v9802, %v9803
    %v9805 = vsel %vm9705, %v6272, 0.0
    %v9806 = vadd.f32 %v9804, %v9805
    %v9807 = vsel %vm9705, %v6342, 0.0
    %v9808 = vadd.f32 %v9806, %v9807
    %v9809 = vsel %vm9705, %v6412, 0.0
    %v9810 = vadd.f32 %v9808, %v9809
    %v9811 = vsel %vm9705, %v6482, 0.0
    %v9812 = vadd.f32 %v9810, %v9811
    %v9813 = vsel %vm9705, %v6552, 0.0
    %v9814 = vadd.f32 %v9812, %v9813
    %v9815 = vsel %vm9705, %v6622, 0.0
    %v9816 = vadd.f32 %v9814, %v9815
    %v9817 = vsel %vm9705, %v6692, 0.0
    %v9818 = vadd.f32 %v9816, %v9817
    %v9819 = vsel %vm9705, %v6762, 0.0
    %v9820 = vadd.f32 %v9818, %v9819
    %v9821 = vsel %vm9705, %v6832, 0.0
    %v9822 = vadd.f32 %v9820, %v9821
    %v9823 = vsel %vm9705, %v6902, 0.0
    %v9824 = vadd.f32 %v9822, %v9823
    %v9825 = vsel %vm9705, %v6972, 0.0
    %v9826 = vadd.f32 %v9824, %v9825
    %v9827 = vsel %vm9705, %v7042, 0.0
    %v9828 = vadd.f32 %v9826, %v9827
    %v9829 = vsel %vm9705, %v7112, 0.0
    %v9830 = vadd.f32 %v9828, %v9829
    %v9831 = vsel %vm9705, %v7182, 0.0
    %v9832 = vadd.f32 %v9830, %v9831
    %v9833 = vsel %vm9705, %v7252, 0.0
    %v9834 = vadd.f32 %v9832, %v9833
    %v9835 = vsel %vm9705, %v7322, 0.0
    %v9836 = vadd.f32 %v9834, %v9835
    %v9837 = vsel %vm9705, %v7392, 0.0
    %v9838 = vadd.f32 %v9836, %v9837
    %v9839 = vsel %vm9705, %v7462, 0.0
    %v9840 = vadd.f32 %v9838, %v9839
    %v9841 = vsel %vm9705, %v7532, 0.0
    %v9842 = vadd.f32 %v9840, %v9841
    %v9843 = vsel %vm9705, %v7602, 0.0
    %v9844 = vadd.f32 %v9842, %v9843
    %v9845 = vsel %vm9705, %v7672, 0.0
    %v9846 = vadd.f32 %v9844, %v9845
    %v9847 = vsel %vm9705, %v7742, 0.0
    %v9848 = vadd.f32 %v9846, %v9847
    %v9849 = vsel %vm9705, %v7812, 0.0
    %v9850 = vadd.f32 %v9848, %v9849
    %v9851 = vsel %vm9705, %v7882, 0.0
    %v9852 = vadd.f32 %v9850, %v9851
    %v9853 = vsel %vm9705, %v7952, 0.0
    %v9854 = vadd.f32 %v9852, %v9853
    %v9855 = vsel %vm9705, %v8022, 0.0
    %v9856 = vadd.f32 %v9854, %v9855
    %v9857 = vsel %vm9705, %v8092, 0.0
    %v9858 = vadd.f32 %v9856, %v9857
    %v9859 = vsel %vm9705, %v8162, 0.0
    %v9860 = vadd.f32 %v9858, %v9859
    %v9861 = vsel %vm9705, %v8232, 0.0
    %v9862 = vadd.f32 %v9860, %v9861
    %v9863 = vsel %vm9705, %v8302, 0.0
    %v9864 = vadd.f32 %v9862, %v9863
    %v9865 = vsel %vm9705, %v8372, 0.0
    %v9866 = vadd.f32 %v9864, %v9865
    %v9867 = vsel %vm9705, %v8442, 0.0
    %v9868 = vadd.f32 %v9866, %v9867
    %v9869 = vsel %vm9705, %v8512, 0.0
    %v9870 = vadd.f32 %v9868, %v9869
    %v9871 = vsel %vm9705, %v8582, 0.0
    %v9872 = vadd.f32 %v9870, %v9871
    %v9873 = vsel %vm9705, %v8652, 0.0
    %v9874 = vadd.f32 %v9872, %v9873
    %v9875 = vsel %vm9705, %v8722, 0.0
    %v9876 = vadd.f32 %v9874, %v9875
    %v9877 = vsel %vm9705, %v8792, 0.0
    %v9878 = vadd.f32 %v9876, %v9877
    %v9879 = vsel %vm9705, %v8862, 0.0
    %v9880 = vadd.f32 %v9878, %v9879
    %v9881 = vsel %vm9705, %v8932, 0.0
    %v9882 = vadd.f32 %v9880, %v9881
    %v9883 = vsel %vm9705, %v9002, 0.0
    %v9884 = vadd.f32 %v9882, %v9883
    %v9885 = vsel %vm9705, %v9072, 0.0
    %v9886 = vadd.f32 %v9884, %v9885
    %v9887 = vsel %vm9705, %v9142, 0.0
    %v9888 = vadd.f32 %v9886, %v9887
    %v9889 = vsel %vm9705, %v9212, 0.0
    %v9890 = vadd.f32 %v9888, %v9889
    %v9891 = vsel %vm9705, %v9282, 0.0
    %v9892 = vadd.f32 %v9890, %v9891
    %v9893 = vsel %vm9705, %v9352, 0.0
    %v9894 = vadd.f32 %v9892, %v9893
    %v9895 = vsel %vm9705, %v9422, 0.0
    %v9896 = vadd.f32 %v9894, %v9895
    %v9897 = vsel %vm9705, %v9492, 0.0
    %v9898 = vadd.f32 %v9896, %v9897
    %v9899 = vsel %vm9705, %v9562, 0.0
    %v9900 = vadd.f32 %v9898, %v9899
    %v9901 = vsel %vm9705, %v9632, 0.0
    %v9902 = vadd.f32 %v9900, %v9901
    %v9903 = vsel %vm9705, %v9702, 0.0
    %v9904 = vadd.f32 %v9902, %v9903
    %v9905 = vld [vmem:[%s3] sm:$0x1]
    %v9907 = vlaneseq
    %v9908 = vshrl.u32 %v9907, 7
    %v9909 = vsub.s32 0, %v9908
    %v9910 = vrot.slane %v9905, %v9909
    %v9912 = vadd.f32 %v9904, %v9910
    %v9913 = vmax.f32 %v9912, 0.0
    %v9914 = vld [vmem:[%s4] sm:$0xff]
    %v9915 = vld [vmem:[%s4 + $0x8] sm:$0xff]
    %v9916 = vld [vmem:[%s4 + $0x10] sm:$0xff]
    %v9917 = vld [vmem:[%s4 + $0x18] sm:$0xff]
    %v9918 = vld [vmem:[%s4 + $0x20] sm:$0xff]
    %v9919 = vld [vmem:[%s4 + $0x28] sm:$0xff]
    %v9920 = vld [vmem:[%s4 + $0x30] sm:$0xff]
    %v9921 = vld [vmem:[%s4 + $0x38] sm:$0xff]
    %v9922 = vld [vmem:[%s5] sm:$0x1]
    %v9924 = vlaneseq
    %v9925 = vshrl.u32 %v9924, 7
    %v9926 = vsub.s32 0, %v9925
    %v9927 = vrot.slane %v9922, %v9926
    %v9930 = vsel %vm9705, %v9913, 0
    %9932 = vmatprep.subr.mxu0 0.0
    %9933 = vmatpush1.msra.mxu0 0.0
    %9934 = vmatprep.subr.mxu0 0.0
    %9935 = vmatpush1.msra.mxu0 0.0
    %9936 = vmatprep.subr.mxu0 0.0
    %9937 = vmatpush1.msra.mxu0 0.0
    %9938 = vmatprep.subr.mxu0 0.0
    %9939 = vmatpush1.msra.mxu0 0.0
    %9940 = vmatprep.subr.mxu0 0.0
    %9941 = vmatpush1.msra.mxu0 0.0
    %9942 = vmatprep.subr.mxu0 0.0
    %9943 = vmatpush1.msra.mxu0 0.0
    %9944 = vmatprep.subr.mxu0 0.0
    %9945 = vmatpush1.msra.mxu0 0.0
    %9946 = vmatprep.subr.mxu0 0.0
    %9947 = vmatpush1.msra.mxu0 0.0
    %9948 = vmatprep.subr.mxu0 0.0
    %9949 = vmatpush1.msra.mxu0 %v9921
    %9950 = vmatprep.subr.mxu0 0.0
    %9951 = vmatpush1.msra.mxu0 %v9920
    %9952 = vmatprep.subr.mxu0 0.0
    %9953 = vmatpush1.msra.mxu0 %v9919
    %9954 = vmatprep.subr.mxu0 0.0
    %9955 = vmatpush1.msra.mxu0 %v9918
    %9956 = vmatprep.subr.mxu0 0.0
    %9957 = vmatpush1.msra.mxu0 %v9917
    %9958 = vmatprep.subr.mxu0 0.0
    %9959 = vmatpush1.msra.mxu0 %v9916
    %9960 = vmatprep.subr.mxu0 0.0
    %9961 = vmatpush1.msra.mxu0 %v9915
    %9962 = vmatprep.subr.mxu0 0.0
    %9963 = vmatpush1.msra.mxu0 %v9914
    %9964 = vmatprep.subr.mxu0 0.0
    %9965 = vmatpush2.msra.mxu0 0.0
    %9966 = vmatprep.subr.mxu0 0.0
    %9967 = vmatpush2.msra.mxu0 0.0
    %9968 = vmatprep.subr.mxu0 0.0
    %9969 = vmatpush2.msra.mxu0 0.0
    %9970 = vmatprep.subr.mxu0 0.0
    %9971 = vmatpush2.msra.mxu0 0.0
    %9972 = vmatprep.subr.mxu0 0.0
    %9973 = vmatpush2.msra.mxu0 0.0
    %9974 = vmatprep.subr.mxu0 0.0
    %9975 = vmatpush2.msra.mxu0 0.0
    %9976 = vmatprep.subr.mxu0 0.0
    %9977 = vmatpush2.msra.mxu0 0.0
    %9978 = vmatprep.subr.mxu0 0.0
    %9979 = vmatpush2.msra.mxu0 0.0
    %9980 = vmatprep.subr.mxu0 0.0
    %9981 = vmatpush2.msra.mxu0 0.0
    %9982 = vmatprep.subr.mxu0 0.0
    %9983 = vmatpush2.msra.mxu0 0.0
    %9984 = vmatprep.subr.mxu0 0.0
    %9985 = vmatpush2.msra.mxu0 0.0
    %9986 = vmatprep.subr.mxu0 0.0
    %9987 = vmatpush2.msra.mxu0 0.0
    %9988 = vmatprep.subr.mxu0 0.0
    %9989 = vmatpush2.msra.mxu0 0.0
    %9990 = vmatprep.subr.mxu0 0.0
    %9991 = vmatpush2.msra.mxu0 0.0
    %9992 = vmatprep.subr.mxu0 0.0
    %9993 = vmatpush2.msra.mxu0 0.0
    %9994 = vmatprep.subr.mxu0 0.0
    %9995 = vmatpush2.msra.mxu0 0.0
    %9996 = vmatprep.mubr.f32.mxu0 0.0
    %9997 = vmatmul.mubr.f32.gmra.mxu0 %v9930
    %v9998 = vpop.f32.mrf.mxu0
    %v9999 = vadd.f32 %v9927, %v9998
    %v10000 = vpop.f32.mrf.mxu0
    %10001 = vdwg.mxu0
    %v10002 = vxor.u32 %v9999, 2147483648
    %v10003 = vmul.f32 %v10002, 1.442695
    %v10004 = vpow.pop %v10003
    %v10005 = vadd.f32 %v10004, 1.0
    %v10006 = vrcp.pop %v10005
    %v10007 = vmul.f32 1.0, %v10006
    %10008 = vst [vmem:[#allocation2] sm:$0xff] %v10007
    // Predicated region
    $region26: #{_lambda_.1} parent=1 // pred_check
      _
    $region27: #{_lambda_.1} parent=1 // pred_check_branch
      %10010 = sbr.rel (0) target = $region29
    $region28: #{_lambda_.1} parent=1 // pred_region
      %s10012 = ssub.s32 128, 128
      %10013 = vsyncadd [#allocation3], %s10012
      %s10015 = sshll.u32 [#allocation2], 4
      %s10016 = int_to_ptr.vmem [resolvable:$true] %s10015
      %10018 = dma.vmem_to_hbm [thread:$0]  %s10016, 128, %s6, [#allocation3]
    $region29: #{_lambda_.1} parent=1 // pred_fallthru
      _
    // Predicated region
    $region30: #{_lambda_.1} parent=1 // pred_check
      _
    $region31: #{_lambda_.1} parent=1 // pred_check_branch
      %10020 = sbr.rel (0) target = $region33
    $region32: #{_lambda_.1} parent=1 // pred_region
      %10021 = dma.done [#allocation3], 128
    $region33: #{_lambda_.1} parent=1 // pred_fallthru
      _
    %10022 = vsyncpa [#allocation3], 1

</llo_original>
